<compile_context>
chip_gen: v7x
topology: tpu7x:2x2x1
jax: 0.10.0
libtpu: 0.0.40
codegen_flags: <defaults>
</compile_context>

<pallas_src>
import jax
import jax.numpy as jnp
from jax import lax
from jax.experimental import pallas as pl
from jax.experimental.pallas import tpu as pltpu

C1 = 128    # conv1 out channels
C2 = 1024   # conv2 out channels


def _make_kernel(n_tile, pad):
    """Kernel factory; n_tile / pad are static (trace-time) Python ints."""

    def kernel(x_ref, w1_ref, b1_ref, w2_ref, b2_ref, pf_ref, g_ref):
        # x_ref : (D, Nt) f32      w1_ref: (C1, D)  bf16   b1_ref: (C1, 1) f32
        # w2_ref: (C2, C1) bf16    b2_ref: (C2, 1) f32
        # pf_ref: (C1, Nt) f32     g_ref : (C2, 1) f32  (resident across n)
        n_idx = pl.program_id(1)
        n_last = pl.num_programs(1) - 1

        # conv1 (1x1) + folded BN1 + ReLU -> pointfeat tile (bf16 MXU, f32 acc)
        xb = x_ref[...].astype(jnp.bfloat16)                          # (D, Nt)
        h1 = jnp.dot(w1_ref[...], xb, preferred_element_type=jnp.float32)
        h1 = jnp.maximum(h1 + b1_ref[...], 0.0)                       # (C1, Nt)
        pf_ref[...] = h1.astype(pf_ref.dtype)

        # conv2 (1x1) + folded BN2 + ReLU
        h2 = jnp.dot(w2_ref[...], h1.astype(jnp.bfloat16),
                     preferred_element_type=jnp.float32)
        h2 = jnp.maximum(h2 + b2_ref[...], 0.0)                       # (C2, Nt)

        def update(step):
            # Fold this tile's per-channel max into the resident output block.
            @pl.when(n_idx == 0)
            def _():
                g_ref[...] = step.astype(g_ref.dtype)

            @pl.when(n_idx > 0)
            def _():
                g_ref[...] = jnp.maximum(g_ref[...], step.astype(g_ref.dtype))

        if pad:  # static: emitted only when N was padded up to a tile
            # Only the last tile contains padded lanes; mask them there only.
            @pl.when(n_idx == n_last)
            def _():
                lane = lax.broadcasted_iota(jnp.int32, h2.shape, 1)
                h2m = jnp.where(lane < (n_tile - pad), h2, -jnp.inf)
                update(jnp.max(h2m, axis=1, keepdims=True))

            @pl.when(n_idx < n_last)
            def _():
                update(jnp.max(h2, axis=1, keepdims=True))
        else:
            update(jnp.max(h2, axis=1, keepdims=True))

    return kernel


def _fold_bn(w, b, gamma, beta, mean, var, eps=1e-5):
    """Fold conv bias + inference-mode BatchNorm1d into an effective W, b."""
    scale = gamma / jnp.sqrt(var + eps)                       # (O,)
    w_eff = w * scale[:, None]                                # (O, I)
    b_eff = (b - mean) * scale + beta                         # (O,)
    return w_eff.astype(jnp.float32), b_eff[:, None].astype(jnp.float32)


def _round_up(x, m):
    return -(-x // m) * m


def _choose_tile(n, cap):
    """Largest multiple-of-128 tile <= cap that divides n (pad == 0), else cap."""
    cap = max(128, min(cap, _round_up(n, 128)))
    cap -= cap % 128
    for t in range(cap, 0, -128):
        if n % t == 0:
            return t
    return cap


def pointnet_encoder(x, params, *, n_tile=2048, concat=True):
    B, D, N = x.shape

    w1e, b1e = _fold_bn(params["w1"], params["b1"], params["g1"],
                        params["be1"], params["m1"], params["v1"])
    w2e, b2e = _fold_bn(params["w2"], params["b2"], params["g2"],
                        params["be2"], params["m2"], params["v2"])
    # bf16 MXU operands (fold in f32 first, then cast).
    w1b = w1e.astype(jnp.bfloat16)
    w2b = w2e.astype(jnp.bfloat16)

    # N tiling: lane-dense tiles (multiple of 128); prefer a tile that divides
    # N so pad == 0 (no in-kernel mask, no wrapper slice).
    n_tile = _choose_tile(N, n_tile)
    n_padded = _round_up(N, n_tile)
    pad = n_padded - N
    if pad:
        x = jnp.pad(x, ((0, 0), (0, 0), (0, pad)))
    n_steps = n_padded // n_tile

    pf, g = pl.pallas_call(
        _make_kernel(n_tile, pad),
        out_shape=(
            jax.ShapeDtypeStruct((B, C1, n_padded), jnp.float32),   # pointfeat
            jax.ShapeDtypeStruct((B, C2, 1), jnp.float32),          # global max
        ),
        grid_spec=pltpu.PrefetchScalarGridSpec(
            num_scalar_prefetch=0,
            grid=(B, n_steps),                                # N (reduction) last
            in_specs=[
                pl.BlockSpec((None, D, n_tile), lambda b, n: (b, 0, n)),  # x tile
                pl.BlockSpec((C1, D), lambda b, n: (0, 0)),               # W1 bf16
                pl.BlockSpec((C1, 1), lambda b, n: (0, 0)),               # b1
                pl.BlockSpec((C2, C1), lambda b, n: (0, 0)),              # W2 bf16
                pl.BlockSpec((C2, 1), lambda b, n: (0, 0)),               # b2
            ],
            out_specs=[
                pl.BlockSpec((None, C1, n_tile), lambda b, n: (b, 0, n)),
                pl.BlockSpec((None, C2, 1), lambda b, n: (b, 0, 0)),      # resident
            ],
        ),
        compiler_params=pltpu.CompilerParams(
            dimension_semantics=("parallel", "arbitrary"),
            vmem_limit_bytes=32 * 1024 * 1024,
        ),
    )(x, w1b, b1e, w2b, b2e)

    if pad:
        pf = pf[:, :, :N]
    if not concat:
        # Cheaper interface for downstream 1x1-conv consumers: fold g as an
        # N-independent rank-1 term instead of materializing the broadcast.
        return g, pf
    # torch: x.view(-1,1024,1).repeat(1,1,N); cat([x, pointfeat], 1)
    g_tiled = jnp.broadcast_to(g, (B, C2, N))
    return jnp.concatenate([g_tiled, pf], axis=1)


def pointnet_encoder_ref(x, params):
    """Pure-JAX reference mirroring the kernel numerics (eval-mode BN, bf16 MXU)."""
    w1e, b1e = _fold_bn(params["w1"], params["b1"], params["g1"],
                        params["be1"], params["m1"], params["v1"])
    w2e, b2e = _fold_bn(params["w2"], params["b2"], params["g2"],
                        params["be2"], params["m2"], params["v2"])
    w1b = w1e.astype(jnp.bfloat16)
    w2b = w2e.astype(jnp.bfloat16)

    h1 = jax.nn.relu(jnp.einsum("od,bdn->bon", w1b, x.astype(jnp.bfloat16),
                                preferred_element_type=jnp.float32) + b1e[None])
    h2 = jax.nn.relu(jnp.einsum("oc,bcn->bon", w2b, h1.astype(jnp.bfloat16),
                                preferred_element_type=jnp.float32) + b2e[None])
    g = jnp.max(h2, axis=2, keepdims=True)                              # (B,C2,1)
    g = jnp.broadcast_to(g, (x.shape[0], C2, x.shape[2]))
    return jnp.concatenate([g, h1], axis=1)


def _make_params(key, D):
    ks = jax.random.split(key, 10)
    return {
        # Conv1d(in,128,1) weight (128, in, 1) -> squeeze kernel dim; bias (128,)
        "w1": 0.1 * jax.random.normal(ks[0], (C1, D), dtype=jnp.float32),
        "b1": 0.1 * jax.random.normal(ks[1], (C1,), dtype=jnp.float32),
        # Conv1d(128,1024,1) weight (1024, 128, 1); bias (1024,)
        "w2": 0.05 * jax.random.normal(ks[2], (C2, C1), dtype=jnp.float32),
        "b2": 0.05 * jax.random.normal(ks[3], (C2,), dtype=jnp.float32),
        # BatchNorm1d(128): gamma/beta/running_mean/running_var
        "g1": 1.0 + 0.1 * jax.random.normal(ks[4], (C1,), dtype=jnp.float32),
        "be1": 0.1 * jax.random.normal(ks[5], (C1,), dtype=jnp.float32),
        "m1": 0.1 * jax.random.normal(ks[6], (C1,), dtype=jnp.float32),
        "v1": 1.0 + 0.1 * jax.random.uniform(ks[7], (C1,), dtype=jnp.float32),
        # BatchNorm1d(1024)
        "g2": 1.0 + 0.1 * jax.random.normal(ks[8], (C2,), dtype=jnp.float32),
        "be2": 0.1 * jax.random.normal(ks[9], (C2,), dtype=jnp.float32),
        "m2": jnp.zeros((C2,), dtype=jnp.float32),
        "v2": jnp.ones((C2,), dtype=jnp.float32),
    }


def _check(x, params, **kw):
    out = jax.block_until_ready(pointnet_encoder(x, params, **kw))
    ref = jax.block_until_ready(pointnet_encoder_ref(x, params))
    assert out.shape == ref.shape, (out.shape, ref.shape)
    err = float(jnp.max(jnp.abs(out - ref)))
    assert jnp.allclose(out, ref, atol=5e-3, rtol=5e-3), err


if __name__ == "__main__":
    key = jax.random.PRNGKey(0)
    B, D = 2, 64                      # in_channel=64 (module default)
    kx, kp = jax.random.split(key)
    params = _make_params(kp, D)

    # 1) N divisible by 128: single 1024-wide tile, no pad, no mask.
    x = jax.random.normal(kx, (B, D, 1024), dtype=jnp.float32)
    _check(x, params)

    # 2) Forced smaller tile: exercises the multi-step running-max path.
    _check(x, params, n_tile=512)

    # 3) N not a multiple of the tile: exercises the pad + last-tile mask path.
    x2 = jax.random.normal(jax.random.fold_in(kx, 1), (B, D, 1000),
                           dtype=jnp.float32)
    _check(x2, params)

    print("KERNEL_OK")
</pallas_src>

<mosaic_0001>
module attributes {stable_mosaic.version = 11 : i64} {
  func.func @kernel(%arg0: i32, %arg1: i32, %arg2: memref<1x64x1024xf32, #tpu.memory_space<vmem>>, %arg3: memref<128x64xbf16, #tpu.memory_space<vmem>>, %arg4: memref<128x1xf32, #tpu.memory_space<vmem>>, %arg5: memref<1024x128xbf16, #tpu.memory_space<vmem>>, %arg6: memref<1024x1xf32, #tpu.memory_space<vmem>>, %arg7: memref<1x128x1024xf32, #tpu.memory_space<vmem>>, %arg8: memref<1x1024x1xf32, #tpu.memory_space<vmem>>) attributes {dimension_semantics = [#tpu.dimension_semantics<parallel>, #tpu.dimension_semantics<arbitrary>], iteration_bounds = array<i64: 2, 1>, scalar_prefetch = 0 : i64, scratch_operands = 0 : i64, tpu.core_type = #tpu.core_type<tc>, window_params = [{transform_indices = @transform_0, window_bounds = array<i64: 1, 64, 1024>}, {pipeline_mode = #tpu.pipeline_mode<synchronous>, transform_indices = @transform_1, window_bounds = array<i64: 128, 64>}, {pipeline_mode = #tpu.pipeline_mode<synchronous>, transform_indices = @transform_2, window_bounds = array<i64: 128, 1>}, {pipeline_mode = #tpu.pipeline_mode<synchronous>, transform_indices = @transform_3, window_bounds = array<i64: 1024, 128>}, {pipeline_mode = #tpu.pipeline_mode<synchronous>, transform_indices = @transform_4, window_bounds = array<i64: 1024, 1>}, {transform_indices = @transform_5, window_bounds = array<i64: 1, 128, 1024>}, {transform_indices = @transform_6, window_bounds = array<i64: 1, 1024, 1>}]} {
    %c0 = arith.constant 0 : index
    %c0_0 = arith.constant 0 : index
    %c0_1 = arith.constant 0 : index
    %0 = vector.load %arg2[%c0, %c0_0, %c0_1] : memref<1x64x1024xf32, #tpu.memory_space<vmem>>, vector<1x64x1024xf32>
    %1 = vector.shape_cast %0 : vector<1x64x1024xf32> to vector<64x1024xf32>
    %2 = arith.truncf %1 : vector<64x1024xf32> to vector<64x1024xbf16>
    %c0_2 = arith.constant 0 : index
    %c0_3 = arith.constant 0 : index
    %3 = vector.load %arg3[%c0_2, %c0_3] : memref<128x64xbf16, #tpu.memory_space<vmem>>, vector<128x64xbf16>
    %cst = arith.constant dense<0.000000e+00> : vector<128x1024xf32>
    %4 = tpu.matmul %3, %2, %cst {dimension_numbers = #tpu.dot_dimension_numbers<[1], [0], [0], [1], [0, 0, 1, 1], [], []>} : vector<128x64xbf16>, vector<64x1024xbf16>, vector<128x1024xf32> -> vector<128x1024xf32>
    %c0_4 = arith.constant 0 : index
    %c0_5 = arith.constant 0 : index
    %5 = vector.load %arg4[%c0_4, %c0_5] : memref<128x1xf32, #tpu.memory_space<vmem>>, vector<128x1xf32>
    %6 = vector.broadcast %5 : vector<128x1xf32> to vector<128x1024xf32>
    %7 = arith.addf %4, %6 : vector<128x1024xf32>
    %cst_6 = arith.constant 0.000000e+00 : f32
    %8 = vector.broadcast %cst_6 : f32 to vector<128x1024xf32>
    %9 = arith.maximumf %7, %8 : vector<128x1024xf32>
    %c0_7 = arith.constant 0 : index
    %c0_8 = arith.constant 0 : index
    %c0_9 = arith.constant 0 : index
    %10 = vector.load %arg7[%c0_7, %c0_8, %c0_9] : memref<1x128x1024xf32, #tpu.memory_space<vmem>>, vector<1x128x1024xf32>
    %11 = vector.shape_cast %10 : vector<1x128x1024xf32> to vector<128x1024xf32>
    %12 = vector.shape_cast %9 : vector<128x1024xf32> to vector<1x128x1024xf32>
    tpu.vector_store %arg7[%c0_7, %c0_8, %c0_9], %12 {strides = array<i32>} : memref<1x128x1024xf32, #tpu.memory_space<vmem>>, vector<1x128x1024xf32>,
    %c0_10 = arith.constant 0 : index
    %c0_11 = arith.constant 0 : index
    %13 = vector.load %arg5[%c0_10, %c0_11] : memref<1024x128xbf16, #tpu.memory_space<vmem>>, vector<1024x128xbf16>
    %14 = arith.truncf %9 : vector<128x1024xf32> to vector<128x1024xbf16>
    %cst_12 = arith.constant dense<0.000000e+00> : vector<1024x1024xf32>
    %15 = tpu.matmul %13, %14, %cst_12 {dimension_numbers = #tpu.dot_dimension_numbers<[1], [0], [0], [1], [0, 0, 1, 1], [], []>} : vector<1024x128xbf16>, vector<128x1024xbf16>, vector<1024x1024xf32> -> vector<1024x1024xf32>
    %c0_13 = arith.constant 0 : index
    %c0_14 = arith.constant 0 : index
    %16 = vector.load %arg6[%c0_13, %c0_14] : memref<1024x1xf32, #tpu.memory_space<vmem>>, vector<1024x1xf32>
    %17 = vector.broadcast %16 : vector<1024x1xf32> to vector<1024x1024xf32>
    %18 = arith.addf %15, %17 : vector<1024x1024xf32>
    %cst_15 = arith.constant 0.000000e+00 : f32
    %19 = vector.broadcast %cst_15 : f32 to vector<1024x1024xf32>
    %20 = arith.maximumf %18, %19 : vector<1024x1024xf32>
    %cst_16 = arith.constant dense<0xFF800000> : vector<1024xf32>
    %21 = vector.multi_reduction <maximumf>, %20, %cst_16 [1] : vector<1024x1024xf32> to vector<1024xf32>
    %22 = vector.shape_cast %21 : vector<1024xf32> to vector<1024x1xf32>
    %c0_i32 = arith.constant 0 : i32
    %23 = arith.cmpi eq, %arg1, %c0_i32 : i32
    %24 = arith.extui %23 : i1 to i32
    %c0_i32_17 = arith.constant 0 : i32
    %25 = arith.cmpi ne, %24, %c0_i32_17 : i32
    scf.if %25 {
      %c0_20 = arith.constant 0 : index
      %c0_21 = arith.constant 0 : index
      %c0_22 = arith.constant 0 : index
      %29 = vector.load %arg8[%c0_20, %c0_21, %c0_22] : memref<1x1024x1xf32, #tpu.memory_space<vmem>>, vector<1x1024x1xf32>
      %30 = vector.shape_cast %29 : vector<1x1024x1xf32> to vector<1024x1xf32>
      %31 = vector.shape_cast %22 : vector<1024x1xf32> to vector<1x1024x1xf32>
      tpu.vector_store %arg8[%c0_20, %c0_21, %c0_22], %31 {strides = array<i32>} : memref<1x1024x1xf32, #tpu.memory_space<vmem>>, vector<1x1024x1xf32>,
    } else {
    }
    %c0_i32_18 = arith.constant 0 : i32
    %26 = arith.cmpi sgt, %arg1, %c0_i32_18 : i32
    %27 = arith.extui %26 : i1 to i32
    %c0_i32_19 = arith.constant 0 : i32
    %28 = arith.cmpi ne, %27, %c0_i32_19 : i32
    scf.if %28 {
      %c0_20 = arith.constant 0 : index
      %c0_21 = arith.constant 0 : index
      %c0_22 = arith.constant 0 : index
      %29 = vector.load %arg8[%c0_20, %c0_21, %c0_22] : memref<1x1024x1xf32, #tpu.memory_space<vmem>>, vector<1x1024x1xf32>
      %30 = vector.shape_cast %29 : vector<1x1024x1xf32> to vector<1024x1xf32>
      %31 = arith.maximumf %30, %22 : vector<1024x1xf32>
      %c0_23 = arith.constant 0 : index
      %c0_24 = arith.constant 0 : index
      %c0_25 = arith.constant 0 : index
      %32 = vector.load %arg8[%c0_23, %c0_24, %c0_25] : memref<1x1024x1xf32, #tpu.memory_space<vmem>>, vector<1x1024x1xf32>
      %33 = vector.shape_cast %32 : vector<1x1024x1xf32> to vector<1024x1xf32>
      %34 = vector.shape_cast %31 : vector<1024x1xf32> to vector<1x1024x1xf32>
      tpu.vector_store %arg8[%c0_23, %c0_24, %c0_25], %34 {strides = array<i32>} : memref<1x1024x1xf32, #tpu.memory_space<vmem>>, vector<1x1024x1xf32>,
    } else {
    }
    return
  }
  func.func @transform_0(%arg0: i32, %arg1: i32) -> (i32, i32, i32) {
    %c0_i32 = arith.constant 0 : i32
    %c0_i32_0 = arith.constant 0 : i32
    return %arg0, %c0_i32, %arg1 : i32, i32, i32
  }
  func.func @transform_1(%arg0: i32, %arg1: i32) -> (i32, i32) {
    %c0_i32 = arith.constant 0 : i32
    %c0_i32_0 = arith.constant 0 : i32
    %c0_i32_1 = arith.constant 0 : i32
    return %c0_i32, %c0_i32_0 : i32, i32
  }
  func.func @transform_2(%arg0: i32, %arg1: i32) -> (i32, i32) {
    %c0_i32 = arith.constant 0 : i32
    %c0_i32_0 = arith.constant 0 : i32
    %c0_i32_1 = arith.constant 0 : i32
    return %c0_i32, %c0_i32_0 : i32, i32
  }
  func.func @transform_3(%arg0: i32, %arg1: i32) -> (i32, i32) {
    %c0_i32 = arith.constant 0 : i32
    %c0_i32_0 = arith.constant 0 : i32
    %c0_i32_1 = arith.constant 0 : i32
    return %c0_i32, %c0_i32_0 : i32, i32
  }
  func.func @transform_4(%arg0: i32, %arg1: i32) -> (i32, i32) {
    %c0_i32 = arith.constant 0 : i32
    %c0_i32_0 = arith.constant 0 : i32
    %c0_i32_1 = arith.constant 0 : i32
    return %c0_i32, %c0_i32_0 : i32, i32
  }
  func.func @transform_5(%arg0: i32, %arg1: i32) -> (i32, i32, i32) {
    %c0_i32 = arith.constant 0 : i32
    %c0_i32_0 = arith.constant 0 : i32
    return %arg0, %c0_i32, %arg1 : i32, i32, i32
  }
  func.func @transform_6(%arg0: i32, %arg1: i32) -> (i32, i32, i32) {
    %c0_i32 = arith.constant 0 : i32
    %c0_i32_0 = arith.constant 0 : i32
    %c0_i32_1 = arith.constant 0 : i32
    return %arg0, %c0_i32, %c0_i32_0 : i32, i32, i32
  }
}

</mosaic_0001>

<llo_original>
// kernel: tpu_custom_call.1
$region0: #{tpu_custom_call.1}
  #allocation0 [shape = 'u32[]', space=smem, size = 0x4, offset = 0x4, fixed_abs, tag = 'smem constant byte address 0x4 - core index']
  #allocation1 [shape = 'u32[144,128]{1,0:T(1,128)}', space=vmem, size = 0x12000, scoped, tag = 'internal scratch']
  %s0 = inlined_call_operand.vmem [shape: f32[2,64,1024], index: 0, kind: input, shape index: {}]
  %s1 = inlined_call_operand.vmem [shape: bf16[128,64], index: 1, kind: input, shape index: {}]
  %s2 = inlined_call_operand.vmem [shape: f32[128,1], index: 2, kind: input, shape index: {}]
  %s3 = inlined_call_operand.hbm [shape: bf16[1024,128], index: 3, kind: input, shape index: {}]
  %s4 = inlined_call_operand.vmem [shape: f32[1024,1], index: 4, kind: input, shape index: {}]
  %s5 = inlined_call_operand.hbm [shape: f32[2,128,1024], index: 5, kind: output, shape index: {0}]
  %s6 = inlined_call_operand.vmem [shape: f32[2,1024,1], index: 6, kind: output, shape index: {1}]
  %7 = xla_tuple %s5, %s6
  %s8 = sld [smem:[#allocation0]]
  $region73: #{tpu_custom_call.1} parent=0
    _
  %s10 = ssub.s32 1, %s8
  %s11 = scalar_select 0, %s10, %s8
  $region1: #{tpu_custom_call.1} parent=0
    #allocation2 [shape = 'u8[262144]{0}', space=vmem, size = 0x40000, scoped, tag = 'input window, operand 3, single buffered']
    #allocation3 [shape = 's32[2]{0}', space=sflag, size = 0x8, scoped, tag = 'scoped memory for tpu_custom_call.1']
    #allocation4 [shape = 's32[2]{0}', space=sflag, size = 0x8, scoped, tag = 'scoped memory for tpu_custom_call.1']
    #allocation5 [shape = 'u8[1048576]{0}', space=vmem, size = 0x100000, scoped, tag = 'output window, operand 0']
    %12 = vsyncpa [#allocation3], 0
    %13 = vsyncpa [#allocation4], 0
    %s14 = scalar_lea.sflag [#allocation4], 1
    %15 = vsyncpa %s14, 0
    loop: start=0, step=1, limit=4
    $region2: #{tpu_custom_call.1} parent=1 // loop_pre_header
      _
    $region3: #{tpu_custom_call.1} parent=1 // loop_header
      %s17 = sphi 0, %s21
      %p18 = scmp.ge.s32.totalorder %s17, 4
      %s24 = sphi 0, %s36
      %s25 = sphi 0, %s32
      %s26 = sphi 0, %s24
      %s27 = sphi 0, %s25
      %s28 = sphi 0, %s26
      %s29 = sphi 0, %s27
      %s41 = sphi 0, %s43
      %s44 = sphi 0, %s41
      %s45 = sphi 0, %s44
      %s61 = sphi 0, %s45
      %s65 = sphi 0, %s65
      %s67 = sphi 0, %s65
      %s68 = sphi 0, %s67
      %s82 = sphi 0, %s68
      %s86 = sphi 0, %s86
      %s88 = sphi 0, %s86
      %s89 = sphi 0, %s88
      %s103 = sphi 0, %s89
      %s107 = sphi 0, %s107
      %s109 = sphi 0, %s107
      %s110 = sphi 0, %s109
      %s124 = sphi 0, %s110
      %s128 = sphi 0, %s128
      %s130 = sphi 0, %s128
      %s131 = sphi 0, %s130
      %s145 = sphi 0, %s131
      %s153 = sphi 0, %s155
      %s156 = sphi 0, %s153
      %s157 = sphi 0, %s156
      %s173 = sphi 0, %s157
      %s179 = sphi 0, %s181
      %s182 = sphi 0, %s179
      %s183 = sphi 0, %s182
      %s199 = sphi 0, %s183
    $region4: #{tpu_custom_call.1} parent=1 // loop_header_branch
      %20 = sbr.rel (%p18) target = $region8
    $region5: #{tpu_custom_call.1} parent=1 // loop_body
      %s22 = ssub.s32 %s17, 1
      %s23 = ssub.s32 %s17, 2
      %s30 = sadd.s32 1, %s25
      %p31 = scmp.ge.s32.totalorder %s30, 1
      %s32 = scalar_select %p31, 0, %s30
      %s33 = sadd.s32 1, %s24
      %s34 = scalar_select %p31, %s33, %s24
      %p35 = scmp.ge.s32.totalorder %s34, 2
      %s36 = scalar_select %p35, 0, %s34
      %s37 = ssub.s32 %s24, %s36
      %s38 = ssub.s32 %s25, %s32
      %s39 = sor.u32 %s37, %s38
      %p40 = scmp.eq.s32.totalorder %s39, 0
      %s42 = sadd.s32 %s41, 1
      %s43 = scalar_select %p40, %s41, %s42
      %p46 = pneg %p40
      %p47 = scmp.eq.s32.totalorder %s17, 1
      %p48 = por %p46, %p47
      %p49 = scmp.ne.s32.totalorder %s41, %s44
      %p50 = scmp.eq.s32.totalorder %s17, 0
      %p51 = por %p49, %p50
      %p52 = scmp.ne.s32.totalorder %s41, %s44
      %p53 = scmp.eq.s32.totalorder %s22, 1
      %p54 = por %p52, %p53
      %p55 = scmp.ne.s32.totalorder %s44, %s45
      %p56 = scmp.eq.s32.totalorder %s22, 0
      %p57 = por %p55, %p56
      %p58 = scmp.ne.s32.totalorder %s44, %s45
      %p59 = scmp.eq.s32.totalorder %s23, 1
      %p60 = por %p58, %p59
      %p62 = scmp.ne.s32.totalorder %s45, %s61
      %p63 = scmp.eq.s32.totalorder %s23, 0
      %p64 = por %p62, %p63
      %s66 = sadd.s32 %s65, 1
      %p69 = scmp.eq.s32.totalorder %s17, 1
      %p70 = scmp.ne.s32.totalorder %s65, %s67
      %p71 = scmp.eq.s32.totalorder %s17, 0
      %p72 = por %p70, %p71
      %p73 = scmp.ne.s32.totalorder %s65, %s67
      %p74 = scmp.eq.s32.totalorder %s22, 1
      %p75 = por %p73, %p74
      %p76 = scmp.ne.s32.totalorder %s67, %s68
      %p77 = scmp.eq.s32.totalorder %s22, 0
      %p78 = por %p76, %p77
      %p79 = scmp.ne.s32.totalorder %s67, %s68
      %p80 = scmp.eq.s32.totalorder %s23, 1
      %p81 = por %p79, %p80
      %p83 = scmp.ne.s32.totalorder %s68, %s82
      %p84 = scmp.eq.s32.totalorder %s23, 0
      %p85 = por %p83, %p84
      %s87 = sadd.s32 %s86, 1
      %p90 = scmp.eq.s32.totalorder %s17, 1
      %p91 = scmp.ne.s32.totalorder %s86, %s88
      %p92 = scmp.eq.s32.totalorder %s17, 0
      %p93 = por %p91, %p92
      %p94 = scmp.ne.s32.totalorder %s86, %s88
      %p95 = scmp.eq.s32.totalorder %s22, 1
      %p96 = por %p94, %p95
      %p97 = scmp.ne.s32.totalorder %s88, %s89
      %p98 = scmp.eq.s32.totalorder %s22, 0
      %p99 = por %p97, %p98
      %p100 = scmp.ne.s32.totalorder %s88, %s89
      %p101 = scmp.eq.s32.totalorder %s23, 1
      %p102 = por %p100, %p101
      %p104 = scmp.ne.s32.totalorder %s89, %s103
      %p105 = scmp.eq.s32.totalorder %s23, 0
      %p106 = por %p104, %p105
      %s108 = sadd.s32 %s107, 1
      %p111 = scmp.eq.s32.totalorder %s17, 1
      %p112 = scmp.ne.s32.totalorder %s107, %s109
      %p113 = scmp.eq.s32.totalorder %s17, 0
      %p114 = por %p112, %p113
      %p115 = scmp.ne.s32.totalorder %s107, %s109
      %p116 = scmp.eq.s32.totalorder %s22, 1
      %p117 = por %p115, %p116
      %p118 = scmp.ne.s32.totalorder %s109, %s110
      %p119 = scmp.eq.s32.totalorder %s22, 0
      %p120 = por %p118, %p119
      %p121 = scmp.ne.s32.totalorder %s109, %s110
      %p122 = scmp.eq.s32.totalorder %s23, 1
      %p123 = por %p121, %p122
      %p125 = scmp.ne.s32.totalorder %s110, %s124
      %p126 = scmp.eq.s32.totalorder %s23, 0
      %p127 = por %p125, %p126
      %s129 = sadd.s32 %s128, 1
      %p132 = scmp.eq.s32.totalorder %s17, 1
      %p133 = scmp.ne.s32.totalorder %s128, %s130
      %p134 = scmp.eq.s32.totalorder %s17, 0
      %p135 = por %p133, %p134
      %p136 = scmp.ne.s32.totalorder %s128, %s130
      %p137 = scmp.eq.s32.totalorder %s22, 1
      %p138 = por %p136, %p137
      %p139 = scmp.ne.s32.totalorder %s130, %s131
      %p140 = scmp.eq.s32.totalorder %s22, 0
      %p141 = por %p139, %p140
      %p142 = scmp.ne.s32.totalorder %s130, %s131
      %p143 = scmp.eq.s32.totalorder %s23, 1
      %p144 = por %p142, %p143
      %p146 = scmp.ne.s32.totalorder %s131, %s145
      %p147 = scmp.eq.s32.totalorder %s23, 0
      %p148 = por %p146, %p147
      %s149 = ssub.s32 %s24, %s36
      %s150 = ssub.s32 %s25, %s32
      %s151 = sor.u32 %s149, %s150
      %p152 = scmp.eq.s32.totalorder %s151, 0
      %s154 = sadd.s32 %s153, 1
      %s155 = scalar_select %p152, %s153, %s154
      %p158 = pneg %p152
      %p159 = scmp.eq.s32.totalorder %s17, 1
      %p160 = por %p158, %p159
      %p161 = scmp.ne.s32.totalorder %s153, %s156
      %p162 = scmp.eq.s32.totalorder %s17, 0
      %p163 = por %p161, %p162
      %p164 = scmp.ne.s32.totalorder %s153, %s156
      %p165 = scmp.eq.s32.totalorder %s22, 1
      %p166 = por %p164, %p165
      %p167 = scmp.ne.s32.totalorder %s156, %s157
      %p168 = scmp.eq.s32.totalorder %s22, 0
      %p169 = por %p167, %p168
      %p170 = scmp.ne.s32.totalorder %s156, %s157
      %p171 = scmp.eq.s32.totalorder %s23, 1
      %p172 = por %p170, %p171
      %p174 = scmp.ne.s32.totalorder %s157, %s173
      %p175 = scmp.eq.s32.totalorder %s23, 0
      %p176 = por %p174, %p175
      %s177 = ssub.s32 %s24, %s36
      %p178 = scmp.eq.s32.totalorder %s177, 0
      %s180 = sadd.s32 %s179, 1
      %s181 = scalar_select %p178, %s179, %s180
      %p184 = pneg %p178
      %p185 = scmp.eq.s32.totalorder %s17, 1
      %p186 = por %p184, %p185
      %p187 = scmp.ne.s32.totalorder %s179, %s182
      %p188 = scmp.eq.s32.totalorder %s17, 0
      %p189 = por %p187, %p188
      %p190 = scmp.ne.s32.totalorder %s179, %s182
      %p191 = scmp.eq.s32.totalorder %s22, 1
      %p192 = por %p190, %p191
      %p193 = scmp.ne.s32.totalorder %s182, %s183
      %p194 = scmp.eq.s32.totalorder %s22, 0
      %p195 = por %p193, %p194
      %p196 = scmp.ne.s32.totalorder %s182, %s183
      %p197 = scmp.eq.s32.totalorder %s23, 1
      %p198 = por %p196, %p197
      %p200 = scmp.ne.s32.totalorder %s183, %s199
      %p201 = scmp.eq.s32.totalorder %s23, 0
      %p202 = por %p200, %p201
      %p203 = scmp.le.s32.totalorder 1, %s17
      %p204 = scmp.lt.s32.totalorder %s17, 3
      %p205 = pnand %p203, %p204
      %p206 = pneg %p205
      // Predicated region
      $region9: #{tpu_custom_call.1} parent=5 // pred_check
        _
      $region10: #{tpu_custom_call.1} parent=5 // pred_check_branch
        %208 = sbr.rel (%p205) target = $region12
      $region11: #{tpu_custom_call.1} parent=5 // pred_region
        %s209 = ssub.s32 %s17, 1
        // Predicated region
        $region13: #{tpu_custom_call.1} parent=11 // pred_check
          %p210 = pneg %p78
        $region14: #{tpu_custom_call.1} parent=11 // pred_check_branch
          %212 = sbr.rel (%p210) target = $region16
        $region15: #{tpu_custom_call.1} parent=11 // pred_region
          _
        $region16: #{tpu_custom_call.1} parent=11 // pred_fallthru
          _
        // Predicated region
        $region17: #{tpu_custom_call.1} parent=11 // pred_check
          %p213 = pneg %p99
        $region18: #{tpu_custom_call.1} parent=11 // pred_check_branch
          %215 = sbr.rel (%p213) target = $region20
        $region19: #{tpu_custom_call.1} parent=11 // pred_region
          _
        $region20: #{tpu_custom_call.1} parent=11 // pred_fallthru
          _
        // Predicated region
        $region21: #{tpu_custom_call.1} parent=11 // pred_check
          %p216 = pneg %p120
        $region22: #{tpu_custom_call.1} parent=11 // pred_check_branch
          %218 = sbr.rel (%p216) target = $region24
        $region23: #{tpu_custom_call.1} parent=11 // pred_region
          %s220 = ssub.s32 8192, 8192
          %221 = vsyncadd [#allocation3], %s220
          %s222 = sshll.u32 [#allocation2], 4
          %s223 = int_to_ptr.vmem [resolvable:$true] %s222
          %228 = dma.hbm_to_vmem [thread:$0]  %s3, 8192, %s223, [#allocation3], 64, 64, 4
        $region24: #{tpu_custom_call.1} parent=11 // pred_fallthru
          _
        // Predicated region
        $region25: #{tpu_custom_call.1} parent=11 // pred_check
          %p229 = pneg %p141
        $region26: #{tpu_custom_call.1} parent=11 // pred_check_branch
          %231 = sbr.rel (%p229) target = $region28
        $region27: #{tpu_custom_call.1} parent=11 // pred_region
          _
        $region28: #{tpu_custom_call.1} parent=11 // pred_fallthru
          _
      $region12: #{tpu_custom_call.1} parent=5 // pred_fallthru
        _
      %p232 = scmp.lt.s32.totalorder %s17, 2
      // Predicated region
      $region29: #{tpu_custom_call.1} parent=5 // pred_check
        %p233 = pneg %p232
      $region30: #{tpu_custom_call.1} parent=5 // pred_check_branch
        %235 = sbr.rel (%p233) target = $region32
      $region31: #{tpu_custom_call.1} parent=5 // pred_region
        // Predicated region
        $region33: #{tpu_custom_call.1} parent=31 // pred_check
          %p236 = pneg %p51
        $region34: #{tpu_custom_call.1} parent=31 // pred_check_branch
          %238 = sbr.rel (%p236) target = $region36
        $region35: #{tpu_custom_call.1} parent=31 // pred_region
          %s239 = smul.u32 8, %s25
          %p240 = scmp.lt.s32.totalorder %s24, 1
          %s241 = scalar_select %p240, %s24, 1
          %p242 = scmp.lt.s32.totalorder %s239, 7
          %s243 = scalar_select %p242, %s239, 7
          %s244 = smul.addr %s241, 64
          %s245 = sadd.s32 %s243, %s244
          %s246 = smul.addr %s245, 8
          %s247 = scalar_lea.vmem %s0, %s246
          %s248 = smul.u32 8, %s25
        $region36: #{tpu_custom_call.1} parent=31 // pred_fallthru
          _
      $region32: #{tpu_custom_call.1} parent=5 // pred_fallthru
        _
      %p249 = scmp.le.s32.totalorder 1, %s17
      %p250 = scmp.lt.s32.totalorder %s17, 3
      %p251 = pnand %p249, %p250
      %p252 = pneg %p251
      // Predicated region
      $region37: #{tpu_custom_call.1} parent=5 // pred_check
        _
      $region38: #{tpu_custom_call.1} parent=5 // pred_check_branch
        %254 = sbr.rel (%p251) target = $region40
      $region39: #{tpu_custom_call.1} parent=5 // pred_region
        %s255 = ssub.s32 %s17, 1
        // Predicated region
        $region41: #{tpu_custom_call.1} parent=39 // pred_check
          %p256 = pneg %p120
        $region42: #{tpu_custom_call.1} parent=39 // pred_check_branch
          %258 = sbr.rel (%p256) target = $region44
        $region43: #{tpu_custom_call.1} parent=39 // pred_region
          %259 = dma.done [#allocation3], 8192
        $region44: #{tpu_custom_call.1} parent=39 // pred_fallthru
          _
        %s260 = smul.u32 8, %s27
        %p261 = scmp.lt.s32.totalorder %s26, 1
        %s262 = scalar_select %p261, %s26, 1
        %p263 = scmp.lt.s32.totalorder %s260, 7
        %s264 = scalar_select %p263, %s260, 7
        %s265 = smul.addr %s262, 64
        %s266 = sadd.s32 %s264, %s265
        %s267 = smul.addr %s266, 8
        %s268 = scalar_lea.vmem %s0, %s267
        %p269 = pneg %p57
        %p270 = pneg %p54
        %p271 = pneg %p78
        %p272 = pneg %p75
        %p273 = pneg %p99
        %p274 = pneg %p96
        %p275 = pneg %p120
        %p276 = pneg %p117
        %p277 = pneg %p141
        %p278 = pneg %p138
        %p279 = pneg %p169
        %p280 = pneg %p166
        %s281 = sand.u32 %s156, 1
        %s282 = scalar_lea.sflag [#allocation4], %s281
        %s283 = sand.u32 %s156, 1
        %s284 = smul.addr %s283, 1024
        %s285 = scalar_lea.vmem [#allocation5], %s284
        %p286 = pneg %p195
        %p287 = pneg %p192
        %p288 = scmp.lt.s32.totalorder %s26, 1
        %s289 = scalar_select %p288, %s26, 1
        %s290 = smul.addr %s289, 128
        %s291 = smul.addr %s290, 8
        %s292 = scalar_lea.vmem %s6, %s291
        %s293 = smul.u32 8, %s27
        %p294 = scmp.lt.s32.totalorder %s26, 1
        %s295 = scalar_select %p294, %s26, 1
        %p296 = scmp.lt.s32.totalorder %s293, 7
        %s297 = scalar_select %p296, %s293, 7
        %s298 = smul.addr %s295, 64
        %s299 = sadd.s32 %s297, %s298
        %s300 = smul.addr %s299, 8
        %s301 = scalar_lea.vmem %s0, %s300
        %s302 = smul.u32 8, %s27
        %s303 = smul.u32 8, %s27
        %p304 = scmp.lt.s32.totalorder %s26, 1
        %s305 = scalar_select %p304, %s26, 1
        %s306 = smul.addr %s305, 128
        %s307 = smul.addr %s306, 8
        %s308 = scalar_lea.vmem %s6, %s307
        %v310 = vld [vmem:[%s301] sm:$0xff]
        %v311 = vld [vmem:[%s301 + $0x8] sm:$0xff]
        %v312 = vld [vmem:[%s301 + $0x10] sm:$0xff]
        %v313 = vld [vmem:[%s301 + $0x18] sm:$0xff]
        %v314 = vld [vmem:[%s301 + $0x20] sm:$0xff]
        %v315 = vld [vmem:[%s301 + $0x28] sm:$0xff]
        %v316 = vld [vmem:[%s301 + $0x30] sm:$0xff]
        %v317 = vld [vmem:[%s301 + $0x38] sm:$0xff]
        %v318 = vld [vmem:[%s301 + $0x40] sm:$0xff]
        %v319 = vld [vmem:[%s301 + $0x48] sm:$0xff]
        %v320 = vld [vmem:[%s301 + $0x50] sm:$0xff]
        %v321 = vld [vmem:[%s301 + $0x58] sm:$0xff]
        %v322 = vld [vmem:[%s301 + $0x60] sm:$0xff]
        %v323 = vld [vmem:[%s301 + $0x68] sm:$0xff]
        %v324 = vld [vmem:[%s301 + $0x70] sm:$0xff]
        %v325 = vld [vmem:[%s301 + $0x78] sm:$0xff]
        %v326 = vld [vmem:[%s301 + $0x80] sm:$0xff]
        %v327 = vld [vmem:[%s301 + $0x88] sm:$0xff]
        %v328 = vld [vmem:[%s301 + $0x90] sm:$0xff]
        %v329 = vld [vmem:[%s301 + $0x98] sm:$0xff]
        %v330 = vld [vmem:[%s301 + $0xa0] sm:$0xff]
        %v331 = vld [vmem:[%s301 + $0xa8] sm:$0xff]
        %v332 = vld [vmem:[%s301 + $0xb0] sm:$0xff]
        %v333 = vld [vmem:[%s301 + $0xb8] sm:$0xff]
        %v334 = vld [vmem:[%s301 + $0xc0] sm:$0xff]
        %v335 = vld [vmem:[%s301 + $0xc8] sm:$0xff]
        %v336 = vld [vmem:[%s301 + $0xd0] sm:$0xff]
        %v337 = vld [vmem:[%s301 + $0xd8] sm:$0xff]
        %v338 = vld [vmem:[%s301 + $0xe0] sm:$0xff]
        %v339 = vld [vmem:[%s301 + $0xe8] sm:$0xff]
        %v340 = vld [vmem:[%s301 + $0xf0] sm:$0xff]
        %v341 = vld [vmem:[%s301 + $0xf8] sm:$0xff]
        %v342 = vld [vmem:[%s301 + $0x100] sm:$0xff]
        %v343 = vld [vmem:[%s301 + $0x108] sm:$0xff]
        %v344 = vld [vmem:[%s301 + $0x110] sm:$0xff]
        %v345 = vld [vmem:[%s301 + $0x118] sm:$0xff]
        %v346 = vld [vmem:[%s301 + $0x120] sm:$0xff]
        %v347 = vld [vmem:[%s301 + $0x128] sm:$0xff]
        %v348 = vld [vmem:[%s301 + $0x130] sm:$0xff]
        %v349 = vld [vmem:[%s301 + $0x138] sm:$0xff]
        %v350 = vld [vmem:[%s301 + $0x140] sm:$0xff]
        %v351 = vld [vmem:[%s301 + $0x148] sm:$0xff]
        %v352 = vld [vmem:[%s301 + $0x150] sm:$0xff]
        %v353 = vld [vmem:[%s301 + $0x158] sm:$0xff]
        %v354 = vld [vmem:[%s301 + $0x160] sm:$0xff]
        %v355 = vld [vmem:[%s301 + $0x168] sm:$0xff]
        %v356 = vld [vmem:[%s301 + $0x170] sm:$0xff]
        %v357 = vld [vmem:[%s301 + $0x178] sm:$0xff]
        %v358 = vld [vmem:[%s301 + $0x180] sm:$0xff]
        %v359 = vld [vmem:[%s301 + $0x188] sm:$0xff]
        %v360 = vld [vmem:[%s301 + $0x190] sm:$0xff]
        %v361 = vld [vmem:[%s301 + $0x198] sm:$0xff]
        %v362 = vld [vmem:[%s301 + $0x1a0] sm:$0xff]
        %v363 = vld [vmem:[%s301 + $0x1a8] sm:$0xff]
        %v364 = vld [vmem:[%s301 + $0x1b0] sm:$0xff]
        %v365 = vld [vmem:[%s301 + $0x1b8] sm:$0xff]
        %v366 = vld [vmem:[%s301 + $0x1c0] sm:$0xff]
        %v367 = vld [vmem:[%s301 + $0x1c8] sm:$0xff]
        %v368 = vld [vmem:[%s301 + $0x1d0] sm:$0xff]
        %v369 = vld [vmem:[%s301 + $0x1d8] sm:$0xff]
        %v370 = vld [vmem:[%s301 + $0x1e0] sm:$0xff]
        %v371 = vld [vmem:[%s301 + $0x1e8] sm:$0xff]
        %v372 = vld [vmem:[%s301 + $0x1f0] sm:$0xff]
        %v373 = vld [vmem:[%s301 + $0x1f8] sm:$0xff]
        %v374 = vpack.c.bf16 %v318, %v310
        %v375 = vpack.c.bf16 %v319, %v311
        %v376 = vpack.c.bf16 %v320, %v312
        %v377 = vpack.c.bf16 %v321, %v313
        %v378 = vpack.c.bf16 %v322, %v314
        %v379 = vpack.c.bf16 %v323, %v315
        %v380 = vpack.c.bf16 %v324, %v316
        %v381 = vpack.c.bf16 %v325, %v317
        %v382 = vpack.c.bf16 %v334, %v326
        %v383 = vpack.c.bf16 %v335, %v327
        %v384 = vpack.c.bf16 %v336, %v328
        %v385 = vpack.c.bf16 %v337, %v329
        %v386 = vpack.c.bf16 %v338, %v330
        %v387 = vpack.c.bf16 %v339, %v331
        %v388 = vpack.c.bf16 %v340, %v332
        %v389 = vpack.c.bf16 %v341, %v333
        %v390 = vpack.c.bf16 %v350, %v342
        %v391 = vpack.c.bf16 %v351, %v343
        %v392 = vpack.c.bf16 %v352, %v344
        %v393 = vpack.c.bf16 %v353, %v345
        %v394 = vpack.c.bf16 %v354, %v346
        %v395 = vpack.c.bf16 %v355, %v347
        %v396 = vpack.c.bf16 %v356, %v348
        %v397 = vpack.c.bf16 %v357, %v349
        %v398 = vpack.c.bf16 %v366, %v358
        %v399 = vpack.c.bf16 %v367, %v359
        %v400 = vpack.c.bf16 %v368, %v360
        %v401 = vpack.c.bf16 %v369, %v361
        %v402 = vpack.c.bf16 %v370, %v362
        %v403 = vpack.c.bf16 %v371, %v363
        %v404 = vpack.c.bf16 %v372, %v364
        %v405 = vpack.c.bf16 %v373, %v365
        %v406 = vld [vmem:[%s1] sm:$0xf]
        %v407 = vld [vmem:[%s1 + $0x4] sm:$0xf]
        %v408 = vld [vmem:[%s1 + $0x8] sm:$0xf]
        %v409 = vld [vmem:[%s1 + $0xc] sm:$0xf]
        %v410 = vld [vmem:[%s1 + $0x10] sm:$0xf]
        %v411 = vld [vmem:[%s1 + $0x14] sm:$0xf]
        %v412 = vld [vmem:[%s1 + $0x18] sm:$0xf]
        %v413 = vld [vmem:[%s1 + $0x1c] sm:$0xf]
        %v414 = vld [vmem:[%s1 + $0x20] sm:$0xf]
        %v415 = vld [vmem:[%s1 + $0x24] sm:$0xf]
        %v416 = vld [vmem:[%s1 + $0x28] sm:$0xf]
        %v417 = vld [vmem:[%s1 + $0x2c] sm:$0xf]
        %v418 = vld [vmem:[%s1 + $0x30] sm:$0xf]
        %v419 = vld [vmem:[%s1 + $0x34] sm:$0xf]
        %v420 = vld [vmem:[%s1 + $0x38] sm:$0xf]
        %v421 = vld [vmem:[%s1 + $0x3c] sm:$0xf]
        %v422 = vld [vmem:[%s2] sm:$0xff]
        %v423 = vld [vmem:[%s2 + $0x8] sm:$0xff]
        %v424 = vld [vmem:[%s2 + $0x10] sm:$0xff]
        %v425 = vld [vmem:[%s2 + $0x18] sm:$0xff]
        %v426 = vld [vmem:[%s2 + $0x20] sm:$0xff]
        %v427 = vld [vmem:[%s2 + $0x28] sm:$0xff]
        %v428 = vld [vmem:[%s2 + $0x30] sm:$0xff]
        %v429 = vld [vmem:[%s2 + $0x38] sm:$0xff]
        %v430 = vld [vmem:[%s2 + $0x40] sm:$0xff]
        %v431 = vld [vmem:[%s2 + $0x48] sm:$0xff]
        %v432 = vld [vmem:[%s2 + $0x50] sm:$0xff]
        %v433 = vld [vmem:[%s2 + $0x58] sm:$0xff]
        %v434 = vld [vmem:[%s2 + $0x60] sm:$0xff]
        %v435 = vld [vmem:[%s2 + $0x68] sm:$0xff]
        %v436 = vld [vmem:[%s2 + $0x70] sm:$0xff]
        %v437 = vld [vmem:[%s2 + $0x78] sm:$0xff]
        %439 = vset.pattern.permute.xlu0 0
        %440 = vperm.xlu0 %439, %v422
        %v441 = vpop.permute.xlu0 %440
        %444 = vset.pattern.permute.xlu0 0
        %445 = vperm.xlu0 %444, %v423
        %v446 = vpop.permute.xlu0 %445
        %449 = vset.pattern.permute.xlu0 0
        %450 = vperm.xlu0 %449, %v424
        %v451 = vpop.permute.xlu0 %450
        %454 = vset.pattern.permute.xlu0 0
        %455 = vperm.xlu0 %454, %v425
        %v456 = vpop.permute.xlu0 %455
        %459 = vset.pattern.permute.xlu0 0
        %460 = vperm.xlu0 %459, %v426
        %v461 = vpop.permute.xlu0 %460
        %464 = vset.pattern.permute.xlu0 0
        %465 = vperm.xlu0 %464, %v427
        %v466 = vpop.permute.xlu0 %465
        %469 = vset.pattern.permute.xlu0 0
        %470 = vperm.xlu0 %469, %v428
        %v471 = vpop.permute.xlu0 %470
        %474 = vset.pattern.permute.xlu0 0
        %475 = vperm.xlu0 %474, %v429
        %v476 = vpop.permute.xlu0 %475
        %479 = vset.pattern.permute.xlu0 0
        %480 = vperm.xlu0 %479, %v430
        %v481 = vpop.permute.xlu0 %480
        %484 = vset.pattern.permute.xlu0 0
        %485 = vperm.xlu0 %484, %v431
        %v486 = vpop.permute.xlu0 %485
        %489 = vset.pattern.permute.xlu0 0
        %490 = vperm.xlu0 %489, %v432
        %v491 = vpop.permute.xlu0 %490
        %494 = vset.pattern.permute.xlu0 0
        %495 = vperm.xlu0 %494, %v433
        %v496 = vpop.permute.xlu0 %495
        %499 = vset.pattern.permute.xlu0 0
        %500 = vperm.xlu0 %499, %v434
        %v501 = vpop.permute.xlu0 %500
        %504 = vset.pattern.permute.xlu0 0
        %505 = vperm.xlu0 %504, %v435
        %v506 = vpop.permute.xlu0 %505
        %509 = vset.pattern.permute.xlu0 0
        %510 = vperm.xlu0 %509, %v436
        %v511 = vpop.permute.xlu0 %510
        %514 = vset.pattern.permute.xlu0 0
        %515 = vperm.xlu0 %514, %v437
        %v516 = vpop.permute.xlu0 %515
        %v534 = vunpack.c.l.b16 %v406
        %v535 = vunpack.c.l.b16 %v407
        %v536 = vunpack.c.l.b16 %v408
        %v537 = vunpack.c.l.b16 %v409
        %v538 = vunpack.c.l.b16 %v410
        %v539 = vunpack.c.l.b16 %v411
        %v540 = vunpack.c.l.b16 %v412
        %v541 = vunpack.c.l.b16 %v413
        %v542 = vunpack.c.l.b16 %v414
        %v543 = vunpack.c.l.b16 %v415
        %v544 = vunpack.c.l.b16 %v416
        %v545 = vunpack.c.l.b16 %v417
        %v546 = vunpack.c.l.b16 %v418
        %v547 = vunpack.c.l.b16 %v419
        %v548 = vunpack.c.l.b16 %v420
        %v549 = vunpack.c.l.b16 %v421
        %v550 = vpack.c.b16 %v535, %v534
        %v551 = vpack.c.b16 %v537, %v536
        %v552 = vpack.c.b16 %v539, %v538
        %v553 = vpack.c.b16 %v541, %v540
        %v554 = vpack.c.b16 %v543, %v542
        %v555 = vpack.c.b16 %v545, %v544
        %v556 = vpack.c.b16 %v547, %v546
        %v557 = vpack.c.b16 %v549, %v548
        %vm558 = vcmask 523264
        %v560 = vsel %vm558, %v550, 0
        %v563 = vsel %vm558, %v551, 0
        %v566 = vsel %vm558, %v552, 0
        %v569 = vsel %vm558, %v553, 0
        %v572 = vsel %vm558, %v554, 0
        %v575 = vsel %vm558, %v555, 0
        %v578 = vsel %vm558, %v556, 0
        %v581 = vsel %vm558, %v557, 0
        %583 = vmatprep.subr.bf16.mxu0 %v375
        %584 = vmatpush1.bf16.msra.mxu0 %v374
        %585 = vmatprep.subr.bf16.mxu0 %v383
        %586 = vmatpush1.bf16.msra.mxu0 %v382
        %587 = vmatprep.subr.bf16.mxu0 %v391
        %588 = vmatpush1.bf16.msra.mxu0 %v390
        %589 = vmatprep.subr.bf16.mxu0 %v399
        %590 = vmatpush1.bf16.msra.mxu0 %v398
        %591 = vmatprep.subr.bf16.mxu0 0
        %592 = vmatpush1.bf16.msra.mxu0 0
        %593 = vmatprep.subr.bf16.mxu0 0
        %594 = vmatpush1.bf16.msra.mxu0 0
        %595 = vmatprep.subr.bf16.mxu0 0
        %596 = vmatpush1.bf16.msra.mxu0 0
        %597 = vmatprep.subr.bf16.mxu0 0
        %598 = vmatpush1.bf16.msra.mxu0 0
        %599 = vmatprep.subr.bf16.mxu0 0
        %600 = vmatpush1.bf16.msra.mxu0 0
        %601 = vmatprep.subr.bf16.mxu0 0
        %602 = vmatpush1.bf16.msra.mxu0 0
        %603 = vmatprep.subr.bf16.mxu0 0
        %604 = vmatpush1.bf16.msra.mxu0 0
        %605 = vmatprep.subr.bf16.mxu0 0
        %606 = vmatpush1.bf16.msra.mxu0 0
        %607 = vmatprep.subr.bf16.mxu0 0
        %608 = vmatpush1.bf16.msra.mxu0 0
        %609 = vmatprep.subr.bf16.mxu0 0
        %610 = vmatpush1.bf16.msra.mxu0 0
        %611 = vmatprep.subr.bf16.mxu0 0
        %612 = vmatpush1.bf16.msra.mxu0 0
        %613 = vmatprep.subr.bf16.mxu0 0
        %614 = vmatpush1.bf16.msra.mxu0 0
        %615 = vmatprep.mubr.bf16.mxu0 0
        %616 = vmatmul.mubr.bf16.gmra.mrb[0].mxu0 %v560
        %v617 = vpop.f32.mrb[0].mxu0
        %v618 = vadd.f32 %v441, %v617
        %v619 = vpop.f32.mrb[0].mxu0
        %v620 = vadd.f32 %v441, %v619
        %v621 = vpop.f32.mrb[0].mxu0
        %v622 = vadd.f32 %v446, %v621
        %v623 = vpop.f32.mrb[0].mxu0
        %v624 = vadd.f32 %v446, %v623
        %625 = vmatprep.mubr.bf16.mxu0 0
        %626 = vmatmul.mubr.bf16.gmra.mrb[0].mxu0 %v563
        %v627 = vpop.f32.mrb[0].mxu0
        %v628 = vadd.f32 %v451, %v627
        %v629 = vpop.f32.mrb[0].mxu0
        %v630 = vadd.f32 %v451, %v629
        %v631 = vpop.f32.mrb[0].mxu0
        %v632 = vadd.f32 %v456, %v631
        %v633 = vpop.f32.mrb[0].mxu0
        %v634 = vadd.f32 %v456, %v633
        %635 = vmatprep.mubr.bf16.mxu0 0
        %636 = vmatmul.mubr.bf16.gmra.mrb[0].mxu0 %v566
        %v637 = vpop.f32.mrb[0].mxu0
        %v638 = vadd.f32 %v461, %v637
        %v639 = vpop.f32.mrb[0].mxu0
        %v640 = vadd.f32 %v461, %v639
        %v641 = vpop.f32.mrb[0].mxu0
        %v642 = vadd.f32 %v466, %v641
        %v643 = vpop.f32.mrb[0].mxu0
        %v644 = vadd.f32 %v466, %v643
        %645 = vmatprep.mubr.bf16.mxu0 0
        %646 = vmatmul.mubr.bf16.gmra.mrb[0].mxu0 %v569
        %v647 = vpop.f32.mrb[0].mxu0
        %v648 = vadd.f32 %v471, %v647
        %v649 = vpop.f32.mrb[0].mxu0
        %v650 = vadd.f32 %v471, %v649
        %v651 = vpop.f32.mrb[0].mxu0
        %v652 = vadd.f32 %v476, %v651
        %v653 = vpop.f32.mrb[0].mxu0
        %v654 = vadd.f32 %v476, %v653
        %655 = vmatprep.mubr.bf16.mxu0 0
        %656 = vmatmul.mubr.bf16.gmra.mrb[0].mxu0 %v572
        %v657 = vpop.f32.mrb[0].mxu0
        %v658 = vadd.f32 %v481, %v657
        %v659 = vpop.f32.mrb[0].mxu0
        %v660 = vadd.f32 %v481, %v659
        %v661 = vpop.f32.mrb[0].mxu0
        %v662 = vadd.f32 %v486, %v661
        %v663 = vpop.f32.mrb[0].mxu0
        %v664 = vadd.f32 %v486, %v663
        %665 = vmatprep.mubr.bf16.mxu0 0
        %666 = vmatmul.mubr.bf16.gmra.mrb[0].mxu0 %v575
        %v667 = vpop.f32.mrb[0].mxu0
        %v668 = vadd.f32 %v491, %v667
        %v669 = vpop.f32.mrb[0].mxu0
        %v670 = vadd.f32 %v491, %v669
        %v671 = vpop.f32.mrb[0].mxu0
        %v672 = vadd.f32 %v496, %v671
        %v673 = vpop.f32.mrb[0].mxu0
        %v674 = vadd.f32 %v496, %v673
        %675 = vmatprep.mubr.bf16.mxu0 0
        %676 = vmatmul.mubr.bf16.gmra.mrb[0].mxu0 %v578
        %v677 = vpop.f32.mrb[0].mxu0
        %v678 = vadd.f32 %v501, %v677
        %v679 = vpop.f32.mrb[0].mxu0
        %v680 = vadd.f32 %v501, %v679
        %v681 = vpop.f32.mrb[0].mxu0
        %v682 = vadd.f32 %v506, %v681
        %v683 = vpop.f32.mrb[0].mxu0
        %v684 = vadd.f32 %v506, %v683
        %685 = vmatprep.mubr.bf16.mxu0 0
        %686 = vmatmul.mubr.bf16.gmra.mrb[0].mxu0 %v581
        %v687 = vpop.f32.mrb[0].mxu0
        %v688 = vadd.f32 %v511, %v687
        %v689 = vpop.f32.mrb[0].mxu0
        %v690 = vadd.f32 %v511, %v689
        %v691 = vpop.f32.mrb[0].mxu0
        %v692 = vadd.f32 %v516, %v691
        %v693 = vpop.f32.mrb[0].mxu0
        %v694 = vadd.f32 %v516, %v693
        %695 = vdwg.mxu0
        %696 = vmatprep.subr.bf16.mxu0 %v377
        %697 = vmatpush1.bf16.msra.mxu0 %v376
        %698 = vmatprep.subr.bf16.mxu0 %v385
        %699 = vmatpush1.bf16.msra.mxu0 %v384
        %700 = vmatprep.subr.bf16.mxu0 %v393
        %701 = vmatpush1.bf16.msra.mxu0 %v392
        %702 = vmatprep.subr.bf16.mxu0 %v401
        %703 = vmatpush1.bf16.msra.mxu0 %v400
        %704 = vmatprep.subr.bf16.mxu0 0
        %705 = vmatpush1.bf16.msra.mxu0 0
        %706 = vmatprep.subr.bf16.mxu0 0
        %707 = vmatpush1.bf16.msra.mxu0 0
        %708 = vmatprep.subr.bf16.mxu0 0
        %709 = vmatpush1.bf16.msra.mxu0 0
        %710 = vmatprep.subr.bf16.mxu0 0
        %711 = vmatpush1.bf16.msra.mxu0 0
        %712 = vmatprep.subr.bf16.mxu0 0
        %713 = vmatpush1.bf16.msra.mxu0 0
        %714 = vmatprep.subr.bf16.mxu0 0
        %715 = vmatpush1.bf16.msra.mxu0 0
        %716 = vmatprep.subr.bf16.mxu0 0
        %717 = vmatpush1.bf16.msra.mxu0 0
        %718 = vmatprep.subr.bf16.mxu0 0
        %719 = vmatpush1.bf16.msra.mxu0 0
        %720 = vmatprep.subr.bf16.mxu0 0
        %721 = vmatpush1.bf16.msra.mxu0 0
        %722 = vmatprep.subr.bf16.mxu0 0
        %723 = vmatpush1.bf16.msra.mxu0 0
        %724 = vmatprep.subr.bf16.mxu0 0
        %725 = vmatpush1.bf16.msra.mxu0 0
        %726 = vmatprep.subr.bf16.mxu0 0
        %727 = vmatpush1.bf16.msra.mxu0 0
        %728 = vmatprep.mubr.bf16.mxu0 0
        %729 = vmatmul.mubr.bf16.gmra.mrb[0].mxu0 %v560
        %v730 = vpop.f32.mrb[0].mxu0
        %v731 = vadd.f32 %v441, %v730
        %v732 = vpop.f32.mrb[0].mxu0
        %v733 = vadd.f32 %v441, %v732
        %v734 = vpop.f32.mrb[0].mxu0
        %v735 = vadd.f32 %v446, %v734
        %v736 = vpop.f32.mrb[0].mxu0
        %v737 = vadd.f32 %v446, %v736
        %738 = vmatprep.mubr.bf16.mxu0 0
        %739 = vmatmul.mubr.bf16.gmra.mrb[0].mxu0 %v563
        %v740 = vpop.f32.mrb[0].mxu0
        %v741 = vadd.f32 %v451, %v740
        %v742 = vpop.f32.mrb[0].mxu0
        %v743 = vadd.f32 %v451, %v742
        %v744 = vpop.f32.mrb[0].mxu0
        %v745 = vadd.f32 %v456, %v744
        %v746 = vpop.f32.mrb[0].mxu0
        %v747 = vadd.f32 %v456, %v746
        %748 = vmatprep.mubr.bf16.mxu0 0
        %749 = vmatmul.mubr.bf16.gmra.mrb[0].mxu0 %v566
        %v750 = vpop.f32.mrb[0].mxu0
        %v751 = vadd.f32 %v461, %v750
        %v752 = vpop.f32.mrb[0].mxu0
        %v753 = vadd.f32 %v461, %v752
        %v754 = vpop.f32.mrb[0].mxu0
        %v755 = vadd.f32 %v466, %v754
        %v756 = vpop.f32.mrb[0].mxu0
        %v757 = vadd.f32 %v466, %v756
        %758 = vmatprep.mubr.bf16.mxu0 0
        %759 = vmatmul.mubr.bf16.gmra.mrb[0].mxu0 %v569
        %v760 = vpop.f32.mrb[0].mxu0
        %v761 = vadd.f32 %v471, %v760
        %v762 = vpop.f32.mrb[0].mxu0
        %v763 = vadd.f32 %v471, %v762
        %v764 = vpop.f32.mrb[0].mxu0
        %v765 = vadd.f32 %v476, %v764
        %v766 = vpop.f32.mrb[0].mxu0
        %v767 = vadd.f32 %v476, %v766
        %768 = vmatprep.mubr.bf16.mxu0 0
        %769 = vmatmul.mubr.bf16.gmra.mrb[0].mxu0 %v572
        %v770 = vpop.f32.mrb[0].mxu0
        %v771 = vadd.f32 %v481, %v770
        %v772 = vpop.f32.mrb[0].mxu0
        %v773 = vadd.f32 %v481, %v772
        %v774 = vpop.f32.mrb[0].mxu0
        %v775 = vadd.f32 %v486, %v774
        %v776 = vpop.f32.mrb[0].mxu0
        %v777 = vadd.f32 %v486, %v776
        %778 = vmatprep.mubr.bf16.mxu0 0
        %779 = vmatmul.mubr.bf16.gmra.mrb[0].mxu0 %v575
        %v780 = vpop.f32.mrb[0].mxu0
        %v781 = vadd.f32 %v491, %v780
        %v782 = vpop.f32.mrb[0].mxu0
        %v783 = vadd.f32 %v491, %v782
        %v784 = vpop.f32.mrb[0].mxu0
        %v785 = vadd.f32 %v496, %v784
        %v786 = vpop.f32.mrb[0].mxu0
        %v787 = vadd.f32 %v496, %v786
        %788 = vmatprep.mubr.bf16.mxu0 0
        %789 = vmatmul.mubr.bf16.gmra.mrb[0].mxu0 %v578
        %v790 = vpop.f32.mrb[0].mxu0
        %v791 = vadd.f32 %v501, %v790
        %v792 = vpop.f32.mrb[0].mxu0
        %v793 = vadd.f32 %v501, %v792
        %v794 = vpop.f32.mrb[0].mxu0
        %v795 = vadd.f32 %v506, %v794
        %v796 = vpop.f32.mrb[0].mxu0
        %v797 = vadd.f32 %v506, %v796
        %798 = vmatprep.mubr.bf16.mxu0 0
        %799 = vmatmul.mubr.bf16.gmra.mrb[0].mxu0 %v581
        %v800 = vpop.f32.mrb[0].mxu0
        %v801 = vadd.f32 %v511, %v800
        %v802 = vpop.f32.mrb[0].mxu0
        %v803 = vadd.f32 %v511, %v802
        %v804 = vpop.f32.mrb[0].mxu0
        %v805 = vadd.f32 %v516, %v804
        %v806 = vpop.f32.mrb[0].mxu0
        %v807 = vadd.f32 %v516, %v806
        %808 = vdwg.mxu0
        %809 = vmatprep.subr.bf16.mxu0 %v379
        %810 = vmatpush1.bf16.msra.mxu0 %v378
        %811 = vmatprep.subr.bf16.mxu0 %v387
        %812 = vmatpush1.bf16.msra.mxu0 %v386
        %813 = vmatprep.subr.bf16.mxu0 %v395
        %814 = vmatpush1.bf16.msra.mxu0 %v394
        %815 = vmatprep.subr.bf16.mxu0 %v403
        %816 = vmatpush1.bf16.msra.mxu0 %v402
        %817 = vmatprep.subr.bf16.mxu0 0
        %818 = vmatpush1.bf16.msra.mxu0 0
        %819 = vmatprep.subr.bf16.mxu0 0
        %820 = vmatpush1.bf16.msra.mxu0 0
        %821 = vmatprep.subr.bf16.mxu0 0
        %822 = vmatpush1.bf16.msra.mxu0 0
        %823 = vmatprep.subr.bf16.mxu0 0
        %824 = vmatpush1.bf16.msra.mxu0 0
        %825 = vmatprep.subr.bf16.mxu0 0
        %826 = vmatpush1.bf16.msra.mxu0 0
        %827 = vmatprep.subr.bf16.mxu0 0
        %828 = vmatpush1.bf16.msra.mxu0 0
        %829 = vmatprep.subr.bf16.mxu0 0
        %830 = vmatpush1.bf16.msra.mxu0 0
        %831 = vmatprep.subr.bf16.mxu0 0
        %832 = vmatpush1.bf16.msra.mxu0 0
        %833 = vmatprep.subr.bf16.mxu0 0
        %834 = vmatpush1.bf16.msra.mxu0 0
        %835 = vmatprep.subr.bf16.mxu0 0
        %836 = vmatpush1.bf16.msra.mxu0 0
        %837 = vmatprep.subr.bf16.mxu0 0
        %838 = vmatpush1.bf16.msra.mxu0 0
        %839 = vmatprep.subr.bf16.mxu0 0
        %840 = vmatpush1.bf16.msra.mxu0 0
        %841 = vmatprep.mubr.bf16.mxu0 0
        %842 = vmatmul.mubr.bf16.gmra.mrb[0].mxu0 %v560
        %v843 = vpop.f32.mrb[0].mxu0
        %v844 = vadd.f32 %v441, %v843
        %v845 = vpop.f32.mrb[0].mxu0
        %v846 = vadd.f32 %v441, %v845
        %v847 = vpop.f32.mrb[0].mxu0
        %v848 = vadd.f32 %v446, %v847
        %v849 = vpop.f32.mrb[0].mxu0
        %v850 = vadd.f32 %v446, %v849
        %851 = vmatprep.mubr.bf16.mxu0 0
        %852 = vmatmul.mubr.bf16.gmra.mrb[0].mxu0 %v563
        %v853 = vpop.f32.mrb[0].mxu0
        %v854 = vadd.f32 %v451, %v853
        %v855 = vpop.f32.mrb[0].mxu0
        %v856 = vadd.f32 %v451, %v855
        %v857 = vpop.f32.mrb[0].mxu0
        %v858 = vadd.f32 %v456, %v857
        %v859 = vpop.f32.mrb[0].mxu0
        %v860 = vadd.f32 %v456, %v859
        %861 = vmatprep.mubr.bf16.mxu0 0
        %862 = vmatmul.mubr.bf16.gmra.mrb[0].mxu0 %v566
        %v863 = vpop.f32.mrb[0].mxu0
        %v864 = vadd.f32 %v461, %v863
        %v865 = vpop.f32.mrb[0].mxu0
        %v866 = vadd.f32 %v461, %v865
        %v867 = vpop.f32.mrb[0].mxu0
        %v868 = vadd.f32 %v466, %v867
        %v869 = vpop.f32.mrb[0].mxu0
        %v870 = vadd.f32 %v466, %v869
        %871 = vmatprep.mubr.bf16.mxu0 0
        %872 = vmatmul.mubr.bf16.gmra.mrb[0].mxu0 %v569
        %v873 = vpop.f32.mrb[0].mxu0
        %v874 = vadd.f32 %v471, %v873
        %v875 = vpop.f32.mrb[0].mxu0
        %v876 = vadd.f32 %v471, %v875
        %v877 = vpop.f32.mrb[0].mxu0
        %v878 = vadd.f32 %v476, %v877
        %v879 = vpop.f32.mrb[0].mxu0
        %v880 = vadd.f32 %v476, %v879
        %881 = vmatprep.mubr.bf16.mxu0 0
        %882 = vmatmul.mubr.bf16.gmra.mrb[0].mxu0 %v572
        %v883 = vpop.f32.mrb[0].mxu0
        %v884 = vadd.f32 %v481, %v883
        %v885 = vpop.f32.mrb[0].mxu0
        %v886 = vadd.f32 %v481, %v885
        %v887 = vpop.f32.mrb[0].mxu0
        %v888 = vadd.f32 %v486, %v887
        %v889 = vpop.f32.mrb[0].mxu0
        %v890 = vadd.f32 %v486, %v889
        %891 = vmatprep.mubr.bf16.mxu0 0
        %892 = vmatmul.mubr.bf16.gmra.mrb[0].mxu0 %v575
        %v893 = vpop.f32.mrb[0].mxu0
        %v894 = vadd.f32 %v491, %v893
        %v895 = vpop.f32.mrb[0].mxu0
        %v896 = vadd.f32 %v491, %v895
        %v897 = vpop.f32.mrb[0].mxu0
        %v898 = vadd.f32 %v496, %v897
        %v899 = vpop.f32.mrb[0].mxu0
        %v900 = vadd.f32 %v496, %v899
        %901 = vmatprep.mubr.bf16.mxu0 0
        %902 = vmatmul.mubr.bf16.gmra.mrb[0].mxu0 %v578
        %v903 = vpop.f32.mrb[0].mxu0
        %v904 = vadd.f32 %v501, %v903
        %v905 = vpop.f32.mrb[0].mxu0
        %v906 = vadd.f32 %v501, %v905
        %v907 = vpop.f32.mrb[0].mxu0
        %v908 = vadd.f32 %v506, %v907
        %v909 = vpop.f32.mrb[0].mxu0
        %v910 = vadd.f32 %v506, %v909
        %911 = vmatprep.mubr.bf16.mxu0 0
        %912 = vmatmul.mubr.bf16.gmra.mrb[0].mxu0 %v581
        %v913 = vpop.f32.mrb[0].mxu0
        %v914 = vadd.f32 %v511, %v913
        %v915 = vpop.f32.mrb[0].mxu0
        %v916 = vadd.f32 %v511, %v915
        %v917 = vpop.f32.mrb[0].mxu0
        %v918 = vadd.f32 %v516, %v917
        %v919 = vpop.f32.mrb[0].mxu0
        %v920 = vadd.f32 %v516, %v919
        %921 = vdwg.mxu0
        %922 = vmatprep.subr.bf16.mxu0 %v381
        %923 = vmatpush1.bf16.msra.mxu0 %v380
        %924 = vmatprep.subr.bf16.mxu0 %v389
        %925 = vmatpush1.bf16.msra.mxu0 %v388
        %926 = vmatprep.subr.bf16.mxu0 %v397
        %927 = vmatpush1.bf16.msra.mxu0 %v396
        %928 = vmatprep.subr.bf16.mxu0 %v405
        %929 = vmatpush1.bf16.msra.mxu0 %v404
        %930 = vmatprep.subr.bf16.mxu0 0
        %931 = vmatpush1.bf16.msra.mxu0 0
        %932 = vmatprep.subr.bf16.mxu0 0
        %933 = vmatpush1.bf16.msra.mxu0 0
        %934 = vmatprep.subr.bf16.mxu0 0
        %935 = vmatpush1.bf16.msra.mxu0 0
        %936 = vmatprep.subr.bf16.mxu0 0
        %937 = vmatpush1.bf16.msra.mxu0 0
        %938 = vmatprep.subr.bf16.mxu0 0
        %939 = vmatpush1.bf16.msra.mxu0 0
        %940 = vmatprep.subr.bf16.mxu0 0
        %941 = vmatpush1.bf16.msra.mxu0 0
        %942 = vmatprep.subr.bf16.mxu0 0
        %943 = vmatpush1.bf16.msra.mxu0 0
        %944 = vmatprep.subr.bf16.mxu0 0
        %945 = vmatpush1.bf16.msra.mxu0 0
        %946 = vmatprep.subr.bf16.mxu0 0
        %947 = vmatpush1.bf16.msra.mxu0 0
        %948 = vmatprep.subr.bf16.mxu0 0
        %949 = vmatpush1.bf16.msra.mxu0 0
        %950 = vmatprep.subr.bf16.mxu0 0
        %951 = vmatpush1.bf16.msra.mxu0 0
        %952 = vmatprep.subr.bf16.mxu0 0
        %953 = vmatpush1.bf16.msra.mxu0 0
        %954 = vmatprep.mubr.bf16.mxu0 0
        %955 = vmatmul.mubr.bf16.gmra.mrb[0].mxu0 %v560
        %v956 = vpop.f32.mrb[0].mxu0
        %v957 = vadd.f32 %v441, %v956
        %v958 = vpop.f32.mrb[0].mxu0
        %v959 = vadd.f32 %v441, %v958
        %v960 = vpop.f32.mrb[0].mxu0
        %v961 = vadd.f32 %v446, %v960
        %v962 = vpop.f32.mrb[0].mxu0
        %v963 = vadd.f32 %v446, %v962
        %964 = vmatprep.mubr.bf16.mxu0 0
        %965 = vmatmul.mubr.bf16.gmra.mrb[0].mxu0 %v563
        %v966 = vpop.f32.mrb[0].mxu0
        %v967 = vadd.f32 %v451, %v966
        %v968 = vpop.f32.mrb[0].mxu0
        %v969 = vadd.f32 %v451, %v968
        %v970 = vpop.f32.mrb[0].mxu0
        %v971 = vadd.f32 %v456, %v970
        %v972 = vpop.f32.mrb[0].mxu0
        %v973 = vadd.f32 %v456, %v972
        %974 = vmatprep.mubr.bf16.mxu0 0
        %975 = vmatmul.mubr.bf16.gmra.mrb[0].mxu0 %v566
        %v976 = vpop.f32.mrb[0].mxu0
        %v977 = vadd.f32 %v461, %v976
        %v978 = vpop.f32.mrb[0].mxu0
        %v979 = vadd.f32 %v461, %v978
        %v980 = vpop.f32.mrb[0].mxu0
        %v981 = vadd.f32 %v466, %v980
        %v982 = vpop.f32.mrb[0].mxu0
        %v983 = vadd.f32 %v466, %v982
        %984 = vmatprep.mubr.bf16.mxu0 0
        %985 = vmatmul.mubr.bf16.gmra.mrb[0].mxu0 %v569
        %v986 = vpop.f32.mrb[0].mxu0
        %v987 = vadd.f32 %v471, %v986
        %v988 = vpop.f32.mrb[0].mxu0
        %v989 = vadd.f32 %v471, %v988
        %v990 = vpop.f32.mrb[0].mxu0
        %v991 = vadd.f32 %v476, %v990
        %v992 = vpop.f32.mrb[0].mxu0
        %v993 = vadd.f32 %v476, %v992
        %994 = vmatprep.mubr.bf16.mxu0 0
        %995 = vmatmul.mubr.bf16.gmra.mrb[0].mxu0 %v572
        %v996 = vpop.f32.mrb[0].mxu0
        %v997 = vadd.f32 %v481, %v996
        %v998 = vpop.f32.mrb[0].mxu0
        %v999 = vadd.f32 %v481, %v998
        %v1000 = vpop.f32.mrb[0].mxu0
        %v1001 = vadd.f32 %v486, %v1000
        %v1002 = vpop.f32.mrb[0].mxu0
        %v1003 = vadd.f32 %v486, %v1002
        %1004 = vmatprep.mubr.bf16.mxu0 0
        %1005 = vmatmul.mubr.bf16.gmra.mrb[0].mxu0 %v575
        %v1006 = vpop.f32.mrb[0].mxu0
        %v1007 = vadd.f32 %v491, %v1006
        %v1008 = vpop.f32.mrb[0].mxu0
        %v1009 = vadd.f32 %v491, %v1008
        %v1010 = vpop.f32.mrb[0].mxu0
        %v1011 = vadd.f32 %v496, %v1010
        %v1012 = vpop.f32.mrb[0].mxu0
        %v1013 = vadd.f32 %v496, %v1012
        %1014 = vmatprep.mubr.bf16.mxu0 0
        %1015 = vmatmul.mubr.bf16.gmra.mrb[0].mxu0 %v578
        %v1016 = vpop.f32.mrb[0].mxu0
        %v1017 = vadd.f32 %v501, %v1016
        %v1018 = vpop.f32.mrb[0].mxu0
        %v1019 = vadd.f32 %v501, %v1018
        %v1020 = vpop.f32.mrb[0].mxu0
        %v1021 = vadd.f32 %v506, %v1020
        %v1022 = vpop.f32.mrb[0].mxu0
        %v1023 = vadd.f32 %v506, %v1022
        %1024 = vmatprep.mubr.bf16.mxu0 0
        %1025 = vmatmul.mubr.bf16.gmra.mrb[0].mxu0 %v581
        %v1026 = vpop.f32.mrb[0].mxu0
        %v1027 = vadd.f32 %v511, %v1026
        %v1028 = vpop.f32.mrb[0].mxu0
        %v1029 = vadd.f32 %v511, %v1028
        %v1030 = vpop.f32.mrb[0].mxu0
        %v1031 = vadd.f32 %v516, %v1030
        %v1032 = vpop.f32.mrb[0].mxu0
        %v1033 = vadd.f32 %v516, %v1032
        %1034 = vdwg.mxu0
        %v1035 = vmax.f32 %v618, 0.0
        %v1036 = vmax.f32 %v620, 0.0
        %v1037 = vmax.f32 %v731, 0.0
        %v1038 = vmax.f32 %v733, 0.0
        %v1039 = vmax.f32 %v844, 0.0
        %v1040 = vmax.f32 %v846, 0.0
        %v1041 = vmax.f32 %v957, 0.0
        %v1042 = vmax.f32 %v959, 0.0
        %v1043 = vmax.f32 %v622, 0.0
        %v1044 = vmax.f32 %v624, 0.0
        %v1045 = vmax.f32 %v735, 0.0
        %v1046 = vmax.f32 %v737, 0.0
        %v1047 = vmax.f32 %v848, 0.0
        %v1048 = vmax.f32 %v850, 0.0
        %v1049 = vmax.f32 %v961, 0.0
        %v1050 = vmax.f32 %v963, 0.0
        %v1051 = vmax.f32 %v628, 0.0
        %v1052 = vmax.f32 %v630, 0.0
        %v1053 = vmax.f32 %v741, 0.0
        %v1054 = vmax.f32 %v743, 0.0
        %v1055 = vmax.f32 %v854, 0.0
        %v1056 = vmax.f32 %v856, 0.0
        %v1057 = vmax.f32 %v967, 0.0
        %v1058 = vmax.f32 %v969, 0.0
        %v1059 = vmax.f32 %v632, 0.0
        %v1060 = vmax.f32 %v634, 0.0
        %v1061 = vmax.f32 %v745, 0.0
        %v1062 = vmax.f32 %v747, 0.0
        %v1063 = vmax.f32 %v858, 0.0
        %v1064 = vmax.f32 %v860, 0.0
        %v1065 = vmax.f32 %v971, 0.0
        %v1066 = vmax.f32 %v973, 0.0
        %v1067 = vmax.f32 %v638, 0.0
        %v1068 = vmax.f32 %v640, 0.0
        %v1069 = vmax.f32 %v751, 0.0
        %v1070 = vmax.f32 %v753, 0.0
        %v1071 = vmax.f32 %v864, 0.0
        %v1072 = vmax.f32 %v866, 0.0
        %v1073 = vmax.f32 %v977, 0.0
        %v1074 = vmax.f32 %v979, 0.0
        %v1075 = vmax.f32 %v642, 0.0
        %v1076 = vmax.f32 %v644, 0.0
        %v1077 = vmax.f32 %v755, 0.0
        %v1078 = vmax.f32 %v757, 0.0
        %v1079 = vmax.f32 %v868, 0.0
        %v1080 = vmax.f32 %v870, 0.0
        %v1081 = vmax.f32 %v981, 0.0
        %v1082 = vmax.f32 %v983, 0.0
        %v1083 = vmax.f32 %v648, 0.0
        %v1084 = vmax.f32 %v650, 0.0
        %v1085 = vmax.f32 %v761, 0.0
        %v1086 = vmax.f32 %v763, 0.0
        %v1087 = vmax.f32 %v874, 0.0
        %v1088 = vmax.f32 %v876, 0.0
        %v1089 = vmax.f32 %v987, 0.0
        %v1090 = vmax.f32 %v989, 0.0
        %v1091 = vmax.f32 %v652, 0.0
        %v1092 = vmax.f32 %v654, 0.0
        %v1093 = vmax.f32 %v765, 0.0
        %v1094 = vmax.f32 %v767, 0.0
        %v1095 = vmax.f32 %v878, 0.0
        %v1096 = vmax.f32 %v880, 0.0
        %v1097 = vmax.f32 %v991, 0.0
        %v1098 = vmax.f32 %v993, 0.0
        %v1099 = vmax.f32 %v658, 0.0
        %v1100 = vmax.f32 %v660, 0.0
        %v1101 = vmax.f32 %v771, 0.0
        %v1102 = vmax.f32 %v773, 0.0
        %v1103 = vmax.f32 %v884, 0.0
        %v1104 = vmax.f32 %v886, 0.0
        %v1105 = vmax.f32 %v997, 0.0
        %v1106 = vmax.f32 %v999, 0.0
        %v1107 = vmax.f32 %v662, 0.0
        %v1108 = vmax.f32 %v664, 0.0
        %v1109 = vmax.f32 %v775, 0.0
        %v1110 = vmax.f32 %v777, 0.0
        %v1111 = vmax.f32 %v888, 0.0
        %v1112 = vmax.f32 %v890, 0.0
        %v1113 = vmax.f32 %v1001, 0.0
        %v1114 = vmax.f32 %v1003, 0.0
        %v1115 = vmax.f32 %v668, 0.0
        %v1116 = vmax.f32 %v670, 0.0
        %v1117 = vmax.f32 %v781, 0.0
        %v1118 = vmax.f32 %v783, 0.0
        %v1119 = vmax.f32 %v894, 0.0
        %v1120 = vmax.f32 %v896, 0.0
        %v1121 = vmax.f32 %v1007, 0.0
        %v1122 = vmax.f32 %v1009, 0.0
        %v1123 = vmax.f32 %v672, 0.0
        %v1124 = vmax.f32 %v674, 0.0
        %v1125 = vmax.f32 %v785, 0.0
        %v1126 = vmax.f32 %v787, 0.0
        %v1127 = vmax.f32 %v898, 0.0
        %v1128 = vmax.f32 %v900, 0.0
        %v1129 = vmax.f32 %v1011, 0.0
        %v1130 = vmax.f32 %v1013, 0.0
        %v1131 = vmax.f32 %v678, 0.0
        %v1132 = vmax.f32 %v680, 0.0
        %v1133 = vmax.f32 %v791, 0.0
        %v1134 = vmax.f32 %v793, 0.0
        %v1135 = vmax.f32 %v904, 0.0
        %v1136 = vmax.f32 %v906, 0.0
        %v1137 = vmax.f32 %v1017, 0.0
        %v1138 = vmax.f32 %v1019, 0.0
        %v1139 = vmax.f32 %v682, 0.0
        %v1140 = vmax.f32 %v684, 0.0
        %v1141 = vmax.f32 %v795, 0.0
        %v1142 = vmax.f32 %v797, 0.0
        %v1143 = vmax.f32 %v908, 0.0
        %v1144 = vmax.f32 %v910, 0.0
        %v1145 = vmax.f32 %v1021, 0.0
        %v1146 = vmax.f32 %v1023, 0.0
        %v1147 = vmax.f32 %v688, 0.0
        %v1148 = vmax.f32 %v690, 0.0
        %v1149 = vmax.f32 %v801, 0.0
        %v1150 = vmax.f32 %v803, 0.0
        %v1151 = vmax.f32 %v914, 0.0
        %v1152 = vmax.f32 %v916, 0.0
        %v1153 = vmax.f32 %v1027, 0.0
        %v1154 = vmax.f32 %v1029, 0.0
        %v1155 = vmax.f32 %v692, 0.0
        %v1156 = vmax.f32 %v694, 0.0
        %v1157 = vmax.f32 %v805, 0.0
        %v1158 = vmax.f32 %v807, 0.0
        %v1159 = vmax.f32 %v918, 0.0
        %v1160 = vmax.f32 %v920, 0.0
        %v1161 = vmax.f32 %v1031, 0.0
        %v1162 = vmax.f32 %v1033, 0.0
        %1163 = vst [vmem:[%s285] sm:$0xff] %v1035
        %1164 = vst [vmem:[%s285 + $0x8] sm:$0xff] %v1036
        %1165 = vst [vmem:[%s285 + $0x10] sm:$0xff] %v1037
        %1166 = vst [vmem:[%s285 + $0x18] sm:$0xff] %v1038
        %1167 = vst [vmem:[%s285 + $0x20] sm:$0xff] %v1039
        %1168 = vst [vmem:[%s285 + $0x28] sm:$0xff] %v1040
        %1169 = vst [vmem:[%s285 + $0x30] sm:$0xff] %v1041
        %1170 = vst [vmem:[%s285 + $0x38] sm:$0xff] %v1042
        %1171 = vst [vmem:[%s285 + $0x40] sm:$0xff] %v1043
        %1172 = vst [vmem:[%s285 + $0x48] sm:$0xff] %v1044
        %1173 = vst [vmem:[%s285 + $0x50] sm:$0xff] %v1045
        %1174 = vst [vmem:[%s285 + $0x58] sm:$0xff] %v1046
        %1175 = vst [vmem:[%s285 + $0x60] sm:$0xff] %v1047
        %1176 = vst [vmem:[%s285 + $0x68] sm:$0xff] %v1048
        %1177 = vst [vmem:[%s285 + $0x70] sm:$0xff] %v1049
        %1178 = vst [vmem:[%s285 + $0x78] sm:$0xff] %v1050
        %1179 = vst [vmem:[%s285 + $0x80] sm:$0xff] %v1051
        %1180 = vst [vmem:[%s285 + $0x88] sm:$0xff] %v1052
        %1181 = vst [vmem:[%s285 + $0x90] sm:$0xff] %v1053
        %1182 = vst [vmem:[%s285 + $0x98] sm:$0xff] %v1054
        %1183 = vst [vmem:[%s285 + $0xa0] sm:$0xff] %v1055
        %1184 = vst [vmem:[%s285 + $0xa8] sm:$0xff] %v1056
        %1185 = vst [vmem:[%s285 + $0xb0] sm:$0xff] %v1057
        %1186 = vst [vmem:[%s285 + $0xb8] sm:$0xff] %v1058
        %1187 = vst [vmem:[%s285 + $0xc0] sm:$0xff] %v1059
        %1188 = vst [vmem:[%s285 + $0xc8] sm:$0xff] %v1060
        %1189 = vst [vmem:[%s285 + $0xd0] sm:$0xff] %v1061
        %1190 = vst [vmem:[%s285 + $0xd8] sm:$0xff] %v1062
        %1191 = vst [vmem:[%s285 + $0xe0] sm:$0xff] %v1063
        %1192 = vst [vmem:[%s285 + $0xe8] sm:$0xff] %v1064
        %1193 = vst [vmem:[%s285 + $0xf0] sm:$0xff] %v1065
        %1194 = vst [vmem:[%s285 + $0xf8] sm:$0xff] %v1066
        %1195 = vst [vmem:[%s285 + $0x100] sm:$0xff] %v1067
        %1196 = vst [vmem:[%s285 + $0x108] sm:$0xff] %v1068
        %1197 = vst [vmem:[%s285 + $0x110] sm:$0xff] %v1069
        %1198 = vst [vmem:[%s285 + $0x118] sm:$0xff] %v1070
        %1199 = vst [vmem:[%s285 + $0x120] sm:$0xff] %v1071
        %1200 = vst [vmem:[%s285 + $0x128] sm:$0xff] %v1072
        %1201 = vst [vmem:[%s285 + $0x130] sm:$0xff] %v1073
        %1202 = vst [vmem:[%s285 + $0x138] sm:$0xff] %v1074
        %1203 = vst [vmem:[%s285 + $0x140] sm:$0xff] %v1075
        %1204 = vst [vmem:[%s285 + $0x148] sm:$0xff] %v1076
        %1205 = vst [vmem:[%s285 + $0x150] sm:$0xff] %v1077
        %1206 = vst [vmem:[%s285 + $0x158] sm:$0xff] %v1078
        %1207 = vst [vmem:[%s285 + $0x160] sm:$0xff] %v1079
        %1208 = vst [vmem:[%s285 + $0x168] sm:$0xff] %v1080
        %1209 = vst [vmem:[%s285 + $0x170] sm:$0xff] %v1081
        %1210 = vst [vmem:[%s285 + $0x178] sm:$0xff] %v1082
        %1211 = vst [vmem:[%s285 + $0x180] sm:$0xff] %v1083
        %1212 = vst [vmem:[%s285 + $0x188] sm:$0xff] %v1084
        %1213 = vst [vmem:[%s285 + $0x190] sm:$0xff] %v1085
        %1214 = vst [vmem:[%s285 + $0x198] sm:$0xff] %v1086
        %1215 = vst [vmem:[%s285 + $0x1a0] sm:$0xff] %v1087
        %1216 = vst [vmem:[%s285 + $0x1a8] sm:$0xff] %v1088
        %1217 = vst [vmem:[%s285 + $0x1b0] sm:$0xff] %v1089
        %1218 = vst [vmem:[%s285 + $0x1b8] sm:$0xff] %v1090
        %1219 = vst [vmem:[%s285 + $0x1c0] sm:$0xff] %v1091
        %1220 = vst [vmem:[%s285 + $0x1c8] sm:$0xff] %v1092
        %1221 = vst [vmem:[%s285 + $0x1d0] sm:$0xff] %v1093
        %1222 = vst [vmem:[%s285 + $0x1d8] sm:$0xff] %v1094
        %1223 = vst [vmem:[%s285 + $0x1e0] sm:$0xff] %v1095
        %1224 = vst [vmem:[%s285 + $0x1e8] sm:$0xff] %v1096
        %1225 = vst [vmem:[%s285 + $0x1f0] sm:$0xff] %v1097
        %1226 = vst [vmem:[%s285 + $0x1f8] sm:$0xff] %v1098
        %1227 = vst [vmem:[%s285 + $0x200] sm:$0xff] %v1099
        %1228 = vst [vmem:[%s285 + $0x208] sm:$0xff] %v1100
        %1229 = vst [vmem:[%s285 + $0x210] sm:$0xff] %v1101
        %1230 = vst [vmem:[%s285 + $0x218] sm:$0xff] %v1102
        %1231 = vst [vmem:[%s285 + $0x220] sm:$0xff] %v1103
        %1232 = vst [vmem:[%s285 + $0x228] sm:$0xff] %v1104
        %1233 = vst [vmem:[%s285 + $0x230] sm:$0xff] %v1105
        %1234 = vst [vmem:[%s285 + $0x238] sm:$0xff] %v1106
        %1235 = vst [vmem:[%s285 + $0x240] sm:$0xff] %v1107
        %1236 = vst [vmem:[%s285 + $0x248] sm:$0xff] %v1108
        %1237 = vst [vmem:[%s285 + $0x250] sm:$0xff] %v1109
        %1238 = vst [vmem:[%s285 + $0x258] sm:$0xff] %v1110
        %1239 = vst [vmem:[%s285 + $0x260] sm:$0xff] %v1111
        %1240 = vst [vmem:[%s285 + $0x268] sm:$0xff] %v1112
        %1241 = vst [vmem:[%s285 + $0x270] sm:$0xff] %v1113
        %1242 = vst [vmem:[%s285 + $0x278] sm:$0xff] %v1114
        %1243 = vst [vmem:[%s285 + $0x280] sm:$0xff] %v1115
        %1244 = vst [vmem:[%s285 + $0x288] sm:$0xff] %v1116
        %1245 = vst [vmem:[%s285 + $0x290] sm:$0xff] %v1117
        %1246 = vst [vmem:[%s285 + $0x298] sm:$0xff] %v1118
        %1247 = vst [vmem:[%s285 + $0x2a0] sm:$0xff] %v1119
        %1248 = vst [vmem:[%s285 + $0x2a8] sm:$0xff] %v1120
        %1249 = vst [vmem:[%s285 + $0x2b0] sm:$0xff] %v1121
        %1250 = vst [vmem:[%s285 + $0x2b8] sm:$0xff] %v1122
        %1251 = vst [vmem:[%s285 + $0x2c0] sm:$0xff] %v1123
        %1252 = vst [vmem:[%s285 + $0x2c8] sm:$0xff] %v1124
        %1253 = vst [vmem:[%s285 + $0x2d0] sm:$0xff] %v1125
        %1254 = vst [vmem:[%s285 + $0x2d8] sm:$0xff] %v1126
        %1255 = vst [vmem:[%s285 + $0x2e0] sm:$0xff] %v1127
        %1256 = vst [vmem:[%s285 + $0x2e8] sm:$0xff] %v1128
        %1257 = vst [vmem:[%s285 + $0x2f0] sm:$0xff] %v1129
        %1258 = vst [vmem:[%s285 + $0x2f8] sm:$0xff] %v1130
        %1259 = vst [vmem:[%s285 + $0x300] sm:$0xff] %v1131
        %1260 = vst [vmem:[%s285 + $0x308] sm:$0xff] %v1132
        %1261 = vst [vmem:[%s285 + $0x310] sm:$0xff] %v1133
        %1262 = vst [vmem:[%s285 + $0x318] sm:$0xff] %v1134
        %1263 = vst [vmem:[%s285 + $0x320] sm:$0xff] %v1135
        %1264 = vst [vmem:[%s285 + $0x328] sm:$0xff] %v1136
        %1265 = vst [vmem:[%s285 + $0x330] sm:$0xff] %v1137
        %1266 = vst [vmem:[%s285 + $0x338] sm:$0xff] %v1138
        %1267 = vst [vmem:[%s285 + $0x340] sm:$0xff] %v1139
        %1268 = vst [vmem:[%s285 + $0x348] sm:$0xff] %v1140
        %1269 = vst [vmem:[%s285 + $0x350] sm:$0xff] %v1141
        %1270 = vst [vmem:[%s285 + $0x358] sm:$0xff] %v1142
        %1271 = vst [vmem:[%s285 + $0x360] sm:$0xff] %v1143
        %1272 = vst [vmem:[%s285 + $0x368] sm:$0xff] %v1144
        %1273 = vst [vmem:[%s285 + $0x370] sm:$0xff] %v1145
        %1274 = vst [vmem:[%s285 + $0x378] sm:$0xff] %v1146
        %1275 = vst [vmem:[%s285 + $0x380] sm:$0xff] %v1147
        %1276 = vst [vmem:[%s285 + $0x388] sm:$0xff] %v1148
        %1277 = vst [vmem:[%s285 + $0x390] sm:$0xff] %v1149
        %1278 = vst [vmem:[%s285 + $0x398] sm:$0xff] %v1150
        %1279 = vst [vmem:[%s285 + $0x3a0] sm:$0xff] %v1151
        %1280 = vst [vmem:[%s285 + $0x3a8] sm:$0xff] %v1152
        %1281 = vst [vmem:[%s285 + $0x3b0] sm:$0xff] %v1153
        %1282 = vst [vmem:[%s285 + $0x3b8] sm:$0xff] %v1154
        %1283 = vst [vmem:[%s285 + $0x3c0] sm:$0xff] %v1155
        %1284 = vst [vmem:[%s285 + $0x3c8] sm:$0xff] %v1156
        %1285 = vst [vmem:[%s285 + $0x3d0] sm:$0xff] %v1157
        %1286 = vst [vmem:[%s285 + $0x3d8] sm:$0xff] %v1158
        %1287 = vst [vmem:[%s285 + $0x3e0] sm:$0xff] %v1159
        %1288 = vst [vmem:[%s285 + $0x3e8] sm:$0xff] %v1160
        %1289 = vst [vmem:[%s285 + $0x3f0] sm:$0xff] %v1161
        %1290 = vst [vmem:[%s285 + $0x3f8] sm:$0xff] %v1162
        %v1291 = vld [vmem:[#allocation2] sm:$0xf]
        %v1292 = vld [vmem:[#allocation2 + $0x4] sm:$0xf]
        %v1293 = vld [vmem:[#allocation2 + $0x8] sm:$0xf]
        %v1294 = vld [vmem:[#allocation2 + $0xc] sm:$0xf]
        %v1295 = vld [vmem:[#allocation2 + $0x10] sm:$0xf]
        %v1296 = vld [vmem:[#allocation2 + $0x14] sm:$0xf]
        %v1297 = vld [vmem:[#allocation2 + $0x18] sm:$0xf]
        %v1298 = vld [vmem:[#allocation2 + $0x1c] sm:$0xf]
        %v1299 = vld [vmem:[#allocation2 + $0x20] sm:$0xf]
        %v1300 = vld [vmem:[#allocation2 + $0x24] sm:$0xf]
        %v1301 = vld [vmem:[#allocation2 + $0x28] sm:$0xf]
        %v1302 = vld [vmem:[#allocation2 + $0x2c] sm:$0xf]
        %v1303 = vld [vmem:[#allocation2 + $0x30] sm:$0xf]
        %v1304 = vld [vmem:[#allocation2 + $0x34] sm:$0xf]
        %v1305 = vld [vmem:[#allocation2 + $0x38] sm:$0xf]
        %v1306 = vld [vmem:[#allocation2 + $0x3c] sm:$0xf]
        %v1307 = vld [vmem:[#allocation2 + $0x40] sm:$0xf]
        %v1308 = vld [vmem:[#allocation2 + $0x44] sm:$0xf]
        %v1309 = vld [vmem:[#allocation2 + $0x48] sm:$0xf]
        %v1310 = vld [vmem:[#allocation2 + $0x4c] sm:$0xf]
        %v1311 = vld [vmem:[#allocation2 + $0x50] sm:$0xf]
        %v1312 = vld [vmem:[#allocation2 + $0x54] sm:$0xf]
        %v1313 = vld [vmem:[#allocation2 + $0x58] sm:$0xf]
        %v1314 = vld [vmem:[#allocation2 + $0x5c] sm:$0xf]
        %v1315 = vld [vmem:[#allocation2 + $0x60] sm:$0xf]
        %v1316 = vld [vmem:[#allocation2 + $0x64] sm:$0xf]
        %v1317 = vld [vmem:[#allocation2 + $0x68] sm:$0xf]
        %v1318 = vld [vmem:[#allocation2 + $0x6c] sm:$0xf]
        %v1319 = vld [vmem:[#allocation2 + $0x70] sm:$0xf]
        %v1320 = vld [vmem:[#allocation2 + $0x74] sm:$0xf]
        %v1321 = vld [vmem:[#allocation2 + $0x78] sm:$0xf]
        %v1322 = vld [vmem:[#allocation2 + $0x7c] sm:$0xf]
        %v1323 = vld [vmem:[#allocation2 + $0x80] sm:$0xf]
        %v1324 = vld [vmem:[#allocation2 + $0x84] sm:$0xf]
        %v1325 = vld [vmem:[#allocation2 + $0x88] sm:$0xf]
        %v1326 = vld [vmem:[#allocation2 + $0x8c] sm:$0xf]
        %v1327 = vld [vmem:[#allocation2 + $0x90] sm:$0xf]
        %v1328 = vld [vmem:[#allocation2 + $0x94] sm:$0xf]
        %v1329 = vld [vmem:[#allocation2 + $0x98] sm:$0xf]
        %v1330 = vld [vmem:[#allocation2 + $0x9c] sm:$0xf]
        %v1331 = vld [vmem:[#allocation2 + $0xa0] sm:$0xf]
        %v1332 = vld [vmem:[#allocation2 + $0xa4] sm:$0xf]
        %v1333 = vld [vmem:[#allocation2 + $0xa8] sm:$0xf]
        %v1334 = vld [vmem:[#allocation2 + $0xac] sm:$0xf]
        %v1335 = vld [vmem:[#allocation2 + $0xb0] sm:$0xf]
        %v1336 = vld [vmem:[#allocation2 + $0xb4] sm:$0xf]
        %v1337 = vld [vmem:[#allocation2 + $0xb8] sm:$0xf]
        %v1338 = vld [vmem:[#allocation2 + $0xbc] sm:$0xf]
        %v1339 = vld [vmem:[#allocation2 + $0xc0] sm:$0xf]
        %v1340 = vld [vmem:[#allocation2 + $0xc4] sm:$0xf]
        %v1341 = vld [vmem:[#allocation2 + $0xc8] sm:$0xf]
        %v1342 = vld [vmem:[#allocation2 + $0xcc] sm:$0xf]
        %v1343 = vld [vmem:[#allocation2 + $0xd0] sm:$0xf]
        %v1344 = vld [vmem:[#allocation2 + $0xd4] sm:$0xf]
        %v1345 = vld [vmem:[#allocation2 + $0xd8] sm:$0xf]
        %v1346 = vld [vmem:[#allocation2 + $0xdc] sm:$0xf]
        %v1347 = vld [vmem:[#allocation2 + $0xe0] sm:$0xf]
        %v1348 = vld [vmem:[#allocation2 + $0xe4] sm:$0xf]
        %v1349 = vld [vmem:[#allocation2 + $0xe8] sm:$0xf]
        %v1350 = vld [vmem:[#allocation2 + $0xec] sm:$0xf]
        %v1351 = vld [vmem:[#allocation2 + $0xf0] sm:$0xf]
        %v1352 = vld [vmem:[#allocation2 + $0xf4] sm:$0xf]
        %v1353 = vld [vmem:[#allocation2 + $0xf8] sm:$0xf]
        %v1354 = vld [vmem:[#allocation2 + $0xfc] sm:$0xf]
        %v1355 = vld [vmem:[#allocation2 + $0x100] sm:$0xf]
        %v1356 = vld [vmem:[#allocation2 + $0x104] sm:$0xf]
        %v1357 = vld [vmem:[#allocation2 + $0x108] sm:$0xf]
        %v1358 = vld [vmem:[#allocation2 + $0x10c] sm:$0xf]
        %v1359 = vld [vmem:[#allocation2 + $0x110] sm:$0xf]
        %v1360 = vld [vmem:[#allocation2 + $0x114] sm:$0xf]
        %v1361 = vld [vmem:[#allocation2 + $0x118] sm:$0xf]
        %v1362 = vld [vmem:[#allocation2 + $0x11c] sm:$0xf]
        %v1363 = vld [vmem:[#allocation2 + $0x120] sm:$0xf]
        %v1364 = vld [vmem:[#allocation2 + $0x124] sm:$0xf]
        %v1365 = vld [vmem:[#allocation2 + $0x128] sm:$0xf]
        %v1366 = vld [vmem:[#allocation2 + $0x12c] sm:$0xf]
        %v1367 = vld [vmem:[#allocation2 + $0x130] sm:$0xf]
        %v1368 = vld [vmem:[#allocation2 + $0x134] sm:$0xf]
        %v1369 = vld [vmem:[#allocation2 + $0x138] sm:$0xf]
        %v1370 = vld [vmem:[#allocation2 + $0x13c] sm:$0xf]
        %v1371 = vld [vmem:[#allocation2 + $0x140] sm:$0xf]
        %v1372 = vld [vmem:[#allocation2 + $0x144] sm:$0xf]
        %v1373 = vld [vmem:[#allocation2 + $0x148] sm:$0xf]
        %v1374 = vld [vmem:[#allocation2 + $0x14c] sm:$0xf]
        %v1375 = vld [vmem:[#allocation2 + $0x150] sm:$0xf]
        %v1376 = vld [vmem:[#allocation2 + $0x154] sm:$0xf]
        %v1377 = vld [vmem:[#allocation2 + $0x158] sm:$0xf]
        %v1378 = vld [vmem:[#allocation2 + $0x15c] sm:$0xf]
        %v1379 = vld [vmem:[#allocation2 + $0x160] sm:$0xf]
        %v1380 = vld [vmem:[#allocation2 + $0x164] sm:$0xf]
        %v1381 = vld [vmem:[#allocation2 + $0x168] sm:$0xf]
        %v1382 = vld [vmem:[#allocation2 + $0x16c] sm:$0xf]
        %v1383 = vld [vmem:[#allocation2 + $0x170] sm:$0xf]
        %v1384 = vld [vmem:[#allocation2 + $0x174] sm:$0xf]
        %v1385 = vld [vmem:[#allocation2 + $0x178] sm:$0xf]
        %v1386 = vld [vmem:[#allocation2 + $0x17c] sm:$0xf]
        %v1387 = vld [vmem:[#allocation2 + $0x180] sm:$0xf]
        %v1388 = vld [vmem:[#allocation2 + $0x184] sm:$0xf]
        %v1389 = vld [vmem:[#allocation2 + $0x188] sm:$0xf]
        %v1390 = vld [vmem:[#allocation2 + $0x18c] sm:$0xf]
        %v1391 = vld [vmem:[#allocation2 + $0x190] sm:$0xf]
        %v1392 = vld [vmem:[#allocation2 + $0x194] sm:$0xf]
        %v1393 = vld [vmem:[#allocation2 + $0x198] sm:$0xf]
        %v1394 = vld [vmem:[#allocation2 + $0x19c] sm:$0xf]
        %v1395 = vld [vmem:[#allocation2 + $0x1a0] sm:$0xf]
        %v1396 = vld [vmem:[#allocation2 + $0x1a4] sm:$0xf]
        %v1397 = vld [vmem:[#allocation2 + $0x1a8] sm:$0xf]
        %v1398 = vld [vmem:[#allocation2 + $0x1ac] sm:$0xf]
        %v1399 = vld [vmem:[#allocation2 + $0x1b0] sm:$0xf]
        %v1400 = vld [vmem:[#allocation2 + $0x1b4] sm:$0xf]
        %v1401 = vld [vmem:[#allocation2 + $0x1b8] sm:$0xf]
        %v1402 = vld [vmem:[#allocation2 + $0x1bc] sm:$0xf]
        %v1403 = vld [vmem:[#allocation2 + $0x1c0] sm:$0xf]
        %v1404 = vld [vmem:[#allocation2 + $0x1c4] sm:$0xf]
        %v1405 = vld [vmem:[#allocation2 + $0x1c8] sm:$0xf]
        %v1406 = vld [vmem:[#allocation2 + $0x1cc] sm:$0xf]
        %v1407 = vld [vmem:[#allocation2 + $0x1d0] sm:$0xf]
        %v1408 = vld [vmem:[#allocation2 + $0x1d4] sm:$0xf]
        %v1409 = vld [vmem:[#allocation2 + $0x1d8] sm:$0xf]
        %v1410 = vld [vmem:[#allocation2 + $0x1dc] sm:$0xf]
        %v1411 = vld [vmem:[#allocation2 + $0x1e0] sm:$0xf]
        %v1412 = vld [vmem:[#allocation2 + $0x1e4] sm:$0xf]
        %v1413 = vld [vmem:[#allocation2 + $0x1e8] sm:$0xf]
        %v1414 = vld [vmem:[#allocation2 + $0x1ec] sm:$0xf]
        %v1415 = vld [vmem:[#allocation2 + $0x1f0] sm:$0xf]
        %v1416 = vld [vmem:[#allocation2 + $0x1f4] sm:$0xf]
        %v1417 = vld [vmem:[#allocation2 + $0x1f8] sm:$0xf]
        %v1418 = vld [vmem:[#allocation2 + $0x1fc] sm:$0xf]
        %v1419 = vpack.c.bf16 %v1043, %v1035
        %v1420 = vpack.c.bf16 %v1044, %v1036
        %v1421 = vpack.c.bf16 %v1045, %v1037
        %v1422 = vpack.c.bf16 %v1046, %v1038
        %v1423 = vpack.c.bf16 %v1047, %v1039
        %v1424 = vpack.c.bf16 %v1048, %v1040
        %v1425 = vpack.c.bf16 %v1049, %v1041
        %v1426 = vpack.c.bf16 %v1050, %v1042
        %v1427 = vpack.c.bf16 %v1059, %v1051
        %v1428 = vpack.c.bf16 %v1060, %v1052
        %v1429 = vpack.c.bf16 %v1061, %v1053
        %v1430 = vpack.c.bf16 %v1062, %v1054
        %v1431 = vpack.c.bf16 %v1063, %v1055
        %v1432 = vpack.c.bf16 %v1064, %v1056
        %v1433 = vpack.c.bf16 %v1065, %v1057
        %v1434 = vpack.c.bf16 %v1066, %v1058
        %v1435 = vpack.c.bf16 %v1075, %v1067
        %v1436 = vpack.c.bf16 %v1076, %v1068
        %v1437 = vpack.c.bf16 %v1077, %v1069
        %v1438 = vpack.c.bf16 %v1078, %v1070
        %v1439 = vpack.c.bf16 %v1079, %v1071
        %v1440 = vpack.c.bf16 %v1080, %v1072
        %v1441 = vpack.c.bf16 %v1081, %v1073
        %v1442 = vpack.c.bf16 %v1082, %v1074
        %v1443 = vpack.c.bf16 %v1091, %v1083
        %v1444 = vpack.c.bf16 %v1092, %v1084
        %v1445 = vpack.c.bf16 %v1093, %v1085
        %v1446 = vpack.c.bf16 %v1094, %v1086
        %v1447 = vpack.c.bf16 %v1095, %v1087
        %v1448 = vpack.c.bf16 %v1096, %v1088
        %v1449 = vpack.c.bf16 %v1097, %v1089
        %v1450 = vpack.c.bf16 %v1098, %v1090
        %v1451 = vpack.c.bf16 %v1107, %v1099
        %v1452 = vpack.c.bf16 %v1108, %v1100
        %v1453 = vpack.c.bf16 %v1109, %v1101
        %v1454 = vpack.c.bf16 %v1110, %v1102
        %v1455 = vpack.c.bf16 %v1111, %v1103
        %v1456 = vpack.c.bf16 %v1112, %v1104
        %v1457 = vpack.c.bf16 %v1113, %v1105
        %v1458 = vpack.c.bf16 %v1114, %v1106
        %v1459 = vpack.c.bf16 %v1123, %v1115
        %v1460 = vpack.c.bf16 %v1124, %v1116
        %v1461 = vpack.c.bf16 %v1125, %v1117
        %v1462 = vpack.c.bf16 %v1126, %v1118
        %v1463 = vpack.c.bf16 %v1127, %v1119
        %v1464 = vpack.c.bf16 %v1128, %v1120
        %v1465 = vpack.c.bf16 %v1129, %v1121
        %v1466 = vpack.c.bf16 %v1130, %v1122
        %v1467 = vpack.c.bf16 %v1139, %v1131
        %v1468 = vpack.c.bf16 %v1140, %v1132
        %v1469 = vpack.c.bf16 %v1141, %v1133
        %v1470 = vpack.c.bf16 %v1142, %v1134
        %v1471 = vpack.c.bf16 %v1143, %v1135
        %v1472 = vpack.c.bf16 %v1144, %v1136
        %v1473 = vpack.c.bf16 %v1145, %v1137
        %v1474 = vpack.c.bf16 %v1146, %v1138
        %v1475 = vpack.c.bf16 %v1155, %v1147
        %v1476 = vpack.c.bf16 %v1156, %v1148
        %v1477 = vpack.c.bf16 %v1157, %v1149
        %v1478 = vpack.c.bf16 %v1158, %v1150
        %v1479 = vpack.c.bf16 %v1159, %v1151
        %v1480 = vpack.c.bf16 %v1160, %v1152
        %v1481 = vpack.c.bf16 %v1161, %v1153
        %v1482 = vpack.c.bf16 %v1162, %v1154
        %v1483 = vld [vmem:[%s4] sm:$0xff]
        %v1484 = vld [vmem:[%s4 + $0x8] sm:$0xff]
        %v1485 = vld [vmem:[%s4 + $0x10] sm:$0xff]
        %v1486 = vld [vmem:[%s4 + $0x18] sm:$0xff]
        %v1487 = vld [vmem:[%s4 + $0x20] sm:$0xff]
        %v1488 = vld [vmem:[%s4 + $0x28] sm:$0xff]
        %v1489 = vld [vmem:[%s4 + $0x30] sm:$0xff]
        %v1490 = vld [vmem:[%s4 + $0x38] sm:$0xff]
        %v1491 = vld [vmem:[%s4 + $0x40] sm:$0xff]
        %v1492 = vld [vmem:[%s4 + $0x48] sm:$0xff]
        %v1493 = vld [vmem:[%s4 + $0x50] sm:$0xff]
        %v1494 = vld [vmem:[%s4 + $0x58] sm:$0xff]
        %v1495 = vld [vmem:[%s4 + $0x60] sm:$0xff]
        %v1496 = vld [vmem:[%s4 + $0x68] sm:$0xff]
        %v1497 = vld [vmem:[%s4 + $0x70] sm:$0xff]
        %v1498 = vld [vmem:[%s4 + $0x78] sm:$0xff]
        %v1499 = vld [vmem:[%s4 + $0x80] sm:$0xff]
        %v1500 = vld [vmem:[%s4 + $0x88] sm:$0xff]
        %v1501 = vld [vmem:[%s4 + $0x90] sm:$0xff]
        %v1502 = vld [vmem:[%s4 + $0x98] sm:$0xff]
        %v1503 = vld [vmem:[%s4 + $0xa0] sm:$0xff]
        %v1504 = vld [vmem:[%s4 + $0xa8] sm:$0xff]
        %v1505 = vld [vmem:[%s4 + $0xb0] sm:$0xff]
        %v1506 = vld [vmem:[%s4 + $0xb8] sm:$0xff]
        %v1507 = vld [vmem:[%s4 + $0xc0] sm:$0xff]
        %v1508 = vld [vmem:[%s4 + $0xc8] sm:$0xff]
        %v1509 = vld [vmem:[%s4 + $0xd0] sm:$0xff]
        %v1510 = vld [vmem:[%s4 + $0xd8] sm:$0xff]
        %v1511 = vld [vmem:[%s4 + $0xe0] sm:$0xff]
        %v1512 = vld [vmem:[%s4 + $0xe8] sm:$0xff]
        %v1513 = vld [vmem:[%s4 + $0xf0] sm:$0xff]
        %v1514 = vld [vmem:[%s4 + $0xf8] sm:$0xff]
        %v1515 = vld [vmem:[%s4 + $0x100] sm:$0xff]
        %v1516 = vld [vmem:[%s4 + $0x108] sm:$0xff]
        %v1517 = vld [vmem:[%s4 + $0x110] sm:$0xff]
        %v1518 = vld [vmem:[%s4 + $0x118] sm:$0xff]
        %v1519 = vld [vmem:[%s4 + $0x120] sm:$0xff]
        %v1520 = vld [vmem:[%s4 + $0x128] sm:$0xff]
        %v1521 = vld [vmem:[%s4 + $0x130] sm:$0xff]
        %v1522 = vld [vmem:[%s4 + $0x138] sm:$0xff]
        %v1523 = vld [vmem:[%s4 + $0x140] sm:$0xff]
        %v1524 = vld [vmem:[%s4 + $0x148] sm:$0xff]
        %v1525 = vld [vmem:[%s4 + $0x150] sm:$0xff]
        %v1526 = vld [vmem:[%s4 + $0x158] sm:$0xff]
        %v1527 = vld [vmem:[%s4 + $0x160] sm:$0xff]
        %v1528 = vld [vmem:[%s4 + $0x168] sm:$0xff]
        %v1529 = vld [vmem:[%s4 + $0x170] sm:$0xff]
        %v1530 = vld [vmem:[%s4 + $0x178] sm:$0xff]
        %v1531 = vld [vmem:[%s4 + $0x180] sm:$0xff]
        %v1532 = vld [vmem:[%s4 + $0x188] sm:$0xff]
        %v1533 = vld [vmem:[%s4 + $0x190] sm:$0xff]
        %v1534 = vld [vmem:[%s4 + $0x198] sm:$0xff]
        %v1535 = vld [vmem:[%s4 + $0x1a0] sm:$0xff]
        %v1536 = vld [vmem:[%s4 + $0x1a8] sm:$0xff]
        %v1537 = vld [vmem:[%s4 + $0x1b0] sm:$0xff]
        %v1538 = vld [vmem:[%s4 + $0x1b8] sm:$0xff]
        %v1539 = vld [vmem:[%s4 + $0x1c0] sm:$0xff]
        %v1540 = vld [vmem:[%s4 + $0x1c8] sm:$0xff]
        %v1541 = vld [vmem:[%s4 + $0x1d0] sm:$0xff]
        %v1542 = vld [vmem:[%s4 + $0x1d8] sm:$0xff]
        %v1543 = vld [vmem:[%s4 + $0x1e0] sm:$0xff]
        %v1544 = vld [vmem:[%s4 + $0x1e8] sm:$0xff]
        %v1545 = vld [vmem:[%s4 + $0x1f0] sm:$0xff]
        %v1546 = vld [vmem:[%s4 + $0x1f8] sm:$0xff]
        %v1547 = vld [vmem:[%s4 + $0x200] sm:$0xff]
        %v1548 = vld [vmem:[%s4 + $0x208] sm:$0xff]
        %v1549 = vld [vmem:[%s4 + $0x210] sm:$0xff]
        %v1550 = vld [vmem:[%s4 + $0x218] sm:$0xff]
        %v1551 = vld [vmem:[%s4 + $0x220] sm:$0xff]
        %v1552 = vld [vmem:[%s4 + $0x228] sm:$0xff]
        %v1553 = vld [vmem:[%s4 + $0x230] sm:$0xff]
        %v1554 = vld [vmem:[%s4 + $0x238] sm:$0xff]
        %v1555 = vld [vmem:[%s4 + $0x240] sm:$0xff]
        %v1556 = vld [vmem:[%s4 + $0x248] sm:$0xff]
        %v1557 = vld [vmem:[%s4 + $0x250] sm:$0xff]
        %v1558 = vld [vmem:[%s4 + $0x258] sm:$0xff]
        %v1559 = vld [vmem:[%s4 + $0x260] sm:$0xff]
        %v1560 = vld [vmem:[%s4 + $0x268] sm:$0xff]
        %v1561 = vld [vmem:[%s4 + $0x270] sm:$0xff]
        %v1562 = vld [vmem:[%s4 + $0x278] sm:$0xff]
        %v1563 = vld [vmem:[%s4 + $0x280] sm:$0xff]
        %v1564 = vld [vmem:[%s4 + $0x288] sm:$0xff]
        %v1565 = vld [vmem:[%s4 + $0x290] sm:$0xff]
        %v1566 = vld [vmem:[%s4 + $0x298] sm:$0xff]
        %v1567 = vld [vmem:[%s4 + $0x2a0] sm:$0xff]
        %v1568 = vld [vmem:[%s4 + $0x2a8] sm:$0xff]
        %v1569 = vld [vmem:[%s4 + $0x2b0] sm:$0xff]
        %v1570 = vld [vmem:[%s4 + $0x2b8] sm:$0xff]
        %v1571 = vld [vmem:[%s4 + $0x2c0] sm:$0xff]
        %v1572 = vld [vmem:[%s4 + $0x2c8] sm:$0xff]
        %v1573 = vld [vmem:[%s4 + $0x2d0] sm:$0xff]
        %v1574 = vld [vmem:[%s4 + $0x2d8] sm:$0xff]
        %v1575 = vld [vmem:[%s4 + $0x2e0] sm:$0xff]
        %v1576 = vld [vmem:[%s4 + $0x2e8] sm:$0xff]
        %v1577 = vld [vmem:[%s4 + $0x2f0] sm:$0xff]
        %v1578 = vld [vmem:[%s4 + $0x2f8] sm:$0xff]
        %v1579 = vld [vmem:[%s4 + $0x300] sm:$0xff]
        %v1580 = vld [vmem:[%s4 + $0x308] sm:$0xff]
        %v1581 = vld [vmem:[%s4 + $0x310] sm:$0xff]
        %v1582 = vld [vmem:[%s4 + $0x318] sm:$0xff]
        %v1583 = vld [vmem:[%s4 + $0x320] sm:$0xff]
        %v1584 = vld [vmem:[%s4 + $0x328] sm:$0xff]
        %v1585 = vld [vmem:[%s4 + $0x330] sm:$0xff]
        %v1586 = vld [vmem:[%s4 + $0x338] sm:$0xff]
        %v1587 = vld [vmem:[%s4 + $0x340] sm:$0xff]
        %v1588 = vld [vmem:[%s4 + $0x348] sm:$0xff]
        %v1589 = vld [vmem:[%s4 + $0x350] sm:$0xff]
        %v1590 = vld [vmem:[%s4 + $0x358] sm:$0xff]
        %v1591 = vld [vmem:[%s4 + $0x360] sm:$0xff]
        %v1592 = vld [vmem:[%s4 + $0x368] sm:$0xff]
        %v1593 = vld [vmem:[%s4 + $0x370] sm:$0xff]
        %v1594 = vld [vmem:[%s4 + $0x378] sm:$0xff]
        %v1595 = vld [vmem:[%s4 + $0x380] sm:$0xff]
        %v1596 = vld [vmem:[%s4 + $0x388] sm:$0xff]
        %v1597 = vld [vmem:[%s4 + $0x390] sm:$0xff]
        %v1598 = vld [vmem:[%s4 + $0x398] sm:$0xff]
        %v1599 = vld [vmem:[%s4 + $0x3a0] sm:$0xff]
        %v1600 = vld [vmem:[%s4 + $0x3a8] sm:$0xff]
        %v1601 = vld [vmem:[%s4 + $0x3b0] sm:$0xff]
        %v1602 = vld [vmem:[%s4 + $0x3b8] sm:$0xff]
        %v1603 = vld [vmem:[%s4 + $0x3c0] sm:$0xff]
        %v1604 = vld [vmem:[%s4 + $0x3c8] sm:$0xff]
        %v1605 = vld [vmem:[%s4 + $0x3d0] sm:$0xff]
        %v1606 = vld [vmem:[%s4 + $0x3d8] sm:$0xff]
        %v1607 = vld [vmem:[%s4 + $0x3e0] sm:$0xff]
        %v1608 = vld [vmem:[%s4 + $0x3e8] sm:$0xff]
        %v1609 = vld [vmem:[%s4 + $0x3f0] sm:$0xff]
        %v1610 = vld [vmem:[%s4 + $0x3f8] sm:$0xff]
        %1612 = vset.pattern.permute.xlu0 0
        %1613 = vperm.xlu0 %1612, %v1483
        %v1614 = vpop.permute.xlu0 %1613
        %1617 = vset.pattern.permute.xlu0 0
        %1618 = vperm.xlu0 %1617, %v1484
        %v1619 = vpop.permute.xlu0 %1618
        %1622 = vset.pattern.permute.xlu0 0
        %1623 = vperm.xlu0 %1622, %v1485
        %v1624 = vpop.permute.xlu0 %1623
        %1627 = vset.pattern.permute.xlu0 0
        %1628 = vperm.xlu0 %1627, %v1486
        %v1629 = vpop.permute.xlu0 %1628
        %1632 = vset.pattern.permute.xlu0 0
        %1633 = vperm.xlu0 %1632, %v1487
        %v1634 = vpop.permute.xlu0 %1633
        %1637 = vset.pattern.permute.xlu0 0
        %1638 = vperm.xlu0 %1637, %v1488
        %v1639 = vpop.permute.xlu0 %1638
        %1642 = vset.pattern.permute.xlu0 0
        %1643 = vperm.xlu0 %1642, %v1489
        %v1644 = vpop.permute.xlu0 %1643
        %1647 = vset.pattern.permute.xlu0 0
        %1648 = vperm.xlu0 %1647, %v1490
        %v1649 = vpop.permute.xlu0 %1648
        %1652 = vset.pattern.permute.xlu0 0
        %1653 = vperm.xlu0 %1652, %v1491
        %v1654 = vpop.permute.xlu0 %1653
        %1657 = vset.pattern.permute.xlu0 0
        %1658 = vperm.xlu0 %1657, %v1492
        %v1659 = vpop.permute.xlu0 %1658
        %1662 = vset.pattern.permute.xlu0 0
        %1663 = vperm.xlu0 %1662, %v1493
        %v1664 = vpop.permute.xlu0 %1663
        %1667 = vset.pattern.permute.xlu0 0
        %1668 = vperm.xlu0 %1667, %v1494
        %v1669 = vpop.permute.xlu0 %1668
        %1672 = vset.pattern.permute.xlu0 0
        %1673 = vperm.xlu0 %1672, %v1495
        %v1674 = vpop.permute.xlu0 %1673
        %1677 = vset.pattern.permute.xlu0 0
        %1678 = vperm.xlu0 %1677, %v1496
        %v1679 = vpop.permute.xlu0 %1678
        %1682 = vset.pattern.permute.xlu0 0
        %1683 = vperm.xlu0 %1682, %v1497
        %v1684 = vpop.permute.xlu0 %1683
        %1687 = vset.pattern.permute.xlu0 0
        %1688 = vperm.xlu0 %1687, %v1498
        %v1689 = vpop.permute.xlu0 %1688
        %1692 = vset.pattern.permute.xlu0 0
        %1693 = vperm.xlu0 %1692, %v1499
        %v1694 = vpop.permute.xlu0 %1693
        %1697 = vset.pattern.permute.xlu0 0
        %1698 = vperm.xlu0 %1697, %v1500
        %v1699 = vpop.permute.xlu0 %1698
        %1702 = vset.pattern.permute.xlu0 0
        %1703 = vperm.xlu0 %1702, %v1501
        %v1704 = vpop.permute.xlu0 %1703
        %1707 = vset.pattern.permute.xlu0 0
        %1708 = vperm.xlu0 %1707, %v1502
        %v1709 = vpop.permute.xlu0 %1708
        %1712 = vset.pattern.permute.xlu0 0
        %1713 = vperm.xlu0 %1712, %v1503
        %v1714 = vpop.permute.xlu0 %1713
        %1717 = vset.pattern.permute.xlu0 0
        %1718 = vperm.xlu0 %1717, %v1504
        %v1719 = vpop.permute.xlu0 %1718
        %1722 = vset.pattern.permute.xlu0 0
        %1723 = vperm.xlu0 %1722, %v1505
        %v1724 = vpop.permute.xlu0 %1723
        %1727 = vset.pattern.permute.xlu0 0
        %1728 = vperm.xlu0 %1727, %v1506
        %v1729 = vpop.permute.xlu0 %1728
        %1732 = vset.pattern.permute.xlu0 0
        %1733 = vperm.xlu0 %1732, %v1507
        %v1734 = vpop.permute.xlu0 %1733
        %1737 = vset.pattern.permute.xlu0 0
        %1738 = vperm.xlu0 %1737, %v1508
        %v1739 = vpop.permute.xlu0 %1738
        %1742 = vset.pattern.permute.xlu0 0
        %1743 = vperm.xlu0 %1742, %v1509
        %v1744 = vpop.permute.xlu0 %1743
        %1747 = vset.pattern.permute.xlu0 0
        %1748 = vperm.xlu0 %1747, %v1510
        %v1749 = vpop.permute.xlu0 %1748
        %1752 = vset.pattern.permute.xlu0 0
        %1753 = vperm.xlu0 %1752, %v1511
        %v1754 = vpop.permute.xlu0 %1753
        %1757 = vset.pattern.permute.xlu0 0
        %1758 = vperm.xlu0 %1757, %v1512
        %v1759 = vpop.permute.xlu0 %1758
        %1762 = vset.pattern.permute.xlu0 0
        %1763 = vperm.xlu0 %1762, %v1513
        %v1764 = vpop.permute.xlu0 %1763
        %1767 = vset.pattern.permute.xlu0 0
        %1768 = vperm.xlu0 %1767, %v1514
        %v1769 = vpop.permute.xlu0 %1768
        %1772 = vset.pattern.permute.xlu0 0
        %1773 = vperm.xlu0 %1772, %v1515
        %v1774 = vpop.permute.xlu0 %1773
        %1777 = vset.pattern.permute.xlu0 0
        %1778 = vperm.xlu0 %1777, %v1516
        %v1779 = vpop.permute.xlu0 %1778
        %1782 = vset.pattern.permute.xlu0 0
        %1783 = vperm.xlu0 %1782, %v1517
        %v1784 = vpop.permute.xlu0 %1783
        %1787 = vset.pattern.permute.xlu0 0
        %1788 = vperm.xlu0 %1787, %v1518
        %v1789 = vpop.permute.xlu0 %1788
        %1792 = vset.pattern.permute.xlu0 0
        %1793 = vperm.xlu0 %1792, %v1519
        %v1794 = vpop.permute.xlu0 %1793
        %1797 = vset.pattern.permute.xlu0 0
        %1798 = vperm.xlu0 %1797, %v1520
        %v1799 = vpop.permute.xlu0 %1798
        %1802 = vset.pattern.permute.xlu0 0
        %1803 = vperm.xlu0 %1802, %v1521
        %v1804 = vpop.permute.xlu0 %1803
        %1807 = vset.pattern.permute.xlu0 0
        %1808 = vperm.xlu0 %1807, %v1522
        %v1809 = vpop.permute.xlu0 %1808
        %1812 = vset.pattern.permute.xlu0 0
        %1813 = vperm.xlu0 %1812, %v1523
        %v1814 = vpop.permute.xlu0 %1813
        %1817 = vset.pattern.permute.xlu0 0
        %1818 = vperm.xlu0 %1817, %v1524
        %v1819 = vpop.permute.xlu0 %1818
        %1822 = vset.pattern.permute.xlu0 0
        %1823 = vperm.xlu0 %1822, %v1525
        %v1824 = vpop.permute.xlu0 %1823
        %1827 = vset.pattern.permute.xlu0 0
        %1828 = vperm.xlu0 %1827, %v1526
        %v1829 = vpop.permute.xlu0 %1828
        %1832 = vset.pattern.permute.xlu0 0
        %1833 = vperm.xlu0 %1832, %v1527
        %v1834 = vpop.permute.xlu0 %1833
        %1837 = vset.pattern.permute.xlu0 0
        %1838 = vperm.xlu0 %1837, %v1528
        %v1839 = vpop.permute.xlu0 %1838
        %1842 = vset.pattern.permute.xlu0 0
        %1843 = vperm.xlu0 %1842, %v1529
        %v1844 = vpop.permute.xlu0 %1843
        %1847 = vset.pattern.permute.xlu0 0
        %1848 = vperm.xlu0 %1847, %v1530
        %v1849 = vpop.permute.xlu0 %1848
        %1852 = vset.pattern.permute.xlu0 0
        %1853 = vperm.xlu0 %1852, %v1531
        %v1854 = vpop.permute.xlu0 %1853
        %1857 = vset.pattern.permute.xlu0 0
        %1858 = vperm.xlu0 %1857, %v1532
        %v1859 = vpop.permute.xlu0 %1858
        %1862 = vset.pattern.permute.xlu0 0
        %1863 = vperm.xlu0 %1862, %v1533
        %v1864 = vpop.permute.xlu0 %1863
        %1867 = vset.pattern.permute.xlu0 0
        %1868 = vperm.xlu0 %1867, %v1534
        %v1869 = vpop.permute.xlu0 %1868
        %1872 = vset.pattern.permute.xlu0 0
        %1873 = vperm.xlu0 %1872, %v1535
        %v1874 = vpop.permute.xlu0 %1873
        %1877 = vset.pattern.permute.xlu0 0
        %1878 = vperm.xlu0 %1877, %v1536
        %v1879 = vpop.permute.xlu0 %1878
        %1882 = vset.pattern.permute.xlu0 0
        %1883 = vperm.xlu0 %1882, %v1537
        %v1884 = vpop.permute.xlu0 %1883
        %1887 = vset.pattern.permute.xlu0 0
        %1888 = vperm.xlu0 %1887, %v1538
        %v1889 = vpop.permute.xlu0 %1888
        %1892 = vset.pattern.permute.xlu0 0
        %1893 = vperm.xlu0 %1892, %v1539
        %v1894 = vpop.permute.xlu0 %1893
        %1897 = vset.pattern.permute.xlu0 0
        %1898 = vperm.xlu0 %1897, %v1540
        %v1899 = vpop.permute.xlu0 %1898
        %1902 = vset.pattern.permute.xlu0 0
        %1903 = vperm.xlu0 %1902, %v1541
        %v1904 = vpop.permute.xlu0 %1903
        %1907 = vset.pattern.permute.xlu0 0
        %1908 = vperm.xlu0 %1907, %v1542
        %v1909 = vpop.permute.xlu0 %1908
        %1912 = vset.pattern.permute.xlu0 0
        %1913 = vperm.xlu0 %1912, %v1543
        %v1914 = vpop.permute.xlu0 %1913
        %1917 = vset.pattern.permute.xlu0 0
        %1918 = vperm.xlu0 %1917, %v1544
        %v1919 = vpop.permute.xlu0 %1918
        %1922 = vset.pattern.permute.xlu0 0
        %1923 = vperm.xlu0 %1922, %v1545
        %v1924 = vpop.permute.xlu0 %1923
        %1927 = vset.pattern.permute.xlu0 0
        %1928 = vperm.xlu0 %1927, %v1546
        %v1929 = vpop.permute.xlu0 %1928
        %1932 = vset.pattern.permute.xlu0 0
        %1933 = vperm.xlu0 %1932, %v1547
        %v1934 = vpop.permute.xlu0 %1933
        %1937 = vset.pattern.permute.xlu0 0
        %1938 = vperm.xlu0 %1937, %v1548
        %v1939 = vpop.permute.xlu0 %1938
        %1942 = vset.pattern.permute.xlu0 0
        %1943 = vperm.xlu0 %1942, %v1549
        %v1944 = vpop.permute.xlu0 %1943
        %1947 = vset.pattern.permute.xlu0 0
        %1948 = vperm.xlu0 %1947, %v1550
        %v1949 = vpop.permute.xlu0 %1948
        %1952 = vset.pattern.permute.xlu0 0
        %1953 = vperm.xlu0 %1952, %v1551
        %v1954 = vpop.permute.xlu0 %1953
        %1957 = vset.pattern.permute.xlu0 0
        %1958 = vperm.xlu0 %1957, %v1552
        %v1959 = vpop.permute.xlu0 %1958
        %1962 = vset.pattern.permute.xlu0 0
        %1963 = vperm.xlu0 %1962, %v1553
        %v1964 = vpop.permute.xlu0 %1963
        %1967 = vset.pattern.permute.xlu0 0
        %1968 = vperm.xlu0 %1967, %v1554
        %v1969 = vpop.permute.xlu0 %1968
        %1972 = vset.pattern.permute.xlu0 0
        %1973 = vperm.xlu0 %1972, %v1555
        %v1974 = vpop.permute.xlu0 %1973
        %1977 = vset.pattern.permute.xlu0 0
        %1978 = vperm.xlu0 %1977, %v1556
        %v1979 = vpop.permute.xlu0 %1978
        %1982 = vset.pattern.permute.xlu0 0
        %1983 = vperm.xlu0 %1982, %v1557
        %v1984 = vpop.permute.xlu0 %1983
        %1987 = vset.pattern.permute.xlu0 0
        %1988 = vperm.xlu0 %1987, %v1558
        %v1989 = vpop.permute.xlu0 %1988
        %1992 = vset.pattern.permute.xlu0 0
        %1993 = vperm.xlu0 %1992, %v1559
        %v1994 = vpop.permute.xlu0 %1993
        %1997 = vset.pattern.permute.xlu0 0
        %1998 = vperm.xlu0 %1997, %v1560
        %v1999 = vpop.permute.xlu0 %1998
        %2002 = vset.pattern.permute.xlu0 0
        %2003 = vperm.xlu0 %2002, %v1561
        %v2004 = vpop.permute.xlu0 %2003
        %2007 = vset.pattern.permute.xlu0 0
        %2008 = vperm.xlu0 %2007, %v1562
        %v2009 = vpop.permute.xlu0 %2008
        %2012 = vset.pattern.permute.xlu0 0
        %2013 = vperm.xlu0 %2012, %v1563
        %v2014 = vpop.permute.xlu0 %2013
        %2017 = vset.pattern.permute.xlu0 0
        %2018 = vperm.xlu0 %2017, %v1564
        %v2019 = vpop.permute.xlu0 %2018
        %2022 = vset.pattern.permute.xlu0 0
        %2023 = vperm.xlu0 %2022, %v1565
        %v2024 = vpop.permute.xlu0 %2023
        %2027 = vset.pattern.permute.xlu0 0
        %2028 = vperm.xlu0 %2027, %v1566
        %v2029 = vpop.permute.xlu0 %2028
        %2032 = vset.pattern.permute.xlu0 0
        %2033 = vperm.xlu0 %2032, %v1567
        %v2034 = vpop.permute.xlu0 %2033
        %2037 = vset.pattern.permute.xlu0 0
        %2038 = vperm.xlu0 %2037, %v1568
        %v2039 = vpop.permute.xlu0 %2038
        %2042 = vset.pattern.permute.xlu0 0
        %2043 = vperm.xlu0 %2042, %v1569
        %v2044 = vpop.permute.xlu0 %2043
        %2047 = vset.pattern.permute.xlu0 0
        %2048 = vperm.xlu0 %2047, %v1570
        %v2049 = vpop.permute.xlu0 %2048
        %2052 = vset.pattern.permute.xlu0 0
        %2053 = vperm.xlu0 %2052, %v1571
        %v2054 = vpop.permute.xlu0 %2053
        %2057 = vset.pattern.permute.xlu0 0
        %2058 = vperm.xlu0 %2057, %v1572
        %v2059 = vpop.permute.xlu0 %2058
        %2062 = vset.pattern.permute.xlu0 0
        %2063 = vperm.xlu0 %2062, %v1573
        %v2064 = vpop.permute.xlu0 %2063
        %2067 = vset.pattern.permute.xlu0 0
        %2068 = vperm.xlu0 %2067, %v1574
        %v2069 = vpop.permute.xlu0 %2068
        %2072 = vset.pattern.permute.xlu0 0
        %2073 = vperm.xlu0 %2072, %v1575
        %v2074 = vpop.permute.xlu0 %2073
        %2077 = vset.pattern.permute.xlu0 0
        %2078 = vperm.xlu0 %2077, %v1576
        %v2079 = vpop.permute.xlu0 %2078
        %2082 = vset.pattern.permute.xlu0 0
        %2083 = vperm.xlu0 %2082, %v1577
        %v2084 = vpop.permute.xlu0 %2083
        %2087 = vset.pattern.permute.xlu0 0
        %2088 = vperm.xlu0 %2087, %v1578
        %v2089 = vpop.permute.xlu0 %2088
        %2092 = vset.pattern.permute.xlu0 0
        %2093 = vperm.xlu0 %2092, %v1579
        %v2094 = vpop.permute.xlu0 %2093
        %2097 = vset.pattern.permute.xlu0 0
        %2098 = vperm.xlu0 %2097, %v1580
        %v2099 = vpop.permute.xlu0 %2098
        %2102 = vset.pattern.permute.xlu0 0
        %2103 = vperm.xlu0 %2102, %v1581
        %v2104 = vpop.permute.xlu0 %2103
        %2107 = vset.pattern.permute.xlu0 0
        %2108 = vperm.xlu0 %2107, %v1582
        %v2109 = vpop.permute.xlu0 %2108
        %2112 = vset.pattern.permute.xlu0 0
        %2113 = vperm.xlu0 %2112, %v1583
        %v2114 = vpop.permute.xlu0 %2113
        %2117 = vset.pattern.permute.xlu0 0
        %2118 = vperm.xlu0 %2117, %v1584
        %v2119 = vpop.permute.xlu0 %2118
        %2122 = vset.pattern.permute.xlu0 0
        %2123 = vperm.xlu0 %2122, %v1585
        %v2124 = vpop.permute.xlu0 %2123
        %2127 = vset.pattern.permute.xlu0 0
        %2128 = vperm.xlu0 %2127, %v1586
        %v2129 = vpop.permute.xlu0 %2128
        %2132 = vset.pattern.permute.xlu0 0
        %2133 = vperm.xlu0 %2132, %v1587
        %v2134 = vpop.permute.xlu0 %2133
        %2137 = vset.pattern.permute.xlu0 0
        %2138 = vperm.xlu0 %2137, %v1588
        %v2139 = vpop.permute.xlu0 %2138
        %2142 = vset.pattern.permute.xlu0 0
        %2143 = vperm.xlu0 %2142, %v1589
        %v2144 = vpop.permute.xlu0 %2143
        %2147 = vset.pattern.permute.xlu0 0
        %2148 = vperm.xlu0 %2147, %v1590
        %v2149 = vpop.permute.xlu0 %2148
        %2152 = vset.pattern.permute.xlu0 0
        %2153 = vperm.xlu0 %2152, %v1591
        %v2154 = vpop.permute.xlu0 %2153
        %2157 = vset.pattern.permute.xlu0 0
        %2158 = vperm.xlu0 %2157, %v1592
        %v2159 = vpop.permute.xlu0 %2158
        %2162 = vset.pattern.permute.xlu0 0
        %2163 = vperm.xlu0 %2162, %v1593
        %v2164 = vpop.permute.xlu0 %2163
        %2167 = vset.pattern.permute.xlu0 0
        %2168 = vperm.xlu0 %2167, %v1594
        %v2169 = vpop.permute.xlu0 %2168
        %2172 = vset.pattern.permute.xlu0 0
        %2173 = vperm.xlu0 %2172, %v1595
        %v2174 = vpop.permute.xlu0 %2173
        %2177 = vset.pattern.permute.xlu0 0
        %2178 = vperm.xlu0 %2177, %v1596
        %v2179 = vpop.permute.xlu0 %2178
        %2182 = vset.pattern.permute.xlu0 0
        %2183 = vperm.xlu0 %2182, %v1597
        %v2184 = vpop.permute.xlu0 %2183
        %2187 = vset.pattern.permute.xlu0 0
        %2188 = vperm.xlu0 %2187, %v1598
        %v2189 = vpop.permute.xlu0 %2188
        %2192 = vset.pattern.permute.xlu0 0
        %2193 = vperm.xlu0 %2192, %v1599
        %v2194 = vpop.permute.xlu0 %2193
        %2197 = vset.pattern.permute.xlu0 0
        %2198 = vperm.xlu0 %2197, %v1600
        %v2199 = vpop.permute.xlu0 %2198
        %2202 = vset.pattern.permute.xlu0 0
        %2203 = vperm.xlu0 %2202, %v1601
        %v2204 = vpop.permute.xlu0 %2203
        %2207 = vset.pattern.permute.xlu0 0
        %2208 = vperm.xlu0 %2207, %v1602
        %v2209 = vpop.permute.xlu0 %2208
        %2212 = vset.pattern.permute.xlu0 0
        %2213 = vperm.xlu0 %2212, %v1603
        %v2214 = vpop.permute.xlu0 %2213
        %2217 = vset.pattern.permute.xlu0 0
        %2218 = vperm.xlu0 %2217, %v1604
        %v2219 = vpop.permute.xlu0 %2218
        %2222 = vset.pattern.permute.xlu0 0
        %2223 = vperm.xlu0 %2222, %v1605
        %v2224 = vpop.permute.xlu0 %2223
        %2227 = vset.pattern.permute.xlu0 0
        %2228 = vperm.xlu0 %2227, %v1606
        %v2229 = vpop.permute.xlu0 %2228
        %2232 = vset.pattern.permute.xlu0 0
        %2233 = vperm.xlu0 %2232, %v1607
        %v2234 = vpop.permute.xlu0 %2233
        %2237 = vset.pattern.permute.xlu0 0
        %2238 = vperm.xlu0 %2237, %v1608
        %v2239 = vpop.permute.xlu0 %2238
        %2242 = vset.pattern.permute.xlu0 0
        %2243 = vperm.xlu0 %2242, %v1609
        %v2244 = vpop.permute.xlu0 %2243
        %2247 = vset.pattern.permute.xlu0 0
        %2248 = vperm.xlu0 %2247, %v1610
        %v2249 = vpop.permute.xlu0 %2248
        %v2379 = vunpack.c.l.b16 %v1291
        %v2380 = vunpack.c.l.b16 %v1292
        %v2381 = vunpack.c.l.b16 %v1293
        %v2382 = vunpack.c.l.b16 %v1294
        %v2383 = vunpack.c.l.b16 %v1295
        %v2384 = vunpack.c.l.b16 %v1296
        %v2385 = vunpack.c.l.b16 %v1297
        %v2386 = vunpack.c.l.b16 %v1298
        %v2387 = vunpack.c.l.b16 %v1299
        %v2388 = vunpack.c.l.b16 %v1300
        %v2389 = vunpack.c.l.b16 %v1301
        %v2390 = vunpack.c.l.b16 %v1302
        %v2391 = vunpack.c.l.b16 %v1303
        %v2392 = vunpack.c.l.b16 %v1304
        %v2393 = vunpack.c.l.b16 %v1305
        %v2394 = vunpack.c.l.b16 %v1306
        %v2395 = vunpack.c.l.b16 %v1307
        %v2396 = vunpack.c.l.b16 %v1308
        %v2397 = vunpack.c.l.b16 %v1309
        %v2398 = vunpack.c.l.b16 %v1310
        %v2399 = vunpack.c.l.b16 %v1311
        %v2400 = vunpack.c.l.b16 %v1312
        %v2401 = vunpack.c.l.b16 %v1313
        %v2402 = vunpack.c.l.b16 %v1314
        %v2403 = vunpack.c.l.b16 %v1315
        %v2404 = vunpack.c.l.b16 %v1316
        %v2405 = vunpack.c.l.b16 %v1317
        %v2406 = vunpack.c.l.b16 %v1318
        %v2407 = vunpack.c.l.b16 %v1319
        %v2408 = vunpack.c.l.b16 %v1320
        %v2409 = vunpack.c.l.b16 %v1321
        %v2410 = vunpack.c.l.b16 %v1322
        %v2411 = vunpack.c.l.b16 %v1323
        %v2412 = vunpack.c.l.b16 %v1324
        %v2413 = vunpack.c.l.b16 %v1325
        %v2414 = vunpack.c.l.b16 %v1326
        %v2415 = vunpack.c.l.b16 %v1327
        %v2416 = vunpack.c.l.b16 %v1328
        %v2417 = vunpack.c.l.b16 %v1329
        %v2418 = vunpack.c.l.b16 %v1330
        %v2419 = vunpack.c.l.b16 %v1331
        %v2420 = vunpack.c.l.b16 %v1332
        %v2421 = vunpack.c.l.b16 %v1333
        %v2422 = vunpack.c.l.b16 %v1334
        %v2423 = vunpack.c.l.b16 %v1335
        %v2424 = vunpack.c.l.b16 %v1336
        %v2425 = vunpack.c.l.b16 %v1337
        %v2426 = vunpack.c.l.b16 %v1338
        %v2427 = vunpack.c.l.b16 %v1339
        %v2428 = vunpack.c.l.b16 %v1340
        %v2429 = vunpack.c.l.b16 %v1341
        %v2430 = vunpack.c.l.b16 %v1342
        %v2431 = vunpack.c.l.b16 %v1343
        %v2432 = vunpack.c.l.b16 %v1344
        %v2433 = vunpack.c.l.b16 %v1345
        %v2434 = vunpack.c.l.b16 %v1346
        %v2435 = vunpack.c.l.b16 %v1347
        %v2436 = vunpack.c.l.b16 %v1348
        %v2437 = vunpack.c.l.b16 %v1349
        %v2438 = vunpack.c.l.b16 %v1350
        %v2439 = vunpack.c.l.b16 %v1351
        %v2440 = vunpack.c.l.b16 %v1352
        %v2441 = vunpack.c.l.b16 %v1353
        %v2442 = vunpack.c.l.b16 %v1354
        %v2443 = vunpack.c.l.b16 %v1355
        %v2444 = vunpack.c.l.b16 %v1356
        %v2445 = vunpack.c.l.b16 %v1357
        %v2446 = vunpack.c.l.b16 %v1358
        %v2447 = vunpack.c.l.b16 %v1359
        %v2448 = vunpack.c.l.b16 %v1360
        %v2449 = vunpack.c.l.b16 %v1361
        %v2450 = vunpack.c.l.b16 %v1362
        %v2451 = vunpack.c.l.b16 %v1363
        %v2452 = vunpack.c.l.b16 %v1364
        %v2453 = vunpack.c.l.b16 %v1365
        %v2454 = vunpack.c.l.b16 %v1366
        %v2455 = vunpack.c.l.b16 %v1367
        %v2456 = vunpack.c.l.b16 %v1368
        %v2457 = vunpack.c.l.b16 %v1369
        %v2458 = vunpack.c.l.b16 %v1370
        %v2459 = vunpack.c.l.b16 %v1371
        %v2460 = vunpack.c.l.b16 %v1372
        %v2461 = vunpack.c.l.b16 %v1373
        %v2462 = vunpack.c.l.b16 %v1374
        %v2463 = vunpack.c.l.b16 %v1375
        %v2464 = vunpack.c.l.b16 %v1376
        %v2465 = vunpack.c.l.b16 %v1377
        %v2466 = vunpack.c.l.b16 %v1378
        %v2467 = vunpack.c.l.b16 %v1379
        %v2468 = vunpack.c.l.b16 %v1380
        %v2469 = vunpack.c.l.b16 %v1381
        %v2470 = vunpack.c.l.b16 %v1382
        %v2471 = vunpack.c.l.b16 %v1383
        %v2472 = vunpack.c.l.b16 %v1384
        %v2473 = vunpack.c.l.b16 %v1385
        %v2474 = vunpack.c.l.b16 %v1386
        %v2475 = vunpack.c.l.b16 %v1387
        %v2476 = vunpack.c.l.b16 %v1388
        %v2477 = vunpack.c.l.b16 %v1389
        %v2478 = vunpack.c.l.b16 %v1390
        %v2479 = vunpack.c.l.b16 %v1391
        %v2480 = vunpack.c.l.b16 %v1392
        %v2481 = vunpack.c.l.b16 %v1393
        %v2482 = vunpack.c.l.b16 %v1394
        %v2483 = vunpack.c.l.b16 %v1395
        %v2484 = vunpack.c.l.b16 %v1396
        %v2485 = vunpack.c.l.b16 %v1397
        %v2486 = vunpack.c.l.b16 %v1398
        %v2487 = vunpack.c.l.b16 %v1399
        %v2488 = vunpack.c.l.b16 %v1400
        %v2489 = vunpack.c.l.b16 %v1401
        %v2490 = vunpack.c.l.b16 %v1402
        %v2491 = vunpack.c.l.b16 %v1403
        %v2492 = vunpack.c.l.b16 %v1404
        %v2493 = vunpack.c.l.b16 %v1405
        %v2494 = vunpack.c.l.b16 %v1406
        %v2495 = vunpack.c.l.b16 %v1407
        %v2496 = vunpack.c.l.b16 %v1408
        %v2497 = vunpack.c.l.b16 %v1409
        %v2498 = vunpack.c.l.b16 %v1410
        %v2499 = vunpack.c.l.b16 %v1411
        %v2500 = vunpack.c.l.b16 %v1412
        %v2501 = vunpack.c.l.b16 %v1413
        %v2502 = vunpack.c.l.b16 %v1414
        %v2503 = vunpack.c.l.b16 %v1415
        %v2504 = vunpack.c.l.b16 %v1416
        %v2505 = vunpack.c.l.b16 %v1417
        %v2506 = vunpack.c.l.b16 %v1418
        %v2507 = vpack.c.b16 %v2380, %v2379
        %v2508 = vpack.c.b16 %v2382, %v2381
        %v2509 = vpack.c.b16 %v2384, %v2383
        %v2510 = vpack.c.b16 %v2386, %v2385
        %v2511 = vpack.c.b16 %v2388, %v2387
        %v2512 = vpack.c.b16 %v2390, %v2389
        %v2513 = vpack.c.b16 %v2392, %v2391
        %v2514 = vpack.c.b16 %v2394, %v2393
        %v2515 = vpack.c.b16 %v2396, %v2395
        %v2516 = vpack.c.b16 %v2398, %v2397
        %v2517 = vpack.c.b16 %v2400, %v2399
        %v2518 = vpack.c.b16 %v2402, %v2401
        %v2519 = vpack.c.b16 %v2404, %v2403
        %v2520 = vpack.c.b16 %v2406, %v2405
        %v2521 = vpack.c.b16 %v2408, %v2407
        %v2522 = vpack.c.b16 %v2410, %v2409
        %v2523 = vpack.c.b16 %v2412, %v2411
        %v2524 = vpack.c.b16 %v2414, %v2413
        %v2525 = vpack.c.b16 %v2416, %v2415
        %v2526 = vpack.c.b16 %v2418, %v2417
        %v2527 = vpack.c.b16 %v2420, %v2419
        %v2528 = vpack.c.b16 %v2422, %v2421
        %v2529 = vpack.c.b16 %v2424, %v2423
        %v2530 = vpack.c.b16 %v2426, %v2425
        %v2531 = vpack.c.b16 %v2428, %v2427
        %v2532 = vpack.c.b16 %v2430, %v2429
        %v2533 = vpack.c.b16 %v2432, %v2431
        %v2534 = vpack.c.b16 %v2434, %v2433
        %v2535 = vpack.c.b16 %v2436, %v2435
        %v2536 = vpack.c.b16 %v2438, %v2437
        %v2537 = vpack.c.b16 %v2440, %v2439
        %v2538 = vpack.c.b16 %v2442, %v2441
        %v2539 = vpack.c.b16 %v2444, %v2443
        %v2540 = vpack.c.b16 %v2446, %v2445
        %v2541 = vpack.c.b16 %v2448, %v2447
        %v2542 = vpack.c.b16 %v2450, %v2449
        %v2543 = vpack.c.b16 %v2452, %v2451
        %v2544 = vpack.c.b16 %v2454, %v2453
        %v2545 = vpack.c.b16 %v2456, %v2455
        %v2546 = vpack.c.b16 %v2458, %v2457
        %v2547 = vpack.c.b16 %v2460, %v2459
        %v2548 = vpack.c.b16 %v2462, %v2461
        %v2549 = vpack.c.b16 %v2464, %v2463
        %v2550 = vpack.c.b16 %v2466, %v2465
        %v2551 = vpack.c.b16 %v2468, %v2467
        %v2552 = vpack.c.b16 %v2470, %v2469
        %v2553 = vpack.c.b16 %v2472, %v2471
        %v2554 = vpack.c.b16 %v2474, %v2473
        %v2555 = vpack.c.b16 %v2476, %v2475
        %v2556 = vpack.c.b16 %v2478, %v2477
        %v2557 = vpack.c.b16 %v2480, %v2479
        %v2558 = vpack.c.b16 %v2482, %v2481
        %v2559 = vpack.c.b16 %v2484, %v2483
        %v2560 = vpack.c.b16 %v2486, %v2485
        %v2561 = vpack.c.b16 %v2488, %v2487
        %v2562 = vpack.c.b16 %v2490, %v2489
        %v2563 = vpack.c.b16 %v2492, %v2491
        %v2564 = vpack.c.b16 %v2494, %v2493
        %v2565 = vpack.c.b16 %v2496, %v2495
        %v2566 = vpack.c.b16 %v2498, %v2497
        %v2567 = vpack.c.b16 %v2500, %v2499
        %v2568 = vpack.c.b16 %v2502, %v2501
        %v2569 = vpack.c.b16 %v2504, %v2503
        %v2570 = vpack.c.b16 %v2506, %v2505
        %2635 = vmatprep.subr.bf16.mxu0 %v1420
        %2636 = vmatpush1.bf16.msra.mxu0 %v1419
        %2637 = vmatprep.subr.bf16.mxu0 %v1428
        %2638 = vmatpush1.bf16.msra.mxu0 %v1427
        %2639 = vmatprep.subr.bf16.mxu0 %v1436
        %2640 = vmatpush1.bf16.msra.mxu0 %v1435
        %2641 = vmatprep.subr.bf16.mxu0 %v1444
        %2642 = vmatpush1.bf16.msra.mxu0 %v1443
        %2643 = vmatprep.subr.bf16.mxu0 %v1452
        %2644 = vmatpush1.bf16.msra.mxu0 %v1451
        %2645 = vmatprep.subr.bf16.mxu0 %v1460
        %2646 = vmatpush1.bf16.msra.mxu0 %v1459
        %2647 = vmatprep.subr.bf16.mxu0 %v1468
        %2648 = vmatpush1.bf16.msra.mxu0 %v1467
        %2649 = vmatprep.subr.bf16.mxu0 %v1476
        %2650 = vmatpush1.bf16.msra.mxu0 %v1475
        %2651 = vmatprep.subr.bf16.mxu0 0
        %2652 = vmatpush1.bf16.msra.mxu0 0
        %2653 = vmatprep.subr.bf16.mxu0 0
        %2654 = vmatpush1.bf16.msra.mxu0 0
        %2655 = vmatprep.subr.bf16.mxu0 0
        %2656 = vmatpush1.bf16.msra.mxu0 0
        %2657 = vmatprep.subr.bf16.mxu0 0
        %2658 = vmatpush1.bf16.msra.mxu0 0
        %2659 = vmatprep.subr.bf16.mxu0 0
        %2660 = vmatpush1.bf16.msra.mxu0 0
        %2661 = vmatprep.subr.bf16.mxu0 0
        %2662 = vmatpush1.bf16.msra.mxu0 0
        %2663 = vmatprep.subr.bf16.mxu0 0
        %2664 = vmatpush1.bf16.msra.mxu0 0
        %2665 = vmatprep.subr.bf16.mxu0 0
        %2666 = vmatpush1.bf16.msra.mxu0 0
        %2667 = vmatprep.mubr.bf16.mxu0 0
        %2668 = vmatmul.mubr.bf16.gmra.mrb[0].mxu0 %v2507
        %v2669 = vpop.f32.mrb[0].mxu0
        %v2670 = vadd.f32 %v1614, %v2669
        %v2671 = vpop.f32.mrb[0].mxu0
        %v2672 = vadd.f32 %v1614, %v2671
        %v2673 = vpop.f32.mrb[0].mxu0
        %v2674 = vadd.f32 %v1619, %v2673
        %v2675 = vpop.f32.mrb[0].mxu0
        %v2676 = vadd.f32 %v1619, %v2675
        %2677 = vmatprep.mubr.bf16.mxu0 0
        %2678 = vmatmul.mubr.bf16.gmra.mrb[0].mxu0 %v2508
        %v2679 = vpop.f32.mrb[0].mxu0
        %v2680 = vadd.f32 %v1624, %v2679
        %v2681 = vpop.f32.mrb[0].mxu0
        %v2682 = vadd.f32 %v1624, %v2681
        %v2683 = vpop.f32.mrb[0].mxu0
        %v2684 = vadd.f32 %v1629, %v2683
        %v2685 = vpop.f32.mrb[0].mxu0
        %v2686 = vadd.f32 %v1629, %v2685
        %2687 = vmatprep.mubr.bf16.mxu0 0
        %2688 = vmatmul.mubr.bf16.gmra.mrb[0].mxu0 %v2509
        %v2689 = vpop.f32.mrb[0].mxu0
        %v2690 = vadd.f32 %v1634, %v2689
        %v2691 = vpop.f32.mrb[0].mxu0
        %v2692 = vadd.f32 %v1634, %v2691
        %v2693 = vpop.f32.mrb[0].mxu0
        %v2694 = vadd.f32 %v1639, %v2693
        %v2695 = vpop.f32.mrb[0].mxu0
        %v2696 = vadd.f32 %v1639, %v2695
        %2697 = vmatprep.mubr.bf16.mxu0 0
        %2698 = vmatmul.mubr.bf16.gmra.mrb[0].mxu0 %v2510
        %v2699 = vpop.f32.mrb[0].mxu0
        %v2700 = vadd.f32 %v1644, %v2699
        %v2701 = vpop.f32.mrb[0].mxu0
        %v2702 = vadd.f32 %v1644, %v2701
        %v2703 = vpop.f32.mrb[0].mxu0
        %v2704 = vadd.f32 %v1649, %v2703
        %v2705 = vpop.f32.mrb[0].mxu0
        %v2706 = vadd.f32 %v1649, %v2705
        %2707 = vmatprep.mubr.bf16.mxu0 0
        %2708 = vmatmul.mubr.bf16.gmra.mrb[0].mxu0 %v2511
        %v2709 = vpop.f32.mrb[0].mxu0
        %v2710 = vadd.f32 %v1654, %v2709
        %v2711 = vpop.f32.mrb[0].mxu0
        %v2712 = vadd.f32 %v1654, %v2711
        %v2713 = vpop.f32.mrb[0].mxu0
        %v2714 = vadd.f32 %v1659, %v2713
        %v2715 = vpop.f32.mrb[0].mxu0
        %v2716 = vadd.f32 %v1659, %v2715
        %2717 = vmatprep.mubr.bf16.mxu0 0
        %2718 = vmatmul.mubr.bf16.gmra.mrb[0].mxu0 %v2512
        %v2719 = vpop.f32.mrb[0].mxu0
        %v2720 = vadd.f32 %v1664, %v2719
        %v2721 = vpop.f32.mrb[0].mxu0
        %v2722 = vadd.f32 %v1664, %v2721
        %v2723 = vpop.f32.mrb[0].mxu0
        %v2724 = vadd.f32 %v1669, %v2723
        %v2725 = vpop.f32.mrb[0].mxu0
        %v2726 = vadd.f32 %v1669, %v2725
        %2727 = vmatprep.mubr.bf16.mxu0 0
        %2728 = vmatmul.mubr.bf16.gmra.mrb[0].mxu0 %v2513
        %v2729 = vpop.f32.mrb[0].mxu0
        %v2730 = vadd.f32 %v1674, %v2729
        %v2731 = vpop.f32.mrb[0].mxu0
        %v2732 = vadd.f32 %v1674, %v2731
        %v2733 = vpop.f32.mrb[0].mxu0
        %v2734 = vadd.f32 %v1679, %v2733
        %v2735 = vpop.f32.mrb[0].mxu0
        %v2736 = vadd.f32 %v1679, %v2735
        %2737 = vmatprep.mubr.bf16.mxu0 0
        %2738 = vmatmul.mubr.bf16.gmra.mrb[0].mxu0 %v2514
        %v2739 = vpop.f32.mrb[0].mxu0
        %v2740 = vadd.f32 %v1684, %v2739
        %v2741 = vpop.f32.mrb[0].mxu0
        %v2742 = vadd.f32 %v1684, %v2741
        %v2743 = vpop.f32.mrb[0].mxu0
        %v2744 = vadd.f32 %v1689, %v2743
        %v2745 = vpop.f32.mrb[0].mxu0
        %v2746 = vadd.f32 %v1689, %v2745
        %2747 = vmatprep.mubr.bf16.mxu0 0
        %2748 = vmatmul.mubr.bf16.gmra.mrb[0].mxu0 %v2515
        %v2749 = vpop.f32.mrb[0].mxu0
        %v2750 = vadd.f32 %v1694, %v2749
        %v2751 = vpop.f32.mrb[0].mxu0
        %v2752 = vadd.f32 %v1694, %v2751
        %v2753 = vpop.f32.mrb[0].mxu0
        %v2754 = vadd.f32 %v1699, %v2753
        %v2755 = vpop.f32.mrb[0].mxu0
        %v2756 = vadd.f32 %v1699, %v2755
        %2757 = vmatprep.mubr.bf16.mxu0 0
        %2758 = vmatmul.mubr.bf16.gmra.mrb[0].mxu0 %v2516
        %v2759 = vpop.f32.mrb[0].mxu0
        %v2760 = vadd.f32 %v1704, %v2759
        %v2761 = vpop.f32.mrb[0].mxu0
        %v2762 = vadd.f32 %v1704, %v2761
        %v2763 = vpop.f32.mrb[0].mxu0
        %v2764 = vadd.f32 %v1709, %v2763
        %v2765 = vpop.f32.mrb[0].mxu0
        %v2766 = vadd.f32 %v1709, %v2765
        %2767 = vmatprep.mubr.bf16.mxu0 0
        %2768 = vmatmul.mubr.bf16.gmra.mrb[0].mxu0 %v2517
        %v2769 = vpop.f32.mrb[0].mxu0
        %v2770 = vadd.f32 %v1714, %v2769
        %v2771 = vpop.f32.mrb[0].mxu0
        %v2772 = vadd.f32 %v1714, %v2771
        %v2773 = vpop.f32.mrb[0].mxu0
        %v2774 = vadd.f32 %v1719, %v2773
        %v2775 = vpop.f32.mrb[0].mxu0
        %v2776 = vadd.f32 %v1719, %v2775
        %2777 = vmatprep.mubr.bf16.mxu0 0
        %2778 = vmatmul.mubr.bf16.gmra.mrb[0].mxu0 %v2518
        %v2779 = vpop.f32.mrb[0].mxu0
        %v2780 = vadd.f32 %v1724, %v2779
        %v2781 = vpop.f32.mrb[0].mxu0
        %v2782 = vadd.f32 %v1724, %v2781
        %v2783 = vpop.f32.mrb[0].mxu0
        %v2784 = vadd.f32 %v1729, %v2783
        %v2785 = vpop.f32.mrb[0].mxu0
        %v2786 = vadd.f32 %v1729, %v2785
        %2787 = vmatprep.mubr.bf16.mxu0 0
        %2788 = vmatmul.mubr.bf16.gmra.mrb[0].mxu0 %v2519
        %v2789 = vpop.f32.mrb[0].mxu0
        %v2790 = vadd.f32 %v1734, %v2789
        %v2791 = vpop.f32.mrb[0].mxu0
        %v2792 = vadd.f32 %v1734, %v2791
        %v2793 = vpop.f32.mrb[0].mxu0
        %v2794 = vadd.f32 %v1739, %v2793
        %v2795 = vpop.f32.mrb[0].mxu0
        %v2796 = vadd.f32 %v1739, %v2795
        %2797 = vmatprep.mubr.bf16.mxu0 0
        %2798 = vmatmul.mubr.bf16.gmra.mrb[0].mxu0 %v2520
        %v2799 = vpop.f32.mrb[0].mxu0
        %v2800 = vadd.f32 %v1744, %v2799
        %v2801 = vpop.f32.mrb[0].mxu0
        %v2802 = vadd.f32 %v1744, %v2801
        %v2803 = vpop.f32.mrb[0].mxu0
        %v2804 = vadd.f32 %v1749, %v2803
        %v2805 = vpop.f32.mrb[0].mxu0
        %v2806 = vadd.f32 %v1749, %v2805
        %2807 = vmatprep.mubr.bf16.mxu0 0
        %2808 = vmatmul.mubr.bf16.gmra.mrb[0].mxu0 %v2521
        %v2809 = vpop.f32.mrb[0].mxu0
        %v2810 = vadd.f32 %v1754, %v2809
        %v2811 = vpop.f32.mrb[0].mxu0
        %v2812 = vadd.f32 %v1754, %v2811
        %v2813 = vpop.f32.mrb[0].mxu0
        %v2814 = vadd.f32 %v1759, %v2813
        %v2815 = vpop.f32.mrb[0].mxu0
        %v2816 = vadd.f32 %v1759, %v2815
        %2817 = vmatprep.mubr.bf16.mxu0 0
        %2818 = vmatmul.mubr.bf16.gmra.mrb[0].mxu0 %v2522
        %v2819 = vpop.f32.mrb[0].mxu0
        %v2820 = vadd.f32 %v1764, %v2819
        %v2821 = vpop.f32.mrb[0].mxu0
        %v2822 = vadd.f32 %v1764, %v2821
        %v2823 = vpop.f32.mrb[0].mxu0
        %v2824 = vadd.f32 %v1769, %v2823
        %v2825 = vpop.f32.mrb[0].mxu0
        %v2826 = vadd.f32 %v1769, %v2825
        %2827 = vmatprep.mubr.bf16.mxu0 0
        %2828 = vmatmul.mubr.bf16.gmra.mrb[0].mxu0 %v2523
        %v2829 = vpop.f32.mrb[0].mxu0
        %v2830 = vadd.f32 %v1774, %v2829
        %v2831 = vpop.f32.mrb[0].mxu0
        %v2832 = vadd.f32 %v1774, %v2831
        %v2833 = vpop.f32.mrb[0].mxu0
        %v2834 = vadd.f32 %v1779, %v2833
        %v2835 = vpop.f32.mrb[0].mxu0
        %v2836 = vadd.f32 %v1779, %v2835
        %2837 = vmatprep.mubr.bf16.mxu0 0
        %2838 = vmatmul.mubr.bf16.gmra.mrb[0].mxu0 %v2524
        %v2839 = vpop.f32.mrb[0].mxu0
        %v2840 = vadd.f32 %v1784, %v2839
        %v2841 = vpop.f32.mrb[0].mxu0
        %v2842 = vadd.f32 %v1784, %v2841
        %v2843 = vpop.f32.mrb[0].mxu0
        %v2844 = vadd.f32 %v1789, %v2843
        %v2845 = vpop.f32.mrb[0].mxu0
        %v2846 = vadd.f32 %v1789, %v2845
        %2847 = vmatprep.mubr.bf16.mxu0 0
        %2848 = vmatmul.mubr.bf16.gmra.mrb[0].mxu0 %v2525
        %v2849 = vpop.f32.mrb[0].mxu0
        %v2850 = vadd.f32 %v1794, %v2849
        %v2851 = vpop.f32.mrb[0].mxu0
        %v2852 = vadd.f32 %v1794, %v2851
        %v2853 = vpop.f32.mrb[0].mxu0
        %v2854 = vadd.f32 %v1799, %v2853
        %v2855 = vpop.f32.mrb[0].mxu0
        %v2856 = vadd.f32 %v1799, %v2855
        %2857 = vmatprep.mubr.bf16.mxu0 0
        %2858 = vmatmul.mubr.bf16.gmra.mrb[0].mxu0 %v2526
        %v2859 = vpop.f32.mrb[0].mxu0
        %v2860 = vadd.f32 %v1804, %v2859
        %v2861 = vpop.f32.mrb[0].mxu0
        %v2862 = vadd.f32 %v1804, %v2861
        %v2863 = vpop.f32.mrb[0].mxu0
        %v2864 = vadd.f32 %v1809, %v2863
        %v2865 = vpop.f32.mrb[0].mxu0
        %v2866 = vadd.f32 %v1809, %v2865
        %2867 = vmatprep.mubr.bf16.mxu0 0
        %2868 = vmatmul.mubr.bf16.gmra.mrb[0].mxu0 %v2527
        %v2869 = vpop.f32.mrb[0].mxu0
        %v2870 = vadd.f32 %v1814, %v2869
        %v2871 = vpop.f32.mrb[0].mxu0
        %v2872 = vadd.f32 %v1814, %v2871
        %v2873 = vpop.f32.mrb[0].mxu0
        %v2874 = vadd.f32 %v1819, %v2873
        %v2875 = vpop.f32.mrb[0].mxu0
        %v2876 = vadd.f32 %v1819, %v2875
        %2877 = vmatprep.mubr.bf16.mxu0 0
        %2878 = vmatmul.mubr.bf16.gmra.mrb[0].mxu0 %v2528
        %v2879 = vpop.f32.mrb[0].mxu0
        %v2880 = vadd.f32 %v1824, %v2879
        %v2881 = vpop.f32.mrb[0].mxu0
        %v2882 = vadd.f32 %v1824, %v2881
        %v2883 = vpop.f32.mrb[0].mxu0
        %v2884 = vadd.f32 %v1829, %v2883
        %v2885 = vpop.f32.mrb[0].mxu0
        %v2886 = vadd.f32 %v1829, %v2885
        %2887 = vmatprep.mubr.bf16.mxu0 0
        %2888 = vmatmul.mubr.bf16.gmra.mrb[0].mxu0 %v2529
        %v2889 = vpop.f32.mrb[0].mxu0
        %v2890 = vadd.f32 %v1834, %v2889
        %v2891 = vpop.f32.mrb[0].mxu0
        %v2892 = vadd.f32 %v1834, %v2891
        %v2893 = vpop.f32.mrb[0].mxu0
        %v2894 = vadd.f32 %v1839, %v2893
        %v2895 = vpop.f32.mrb[0].mxu0
        %v2896 = vadd.f32 %v1839, %v2895
        %2897 = vmatprep.mubr.bf16.mxu0 0
        %2898 = vmatmul.mubr.bf16.gmra.mrb[0].mxu0 %v2530
        %v2899 = vpop.f32.mrb[0].mxu0
        %v2900 = vadd.f32 %v1844, %v2899
        %v2901 = vpop.f32.mrb[0].mxu0
        %v2902 = vadd.f32 %v1844, %v2901
        %v2903 = vpop.f32.mrb[0].mxu0
        %v2904 = vadd.f32 %v1849, %v2903
        %v2905 = vpop.f32.mrb[0].mxu0
        %v2906 = vadd.f32 %v1849, %v2905
        %2907 = vmatprep.mubr.bf16.mxu0 0
        %2908 = vmatmul.mubr.bf16.gmra.mrb[0].mxu0 %v2531
        %v2909 = vpop.f32.mrb[0].mxu0
        %v2910 = vadd.f32 %v1854, %v2909
        %v2911 = vpop.f32.mrb[0].mxu0
        %v2912 = vadd.f32 %v1854, %v2911
        %v2913 = vpop.f32.mrb[0].mxu0
        %v2914 = vadd.f32 %v1859, %v2913
        %v2915 = vpop.f32.mrb[0].mxu0
        %v2916 = vadd.f32 %v1859, %v2915
        %2917 = vmatprep.mubr.bf16.mxu0 0
        %2918 = vmatmul.mubr.bf16.gmra.mrb[0].mxu0 %v2532
        %v2919 = vpop.f32.mrb[0].mxu0
        %v2920 = vadd.f32 %v1864, %v2919
        %v2921 = vpop.f32.mrb[0].mxu0
        %v2922 = vadd.f32 %v1864, %v2921
        %v2923 = vpop.f32.mrb[0].mxu0
        %v2924 = vadd.f32 %v1869, %v2923
        %v2925 = vpop.f32.mrb[0].mxu0
        %v2926 = vadd.f32 %v1869, %v2925
        %2927 = vmatprep.mubr.bf16.mxu0 0
        %2928 = vmatmul.mubr.bf16.gmra.mrb[0].mxu0 %v2533
        %v2929 = vpop.f32.mrb[0].mxu0
        %v2930 = vadd.f32 %v1874, %v2929
        %v2931 = vpop.f32.mrb[0].mxu0
        %v2932 = vadd.f32 %v1874, %v2931
        %v2933 = vpop.f32.mrb[0].mxu0
        %v2934 = vadd.f32 %v1879, %v2933
        %v2935 = vpop.f32.mrb[0].mxu0
        %v2936 = vadd.f32 %v1879, %v2935
        %2937 = vmatprep.mubr.bf16.mxu0 0
        %2938 = vmatmul.mubr.bf16.gmra.mrb[0].mxu0 %v2534
        %v2939 = vpop.f32.mrb[0].mxu0
        %v2940 = vadd.f32 %v1884, %v2939
        %v2941 = vpop.f32.mrb[0].mxu0
        %v2942 = vadd.f32 %v1884, %v2941
        %v2943 = vpop.f32.mrb[0].mxu0
        %v2944 = vadd.f32 %v1889, %v2943
        %v2945 = vpop.f32.mrb[0].mxu0
        %v2946 = vadd.f32 %v1889, %v2945
        %2947 = vmatprep.mubr.bf16.mxu0 0
        %2948 = vmatmul.mubr.bf16.gmra.mrb[0].mxu0 %v2535
        %v2949 = vpop.f32.mrb[0].mxu0
        %v2950 = vadd.f32 %v1894, %v2949
        %v2951 = vpop.f32.mrb[0].mxu0
        %v2952 = vadd.f32 %v1894, %v2951
        %v2953 = vpop.f32.mrb[0].mxu0
        %v2954 = vadd.f32 %v1899, %v2953
        %v2955 = vpop.f32.mrb[0].mxu0
        %v2956 = vadd.f32 %v1899, %v2955
        %2957 = vmatprep.mubr.bf16.mxu0 0
        %2958 = vmatmul.mubr.bf16.gmra.mrb[0].mxu0 %v2536
        %v2959 = vpop.f32.mrb[0].mxu0
        %v2960 = vadd.f32 %v1904, %v2959
        %v2961 = vpop.f32.mrb[0].mxu0
        %v2962 = vadd.f32 %v1904, %v2961
        %v2963 = vpop.f32.mrb[0].mxu0
        %v2964 = vadd.f32 %v1909, %v2963
        %v2965 = vpop.f32.mrb[0].mxu0
        %v2966 = vadd.f32 %v1909, %v2965
        %2967 = vmatprep.mubr.bf16.mxu0 0
        %2968 = vmatmul.mubr.bf16.gmra.mrb[0].mxu0 %v2537
        %v2969 = vpop.f32.mrb[0].mxu0
        %v2970 = vadd.f32 %v1914, %v2969
        %v2971 = vpop.f32.mrb[0].mxu0
        %v2972 = vadd.f32 %v1914, %v2971
        %v2973 = vpop.f32.mrb[0].mxu0
        %v2974 = vadd.f32 %v1919, %v2973
        %v2975 = vpop.f32.mrb[0].mxu0
        %v2976 = vadd.f32 %v1919, %v2975
        %2977 = vmatprep.mubr.bf16.mxu0 0
        %2978 = vmatmul.mubr.bf16.gmra.mrb[0].mxu0 %v2538
        %v2979 = vpop.f32.mrb[0].mxu0
        %v2980 = vadd.f32 %v1924, %v2979
        %v2981 = vpop.f32.mrb[0].mxu0
        %v2982 = vadd.f32 %v1924, %v2981
        %v2983 = vpop.f32.mrb[0].mxu0
        %v2984 = vadd.f32 %v1929, %v2983
        %v2985 = vpop.f32.mrb[0].mxu0
        %v2986 = vadd.f32 %v1929, %v2985
        %2987 = vmatprep.mubr.bf16.mxu0 0
        %2988 = vmatmul.mubr.bf16.gmra.mrb[0].mxu0 %v2539
        %v2989 = vpop.f32.mrb[0].mxu0
        %v2990 = vadd.f32 %v1934, %v2989
        %v2991 = vpop.f32.mrb[0].mxu0
        %v2992 = vadd.f32 %v1934, %v2991
        %v2993 = vpop.f32.mrb[0].mxu0
        %v2994 = vadd.f32 %v1939, %v2993
        %v2995 = vpop.f32.mrb[0].mxu0
        %v2996 = vadd.f32 %v1939, %v2995
        %2997 = vmatprep.mubr.bf16.mxu0 0
        %2998 = vmatmul.mubr.bf16.gmra.mrb[0].mxu0 %v2540
        %v2999 = vpop.f32.mrb[0].mxu0
        %v3000 = vadd.f32 %v1944, %v2999
        %v3001 = vpop.f32.mrb[0].mxu0
        %v3002 = vadd.f32 %v1944, %v3001
        %v3003 = vpop.f32.mrb[0].mxu0
        %v3004 = vadd.f32 %v1949, %v3003
        %v3005 = vpop.f32.mrb[0].mxu0
        %v3006 = vadd.f32 %v1949, %v3005
        %3007 = vmatprep.mubr.bf16.mxu0 0
        %3008 = vmatmul.mubr.bf16.gmra.mrb[0].mxu0 %v2541
        %v3009 = vpop.f32.mrb[0].mxu0
        %v3010 = vadd.f32 %v1954, %v3009
        %v3011 = vpop.f32.mrb[0].mxu0
        %v3012 = vadd.f32 %v1954, %v3011
        %v3013 = vpop.f32.mrb[0].mxu0
        %v3014 = vadd.f32 %v1959, %v3013
        %v3015 = vpop.f32.mrb[0].mxu0
        %v3016 = vadd.f32 %v1959, %v3015
        %3017 = vmatprep.mubr.bf16.mxu0 0
        %3018 = vmatmul.mubr.bf16.gmra.mrb[0].mxu0 %v2542
        %v3019 = vpop.f32.mrb[0].mxu0
        %v3020 = vadd.f32 %v1964, %v3019
        %v3021 = vpop.f32.mrb[0].mxu0
        %v3022 = vadd.f32 %v1964, %v3021
        %v3023 = vpop.f32.mrb[0].mxu0
        %v3024 = vadd.f32 %v1969, %v3023
        %v3025 = vpop.f32.mrb[0].mxu0
        %v3026 = vadd.f32 %v1969, %v3025
        %3027 = vmatprep.mubr.bf16.mxu0 0
        %3028 = vmatmul.mubr.bf16.gmra.mrb[0].mxu0 %v2543
        %v3029 = vpop.f32.mrb[0].mxu0
        %v3030 = vadd.f32 %v1974, %v3029
        %v3031 = vpop.f32.mrb[0].mxu0
        %v3032 = vadd.f32 %v1974, %v3031
        %v3033 = vpop.f32.mrb[0].mxu0
        %v3034 = vadd.f32 %v1979, %v3033
        %v3035 = vpop.f32.mrb[0].mxu0
        %v3036 = vadd.f32 %v1979, %v3035
        %3037 = vmatprep.mubr.bf16.mxu0 0
        %3038 = vmatmul.mubr.bf16.gmra.mrb[0].mxu0 %v2544
        %v3039 = vpop.f32.mrb[0].mxu0
        %v3040 = vadd.f32 %v1984, %v3039
        %v3041 = vpop.f32.mrb[0].mxu0
        %v3042 = vadd.f32 %v1984, %v3041
        %v3043 = vpop.f32.mrb[0].mxu0
        %v3044 = vadd.f32 %v1989, %v3043
        %v3045 = vpop.f32.mrb[0].mxu0
        %v3046 = vadd.f32 %v1989, %v3045
        %3047 = vmatprep.mubr.bf16.mxu0 0
        %3048 = vmatmul.mubr.bf16.gmra.mrb[0].mxu0 %v2545
        %v3049 = vpop.f32.mrb[0].mxu0
        %v3050 = vadd.f32 %v1994, %v3049
        %v3051 = vpop.f32.mrb[0].mxu0
        %v3052 = vadd.f32 %v1994, %v3051
        %v3053 = vpop.f32.mrb[0].mxu0
        %v3054 = vadd.f32 %v1999, %v3053
        %v3055 = vpop.f32.mrb[0].mxu0
        %v3056 = vadd.f32 %v1999, %v3055
        %3057 = vmatprep.mubr.bf16.mxu0 0
        %3058 = vmatmul.mubr.bf16.gmra.mrb[0].mxu0 %v2546
        %v3059 = vpop.f32.mrb[0].mxu0
        %v3060 = vadd.f32 %v2004, %v3059
        %v3061 = vpop.f32.mrb[0].mxu0
        %v3062 = vadd.f32 %v2004, %v3061
        %v3063 = vpop.f32.mrb[0].mxu0
        %v3064 = vadd.f32 %v2009, %v3063
        %v3065 = vpop.f32.mrb[0].mxu0
        %v3066 = vadd.f32 %v2009, %v3065
        %3067 = vmatprep.mubr.bf16.mxu0 0
        %3068 = vmatmul.mubr.bf16.gmra.mrb[0].mxu0 %v2547
        %v3069 = vpop.f32.mrb[0].mxu0
        %v3070 = vadd.f32 %v2014, %v3069
        %v3071 = vpop.f32.mrb[0].mxu0
        %v3072 = vadd.f32 %v2014, %v3071
        %v3073 = vpop.f32.mrb[0].mxu0
        %v3074 = vadd.f32 %v2019, %v3073
        %v3075 = vpop.f32.mrb[0].mxu0
        %v3076 = vadd.f32 %v2019, %v3075
        %3077 = vmatprep.mubr.bf16.mxu0 0
        %3078 = vmatmul.mubr.bf16.gmra.mrb[0].mxu0 %v2548
        %v3079 = vpop.f32.mrb[0].mxu0
        %v3080 = vadd.f32 %v2024, %v3079
        %v3081 = vpop.f32.mrb[0].mxu0
        %v3082 = vadd.f32 %v2024, %v3081
        %v3083 = vpop.f32.mrb[0].mxu0
        %v3084 = vadd.f32 %v2029, %v3083
        %v3085 = vpop.f32.mrb[0].mxu0
        %v3086 = vadd.f32 %v2029, %v3085
        %3087 = vmatprep.mubr.bf16.mxu0 0
        %3088 = vmatmul.mubr.bf16.gmra.mrb[0].mxu0 %v2549
        %v3089 = vpop.f32.mrb[0].mxu0
        %v3090 = vadd.f32 %v2034, %v3089
        %v3091 = vpop.f32.mrb[0].mxu0
        %v3092 = vadd.f32 %v2034, %v3091
        %v3093 = vpop.f32.mrb[0].mxu0
        %v3094 = vadd.f32 %v2039, %v3093
        %v3095 = vpop.f32.mrb[0].mxu0
        %v3096 = vadd.f32 %v2039, %v3095
        %3097 = vmatprep.mubr.bf16.mxu0 0
        %3098 = vmatmul.mubr.bf16.gmra.mrb[0].mxu0 %v2550
        %v3099 = vpop.f32.mrb[0].mxu0
        %v3100 = vadd.f32 %v2044, %v3099
        %v3101 = vpop.f32.mrb[0].mxu0
        %v3102 = vadd.f32 %v2044, %v3101
        %v3103 = vpop.f32.mrb[0].mxu0
        %v3104 = vadd.f32 %v2049, %v3103
        %v3105 = vpop.f32.mrb[0].mxu0
        %v3106 = vadd.f32 %v2049, %v3105
        %3107 = vmatprep.mubr.bf16.mxu0 0
        %3108 = vmatmul.mubr.bf16.gmra.mrb[0].mxu0 %v2551
        %v3109 = vpop.f32.mrb[0].mxu0
        %v3110 = vadd.f32 %v2054, %v3109
        %v3111 = vpop.f32.mrb[0].mxu0
        %v3112 = vadd.f32 %v2054, %v3111
        %v3113 = vpop.f32.mrb[0].mxu0
        %v3114 = vadd.f32 %v2059, %v3113
        %v3115 = vpop.f32.mrb[0].mxu0
        %v3116 = vadd.f32 %v2059, %v3115
        %3117 = vmatprep.mubr.bf16.mxu0 0
        %3118 = vmatmul.mubr.bf16.gmra.mrb[0].mxu0 %v2552
        %v3119 = vpop.f32.mrb[0].mxu0
        %v3120 = vadd.f32 %v2064, %v3119
        %v3121 = vpop.f32.mrb[0].mxu0
        %v3122 = vadd.f32 %v2064, %v3121
        %v3123 = vpop.f32.mrb[0].mxu0
        %v3124 = vadd.f32 %v2069, %v3123
        %v3125 = vpop.f32.mrb[0].mxu0
        %v3126 = vadd.f32 %v2069, %v3125
        %3127 = vmatprep.mubr.bf16.mxu0 0
        %3128 = vmatmul.mubr.bf16.gmra.mrb[0].mxu0 %v2553
        %v3129 = vpop.f32.mrb[0].mxu0
        %v3130 = vadd.f32 %v2074, %v3129
        %v3131 = vpop.f32.mrb[0].mxu0
        %v3132 = vadd.f32 %v2074, %v3131
        %v3133 = vpop.f32.mrb[0].mxu0
        %v3134 = vadd.f32 %v2079, %v3133
        %v3135 = vpop.f32.mrb[0].mxu0
        %v3136 = vadd.f32 %v2079, %v3135
        %3137 = vmatprep.mubr.bf16.mxu0 0
        %3138 = vmatmul.mubr.bf16.gmra.mrb[0].mxu0 %v2554
        %v3139 = vpop.f32.mrb[0].mxu0
        %v3140 = vadd.f32 %v2084, %v3139
        %v3141 = vpop.f32.mrb[0].mxu0
        %v3142 = vadd.f32 %v2084, %v3141
        %v3143 = vpop.f32.mrb[0].mxu0
        %v3144 = vadd.f32 %v2089, %v3143
        %v3145 = vpop.f32.mrb[0].mxu0
        %v3146 = vadd.f32 %v2089, %v3145
        %3147 = vmatprep.mubr.bf16.mxu0 0
        %3148 = vmatmul.mubr.bf16.gmra.mrb[0].mxu0 %v2555
        %v3149 = vpop.f32.mrb[0].mxu0
        %v3150 = vadd.f32 %v2094, %v3149
        %v3151 = vpop.f32.mrb[0].mxu0
        %v3152 = vadd.f32 %v2094, %v3151
        %v3153 = vpop.f32.mrb[0].mxu0
        %v3154 = vadd.f32 %v2099, %v3153
        %v3155 = vpop.f32.mrb[0].mxu0
        %v3156 = vadd.f32 %v2099, %v3155
        %3157 = vmatprep.mubr.bf16.mxu0 0
        %3158 = vmatmul.mubr.bf16.gmra.mrb[0].mxu0 %v2556
        %v3159 = vpop.f32.mrb[0].mxu0
        %v3160 = vadd.f32 %v2104, %v3159
        %v3161 = vpop.f32.mrb[0].mxu0
        %v3162 = vadd.f32 %v2104, %v3161
        %v3163 = vpop.f32.mrb[0].mxu0
        %v3164 = vadd.f32 %v2109, %v3163
        %v3165 = vpop.f32.mrb[0].mxu0
        %v3166 = vadd.f32 %v2109, %v3165
        %3167 = vmatprep.mubr.bf16.mxu0 0
        %3168 = vmatmul.mubr.bf16.gmra.mrb[0].mxu0 %v2557
        %v3169 = vpop.f32.mrb[0].mxu0
        %v3170 = vadd.f32 %v2114, %v3169
        %v3171 = vpop.f32.mrb[0].mxu0
        %v3172 = vadd.f32 %v2114, %v3171
        %v3173 = vpop.f32.mrb[0].mxu0
        %v3174 = vadd.f32 %v2119, %v3173
        %v3175 = vpop.f32.mrb[0].mxu0
        %v3176 = vadd.f32 %v2119, %v3175
        %3177 = vmatprep.mubr.bf16.mxu0 0
        %3178 = vmatmul.mubr.bf16.gmra.mrb[0].mxu0 %v2558
        %v3179 = vpop.f32.mrb[0].mxu0
        %v3180 = vadd.f32 %v2124, %v3179
        %v3181 = vpop.f32.mrb[0].mxu0
        %v3182 = vadd.f32 %v2124, %v3181
        %v3183 = vpop.f32.mrb[0].mxu0
        %v3184 = vadd.f32 %v2129, %v3183
        %v3185 = vpop.f32.mrb[0].mxu0
        %v3186 = vadd.f32 %v2129, %v3185
        %3187 = vmatprep.mubr.bf16.mxu0 0
        %3188 = vmatmul.mubr.bf16.gmra.mrb[0].mxu0 %v2559
        %v3189 = vpop.f32.mrb[0].mxu0
        %v3190 = vadd.f32 %v2134, %v3189
        %v3191 = vpop.f32.mrb[0].mxu0
        %v3192 = vadd.f32 %v2134, %v3191
        %v3193 = vpop.f32.mrb[0].mxu0
        %v3194 = vadd.f32 %v2139, %v3193
        %v3195 = vpop.f32.mrb[0].mxu0
        %v3196 = vadd.f32 %v2139, %v3195
        %3197 = vmatprep.mubr.bf16.mxu0 0
        %3198 = vmatmul.mubr.bf16.gmra.mrb[0].mxu0 %v2560
        %v3199 = vpop.f32.mrb[0].mxu0
        %v3200 = vadd.f32 %v2144, %v3199
        %v3201 = vpop.f32.mrb[0].mxu0
        %v3202 = vadd.f32 %v2144, %v3201
        %v3203 = vpop.f32.mrb[0].mxu0
        %v3204 = vadd.f32 %v2149, %v3203
        %v3205 = vpop.f32.mrb[0].mxu0
        %v3206 = vadd.f32 %v2149, %v3205
        %3207 = vmatprep.mubr.bf16.mxu0 0
        %3208 = vmatmul.mubr.bf16.gmra.mrb[0].mxu0 %v2561
        %v3209 = vpop.f32.mrb[0].mxu0
        %v3210 = vadd.f32 %v2154, %v3209
        %v3211 = vpop.f32.mrb[0].mxu0
        %v3212 = vadd.f32 %v2154, %v3211
        %v3213 = vpop.f32.mrb[0].mxu0
        %v3214 = vadd.f32 %v2159, %v3213
        %v3215 = vpop.f32.mrb[0].mxu0
        %v3216 = vadd.f32 %v2159, %v3215
        %3217 = vmatprep.mubr.bf16.mxu0 0
        %3218 = vmatmul.mubr.bf16.gmra.mrb[0].mxu0 %v2562
        %v3219 = vpop.f32.mrb[0].mxu0
        %v3220 = vadd.f32 %v2164, %v3219
        %v3221 = vpop.f32.mrb[0].mxu0
        %v3222 = vadd.f32 %v2164, %v3221
        %v3223 = vpop.f32.mrb[0].mxu0
        %v3224 = vadd.f32 %v2169, %v3223
        %v3225 = vpop.f32.mrb[0].mxu0
        %v3226 = vadd.f32 %v2169, %v3225
        %3227 = vmatprep.mubr.bf16.mxu0 0
        %3228 = vmatmul.mubr.bf16.gmra.mrb[0].mxu0 %v2563
        %v3229 = vpop.f32.mrb[0].mxu0
        %v3230 = vadd.f32 %v2174, %v3229
        %v3231 = vpop.f32.mrb[0].mxu0
        %v3232 = vadd.f32 %v2174, %v3231
        %v3233 = vpop.f32.mrb[0].mxu0
        %v3234 = vadd.f32 %v2179, %v3233
        %v3235 = vpop.f32.mrb[0].mxu0
        %v3236 = vadd.f32 %v2179, %v3235
        %3237 = vmatprep.mubr.bf16.mxu0 0
        %3238 = vmatmul.mubr.bf16.gmra.mrb[0].mxu0 %v2564
        %v3239 = vpop.f32.mrb[0].mxu0
        %v3240 = vadd.f32 %v2184, %v3239
        %v3241 = vpop.f32.mrb[0].mxu0
        %v3242 = vadd.f32 %v2184, %v3241
        %v3243 = vpop.f32.mrb[0].mxu0
        %v3244 = vadd.f32 %v2189, %v3243
        %v3245 = vpop.f32.mrb[0].mxu0
        %v3246 = vadd.f32 %v2189, %v3245
        %3247 = vmatprep.mubr.bf16.mxu0 0
        %3248 = vmatmul.mubr.bf16.gmra.mrb[0].mxu0 %v2565
        %v3249 = vpop.f32.mrb[0].mxu0
        %v3250 = vadd.f32 %v2194, %v3249
        %v3251 = vpop.f32.mrb[0].mxu0
        %v3252 = vadd.f32 %v2194, %v3251
        %v3253 = vpop.f32.mrb[0].mxu0
        %v3254 = vadd.f32 %v2199, %v3253
        %v3255 = vpop.f32.mrb[0].mxu0
        %v3256 = vadd.f32 %v2199, %v3255
        %3257 = vmatprep.mubr.bf16.mxu0 0
        %3258 = vmatmul.mubr.bf16.gmra.mrb[0].mxu0 %v2566
        %v3259 = vpop.f32.mrb[0].mxu0
        %v3260 = vadd.f32 %v2204, %v3259
        %v3261 = vpop.f32.mrb[0].mxu0
        %v3262 = vadd.f32 %v2204, %v3261
        %v3263 = vpop.f32.mrb[0].mxu0
        %v3264 = vadd.f32 %v2209, %v3263
        %v3265 = vpop.f32.mrb[0].mxu0
        %v3266 = vadd.f32 %v2209, %v3265
        %3267 = vmatprep.mubr.bf16.mxu0 0
        %3268 = vmatmul.mubr.bf16.gmra.mrb[0].mxu0 %v2567
        %v3269 = vpop.f32.mrb[0].mxu0
        %v3270 = vadd.f32 %v2214, %v3269
        %v3271 = vpop.f32.mrb[0].mxu0
        %v3272 = vadd.f32 %v2214, %v3271
        %v3273 = vpop.f32.mrb[0].mxu0
        %v3274 = vadd.f32 %v2219, %v3273
        %v3275 = vpop.f32.mrb[0].mxu0
        %v3276 = vadd.f32 %v2219, %v3275
        %3277 = vmatprep.mubr.bf16.mxu0 0
        %3278 = vmatmul.mubr.bf16.gmra.mrb[0].mxu0 %v2568
        %v3279 = vpop.f32.mrb[0].mxu0
        %v3280 = vadd.f32 %v2224, %v3279
        %v3281 = vpop.f32.mrb[0].mxu0
        %v3282 = vadd.f32 %v2224, %v3281
        %v3283 = vpop.f32.mrb[0].mxu0
        %v3284 = vadd.f32 %v2229, %v3283
        %v3285 = vpop.f32.mrb[0].mxu0
        %v3286 = vadd.f32 %v2229, %v3285
        %3287 = vmatprep.mubr.bf16.mxu0 0
        %3288 = vmatmul.mubr.bf16.gmra.mrb[0].mxu0 %v2569
        %v3289 = vpop.f32.mrb[0].mxu0
        %v3290 = vadd.f32 %v2234, %v3289
        %v3291 = vpop.f32.mrb[0].mxu0
        %v3292 = vadd.f32 %v2234, %v3291
        %v3293 = vpop.f32.mrb[0].mxu0
        %v3294 = vadd.f32 %v2239, %v3293
        %v3295 = vpop.f32.mrb[0].mxu0
        %v3296 = vadd.f32 %v2239, %v3295
        %3297 = vmatprep.mubr.bf16.mxu0 0
        %3298 = vmatmul.mubr.bf16.gmra.mrb[0].mxu0 %v2570
        %v3299 = vpop.f32.mrb[0].mxu0
        %v3300 = vadd.f32 %v2244, %v3299
        %v3301 = vpop.f32.mrb[0].mxu0
        %v3302 = vadd.f32 %v2244, %v3301
        %v3303 = vpop.f32.mrb[0].mxu0
        %v3304 = vadd.f32 %v2249, %v3303
        %v3305 = vpop.f32.mrb[0].mxu0
        %v3306 = vadd.f32 %v2249, %v3305
        %3307 = vdwg.mxu0
        %3308 = vmatprep.subr.bf16.mxu0 %v1422
        %3309 = vmatpush1.bf16.msra.mxu0 %v1421
        %3310 = vmatprep.subr.bf16.mxu0 %v1430
        %3311 = vmatpush1.bf16.msra.mxu0 %v1429
        %3312 = vmatprep.subr.bf16.mxu0 %v1438
        %3313 = vmatpush1.bf16.msra.mxu0 %v1437
        %3314 = vmatprep.subr.bf16.mxu0 %v1446
        %3315 = vmatpush1.bf16.msra.mxu0 %v1445
        %3316 = vmatprep.subr.bf16.mxu0 %v1454
        %3317 = vmatpush1.bf16.msra.mxu0 %v1453
        %3318 = vmatprep.subr.bf16.mxu0 %v1462
        %3319 = vmatpush1.bf16.msra.mxu0 %v1461
        %3320 = vmatprep.subr.bf16.mxu0 %v1470
        %3321 = vmatpush1.bf16.msra.mxu0 %v1469
        %3322 = vmatprep.subr.bf16.mxu0 %v1478
        %3323 = vmatpush1.bf16.msra.mxu0 %v1477
        %3324 = vmatprep.subr.bf16.mxu0 0
        %3325 = vmatpush1.bf16.msra.mxu0 0
        %3326 = vmatprep.subr.bf16.mxu0 0
        %3327 = vmatpush1.bf16.msra.mxu0 0
        %3328 = vmatprep.subr.bf16.mxu0 0
        %3329 = vmatpush1.bf16.msra.mxu0 0
        %3330 = vmatprep.subr.bf16.mxu0 0
        %3331 = vmatpush1.bf16.msra.mxu0 0
        %3332 = vmatprep.subr.bf16.mxu0 0
        %3333 = vmatpush1.bf16.msra.mxu0 0
        %3334 = vmatprep.subr.bf16.mxu0 0
        %3335 = vmatpush1.bf16.msra.mxu0 0
        %3336 = vmatprep.subr.bf16.mxu0 0
        %3337 = vmatpush1.bf16.msra.mxu0 0
        %3338 = vmatprep.subr.bf16.mxu0 0
        %3339 = vmatpush1.bf16.msra.mxu0 0
        %3340 = vmatprep.mubr.bf16.mxu0 0
        %3341 = vmatmul.mubr.bf16.gmra.mrb[0].mxu0 %v2507
        %v3342 = vpop.f32.mrb[0].mxu0
        %v3343 = vadd.f32 %v1614, %v3342
        %v3344 = vpop.f32.mrb[0].mxu0
        %v3345 = vadd.f32 %v1614, %v3344
        %v3346 = vpop.f32.mrb[0].mxu0
        %v3347 = vadd.f32 %v1619, %v3346
        %v3348 = vpop.f32.mrb[0].mxu0
        %v3349 = vadd.f32 %v1619, %v3348
        %3350 = vmatprep.mubr.bf16.mxu0 0
        %3351 = vmatmul.mubr.bf16.gmra.mrb[0].mxu0 %v2508
        %v3352 = vpop.f32.mrb[0].mxu0
        %v3353 = vadd.f32 %v1624, %v3352
        %v3354 = vpop.f32.mrb[0].mxu0
        %v3355 = vadd.f32 %v1624, %v3354
        %v3356 = vpop.f32.mrb[0].mxu0
        %v3357 = vadd.f32 %v1629, %v3356
        %v3358 = vpop.f32.mrb[0].mxu0
        %v3359 = vadd.f32 %v1629, %v3358
        %3360 = vmatprep.mubr.bf16.mxu0 0
        %3361 = vmatmul.mubr.bf16.gmra.mrb[0].mxu0 %v2509
        %v3362 = vpop.f32.mrb[0].mxu0
        %v3363 = vadd.f32 %v1634, %v3362
        %v3364 = vpop.f32.mrb[0].mxu0
        %v3365 = vadd.f32 %v1634, %v3364
        %v3366 = vpop.f32.mrb[0].mxu0
        %v3367 = vadd.f32 %v1639, %v3366
        %v3368 = vpop.f32.mrb[0].mxu0
        %v3369 = vadd.f32 %v1639, %v3368
        %3370 = vmatprep.mubr.bf16.mxu0 0
        %3371 = vmatmul.mubr.bf16.gmra.mrb[0].mxu0 %v2510
        %v3372 = vpop.f32.mrb[0].mxu0
        %v3373 = vadd.f32 %v1644, %v3372
        %v3374 = vpop.f32.mrb[0].mxu0
        %v3375 = vadd.f32 %v1644, %v3374
        %v3376 = vpop.f32.mrb[0].mxu0
        %v3377 = vadd.f32 %v1649, %v3376
        %v3378 = vpop.f32.mrb[0].mxu0
        %v3379 = vadd.f32 %v1649, %v3378
        %3380 = vmatprep.mubr.bf16.mxu0 0
        %3381 = vmatmul.mubr.bf16.gmra.mrb[0].mxu0 %v2511
        %v3382 = vpop.f32.mrb[0].mxu0
        %v3383 = vadd.f32 %v1654, %v3382
        %v3384 = vpop.f32.mrb[0].mxu0
        %v3385 = vadd.f32 %v1654, %v3384
        %v3386 = vpop.f32.mrb[0].mxu0
        %v3387 = vadd.f32 %v1659, %v3386
        %v3388 = vpop.f32.mrb[0].mxu0
        %v3389 = vadd.f32 %v1659, %v3388
        %3390 = vmatprep.mubr.bf16.mxu0 0
        %3391 = vmatmul.mubr.bf16.gmra.mrb[0].mxu0 %v2512
        %v3392 = vpop.f32.mrb[0].mxu0
        %v3393 = vadd.f32 %v1664, %v3392
        %v3394 = vpop.f32.mrb[0].mxu0
        %v3395 = vadd.f32 %v1664, %v3394
        %v3396 = vpop.f32.mrb[0].mxu0
        %v3397 = vadd.f32 %v1669, %v3396
        %v3398 = vpop.f32.mrb[0].mxu0
        %v3399 = vadd.f32 %v1669, %v3398
        %3400 = vmatprep.mubr.bf16.mxu0 0
        %3401 = vmatmul.mubr.bf16.gmra.mrb[0].mxu0 %v2513
        %v3402 = vpop.f32.mrb[0].mxu0
        %v3403 = vadd.f32 %v1674, %v3402
        %v3404 = vpop.f32.mrb[0].mxu0
        %v3405 = vadd.f32 %v1674, %v3404
        %v3406 = vpop.f32.mrb[0].mxu0
        %v3407 = vadd.f32 %v1679, %v3406
        %v3408 = vpop.f32.mrb[0].mxu0
        %v3409 = vadd.f32 %v1679, %v3408
        %3410 = vmatprep.mubr.bf16.mxu0 0
        %3411 = vmatmul.mubr.bf16.gmra.mrb[0].mxu0 %v2514
        %v3412 = vpop.f32.mrb[0].mxu0
        %v3413 = vadd.f32 %v1684, %v3412
        %v3414 = vpop.f32.mrb[0].mxu0
        %v3415 = vadd.f32 %v1684, %v3414
        %v3416 = vpop.f32.mrb[0].mxu0
        %v3417 = vadd.f32 %v1689, %v3416
        %v3418 = vpop.f32.mrb[0].mxu0
        %v3419 = vadd.f32 %v1689, %v3418
        %3420 = vmatprep.mubr.bf16.mxu0 0
        %3421 = vmatmul.mubr.bf16.gmra.mrb[0].mxu0 %v2515
        %v3422 = vpop.f32.mrb[0].mxu0
        %v3423 = vadd.f32 %v1694, %v3422
        %v3424 = vpop.f32.mrb[0].mxu0
        %v3425 = vadd.f32 %v1694, %v3424
        %v3426 = vpop.f32.mrb[0].mxu0
        %v3427 = vadd.f32 %v1699, %v3426
        %v3428 = vpop.f32.mrb[0].mxu0
        %v3429 = vadd.f32 %v1699, %v3428
        %3430 = vmatprep.mubr.bf16.mxu0 0
        %3431 = vmatmul.mubr.bf16.gmra.mrb[0].mxu0 %v2516
        %v3432 = vpop.f32.mrb[0].mxu0
        %v3433 = vadd.f32 %v1704, %v3432
        %v3434 = vpop.f32.mrb[0].mxu0
        %v3435 = vadd.f32 %v1704, %v3434
        %v3436 = vpop.f32.mrb[0].mxu0
        %v3437 = vadd.f32 %v1709, %v3436
        %v3438 = vpop.f32.mrb[0].mxu0
        %v3439 = vadd.f32 %v1709, %v3438
        %3440 = vmatprep.mubr.bf16.mxu0 0
        %3441 = vmatmul.mubr.bf16.gmra.mrb[0].mxu0 %v2517
        %v3442 = vpop.f32.mrb[0].mxu0
        %v3443 = vadd.f32 %v1714, %v3442
        %v3444 = vpop.f32.mrb[0].mxu0
        %v3445 = vadd.f32 %v1714, %v3444
        %v3446 = vpop.f32.mrb[0].mxu0
        %v3447 = vadd.f32 %v1719, %v3446
        %v3448 = vpop.f32.mrb[0].mxu0
        %v3449 = vadd.f32 %v1719, %v3448
        %3450 = vmatprep.mubr.bf16.mxu0 0
        %3451 = vmatmul.mubr.bf16.gmra.mrb[0].mxu0 %v2518
        %v3452 = vpop.f32.mrb[0].mxu0
        %v3453 = vadd.f32 %v1724, %v3452
        %v3454 = vpop.f32.mrb[0].mxu0
        %v3455 = vadd.f32 %v1724, %v3454
        %v3456 = vpop.f32.mrb[0].mxu0
        %v3457 = vadd.f32 %v1729, %v3456
        %v3458 = vpop.f32.mrb[0].mxu0
        %v3459 = vadd.f32 %v1729, %v3458
        %3460 = vmatprep.mubr.bf16.mxu0 0
        %3461 = vmatmul.mubr.bf16.gmra.mrb[0].mxu0 %v2519
        %v3462 = vpop.f32.mrb[0].mxu0
        %v3463 = vadd.f32 %v1734, %v3462
        %v3464 = vpop.f32.mrb[0].mxu0
        %v3465 = vadd.f32 %v1734, %v3464
        %v3466 = vpop.f32.mrb[0].mxu0
        %v3467 = vadd.f32 %v1739, %v3466
        %v3468 = vpop.f32.mrb[0].mxu0
        %v3469 = vadd.f32 %v1739, %v3468
        %3470 = vmatprep.mubr.bf16.mxu0 0
        %3471 = vmatmul.mubr.bf16.gmra.mrb[0].mxu0 %v2520
        %v3472 = vpop.f32.mrb[0].mxu0
        %v3473 = vadd.f32 %v1744, %v3472
        %v3474 = vpop.f32.mrb[0].mxu0
        %v3475 = vadd.f32 %v1744, %v3474
        %v3476 = vpop.f32.mrb[0].mxu0
        %v3477 = vadd.f32 %v1749, %v3476
        %v3478 = vpop.f32.mrb[0].mxu0
        %v3479 = vadd.f32 %v1749, %v3478
        %3480 = vmatprep.mubr.bf16.mxu0 0
        %3481 = vmatmul.mubr.bf16.gmra.mrb[0].mxu0 %v2521
        %v3482 = vpop.f32.mrb[0].mxu0
        %v3483 = vadd.f32 %v1754, %v3482
        %v3484 = vpop.f32.mrb[0].mxu0
        %v3485 = vadd.f32 %v1754, %v3484
        %v3486 = vpop.f32.mrb[0].mxu0
        %v3487 = vadd.f32 %v1759, %v3486
        %v3488 = vpop.f32.mrb[0].mxu0
        %v3489 = vadd.f32 %v1759, %v3488
        %3490 = vmatprep.mubr.bf16.mxu0 0
        %3491 = vmatmul.mubr.bf16.gmra.mrb[0].mxu0 %v2522
        %v3492 = vpop.f32.mrb[0].mxu0
        %v3493 = vadd.f32 %v1764, %v3492
        %v3494 = vpop.f32.mrb[0].mxu0
        %v3495 = vadd.f32 %v1764, %v3494
        %v3496 = vpop.f32.mrb[0].mxu0
        %v3497 = vadd.f32 %v1769, %v3496
        %v3498 = vpop.f32.mrb[0].mxu0
        %v3499 = vadd.f32 %v1769, %v3498
        %3500 = vmatprep.mubr.bf16.mxu0 0
        %3501 = vmatmul.mubr.bf16.gmra.mrb[0].mxu0 %v2523
        %v3502 = vpop.f32.mrb[0].mxu0
        %v3503 = vadd.f32 %v1774, %v3502
        %v3504 = vpop.f32.mrb[0].mxu0
        %v3505 = vadd.f32 %v1774, %v3504
        %v3506 = vpop.f32.mrb[0].mxu0
        %v3507 = vadd.f32 %v1779, %v3506
        %v3508 = vpop.f32.mrb[0].mxu0
        %v3509 = vadd.f32 %v1779, %v3508
        %3510 = vmatprep.mubr.bf16.mxu0 0
        %3511 = vmatmul.mubr.bf16.gmra.mrb[0].mxu0 %v2524
        %v3512 = vpop.f32.mrb[0].mxu0
        %v3513 = vadd.f32 %v1784, %v3512
        %v3514 = vpop.f32.mrb[0].mxu0
        %v3515 = vadd.f32 %v1784, %v3514
        %v3516 = vpop.f32.mrb[0].mxu0
        %v3517 = vadd.f32 %v1789, %v3516
        %v3518 = vpop.f32.mrb[0].mxu0
        %v3519 = vadd.f32 %v1789, %v3518
        %3520 = vmatprep.mubr.bf16.mxu0 0
        %3521 = vmatmul.mubr.bf16.gmra.mrb[0].mxu0 %v2525
        %v3522 = vpop.f32.mrb[0].mxu0
        %v3523 = vadd.f32 %v1794, %v3522
        %v3524 = vpop.f32.mrb[0].mxu0
        %v3525 = vadd.f32 %v1794, %v3524
        %v3526 = vpop.f32.mrb[0].mxu0
        %v3527 = vadd.f32 %v1799, %v3526
        %v3528 = vpop.f32.mrb[0].mxu0
        %v3529 = vadd.f32 %v1799, %v3528
        %3530 = vmatprep.mubr.bf16.mxu0 0
        %3531 = vmatmul.mubr.bf16.gmra.mrb[0].mxu0 %v2526
        %v3532 = vpop.f32.mrb[0].mxu0
        %v3533 = vadd.f32 %v1804, %v3532
        %v3534 = vpop.f32.mrb[0].mxu0
        %v3535 = vadd.f32 %v1804, %v3534
        %v3536 = vpop.f32.mrb[0].mxu0
        %v3537 = vadd.f32 %v1809, %v3536
        %v3538 = vpop.f32.mrb[0].mxu0
        %v3539 = vadd.f32 %v1809, %v3538
        %3540 = vmatprep.mubr.bf16.mxu0 0
        %3541 = vmatmul.mubr.bf16.gmra.mrb[0].mxu0 %v2527
        %v3542 = vpop.f32.mrb[0].mxu0
        %v3543 = vadd.f32 %v1814, %v3542
        %v3544 = vpop.f32.mrb[0].mxu0
        %v3545 = vadd.f32 %v1814, %v3544
        %v3546 = vpop.f32.mrb[0].mxu0
        %v3547 = vadd.f32 %v1819, %v3546
        %v3548 = vpop.f32.mrb[0].mxu0
        %v3549 = vadd.f32 %v1819, %v3548
        %3550 = vmatprep.mubr.bf16.mxu0 0
        %3551 = vmatmul.mubr.bf16.gmra.mrb[0].mxu0 %v2528
        %v3552 = vpop.f32.mrb[0].mxu0
        %v3553 = vadd.f32 %v1824, %v3552
        %v3554 = vpop.f32.mrb[0].mxu0
        %v3555 = vadd.f32 %v1824, %v3554
        %v3556 = vpop.f32.mrb[0].mxu0
        %v3557 = vadd.f32 %v1829, %v3556
        %v3558 = vpop.f32.mrb[0].mxu0
        %v3559 = vadd.f32 %v1829, %v3558
        %3560 = vmatprep.mubr.bf16.mxu0 0
        %3561 = vmatmul.mubr.bf16.gmra.mrb[0].mxu0 %v2529
        %v3562 = vpop.f32.mrb[0].mxu0
        %v3563 = vadd.f32 %v1834, %v3562
        %v3564 = vpop.f32.mrb[0].mxu0
        %v3565 = vadd.f32 %v1834, %v3564
        %v3566 = vpop.f32.mrb[0].mxu0
        %v3567 = vadd.f32 %v1839, %v3566
        %v3568 = vpop.f32.mrb[0].mxu0
        %v3569 = vadd.f32 %v1839, %v3568
        %3570 = vmatprep.mubr.bf16.mxu0 0
        %3571 = vmatmul.mubr.bf16.gmra.mrb[0].mxu0 %v2530
        %v3572 = vpop.f32.mrb[0].mxu0
        %v3573 = vadd.f32 %v1844, %v3572
        %v3574 = vpop.f32.mrb[0].mxu0
        %v3575 = vadd.f32 %v1844, %v3574
        %v3576 = vpop.f32.mrb[0].mxu0
        %v3577 = vadd.f32 %v1849, %v3576
        %v3578 = vpop.f32.mrb[0].mxu0
        %v3579 = vadd.f32 %v1849, %v3578
        %3580 = vmatprep.mubr.bf16.mxu0 0
        %3581 = vmatmul.mubr.bf16.gmra.mrb[0].mxu0 %v2531
        %v3582 = vpop.f32.mrb[0].mxu0
        %v3583 = vadd.f32 %v1854, %v3582
        %v3584 = vpop.f32.mrb[0].mxu0
        %v3585 = vadd.f32 %v1854, %v3584
        %v3586 = vpop.f32.mrb[0].mxu0
        %v3587 = vadd.f32 %v1859, %v3586
        %v3588 = vpop.f32.mrb[0].mxu0
        %v3589 = vadd.f32 %v1859, %v3588
        %3590 = vmatprep.mubr.bf16.mxu0 0
        %3591 = vmatmul.mubr.bf16.gmra.mrb[0].mxu0 %v2532
        %v3592 = vpop.f32.mrb[0].mxu0
        %v3593 = vadd.f32 %v1864, %v3592
        %v3594 = vpop.f32.mrb[0].mxu0
        %v3595 = vadd.f32 %v1864, %v3594
        %v3596 = vpop.f32.mrb[0].mxu0
        %v3597 = vadd.f32 %v1869, %v3596
        %v3598 = vpop.f32.mrb[0].mxu0
        %v3599 = vadd.f32 %v1869, %v3598
        %3600 = vmatprep.mubr.bf16.mxu0 0
        %3601 = vmatmul.mubr.bf16.gmra.mrb[0].mxu0 %v2533
        %v3602 = vpop.f32.mrb[0].mxu0
        %v3603 = vadd.f32 %v1874, %v3602
        %v3604 = vpop.f32.mrb[0].mxu0
        %v3605 = vadd.f32 %v1874, %v3604
        %v3606 = vpop.f32.mrb[0].mxu0
        %v3607 = vadd.f32 %v1879, %v3606
        %v3608 = vpop.f32.mrb[0].mxu0
        %v3609 = vadd.f32 %v1879, %v3608
        %3610 = vmatprep.mubr.bf16.mxu0 0
        %3611 = vmatmul.mubr.bf16.gmra.mrb[0].mxu0 %v2534
        %v3612 = vpop.f32.mrb[0].mxu0
        %v3613 = vadd.f32 %v1884, %v3612
        %v3614 = vpop.f32.mrb[0].mxu0
        %v3615 = vadd.f32 %v1884, %v3614
        %v3616 = vpop.f32.mrb[0].mxu0
        %v3617 = vadd.f32 %v1889, %v3616
        %v3618 = vpop.f32.mrb[0].mxu0
        %v3619 = vadd.f32 %v1889, %v3618
        %3620 = vmatprep.mubr.bf16.mxu0 0
        %3621 = vmatmul.mubr.bf16.gmra.mrb[0].mxu0 %v2535
        %v3622 = vpop.f32.mrb[0].mxu0
        %v3623 = vadd.f32 %v1894, %v3622
        %v3624 = vpop.f32.mrb[0].mxu0
        %v3625 = vadd.f32 %v1894, %v3624
        %v3626 = vpop.f32.mrb[0].mxu0
        %v3627 = vadd.f32 %v1899, %v3626
        %v3628 = vpop.f32.mrb[0].mxu0
        %v3629 = vadd.f32 %v1899, %v3628
        %3630 = vmatprep.mubr.bf16.mxu0 0
        %3631 = vmatmul.mubr.bf16.gmra.mrb[0].mxu0 %v2536
        %v3632 = vpop.f32.mrb[0].mxu0
        %v3633 = vadd.f32 %v1904, %v3632
        %v3634 = vpop.f32.mrb[0].mxu0
        %v3635 = vadd.f32 %v1904, %v3634
        %v3636 = vpop.f32.mrb[0].mxu0
        %v3637 = vadd.f32 %v1909, %v3636
        %v3638 = vpop.f32.mrb[0].mxu0
        %v3639 = vadd.f32 %v1909, %v3638
        %3640 = vmatprep.mubr.bf16.mxu0 0
        %3641 = vmatmul.mubr.bf16.gmra.mrb[0].mxu0 %v2537
        %v3642 = vpop.f32.mrb[0].mxu0
        %v3643 = vadd.f32 %v1914, %v3642
        %v3644 = vpop.f32.mrb[0].mxu0
        %v3645 = vadd.f32 %v1914, %v3644
        %v3646 = vpop.f32.mrb[0].mxu0
        %v3647 = vadd.f32 %v1919, %v3646
        %v3648 = vpop.f32.mrb[0].mxu0
        %v3649 = vadd.f32 %v1919, %v3648
        %3650 = vmatprep.mubr.bf16.mxu0 0
        %3651 = vmatmul.mubr.bf16.gmra.mrb[0].mxu0 %v2538
        %v3652 = vpop.f32.mrb[0].mxu0
        %v3653 = vadd.f32 %v1924, %v3652
        %v3654 = vpop.f32.mrb[0].mxu0
        %v3655 = vadd.f32 %v1924, %v3654
        %v3656 = vpop.f32.mrb[0].mxu0
        %v3657 = vadd.f32 %v1929, %v3656
        %v3658 = vpop.f32.mrb[0].mxu0
        %v3659 = vadd.f32 %v1929, %v3658
        %3660 = vmatprep.mubr.bf16.mxu0 0
        %3661 = vmatmul.mubr.bf16.gmra.mrb[0].mxu0 %v2539
        %v3662 = vpop.f32.mrb[0].mxu0
        %v3663 = vadd.f32 %v1934, %v3662
        %v3664 = vpop.f32.mrb[0].mxu0
        %v3665 = vadd.f32 %v1934, %v3664
        %v3666 = vpop.f32.mrb[0].mxu0
        %v3667 = vadd.f32 %v1939, %v3666
        %v3668 = vpop.f32.mrb[0].mxu0
        %v3669 = vadd.f32 %v1939, %v3668
        %3670 = vmatprep.mubr.bf16.mxu0 0
        %3671 = vmatmul.mubr.bf16.gmra.mrb[0].mxu0 %v2540
        %v3672 = vpop.f32.mrb[0].mxu0
        %v3673 = vadd.f32 %v1944, %v3672
        %v3674 = vpop.f32.mrb[0].mxu0
        %v3675 = vadd.f32 %v1944, %v3674
        %v3676 = vpop.f32.mrb[0].mxu0
        %v3677 = vadd.f32 %v1949, %v3676
        %v3678 = vpop.f32.mrb[0].mxu0
        %v3679 = vadd.f32 %v1949, %v3678
        %3680 = vmatprep.mubr.bf16.mxu0 0
        %3681 = vmatmul.mubr.bf16.gmra.mrb[0].mxu0 %v2541
        %v3682 = vpop.f32.mrb[0].mxu0
        %v3683 = vadd.f32 %v1954, %v3682
        %v3684 = vpop.f32.mrb[0].mxu0
        %v3685 = vadd.f32 %v1954, %v3684
        %v3686 = vpop.f32.mrb[0].mxu0
        %v3687 = vadd.f32 %v1959, %v3686
        %v3688 = vpop.f32.mrb[0].mxu0
        %v3689 = vadd.f32 %v1959, %v3688
        %3690 = vmatprep.mubr.bf16.mxu0 0
        %3691 = vmatmul.mubr.bf16.gmra.mrb[0].mxu0 %v2542
        %v3692 = vpop.f32.mrb[0].mxu0
        %v3693 = vadd.f32 %v1964, %v3692
        %v3694 = vpop.f32.mrb[0].mxu0
        %v3695 = vadd.f32 %v1964, %v3694
        %v3696 = vpop.f32.mrb[0].mxu0
        %v3697 = vadd.f32 %v1969, %v3696
        %v3698 = vpop.f32.mrb[0].mxu0
        %v3699 = vadd.f32 %v1969, %v3698
        %3700 = vmatprep.mubr.bf16.mxu0 0
        %3701 = vmatmul.mubr.bf16.gmra.mrb[0].mxu0 %v2543
        %v3702 = vpop.f32.mrb[0].mxu0
        %v3703 = vadd.f32 %v1974, %v3702
        %v3704 = vpop.f32.mrb[0].mxu0
        %v3705 = vadd.f32 %v1974, %v3704
        %v3706 = vpop.f32.mrb[0].mxu0
        %v3707 = vadd.f32 %v1979, %v3706
        %v3708 = vpop.f32.mrb[0].mxu0
        %v3709 = vadd.f32 %v1979, %v3708
        %3710 = vmatprep.mubr.bf16.mxu0 0
        %3711 = vmatmul.mubr.bf16.gmra.mrb[0].mxu0 %v2544
        %v3712 = vpop.f32.mrb[0].mxu0
        %v3713 = vadd.f32 %v1984, %v3712
        %v3714 = vpop.f32.mrb[0].mxu0
        %v3715 = vadd.f32 %v1984, %v3714
        %v3716 = vpop.f32.mrb[0].mxu0
        %v3717 = vadd.f32 %v1989, %v3716
        %v3718 = vpop.f32.mrb[0].mxu0
        %v3719 = vadd.f32 %v1989, %v3718
        %3720 = vmatprep.mubr.bf16.mxu0 0
        %3721 = vmatmul.mubr.bf16.gmra.mrb[0].mxu0 %v2545
        %v3722 = vpop.f32.mrb[0].mxu0
        %v3723 = vadd.f32 %v1994, %v3722
        %v3724 = vpop.f32.mrb[0].mxu0
        %v3725 = vadd.f32 %v1994, %v3724
        %v3726 = vpop.f32.mrb[0].mxu0
        %v3727 = vadd.f32 %v1999, %v3726
        %v3728 = vpop.f32.mrb[0].mxu0
        %v3729 = vadd.f32 %v1999, %v3728
        %3730 = vmatprep.mubr.bf16.mxu0 0
        %3731 = vmatmul.mubr.bf16.gmra.mrb[0].mxu0 %v2546
        %v3732 = vpop.f32.mrb[0].mxu0
        %v3733 = vadd.f32 %v2004, %v3732
        %v3734 = vpop.f32.mrb[0].mxu0
        %v3735 = vadd.f32 %v2004, %v3734
        %v3736 = vpop.f32.mrb[0].mxu0
        %v3737 = vadd.f32 %v2009, %v3736
        %v3738 = vpop.f32.mrb[0].mxu0
        %v3739 = vadd.f32 %v2009, %v3738
        %3740 = vmatprep.mubr.bf16.mxu0 0
        %3741 = vmatmul.mubr.bf16.gmra.mrb[0].mxu0 %v2547
        %v3742 = vpop.f32.mrb[0].mxu0
        %v3743 = vadd.f32 %v2014, %v3742
        %v3744 = vpop.f32.mrb[0].mxu0
        %v3745 = vadd.f32 %v2014, %v3744
        %v3746 = vpop.f32.mrb[0].mxu0
        %v3747 = vadd.f32 %v2019, %v3746
        %v3748 = vpop.f32.mrb[0].mxu0
        %v3749 = vadd.f32 %v2019, %v3748
        %3750 = vmatprep.mubr.bf16.mxu0 0
        %3751 = vmatmul.mubr.bf16.gmra.mrb[0].mxu0 %v2548
        %v3752 = vpop.f32.mrb[0].mxu0
        %v3753 = vadd.f32 %v2024, %v3752
        %v3754 = vpop.f32.mrb[0].mxu0
        %v3755 = vadd.f32 %v2024, %v3754
        %v3756 = vpop.f32.mrb[0].mxu0
        %v3757 = vadd.f32 %v2029, %v3756
        %v3758 = vpop.f32.mrb[0].mxu0
        %v3759 = vadd.f32 %v2029, %v3758
        %3760 = vmatprep.mubr.bf16.mxu0 0
        %3761 = vmatmul.mubr.bf16.gmra.mrb[0].mxu0 %v2549
        %v3762 = vpop.f32.mrb[0].mxu0
        %v3763 = vadd.f32 %v2034, %v3762
        %v3764 = vpop.f32.mrb[0].mxu0
        %v3765 = vadd.f32 %v2034, %v3764
        %v3766 = vpop.f32.mrb[0].mxu0
        %v3767 = vadd.f32 %v2039, %v3766
        %v3768 = vpop.f32.mrb[0].mxu0
        %v3769 = vadd.f32 %v2039, %v3768
        %3770 = vmatprep.mubr.bf16.mxu0 0
        %3771 = vmatmul.mubr.bf16.gmra.mrb[0].mxu0 %v2550
        %v3772 = vpop.f32.mrb[0].mxu0
        %v3773 = vadd.f32 %v2044, %v3772
        %v3774 = vpop.f32.mrb[0].mxu0
        %v3775 = vadd.f32 %v2044, %v3774
        %v3776 = vpop.f32.mrb[0].mxu0
        %v3777 = vadd.f32 %v2049, %v3776
        %v3778 = vpop.f32.mrb[0].mxu0
        %v3779 = vadd.f32 %v2049, %v3778
        %3780 = vmatprep.mubr.bf16.mxu0 0
        %3781 = vmatmul.mubr.bf16.gmra.mrb[0].mxu0 %v2551
        %v3782 = vpop.f32.mrb[0].mxu0
        %v3783 = vadd.f32 %v2054, %v3782
        %v3784 = vpop.f32.mrb[0].mxu0
        %v3785 = vadd.f32 %v2054, %v3784
        %v3786 = vpop.f32.mrb[0].mxu0
        %v3787 = vadd.f32 %v2059, %v3786
        %v3788 = vpop.f32.mrb[0].mxu0
        %v3789 = vadd.f32 %v2059, %v3788
        %3790 = vmatprep.mubr.bf16.mxu0 0
        %3791 = vmatmul.mubr.bf16.gmra.mrb[0].mxu0 %v2552
        %v3792 = vpop.f32.mrb[0].mxu0
        %v3793 = vadd.f32 %v2064, %v3792
        %v3794 = vpop.f32.mrb[0].mxu0
        %v3795 = vadd.f32 %v2064, %v3794
        %v3796 = vpop.f32.mrb[0].mxu0
        %v3797 = vadd.f32 %v2069, %v3796
        %v3798 = vpop.f32.mrb[0].mxu0
        %v3799 = vadd.f32 %v2069, %v3798
        %3800 = vmatprep.mubr.bf16.mxu0 0
        %3801 = vmatmul.mubr.bf16.gmra.mrb[0].mxu0 %v2553
        %v3802 = vpop.f32.mrb[0].mxu0
        %v3803 = vadd.f32 %v2074, %v3802
        %v3804 = vpop.f32.mrb[0].mxu0
        %v3805 = vadd.f32 %v2074, %v3804
        %v3806 = vpop.f32.mrb[0].mxu0
        %v3807 = vadd.f32 %v2079, %v3806
        %v3808 = vpop.f32.mrb[0].mxu0
        %v3809 = vadd.f32 %v2079, %v3808
        %3810 = vmatprep.mubr.bf16.mxu0 0
        %3811 = vmatmul.mubr.bf16.gmra.mrb[0].mxu0 %v2554
        %v3812 = vpop.f32.mrb[0].mxu0
        %v3813 = vadd.f32 %v2084, %v3812
        %v3814 = vpop.f32.mrb[0].mxu0
        %v3815 = vadd.f32 %v2084, %v3814
        %v3816 = vpop.f32.mrb[0].mxu0
        %v3817 = vadd.f32 %v2089, %v3816
        %v3818 = vpop.f32.mrb[0].mxu0
        %v3819 = vadd.f32 %v2089, %v3818
        %3820 = vmatprep.mubr.bf16.mxu0 0
        %3821 = vmatmul.mubr.bf16.gmra.mrb[0].mxu0 %v2555
        %v3822 = vpop.f32.mrb[0].mxu0
        %v3823 = vadd.f32 %v2094, %v3822
        %v3824 = vpop.f32.mrb[0].mxu0
        %v3825 = vadd.f32 %v2094, %v3824
        %v3826 = vpop.f32.mrb[0].mxu0
        %v3827 = vadd.f32 %v2099, %v3826
        %v3828 = vpop.f32.mrb[0].mxu0
        %v3829 = vadd.f32 %v2099, %v3828
        %3830 = vmatprep.mubr.bf16.mxu0 0
        %3831 = vmatmul.mubr.bf16.gmra.mrb[0].mxu0 %v2556
        %v3832 = vpop.f32.mrb[0].mxu0
        %v3833 = vadd.f32 %v2104, %v3832
        %v3834 = vpop.f32.mrb[0].mxu0
        %v3835 = vadd.f32 %v2104, %v3834
        %v3836 = vpop.f32.mrb[0].mxu0
        %v3837 = vadd.f32 %v2109, %v3836
        %v3838 = vpop.f32.mrb[0].mxu0
        %v3839 = vadd.f32 %v2109, %v3838
        %3840 = vmatprep.mubr.bf16.mxu0 0
        %3841 = vmatmul.mubr.bf16.gmra.mrb[0].mxu0 %v2557
        %v3842 = vpop.f32.mrb[0].mxu0
        %v3843 = vadd.f32 %v2114, %v3842
        %v3844 = vpop.f32.mrb[0].mxu0
        %v3845 = vadd.f32 %v2114, %v3844
        %v3846 = vpop.f32.mrb[0].mxu0
        %v3847 = vadd.f32 %v2119, %v3846
        %v3848 = vpop.f32.mrb[0].mxu0
        %v3849 = vadd.f32 %v2119, %v3848
        %3850 = vmatprep.mubr.bf16.mxu0 0
        %3851 = vmatmul.mubr.bf16.gmra.mrb[0].mxu0 %v2558
        %v3852 = vpop.f32.mrb[0].mxu0
        %v3853 = vadd.f32 %v2124, %v3852
        %v3854 = vpop.f32.mrb[0].mxu0
        %v3855 = vadd.f32 %v2124, %v3854
        %v3856 = vpop.f32.mrb[0].mxu0
        %v3857 = vadd.f32 %v2129, %v3856
        %v3858 = vpop.f32.mrb[0].mxu0
        %v3859 = vadd.f32 %v2129, %v3858
        %3860 = vmatprep.mubr.bf16.mxu0 0
        %3861 = vmatmul.mubr.bf16.gmra.mrb[0].mxu0 %v2559
        %v3862 = vpop.f32.mrb[0].mxu0
        %v3863 = vadd.f32 %v2134, %v3862
        %v3864 = vpop.f32.mrb[0].mxu0
        %v3865 = vadd.f32 %v2134, %v3864
        %v3866 = vpop.f32.mrb[0].mxu0
        %v3867 = vadd.f32 %v2139, %v3866
        %v3868 = vpop.f32.mrb[0].mxu0
        %v3869 = vadd.f32 %v2139, %v3868
        %3870 = vmatprep.mubr.bf16.mxu0 0
        %3871 = vmatmul.mubr.bf16.gmra.mrb[0].mxu0 %v2560
        %v3872 = vpop.f32.mrb[0].mxu0
        %v3873 = vadd.f32 %v2144, %v3872
        %v3874 = vpop.f32.mrb[0].mxu0
        %v3875 = vadd.f32 %v2144, %v3874
        %v3876 = vpop.f32.mrb[0].mxu0
        %v3877 = vadd.f32 %v2149, %v3876
        %v3878 = vpop.f32.mrb[0].mxu0
        %v3879 = vadd.f32 %v2149, %v3878
        %3880 = vmatprep.mubr.bf16.mxu0 0
        %3881 = vmatmul.mubr.bf16.gmra.mrb[0].mxu0 %v2561
        %v3882 = vpop.f32.mrb[0].mxu0
        %v3883 = vadd.f32 %v2154, %v3882
        %v3884 = vpop.f32.mrb[0].mxu0
        %v3885 = vadd.f32 %v2154, %v3884
        %v3886 = vpop.f32.mrb[0].mxu0
        %v3887 = vadd.f32 %v2159, %v3886
        %v3888 = vpop.f32.mrb[0].mxu0
        %v3889 = vadd.f32 %v2159, %v3888
        %3890 = vmatprep.mubr.bf16.mxu0 0
        %3891 = vmatmul.mubr.bf16.gmra.mrb[0].mxu0 %v2562
        %v3892 = vpop.f32.mrb[0].mxu0
        %v3893 = vadd.f32 %v2164, %v3892
        %v3894 = vpop.f32.mrb[0].mxu0
        %v3895 = vadd.f32 %v2164, %v3894
        %v3896 = vpop.f32.mrb[0].mxu0
        %v3897 = vadd.f32 %v2169, %v3896
        %v3898 = vpop.f32.mrb[0].mxu0
        %v3899 = vadd.f32 %v2169, %v3898
        %3900 = vmatprep.mubr.bf16.mxu0 0
        %3901 = vmatmul.mubr.bf16.gmra.mrb[0].mxu0 %v2563
        %v3902 = vpop.f32.mrb[0].mxu0
        %v3903 = vadd.f32 %v2174, %v3902
        %v3904 = vpop.f32.mrb[0].mxu0
        %v3905 = vadd.f32 %v2174, %v3904
        %v3906 = vpop.f32.mrb[0].mxu0
        %v3907 = vadd.f32 %v2179, %v3906
        %v3908 = vpop.f32.mrb[0].mxu0
        %v3909 = vadd.f32 %v2179, %v3908
        %3910 = vmatprep.mubr.bf16.mxu0 0
        %3911 = vmatmul.mubr.bf16.gmra.mrb[0].mxu0 %v2564
        %v3912 = vpop.f32.mrb[0].mxu0
        %v3913 = vadd.f32 %v2184, %v3912
        %v3914 = vpop.f32.mrb[0].mxu0
        %v3915 = vadd.f32 %v2184, %v3914
        %v3916 = vpop.f32.mrb[0].mxu0
        %v3917 = vadd.f32 %v2189, %v3916
        %v3918 = vpop.f32.mrb[0].mxu0
        %v3919 = vadd.f32 %v2189, %v3918
        %3920 = vmatprep.mubr.bf16.mxu0 0
        %3921 = vmatmul.mubr.bf16.gmra.mrb[0].mxu0 %v2565
        %v3922 = vpop.f32.mrb[0].mxu0
        %v3923 = vadd.f32 %v2194, %v3922
        %v3924 = vpop.f32.mrb[0].mxu0
        %v3925 = vadd.f32 %v2194, %v3924
        %v3926 = vpop.f32.mrb[0].mxu0
        %v3927 = vadd.f32 %v2199, %v3926
        %v3928 = vpop.f32.mrb[0].mxu0
        %v3929 = vadd.f32 %v2199, %v3928
        %3930 = vmatprep.mubr.bf16.mxu0 0
        %3931 = vmatmul.mubr.bf16.gmra.mrb[0].mxu0 %v2566
        %v3932 = vpop.f32.mrb[0].mxu0
        %v3933 = vadd.f32 %v2204, %v3932
        %v3934 = vpop.f32.mrb[0].mxu0
        %v3935 = vadd.f32 %v2204, %v3934
        %v3936 = vpop.f32.mrb[0].mxu0
        %v3937 = vadd.f32 %v2209, %v3936
        %v3938 = vpop.f32.mrb[0].mxu0
        %v3939 = vadd.f32 %v2209, %v3938
        %3940 = vmatprep.mubr.bf16.mxu0 0
        %3941 = vmatmul.mubr.bf16.gmra.mrb[0].mxu0 %v2567
        %v3942 = vpop.f32.mrb[0].mxu0
        %v3943 = vadd.f32 %v2214, %v3942
        %v3944 = vpop.f32.mrb[0].mxu0
        %v3945 = vadd.f32 %v2214, %v3944
        %v3946 = vpop.f32.mrb[0].mxu0
        %v3947 = vadd.f32 %v2219, %v3946
        %v3948 = vpop.f32.mrb[0].mxu0
        %v3949 = vadd.f32 %v2219, %v3948
        %3950 = vmatprep.mubr.bf16.mxu0 0
        %3951 = vmatmul.mubr.bf16.gmra.mrb[0].mxu0 %v2568
        %v3952 = vpop.f32.mrb[0].mxu0
        %v3953 = vadd.f32 %v2224, %v3952
        %v3954 = vpop.f32.mrb[0].mxu0
        %v3955 = vadd.f32 %v2224, %v3954
        %v3956 = vpop.f32.mrb[0].mxu0
        %v3957 = vadd.f32 %v2229, %v3956
        %v3958 = vpop.f32.mrb[0].mxu0
        %v3959 = vadd.f32 %v2229, %v3958
        %3960 = vmatprep.mubr.bf16.mxu0 0
        %3961 = vmatmul.mubr.bf16.gmra.mrb[0].mxu0 %v2569
        %v3962 = vpop.f32.mrb[0].mxu0
        %v3963 = vadd.f32 %v2234, %v3962
        %v3964 = vpop.f32.mrb[0].mxu0
        %v3965 = vadd.f32 %v2234, %v3964
        %v3966 = vpop.f32.mrb[0].mxu0
        %v3967 = vadd.f32 %v2239, %v3966
        %v3968 = vpop.f32.mrb[0].mxu0
        %v3969 = vadd.f32 %v2239, %v3968
        %3970 = vmatprep.mubr.bf16.mxu0 0
        %3971 = vmatmul.mubr.bf16.gmra.mrb[0].mxu0 %v2570
        %v3972 = vpop.f32.mrb[0].mxu0
        %v3973 = vadd.f32 %v2244, %v3972
        %v3974 = vpop.f32.mrb[0].mxu0
        %v3975 = vadd.f32 %v2244, %v3974
        %v3976 = vpop.f32.mrb[0].mxu0
        %v3977 = vadd.f32 %v2249, %v3976
        %v3978 = vpop.f32.mrb[0].mxu0
        %v3979 = vadd.f32 %v2249, %v3978
        %3980 = vdwg.mxu0
        %3981 = vmatprep.subr.bf16.mxu0 %v1424
        %3982 = vmatpush1.bf16.msra.mxu0 %v1423
        %3983 = vmatprep.subr.bf16.mxu0 %v1432
        %3984 = vmatpush1.bf16.msra.mxu0 %v1431
        %3985 = vmatprep.subr.bf16.mxu0 %v1440
        %3986 = vmatpush1.bf16.msra.mxu0 %v1439
        %3987 = vmatprep.subr.bf16.mxu0 %v1448
        %3988 = vmatpush1.bf16.msra.mxu0 %v1447
        %3989 = vmatprep.subr.bf16.mxu0 %v1456
        %3990 = vmatpush1.bf16.msra.mxu0 %v1455
        %3991 = vmatprep.subr.bf16.mxu0 %v1464
        %3992 = vmatpush1.bf16.msra.mxu0 %v1463
        %3993 = vmatprep.subr.bf16.mxu0 %v1472
        %3994 = vmatpush1.bf16.msra.mxu0 %v1471
        %3995 = vmatprep.subr.bf16.mxu0 %v1480
        %3996 = vmatpush1.bf16.msra.mxu0 %v1479
        %3997 = vmatprep.subr.bf16.mxu0 0
        %3998 = vmatpush1.bf16.msra.mxu0 0
        %3999 = vmatprep.subr.bf16.mxu0 0
        %4000 = vmatpush1.bf16.msra.mxu0 0
        %4001 = vmatprep.subr.bf16.mxu0 0
        %4002 = vmatpush1.bf16.msra.mxu0 0
        %4003 = vmatprep.subr.bf16.mxu0 0
        %4004 = vmatpush1.bf16.msra.mxu0 0
        %4005 = vmatprep.subr.bf16.mxu0 0
        %4006 = vmatpush1.bf16.msra.mxu0 0
        %4007 = vmatprep.subr.bf16.mxu0 0
        %4008 = vmatpush1.bf16.msra.mxu0 0
        %4009 = vmatprep.subr.bf16.mxu0 0
        %4010 = vmatpush1.bf16.msra.mxu0 0
        %4011 = vmatprep.subr.bf16.mxu0 0
        %4012 = vmatpush1.bf16.msra.mxu0 0
        %4013 = vmatprep.mubr.bf16.mxu0 0
        %4014 = vmatmul.mubr.bf16.gmra.mrb[0].mxu0 %v2507
        %v4015 = vpop.f32.mrb[0].mxu0
        %v4016 = vadd.f32 %v1614, %v4015
        %v4017 = vpop.f32.mrb[0].mxu0
        %v4018 = vadd.f32 %v1614, %v4017
        %v4019 = vpop.f32.mrb[0].mxu0
        %v4020 = vadd.f32 %v1619, %v4019
        %v4021 = vpop.f32.mrb[0].mxu0
        %v4022 = vadd.f32 %v1619, %v4021
        %4023 = vmatprep.mubr.bf16.mxu0 0
        %4024 = vmatmul.mubr.bf16.gmra.mrb[0].mxu0 %v2508
        %v4025 = vpop.f32.mrb[0].mxu0
        %v4026 = vadd.f32 %v1624, %v4025
        %v4027 = vpop.f32.mrb[0].mxu0
        %v4028 = vadd.f32 %v1624, %v4027
        %v4029 = vpop.f32.mrb[0].mxu0
        %v4030 = vadd.f32 %v1629, %v4029
        %v4031 = vpop.f32.mrb[0].mxu0
        %v4032 = vadd.f32 %v1629, %v4031
        %4033 = vmatprep.mubr.bf16.mxu0 0
        %4034 = vmatmul.mubr.bf16.gmra.mrb[0].mxu0 %v2509
        %v4035 = vpop.f32.mrb[0].mxu0
        %v4036 = vadd.f32 %v1634, %v4035
        %v4037 = vpop.f32.mrb[0].mxu0
        %v4038 = vadd.f32 %v1634, %v4037
        %v4039 = vpop.f32.mrb[0].mxu0
        %v4040 = vadd.f32 %v1639, %v4039
        %v4041 = vpop.f32.mrb[0].mxu0
        %v4042 = vadd.f32 %v1639, %v4041
        %4043 = vmatprep.mubr.bf16.mxu0 0
        %4044 = vmatmul.mubr.bf16.gmra.mrb[0].mxu0 %v2510
        %v4045 = vpop.f32.mrb[0].mxu0
        %v4046 = vadd.f32 %v1644, %v4045
        %v4047 = vpop.f32.mrb[0].mxu0
        %v4048 = vadd.f32 %v1644, %v4047
        %v4049 = vpop.f32.mrb[0].mxu0
        %v4050 = vadd.f32 %v1649, %v4049
        %v4051 = vpop.f32.mrb[0].mxu0
        %v4052 = vadd.f32 %v1649, %v4051
        %4053 = vmatprep.mubr.bf16.mxu0 0
        %4054 = vmatmul.mubr.bf16.gmra.mrb[0].mxu0 %v2511
        %v4055 = vpop.f32.mrb[0].mxu0
        %v4056 = vadd.f32 %v1654, %v4055
        %v4057 = vpop.f32.mrb[0].mxu0
        %v4058 = vadd.f32 %v1654, %v4057
        %v4059 = vpop.f32.mrb[0].mxu0
        %v4060 = vadd.f32 %v1659, %v4059
        %v4061 = vpop.f32.mrb[0].mxu0
        %v4062 = vadd.f32 %v1659, %v4061
        %4063 = vmatprep.mubr.bf16.mxu0 0
        %4064 = vmatmul.mubr.bf16.gmra.mrb[0].mxu0 %v2512
        %v4065 = vpop.f32.mrb[0].mxu0
        %v4066 = vadd.f32 %v1664, %v4065
        %v4067 = vpop.f32.mrb[0].mxu0
        %v4068 = vadd.f32 %v1664, %v4067
        %v4069 = vpop.f32.mrb[0].mxu0
        %v4070 = vadd.f32 %v1669, %v4069
        %v4071 = vpop.f32.mrb[0].mxu0
        %v4072 = vadd.f32 %v1669, %v4071
        %4073 = vmatprep.mubr.bf16.mxu0 0
        %4074 = vmatmul.mubr.bf16.gmra.mrb[0].mxu0 %v2513
        %v4075 = vpop.f32.mrb[0].mxu0
        %v4076 = vadd.f32 %v1674, %v4075
        %v4077 = vpop.f32.mrb[0].mxu0
        %v4078 = vadd.f32 %v1674, %v4077
        %v4079 = vpop.f32.mrb[0].mxu0
        %v4080 = vadd.f32 %v1679, %v4079
        %v4081 = vpop.f32.mrb[0].mxu0
        %v4082 = vadd.f32 %v1679, %v4081
        %4083 = vmatprep.mubr.bf16.mxu0 0
        %4084 = vmatmul.mubr.bf16.gmra.mrb[0].mxu0 %v2514
        %v4085 = vpop.f32.mrb[0].mxu0
        %v4086 = vadd.f32 %v1684, %v4085
        %v4087 = vpop.f32.mrb[0].mxu0
        %v4088 = vadd.f32 %v1684, %v4087
        %v4089 = vpop.f32.mrb[0].mxu0
        %v4090 = vadd.f32 %v1689, %v4089
        %v4091 = vpop.f32.mrb[0].mxu0
        %v4092 = vadd.f32 %v1689, %v4091
        %4093 = vmatprep.mubr.bf16.mxu0 0
        %4094 = vmatmul.mubr.bf16.gmra.mrb[0].mxu0 %v2515
        %v4095 = vpop.f32.mrb[0].mxu0
        %v4096 = vadd.f32 %v1694, %v4095
        %v4097 = vpop.f32.mrb[0].mxu0
        %v4098 = vadd.f32 %v1694, %v4097
        %v4099 = vpop.f32.mrb[0].mxu0
        %v4100 = vadd.f32 %v1699, %v4099
        %v4101 = vpop.f32.mrb[0].mxu0
        %v4102 = vadd.f32 %v1699, %v4101
        %4103 = vmatprep.mubr.bf16.mxu0 0
        %4104 = vmatmul.mubr.bf16.gmra.mrb[0].mxu0 %v2516
        %v4105 = vpop.f32.mrb[0].mxu0
        %v4106 = vadd.f32 %v1704, %v4105
        %v4107 = vpop.f32.mrb[0].mxu0
        %v4108 = vadd.f32 %v1704, %v4107
        %v4109 = vpop.f32.mrb[0].mxu0
        %v4110 = vadd.f32 %v1709, %v4109
        %v4111 = vpop.f32.mrb[0].mxu0
        %v4112 = vadd.f32 %v1709, %v4111
        %4113 = vmatprep.mubr.bf16.mxu0 0
        %4114 = vmatmul.mubr.bf16.gmra.mrb[0].mxu0 %v2517
        %v4115 = vpop.f32.mrb[0].mxu0
        %v4116 = vadd.f32 %v1714, %v4115
        %v4117 = vpop.f32.mrb[0].mxu0
        %v4118 = vadd.f32 %v1714, %v4117
        %v4119 = vpop.f32.mrb[0].mxu0
        %v4120 = vadd.f32 %v1719, %v4119
        %v4121 = vpop.f32.mrb[0].mxu0
        %v4122 = vadd.f32 %v1719, %v4121
        %4123 = vmatprep.mubr.bf16.mxu0 0
        %4124 = vmatmul.mubr.bf16.gmra.mrb[0].mxu0 %v2518
        %v4125 = vpop.f32.mrb[0].mxu0
        %v4126 = vadd.f32 %v1724, %v4125
        %v4127 = vpop.f32.mrb[0].mxu0
        %v4128 = vadd.f32 %v1724, %v4127
        %v4129 = vpop.f32.mrb[0].mxu0
        %v4130 = vadd.f32 %v1729, %v4129
        %v4131 = vpop.f32.mrb[0].mxu0
        %v4132 = vadd.f32 %v1729, %v4131
        %4133 = vmatprep.mubr.bf16.mxu0 0
        %4134 = vmatmul.mubr.bf16.gmra.mrb[0].mxu0 %v2519
        %v4135 = vpop.f32.mrb[0].mxu0
        %v4136 = vadd.f32 %v1734, %v4135
        %v4137 = vpop.f32.mrb[0].mxu0
        %v4138 = vadd.f32 %v1734, %v4137
        %v4139 = vpop.f32.mrb[0].mxu0
        %v4140 = vadd.f32 %v1739, %v4139
        %v4141 = vpop.f32.mrb[0].mxu0
        %v4142 = vadd.f32 %v1739, %v4141
        %4143 = vmatprep.mubr.bf16.mxu0 0
        %4144 = vmatmul.mubr.bf16.gmra.mrb[0].mxu0 %v2520
        %v4145 = vpop.f32.mrb[0].mxu0
        %v4146 = vadd.f32 %v1744, %v4145
        %v4147 = vpop.f32.mrb[0].mxu0
        %v4148 = vadd.f32 %v1744, %v4147
        %v4149 = vpop.f32.mrb[0].mxu0
        %v4150 = vadd.f32 %v1749, %v4149
        %v4151 = vpop.f32.mrb[0].mxu0
        %v4152 = vadd.f32 %v1749, %v4151
        %4153 = vmatprep.mubr.bf16.mxu0 0
        %4154 = vmatmul.mubr.bf16.gmra.mrb[0].mxu0 %v2521
        %v4155 = vpop.f32.mrb[0].mxu0
        %v4156 = vadd.f32 %v1754, %v4155
        %v4157 = vpop.f32.mrb[0].mxu0
        %v4158 = vadd.f32 %v1754, %v4157
        %v4159 = vpop.f32.mrb[0].mxu0
        %v4160 = vadd.f32 %v1759, %v4159
        %v4161 = vpop.f32.mrb[0].mxu0
        %v4162 = vadd.f32 %v1759, %v4161
        %4163 = vmatprep.mubr.bf16.mxu0 0
        %4164 = vmatmul.mubr.bf16.gmra.mrb[0].mxu0 %v2522
        %v4165 = vpop.f32.mrb[0].mxu0
        %v4166 = vadd.f32 %v1764, %v4165
        %v4167 = vpop.f32.mrb[0].mxu0
        %v4168 = vadd.f32 %v1764, %v4167
        %v4169 = vpop.f32.mrb[0].mxu0
        %v4170 = vadd.f32 %v1769, %v4169
        %v4171 = vpop.f32.mrb[0].mxu0
        %v4172 = vadd.f32 %v1769, %v4171
        %4173 = vmatprep.mubr.bf16.mxu0 0
        %4174 = vmatmul.mubr.bf16.gmra.mrb[0].mxu0 %v2523
        %v4175 = vpop.f32.mrb[0].mxu0
        %v4176 = vadd.f32 %v1774, %v4175
        %v4177 = vpop.f32.mrb[0].mxu0
        %v4178 = vadd.f32 %v1774, %v4177
        %v4179 = vpop.f32.mrb[0].mxu0
        %v4180 = vadd.f32 %v1779, %v4179
        %v4181 = vpop.f32.mrb[0].mxu0
        %v4182 = vadd.f32 %v1779, %v4181
        %4183 = vmatprep.mubr.bf16.mxu0 0
        %4184 = vmatmul.mubr.bf16.gmra.mrb[0].mxu0 %v2524
        %v4185 = vpop.f32.mrb[0].mxu0
        %v4186 = vadd.f32 %v1784, %v4185
        %v4187 = vpop.f32.mrb[0].mxu0
        %v4188 = vadd.f32 %v1784, %v4187
        %v4189 = vpop.f32.mrb[0].mxu0
        %v4190 = vadd.f32 %v1789, %v4189
        %v4191 = vpop.f32.mrb[0].mxu0
        %v4192 = vadd.f32 %v1789, %v4191
        %4193 = vmatprep.mubr.bf16.mxu0 0
        %4194 = vmatmul.mubr.bf16.gmra.mrb[0].mxu0 %v2525
        %v4195 = vpop.f32.mrb[0].mxu0
        %v4196 = vadd.f32 %v1794, %v4195
        %v4197 = vpop.f32.mrb[0].mxu0
        %v4198 = vadd.f32 %v1794, %v4197
        %v4199 = vpop.f32.mrb[0].mxu0
        %v4200 = vadd.f32 %v1799, %v4199
        %v4201 = vpop.f32.mrb[0].mxu0
        %v4202 = vadd.f32 %v1799, %v4201
        %4203 = vmatprep.mubr.bf16.mxu0 0
        %4204 = vmatmul.mubr.bf16.gmra.mrb[0].mxu0 %v2526
        %v4205 = vpop.f32.mrb[0].mxu0
        %v4206 = vadd.f32 %v1804, %v4205
        %v4207 = vpop.f32.mrb[0].mxu0
        %v4208 = vadd.f32 %v1804, %v4207
        %v4209 = vpop.f32.mrb[0].mxu0
        %v4210 = vadd.f32 %v1809, %v4209
        %v4211 = vpop.f32.mrb[0].mxu0
        %v4212 = vadd.f32 %v1809, %v4211
        %4213 = vmatprep.mubr.bf16.mxu0 0
        %4214 = vmatmul.mubr.bf16.gmra.mrb[0].mxu0 %v2527
        %v4215 = vpop.f32.mrb[0].mxu0
        %v4216 = vadd.f32 %v1814, %v4215
        %v4217 = vpop.f32.mrb[0].mxu0
        %v4218 = vadd.f32 %v1814, %v4217
        %v4219 = vpop.f32.mrb[0].mxu0
        %v4220 = vadd.f32 %v1819, %v4219
        %v4221 = vpop.f32.mrb[0].mxu0
        %v4222 = vadd.f32 %v1819, %v4221
        %4223 = vmatprep.mubr.bf16.mxu0 0
        %4224 = vmatmul.mubr.bf16.gmra.mrb[0].mxu0 %v2528
        %v4225 = vpop.f32.mrb[0].mxu0
        %v4226 = vadd.f32 %v1824, %v4225
        %v4227 = vpop.f32.mrb[0].mxu0
        %v4228 = vadd.f32 %v1824, %v4227
        %v4229 = vpop.f32.mrb[0].mxu0
        %v4230 = vadd.f32 %v1829, %v4229
        %v4231 = vpop.f32.mrb[0].mxu0
        %v4232 = vadd.f32 %v1829, %v4231
        %4233 = vmatprep.mubr.bf16.mxu0 0
        %4234 = vmatmul.mubr.bf16.gmra.mrb[0].mxu0 %v2529
        %v4235 = vpop.f32.mrb[0].mxu0
        %v4236 = vadd.f32 %v1834, %v4235
        %v4237 = vpop.f32.mrb[0].mxu0
        %v4238 = vadd.f32 %v1834, %v4237
        %v4239 = vpop.f32.mrb[0].mxu0
        %v4240 = vadd.f32 %v1839, %v4239
        %v4241 = vpop.f32.mrb[0].mxu0
        %v4242 = vadd.f32 %v1839, %v4241
        %4243 = vmatprep.mubr.bf16.mxu0 0
        %4244 = vmatmul.mubr.bf16.gmra.mrb[0].mxu0 %v2530
        %v4245 = vpop.f32.mrb[0].mxu0
        %v4246 = vadd.f32 %v1844, %v4245
        %v4247 = vpop.f32.mrb[0].mxu0
        %v4248 = vadd.f32 %v1844, %v4247
        %v4249 = vpop.f32.mrb[0].mxu0
        %v4250 = vadd.f32 %v1849, %v4249
        %v4251 = vpop.f32.mrb[0].mxu0
        %v4252 = vadd.f32 %v1849, %v4251
        %4253 = vmatprep.mubr.bf16.mxu0 0
        %4254 = vmatmul.mubr.bf16.gmra.mrb[0].mxu0 %v2531
        %v4255 = vpop.f32.mrb[0].mxu0
        %v4256 = vadd.f32 %v1854, %v4255
        %v4257 = vpop.f32.mrb[0].mxu0
        %v4258 = vadd.f32 %v1854, %v4257
        %v4259 = vpop.f32.mrb[0].mxu0
        %v4260 = vadd.f32 %v1859, %v4259
        %v4261 = vpop.f32.mrb[0].mxu0
        %v4262 = vadd.f32 %v1859, %v4261
        %4263 = vmatprep.mubr.bf16.mxu0 0
        %4264 = vmatmul.mubr.bf16.gmra.mrb[0].mxu0 %v2532
        %v4265 = vpop.f32.mrb[0].mxu0
        %v4266 = vadd.f32 %v1864, %v4265
        %v4267 = vpop.f32.mrb[0].mxu0
        %v4268 = vadd.f32 %v1864, %v4267
        %v4269 = vpop.f32.mrb[0].mxu0
        %v4270 = vadd.f32 %v1869, %v4269
        %v4271 = vpop.f32.mrb[0].mxu0
        %v4272 = vadd.f32 %v1869, %v4271
        %4273 = vmatprep.mubr.bf16.mxu0 0
        %4274 = vmatmul.mubr.bf16.gmra.mrb[0].mxu0 %v2533
        %v4275 = vpop.f32.mrb[0].mxu0
        %v4276 = vadd.f32 %v1874, %v4275
        %v4277 = vpop.f32.mrb[0].mxu0
        %v4278 = vadd.f32 %v1874, %v4277
        %v4279 = vpop.f32.mrb[0].mxu0
        %v4280 = vadd.f32 %v1879, %v4279
        %v4281 = vpop.f32.mrb[0].mxu0
        %v4282 = vadd.f32 %v1879, %v4281
        %4283 = vmatprep.mubr.bf16.mxu0 0
        %4284 = vmatmul.mubr.bf16.gmra.mrb[0].mxu0 %v2534
        %v4285 = vpop.f32.mrb[0].mxu0
        %v4286 = vadd.f32 %v1884, %v4285
        %v4287 = vpop.f32.mrb[0].mxu0
        %v4288 = vadd.f32 %v1884, %v4287
        %v4289 = vpop.f32.mrb[0].mxu0
        %v4290 = vadd.f32 %v1889, %v4289
        %v4291 = vpop.f32.mrb[0].mxu0
        %v4292 = vadd.f32 %v1889, %v4291
        %4293 = vmatprep.mubr.bf16.mxu0 0
        %4294 = vmatmul.mubr.bf16.gmra.mrb[0].mxu0 %v2535
        %v4295 = vpop.f32.mrb[0].mxu0
        %v4296 = vadd.f32 %v1894, %v4295
        %v4297 = vpop.f32.mrb[0].mxu0
        %v4298 = vadd.f32 %v1894, %v4297
        %v4299 = vpop.f32.mrb[0].mxu0
        %v4300 = vadd.f32 %v1899, %v4299
        %v4301 = vpop.f32.mrb[0].mxu0
        %v4302 = vadd.f32 %v1899, %v4301
        %4303 = vmatprep.mubr.bf16.mxu0 0
        %4304 = vmatmul.mubr.bf16.gmra.mrb[0].mxu0 %v2536
        %v4305 = vpop.f32.mrb[0].mxu0
        %v4306 = vadd.f32 %v1904, %v4305
        %v4307 = vpop.f32.mrb[0].mxu0
        %v4308 = vadd.f32 %v1904, %v4307
        %v4309 = vpop.f32.mrb[0].mxu0
        %v4310 = vadd.f32 %v1909, %v4309
        %v4311 = vpop.f32.mrb[0].mxu0
        %v4312 = vadd.f32 %v1909, %v4311
        %4313 = vmatprep.mubr.bf16.mxu0 0
        %4314 = vmatmul.mubr.bf16.gmra.mrb[0].mxu0 %v2537
        %v4315 = vpop.f32.mrb[0].mxu0
        %v4316 = vadd.f32 %v1914, %v4315
        %v4317 = vpop.f32.mrb[0].mxu0
        %v4318 = vadd.f32 %v1914, %v4317
        %v4319 = vpop.f32.mrb[0].mxu0
        %v4320 = vadd.f32 %v1919, %v4319
        %v4321 = vpop.f32.mrb[0].mxu0
        %v4322 = vadd.f32 %v1919, %v4321
        %4323 = vmatprep.mubr.bf16.mxu0 0
        %4324 = vmatmul.mubr.bf16.gmra.mrb[0].mxu0 %v2538
        %v4325 = vpop.f32.mrb[0].mxu0
        %v4326 = vadd.f32 %v1924, %v4325
        %v4327 = vpop.f32.mrb[0].mxu0
        %v4328 = vadd.f32 %v1924, %v4327
        %v4329 = vpop.f32.mrb[0].mxu0
        %v4330 = vadd.f32 %v1929, %v4329
        %v4331 = vpop.f32.mrb[0].mxu0
        %v4332 = vadd.f32 %v1929, %v4331
        %4333 = vmatprep.mubr.bf16.mxu0 0
        %4334 = vmatmul.mubr.bf16.gmra.mrb[0].mxu0 %v2539
        %v4335 = vpop.f32.mrb[0].mxu0
        %v4336 = vadd.f32 %v1934, %v4335
        %v4337 = vpop.f32.mrb[0].mxu0
        %v4338 = vadd.f32 %v1934, %v4337
        %v4339 = vpop.f32.mrb[0].mxu0
        %v4340 = vadd.f32 %v1939, %v4339
        %v4341 = vpop.f32.mrb[0].mxu0
        %v4342 = vadd.f32 %v1939, %v4341
        %4343 = vmatprep.mubr.bf16.mxu0 0
        %4344 = vmatmul.mubr.bf16.gmra.mrb[0].mxu0 %v2540
        %v4345 = vpop.f32.mrb[0].mxu0
        %v4346 = vadd.f32 %v1944, %v4345
        %v4347 = vpop.f32.mrb[0].mxu0
        %v4348 = vadd.f32 %v1944, %v4347
        %v4349 = vpop.f32.mrb[0].mxu0
        %v4350 = vadd.f32 %v1949, %v4349
        %v4351 = vpop.f32.mrb[0].mxu0
        %v4352 = vadd.f32 %v1949, %v4351
        %4353 = vmatprep.mubr.bf16.mxu0 0
        %4354 = vmatmul.mubr.bf16.gmra.mrb[0].mxu0 %v2541
        %v4355 = vpop.f32.mrb[0].mxu0
        %v4356 = vadd.f32 %v1954, %v4355
        %v4357 = vpop.f32.mrb[0].mxu0
        %v4358 = vadd.f32 %v1954, %v4357
        %v4359 = vpop.f32.mrb[0].mxu0
        %v4360 = vadd.f32 %v1959, %v4359
        %v4361 = vpop.f32.mrb[0].mxu0
        %v4362 = vadd.f32 %v1959, %v4361
        %4363 = vmatprep.mubr.bf16.mxu0 0
        %4364 = vmatmul.mubr.bf16.gmra.mrb[0].mxu0 %v2542
        %v4365 = vpop.f32.mrb[0].mxu0
        %v4366 = vadd.f32 %v1964, %v4365
        %v4367 = vpop.f32.mrb[0].mxu0
        %v4368 = vadd.f32 %v1964, %v4367
        %v4369 = vpop.f32.mrb[0].mxu0
        %v4370 = vadd.f32 %v1969, %v4369
        %v4371 = vpop.f32.mrb[0].mxu0
        %v4372 = vadd.f32 %v1969, %v4371
        %4373 = vmatprep.mubr.bf16.mxu0 0
        %4374 = vmatmul.mubr.bf16.gmra.mrb[0].mxu0 %v2543
        %v4375 = vpop.f32.mrb[0].mxu0
        %v4376 = vadd.f32 %v1974, %v4375
        %v4377 = vpop.f32.mrb[0].mxu0
        %v4378 = vadd.f32 %v1974, %v4377
        %v4379 = vpop.f32.mrb[0].mxu0
        %v4380 = vadd.f32 %v1979, %v4379
        %v4381 = vpop.f32.mrb[0].mxu0
        %v4382 = vadd.f32 %v1979, %v4381
        %4383 = vmatprep.mubr.bf16.mxu0 0
        %4384 = vmatmul.mubr.bf16.gmra.mrb[0].mxu0 %v2544
        %v4385 = vpop.f32.mrb[0].mxu0
        %v4386 = vadd.f32 %v1984, %v4385
        %v4387 = vpop.f32.mrb[0].mxu0
        %v4388 = vadd.f32 %v1984, %v4387
        %v4389 = vpop.f32.mrb[0].mxu0
        %v4390 = vadd.f32 %v1989, %v4389
        %v4391 = vpop.f32.mrb[0].mxu0
        %v4392 = vadd.f32 %v1989, %v4391
        %4393 = vmatprep.mubr.bf16.mxu0 0
        %4394 = vmatmul.mubr.bf16.gmra.mrb[0].mxu0 %v2545
        %v4395 = vpop.f32.mrb[0].mxu0
        %v4396 = vadd.f32 %v1994, %v4395
        %v4397 = vpop.f32.mrb[0].mxu0
        %v4398 = vadd.f32 %v1994, %v4397
        %v4399 = vpop.f32.mrb[0].mxu0
        %v4400 = vadd.f32 %v1999, %v4399
        %v4401 = vpop.f32.mrb[0].mxu0
        %v4402 = vadd.f32 %v1999, %v4401
        %4403 = vmatprep.mubr.bf16.mxu0 0
        %4404 = vmatmul.mubr.bf16.gmra.mrb[0].mxu0 %v2546
        %v4405 = vpop.f32.mrb[0].mxu0
        %v4406 = vadd.f32 %v2004, %v4405
        %v4407 = vpop.f32.mrb[0].mxu0
        %v4408 = vadd.f32 %v2004, %v4407
        %v4409 = vpop.f32.mrb[0].mxu0
        %v4410 = vadd.f32 %v2009, %v4409
        %v4411 = vpop.f32.mrb[0].mxu0
        %v4412 = vadd.f32 %v2009, %v4411
        %4413 = vmatprep.mubr.bf16.mxu0 0
        %4414 = vmatmul.mubr.bf16.gmra.mrb[0].mxu0 %v2547
        %v4415 = vpop.f32.mrb[0].mxu0
        %v4416 = vadd.f32 %v2014, %v4415
        %v4417 = vpop.f32.mrb[0].mxu0
        %v4418 = vadd.f32 %v2014, %v4417
        %v4419 = vpop.f32.mrb[0].mxu0
        %v4420 = vadd.f32 %v2019, %v4419
        %v4421 = vpop.f32.mrb[0].mxu0
        %v4422 = vadd.f32 %v2019, %v4421
        %4423 = vmatprep.mubr.bf16.mxu0 0
        %4424 = vmatmul.mubr.bf16.gmra.mrb[0].mxu0 %v2548
        %v4425 = vpop.f32.mrb[0].mxu0
        %v4426 = vadd.f32 %v2024, %v4425
        %v4427 = vpop.f32.mrb[0].mxu0
        %v4428 = vadd.f32 %v2024, %v4427
        %v4429 = vpop.f32.mrb[0].mxu0
        %v4430 = vadd.f32 %v2029, %v4429
        %v4431 = vpop.f32.mrb[0].mxu0
        %v4432 = vadd.f32 %v2029, %v4431
        %4433 = vmatprep.mubr.bf16.mxu0 0
        %4434 = vmatmul.mubr.bf16.gmra.mrb[0].mxu0 %v2549
        %v4435 = vpop.f32.mrb[0].mxu0
        %v4436 = vadd.f32 %v2034, %v4435
        %v4437 = vpop.f32.mrb[0].mxu0
        %v4438 = vadd.f32 %v2034, %v4437
        %v4439 = vpop.f32.mrb[0].mxu0
        %v4440 = vadd.f32 %v2039, %v4439
        %v4441 = vpop.f32.mrb[0].mxu0
        %v4442 = vadd.f32 %v2039, %v4441
        %4443 = vmatprep.mubr.bf16.mxu0 0
        %4444 = vmatmul.mubr.bf16.gmra.mrb[0].mxu0 %v2550
        %v4445 = vpop.f32.mrb[0].mxu0
        %v4446 = vadd.f32 %v2044, %v4445
        %v4447 = vpop.f32.mrb[0].mxu0
        %v4448 = vadd.f32 %v2044, %v4447
        %v4449 = vpop.f32.mrb[0].mxu0
        %v4450 = vadd.f32 %v2049, %v4449
        %v4451 = vpop.f32.mrb[0].mxu0
        %v4452 = vadd.f32 %v2049, %v4451
        %4453 = vmatprep.mubr.bf16.mxu0 0
        %4454 = vmatmul.mubr.bf16.gmra.mrb[0].mxu0 %v2551
        %v4455 = vpop.f32.mrb[0].mxu0
        %v4456 = vadd.f32 %v2054, %v4455
        %v4457 = vpop.f32.mrb[0].mxu0
        %v4458 = vadd.f32 %v2054, %v4457
        %v4459 = vpop.f32.mrb[0].mxu0
        %v4460 = vadd.f32 %v2059, %v4459
        %v4461 = vpop.f32.mrb[0].mxu0
        %v4462 = vadd.f32 %v2059, %v4461
        %4463 = vmatprep.mubr.bf16.mxu0 0
        %4464 = vmatmul.mubr.bf16.gmra.mrb[0].mxu0 %v2552
        %v4465 = vpop.f32.mrb[0].mxu0
        %v4466 = vadd.f32 %v2064, %v4465
        %v4467 = vpop.f32.mrb[0].mxu0
        %v4468 = vadd.f32 %v2064, %v4467
        %v4469 = vpop.f32.mrb[0].mxu0
        %v4470 = vadd.f32 %v2069, %v4469
        %v4471 = vpop.f32.mrb[0].mxu0
        %v4472 = vadd.f32 %v2069, %v4471
        %4473 = vmatprep.mubr.bf16.mxu0 0
        %4474 = vmatmul.mubr.bf16.gmra.mrb[0].mxu0 %v2553
        %v4475 = vpop.f32.mrb[0].mxu0
        %v4476 = vadd.f32 %v2074, %v4475
        %v4477 = vpop.f32.mrb[0].mxu0
        %v4478 = vadd.f32 %v2074, %v4477
        %v4479 = vpop.f32.mrb[0].mxu0
        %v4480 = vadd.f32 %v2079, %v4479
        %v4481 = vpop.f32.mrb[0].mxu0
        %v4482 = vadd.f32 %v2079, %v4481
        %4483 = vmatprep.mubr.bf16.mxu0 0
        %4484 = vmatmul.mubr.bf16.gmra.mrb[0].mxu0 %v2554
        %v4485 = vpop.f32.mrb[0].mxu0
        %v4486 = vadd.f32 %v2084, %v4485
        %v4487 = vpop.f32.mrb[0].mxu0
        %v4488 = vadd.f32 %v2084, %v4487
        %v4489 = vpop.f32.mrb[0].mxu0
        %v4490 = vadd.f32 %v2089, %v4489
        %v4491 = vpop.f32.mrb[0].mxu0
        %v4492 = vadd.f32 %v2089, %v4491
        %4493 = vmatprep.mubr.bf16.mxu0 0
        %4494 = vmatmul.mubr.bf16.gmra.mrb[0].mxu0 %v2555
        %v4495 = vpop.f32.mrb[0].mxu0
        %v4496 = vadd.f32 %v2094, %v4495
        %v4497 = vpop.f32.mrb[0].mxu0
        %v4498 = vadd.f32 %v2094, %v4497
        %v4499 = vpop.f32.mrb[0].mxu0
        %v4500 = vadd.f32 %v2099, %v4499
        %v4501 = vpop.f32.mrb[0].mxu0
        %v4502 = vadd.f32 %v2099, %v4501
        %4503 = vmatprep.mubr.bf16.mxu0 0
        %4504 = vmatmul.mubr.bf16.gmra.mrb[0].mxu0 %v2556
        %v4505 = vpop.f32.mrb[0].mxu0
        %v4506 = vadd.f32 %v2104, %v4505
        %v4507 = vpop.f32.mrb[0].mxu0
        %v4508 = vadd.f32 %v2104, %v4507
        %v4509 = vpop.f32.mrb[0].mxu0
        %v4510 = vadd.f32 %v2109, %v4509
        %v4511 = vpop.f32.mrb[0].mxu0
        %v4512 = vadd.f32 %v2109, %v4511
        %4513 = vmatprep.mubr.bf16.mxu0 0
        %4514 = vmatmul.mubr.bf16.gmra.mrb[0].mxu0 %v2557
        %v4515 = vpop.f32.mrb[0].mxu0
        %v4516 = vadd.f32 %v2114, %v4515
        %v4517 = vpop.f32.mrb[0].mxu0
        %v4518 = vadd.f32 %v2114, %v4517
        %v4519 = vpop.f32.mrb[0].mxu0
        %v4520 = vadd.f32 %v2119, %v4519
        %v4521 = vpop.f32.mrb[0].mxu0
        %v4522 = vadd.f32 %v2119, %v4521
        %4523 = vmatprep.mubr.bf16.mxu0 0
        %4524 = vmatmul.mubr.bf16.gmra.mrb[0].mxu0 %v2558
        %v4525 = vpop.f32.mrb[0].mxu0
        %v4526 = vadd.f32 %v2124, %v4525
        %v4527 = vpop.f32.mrb[0].mxu0
        %v4528 = vadd.f32 %v2124, %v4527
        %v4529 = vpop.f32.mrb[0].mxu0
        %v4530 = vadd.f32 %v2129, %v4529
        %v4531 = vpop.f32.mrb[0].mxu0
        %v4532 = vadd.f32 %v2129, %v4531
        %4533 = vmatprep.mubr.bf16.mxu0 0
        %4534 = vmatmul.mubr.bf16.gmra.mrb[0].mxu0 %v2559
        %v4535 = vpop.f32.mrb[0].mxu0
        %v4536 = vadd.f32 %v2134, %v4535
        %v4537 = vpop.f32.mrb[0].mxu0
        %v4538 = vadd.f32 %v2134, %v4537
        %v4539 = vpop.f32.mrb[0].mxu0
        %v4540 = vadd.f32 %v2139, %v4539
        %v4541 = vpop.f32.mrb[0].mxu0
        %v4542 = vadd.f32 %v2139, %v4541
        %4543 = vmatprep.mubr.bf16.mxu0 0
        %4544 = vmatmul.mubr.bf16.gmra.mrb[0].mxu0 %v2560
        %v4545 = vpop.f32.mrb[0].mxu0
        %v4546 = vadd.f32 %v2144, %v4545
        %v4547 = vpop.f32.mrb[0].mxu0
        %v4548 = vadd.f32 %v2144, %v4547
        %v4549 = vpop.f32.mrb[0].mxu0
        %v4550 = vadd.f32 %v2149, %v4549
        %v4551 = vpop.f32.mrb[0].mxu0
        %v4552 = vadd.f32 %v2149, %v4551
        %4553 = vmatprep.mubr.bf16.mxu0 0
        %4554 = vmatmul.mubr.bf16.gmra.mrb[0].mxu0 %v2561
        %v4555 = vpop.f32.mrb[0].mxu0
        %v4556 = vadd.f32 %v2154, %v4555
        %v4557 = vpop.f32.mrb[0].mxu0
        %v4558 = vadd.f32 %v2154, %v4557
        %v4559 = vpop.f32.mrb[0].mxu0
        %v4560 = vadd.f32 %v2159, %v4559
        %v4561 = vpop.f32.mrb[0].mxu0
        %v4562 = vadd.f32 %v2159, %v4561
        %4563 = vmatprep.mubr.bf16.mxu0 0
        %4564 = vmatmul.mubr.bf16.gmra.mrb[0].mxu0 %v2562
        %v4565 = vpop.f32.mrb[0].mxu0
        %v4566 = vadd.f32 %v2164, %v4565
        %v4567 = vpop.f32.mrb[0].mxu0
        %v4568 = vadd.f32 %v2164, %v4567
        %v4569 = vpop.f32.mrb[0].mxu0
        %v4570 = vadd.f32 %v2169, %v4569
        %v4571 = vpop.f32.mrb[0].mxu0
        %v4572 = vadd.f32 %v2169, %v4571
        %4573 = vmatprep.mubr.bf16.mxu0 0
        %4574 = vmatmul.mubr.bf16.gmra.mrb[0].mxu0 %v2563
        %v4575 = vpop.f32.mrb[0].mxu0
        %v4576 = vadd.f32 %v2174, %v4575
        %v4577 = vpop.f32.mrb[0].mxu0
        %v4578 = vadd.f32 %v2174, %v4577
        %v4579 = vpop.f32.mrb[0].mxu0
        %v4580 = vadd.f32 %v2179, %v4579
        %v4581 = vpop.f32.mrb[0].mxu0
        %v4582 = vadd.f32 %v2179, %v4581
        %4583 = vmatprep.mubr.bf16.mxu0 0
        %4584 = vmatmul.mubr.bf16.gmra.mrb[0].mxu0 %v2564
        %v4585 = vpop.f32.mrb[0].mxu0
        %v4586 = vadd.f32 %v2184, %v4585
        %v4587 = vpop.f32.mrb[0].mxu0
        %v4588 = vadd.f32 %v2184, %v4587
        %v4589 = vpop.f32.mrb[0].mxu0
        %v4590 = vadd.f32 %v2189, %v4589
        %v4591 = vpop.f32.mrb[0].mxu0
        %v4592 = vadd.f32 %v2189, %v4591
        %4593 = vmatprep.mubr.bf16.mxu0 0
        %4594 = vmatmul.mubr.bf16.gmra.mrb[0].mxu0 %v2565
        %v4595 = vpop.f32.mrb[0].mxu0
        %v4596 = vadd.f32 %v2194, %v4595
        %v4597 = vpop.f32.mrb[0].mxu0
        %v4598 = vadd.f32 %v2194, %v4597
        %v4599 = vpop.f32.mrb[0].mxu0
        %v4600 = vadd.f32 %v2199, %v4599
        %v4601 = vpop.f32.mrb[0].mxu0
        %v4602 = vadd.f32 %v2199, %v4601
        %4603 = vmatprep.mubr.bf16.mxu0 0
        %4604 = vmatmul.mubr.bf16.gmra.mrb[0].mxu0 %v2566
        %v4605 = vpop.f32.mrb[0].mxu0
        %v4606 = vadd.f32 %v2204, %v4605
        %v4607 = vpop.f32.mrb[0].mxu0
        %v4608 = vadd.f32 %v2204, %v4607
        %v4609 = vpop.f32.mrb[0].mxu0
        %v4610 = vadd.f32 %v2209, %v4609
        %v4611 = vpop.f32.mrb[0].mxu0
        %v4612 = vadd.f32 %v2209, %v4611
        %4613 = vmatprep.mubr.bf16.mxu0 0
        %4614 = vmatmul.mubr.bf16.gmra.mrb[0].mxu0 %v2567
        %v4615 = vpop.f32.mrb[0].mxu0
        %v4616 = vadd.f32 %v2214, %v4615
        %v4617 = vpop.f32.mrb[0].mxu0
        %v4618 = vadd.f32 %v2214, %v4617
        %v4619 = vpop.f32.mrb[0].mxu0
        %v4620 = vadd.f32 %v2219, %v4619
        %v4621 = vpop.f32.mrb[0].mxu0
        %v4622 = vadd.f32 %v2219, %v4621
        %4623 = vmatprep.mubr.bf16.mxu0 0
        %4624 = vmatmul.mubr.bf16.gmra.mrb[0].mxu0 %v2568
        %v4625 = vpop.f32.mrb[0].mxu0
        %v4626 = vadd.f32 %v2224, %v4625
        %v4627 = vpop.f32.mrb[0].mxu0
        %v4628 = vadd.f32 %v2224, %v4627
        %v4629 = vpop.f32.mrb[0].mxu0
        %v4630 = vadd.f32 %v2229, %v4629
        %v4631 = vpop.f32.mrb[0].mxu0
        %v4632 = vadd.f32 %v2229, %v4631
        %4633 = vmatprep.mubr.bf16.mxu0 0
        %4634 = vmatmul.mubr.bf16.gmra.mrb[0].mxu0 %v2569
        %v4635 = vpop.f32.mrb[0].mxu0
        %v4636 = vadd.f32 %v2234, %v4635
        %v4637 = vpop.f32.mrb[0].mxu0
        %v4638 = vadd.f32 %v2234, %v4637
        %v4639 = vpop.f32.mrb[0].mxu0
        %v4640 = vadd.f32 %v2239, %v4639
        %v4641 = vpop.f32.mrb[0].mxu0
        %v4642 = vadd.f32 %v2239, %v4641
        %4643 = vmatprep.mubr.bf16.mxu0 0
        %4644 = vmatmul.mubr.bf16.gmra.mrb[0].mxu0 %v2570
        %v4645 = vpop.f32.mrb[0].mxu0
        %v4646 = vadd.f32 %v2244, %v4645
        %v4647 = vpop.f32.mrb[0].mxu0
        %v4648 = vadd.f32 %v2244, %v4647
        %v4649 = vpop.f32.mrb[0].mxu0
        %v4650 = vadd.f32 %v2249, %v4649
        %v4651 = vpop.f32.mrb[0].mxu0
        %v4652 = vadd.f32 %v2249, %v4651
        %4653 = vdwg.mxu0
        %4654 = vmatprep.subr.bf16.mxu0 %v1426
        %4655 = vmatpush1.bf16.msra.mxu0 %v1425
        %4656 = vmatprep.subr.bf16.mxu0 %v1434
        %4657 = vmatpush1.bf16.msra.mxu0 %v1433
        %4658 = vmatprep.subr.bf16.mxu0 %v1442
        %4659 = vmatpush1.bf16.msra.mxu0 %v1441
        %4660 = vmatprep.subr.bf16.mxu0 %v1450
        %4661 = vmatpush1.bf16.msra.mxu0 %v1449
        %4662 = vmatprep.subr.bf16.mxu0 %v1458
        %4663 = vmatpush1.bf16.msra.mxu0 %v1457
        %4664 = vmatprep.subr.bf16.mxu0 %v1466
        %4665 = vmatpush1.bf16.msra.mxu0 %v1465
        %4666 = vmatprep.subr.bf16.mxu0 %v1474
        %4667 = vmatpush1.bf16.msra.mxu0 %v1473
        %4668 = vmatprep.subr.bf16.mxu0 %v1482
        %4669 = vmatpush1.bf16.msra.mxu0 %v1481
        %4670 = vmatprep.subr.bf16.mxu0 0
        %4671 = vmatpush1.bf16.msra.mxu0 0
        %4672 = vmatprep.subr.bf16.mxu0 0
        %4673 = vmatpush1.bf16.msra.mxu0 0
        %4674 = vmatprep.subr.bf16.mxu0 0
        %4675 = vmatpush1.bf16.msra.mxu0 0
        %4676 = vmatprep.subr.bf16.mxu0 0
        %4677 = vmatpush1.bf16.msra.mxu0 0
        %4678 = vmatprep.subr.bf16.mxu0 0
        %4679 = vmatpush1.bf16.msra.mxu0 0
        %4680 = vmatprep.subr.bf16.mxu0 0
        %4681 = vmatpush1.bf16.msra.mxu0 0
        %4682 = vmatprep.subr.bf16.mxu0 0
        %4683 = vmatpush1.bf16.msra.mxu0 0
        %4684 = vmatprep.subr.bf16.mxu0 0
        %4685 = vmatpush1.bf16.msra.mxu0 0
        %4686 = vmatprep.mubr.bf16.mxu0 0
        %4687 = vmatmul.mubr.bf16.gmra.mrb[0].mxu0 %v2507
        %v4688 = vpop.f32.mrb[0].mxu0
        %v4689 = vadd.f32 %v1614, %v4688
        %v4690 = vpop.f32.mrb[0].mxu0
        %v4691 = vadd.f32 %v1614, %v4690
        %v4692 = vpop.f32.mrb[0].mxu0
        %v4693 = vadd.f32 %v1619, %v4692
        %v4694 = vpop.f32.mrb[0].mxu0
        %v4695 = vadd.f32 %v1619, %v4694
        %4696 = vmatprep.mubr.bf16.mxu0 0
        %4697 = vmatmul.mubr.bf16.gmra.mrb[0].mxu0 %v2508
        %v4698 = vpop.f32.mrb[0].mxu0
        %v4699 = vadd.f32 %v1624, %v4698
        %v4700 = vpop.f32.mrb[0].mxu0
        %v4701 = vadd.f32 %v1624, %v4700
        %v4702 = vpop.f32.mrb[0].mxu0
        %v4703 = vadd.f32 %v1629, %v4702
        %v4704 = vpop.f32.mrb[0].mxu0
        %v4705 = vadd.f32 %v1629, %v4704
        %4706 = vmatprep.mubr.bf16.mxu0 0
        %4707 = vmatmul.mubr.bf16.gmra.mrb[0].mxu0 %v2509
        %v4708 = vpop.f32.mrb[0].mxu0
        %v4709 = vadd.f32 %v1634, %v4708
        %v4710 = vpop.f32.mrb[0].mxu0
        %v4711 = vadd.f32 %v1634, %v4710
        %v4712 = vpop.f32.mrb[0].mxu0
        %v4713 = vadd.f32 %v1639, %v4712
        %v4714 = vpop.f32.mrb[0].mxu0
        %v4715 = vadd.f32 %v1639, %v4714
        %4716 = vmatprep.mubr.bf16.mxu0 0
        %4717 = vmatmul.mubr.bf16.gmra.mrb[0].mxu0 %v2510
        %v4718 = vpop.f32.mrb[0].mxu0
        %v4719 = vadd.f32 %v1644, %v4718
        %v4720 = vpop.f32.mrb[0].mxu0
        %v4721 = vadd.f32 %v1644, %v4720
        %v4722 = vpop.f32.mrb[0].mxu0
        %v4723 = vadd.f32 %v1649, %v4722
        %v4724 = vpop.f32.mrb[0].mxu0
        %v4725 = vadd.f32 %v1649, %v4724
        %4726 = vmatprep.mubr.bf16.mxu0 0
        %4727 = vmatmul.mubr.bf16.gmra.mrb[0].mxu0 %v2511
        %v4728 = vpop.f32.mrb[0].mxu0
        %v4729 = vadd.f32 %v1654, %v4728
        %v4730 = vpop.f32.mrb[0].mxu0
        %v4731 = vadd.f32 %v1654, %v4730
        %v4732 = vpop.f32.mrb[0].mxu0
        %v4733 = vadd.f32 %v1659, %v4732
        %v4734 = vpop.f32.mrb[0].mxu0
        %v4735 = vadd.f32 %v1659, %v4734
        %4736 = vmatprep.mubr.bf16.mxu0 0
        %4737 = vmatmul.mubr.bf16.gmra.mrb[0].mxu0 %v2512
        %v4738 = vpop.f32.mrb[0].mxu0
        %v4739 = vadd.f32 %v1664, %v4738
        %v4740 = vpop.f32.mrb[0].mxu0
        %v4741 = vadd.f32 %v1664, %v4740
        %v4742 = vpop.f32.mrb[0].mxu0
        %v4743 = vadd.f32 %v1669, %v4742
        %v4744 = vpop.f32.mrb[0].mxu0
        %v4745 = vadd.f32 %v1669, %v4744
        %4746 = vmatprep.mubr.bf16.mxu0 0
        %4747 = vmatmul.mubr.bf16.gmra.mrb[0].mxu0 %v2513
        %v4748 = vpop.f32.mrb[0].mxu0
        %v4749 = vadd.f32 %v1674, %v4748
        %v4750 = vpop.f32.mrb[0].mxu0
        %v4751 = vadd.f32 %v1674, %v4750
        %v4752 = vpop.f32.mrb[0].mxu0
        %v4753 = vadd.f32 %v1679, %v4752
        %v4754 = vpop.f32.mrb[0].mxu0
        %v4755 = vadd.f32 %v1679, %v4754
        %4756 = vmatprep.mubr.bf16.mxu0 0
        %4757 = vmatmul.mubr.bf16.gmra.mrb[0].mxu0 %v2514
        %v4758 = vpop.f32.mrb[0].mxu0
        %v4759 = vadd.f32 %v1684, %v4758
        %v4760 = vpop.f32.mrb[0].mxu0
        %v4761 = vadd.f32 %v1684, %v4760
        %v4762 = vpop.f32.mrb[0].mxu0
        %v4763 = vadd.f32 %v1689, %v4762
        %v4764 = vpop.f32.mrb[0].mxu0
        %v4765 = vadd.f32 %v1689, %v4764
        %4766 = vmatprep.mubr.bf16.mxu0 0
        %4767 = vmatmul.mubr.bf16.gmra.mrb[0].mxu0 %v2515
        %v4768 = vpop.f32.mrb[0].mxu0
        %v4769 = vadd.f32 %v1694, %v4768
        %v4770 = vpop.f32.mrb[0].mxu0
        %v4771 = vadd.f32 %v1694, %v4770
        %v4772 = vpop.f32.mrb[0].mxu0
        %v4773 = vadd.f32 %v1699, %v4772
        %v4774 = vpop.f32.mrb[0].mxu0
        %v4775 = vadd.f32 %v1699, %v4774
        %4776 = vmatprep.mubr.bf16.mxu0 0
        %4777 = vmatmul.mubr.bf16.gmra.mrb[0].mxu0 %v2516
        %v4778 = vpop.f32.mrb[0].mxu0
        %v4779 = vadd.f32 %v1704, %v4778
        %v4780 = vpop.f32.mrb[0].mxu0
        %v4781 = vadd.f32 %v1704, %v4780
        %v4782 = vpop.f32.mrb[0].mxu0
        %v4783 = vadd.f32 %v1709, %v4782
        %v4784 = vpop.f32.mrb[0].mxu0
        %v4785 = vadd.f32 %v1709, %v4784
        %4786 = vmatprep.mubr.bf16.mxu0 0
        %4787 = vmatmul.mubr.bf16.gmra.mrb[0].mxu0 %v2517
        %v4788 = vpop.f32.mrb[0].mxu0
        %v4789 = vadd.f32 %v1714, %v4788
        %v4790 = vpop.f32.mrb[0].mxu0
        %v4791 = vadd.f32 %v1714, %v4790
        %v4792 = vpop.f32.mrb[0].mxu0
        %v4793 = vadd.f32 %v1719, %v4792
        %v4794 = vpop.f32.mrb[0].mxu0
        %v4795 = vadd.f32 %v1719, %v4794
        %4796 = vmatprep.mubr.bf16.mxu0 0
        %4797 = vmatmul.mubr.bf16.gmra.mrb[0].mxu0 %v2518
        %v4798 = vpop.f32.mrb[0].mxu0
        %v4799 = vadd.f32 %v1724, %v4798
        %v4800 = vpop.f32.mrb[0].mxu0
        %v4801 = vadd.f32 %v1724, %v4800
        %v4802 = vpop.f32.mrb[0].mxu0
        %v4803 = vadd.f32 %v1729, %v4802
        %v4804 = vpop.f32.mrb[0].mxu0
        %v4805 = vadd.f32 %v1729, %v4804
        %4806 = vmatprep.mubr.bf16.mxu0 0
        %4807 = vmatmul.mubr.bf16.gmra.mrb[0].mxu0 %v2519
        %v4808 = vpop.f32.mrb[0].mxu0
        %v4809 = vadd.f32 %v1734, %v4808
        %v4810 = vpop.f32.mrb[0].mxu0
        %v4811 = vadd.f32 %v1734, %v4810
        %v4812 = vpop.f32.mrb[0].mxu0
        %v4813 = vadd.f32 %v1739, %v4812
        %v4814 = vpop.f32.mrb[0].mxu0
        %v4815 = vadd.f32 %v1739, %v4814
        %4816 = vmatprep.mubr.bf16.mxu0 0
        %4817 = vmatmul.mubr.bf16.gmra.mrb[0].mxu0 %v2520
        %v4818 = vpop.f32.mrb[0].mxu0
        %v4819 = vadd.f32 %v1744, %v4818
        %v4820 = vpop.f32.mrb[0].mxu0
        %v4821 = vadd.f32 %v1744, %v4820
        %v4822 = vpop.f32.mrb[0].mxu0
        %v4823 = vadd.f32 %v1749, %v4822
        %v4824 = vpop.f32.mrb[0].mxu0
        %v4825 = vadd.f32 %v1749, %v4824
        %4826 = vmatprep.mubr.bf16.mxu0 0
        %4827 = vmatmul.mubr.bf16.gmra.mrb[0].mxu0 %v2521
        %v4828 = vpop.f32.mrb[0].mxu0
        %v4829 = vadd.f32 %v1754, %v4828
        %v4830 = vpop.f32.mrb[0].mxu0
        %v4831 = vadd.f32 %v1754, %v4830
        %v4832 = vpop.f32.mrb[0].mxu0
        %v4833 = vadd.f32 %v1759, %v4832
        %v4834 = vpop.f32.mrb[0].mxu0
        %v4835 = vadd.f32 %v1759, %v4834
        %4836 = vmatprep.mubr.bf16.mxu0 0
        %4837 = vmatmul.mubr.bf16.gmra.mrb[0].mxu0 %v2522
        %v4838 = vpop.f32.mrb[0].mxu0
        %v4839 = vadd.f32 %v1764, %v4838
        %v4840 = vpop.f32.mrb[0].mxu0
        %v4841 = vadd.f32 %v1764, %v4840
        %v4842 = vpop.f32.mrb[0].mxu0
        %v4843 = vadd.f32 %v1769, %v4842
        %v4844 = vpop.f32.mrb[0].mxu0
        %v4845 = vadd.f32 %v1769, %v4844
        %4846 = vmatprep.mubr.bf16.mxu0 0
        %4847 = vmatmul.mubr.bf16.gmra.mrb[0].mxu0 %v2523
        %v4848 = vpop.f32.mrb[0].mxu0
        %v4849 = vadd.f32 %v1774, %v4848
        %v4850 = vpop.f32.mrb[0].mxu0
        %v4851 = vadd.f32 %v1774, %v4850
        %v4852 = vpop.f32.mrb[0].mxu0
        %v4853 = vadd.f32 %v1779, %v4852
        %v4854 = vpop.f32.mrb[0].mxu0
        %v4855 = vadd.f32 %v1779, %v4854
        %4856 = vmatprep.mubr.bf16.mxu0 0
        %4857 = vmatmul.mubr.bf16.gmra.mrb[0].mxu0 %v2524
        %v4858 = vpop.f32.mrb[0].mxu0
        %v4859 = vadd.f32 %v1784, %v4858
        %v4860 = vpop.f32.mrb[0].mxu0
        %v4861 = vadd.f32 %v1784, %v4860
        %v4862 = vpop.f32.mrb[0].mxu0
        %v4863 = vadd.f32 %v1789, %v4862
        %v4864 = vpop.f32.mrb[0].mxu0
        %v4865 = vadd.f32 %v1789, %v4864
        %4866 = vmatprep.mubr.bf16.mxu0 0
        %4867 = vmatmul.mubr.bf16.gmra.mrb[0].mxu0 %v2525
        %v4868 = vpop.f32.mrb[0].mxu0
        %v4869 = vadd.f32 %v1794, %v4868
        %v4870 = vpop.f32.mrb[0].mxu0
        %v4871 = vadd.f32 %v1794, %v4870
        %v4872 = vpop.f32.mrb[0].mxu0
        %v4873 = vadd.f32 %v1799, %v4872
        %v4874 = vpop.f32.mrb[0].mxu0
        %v4875 = vadd.f32 %v1799, %v4874
        %4876 = vmatprep.mubr.bf16.mxu0 0
        %4877 = vmatmul.mubr.bf16.gmra.mrb[0].mxu0 %v2526
        %v4878 = vpop.f32.mrb[0].mxu0
        %v4879 = vadd.f32 %v1804, %v4878
        %v4880 = vpop.f32.mrb[0].mxu0
        %v4881 = vadd.f32 %v1804, %v4880
        %v4882 = vpop.f32.mrb[0].mxu0
        %v4883 = vadd.f32 %v1809, %v4882
        %v4884 = vpop.f32.mrb[0].mxu0
        %v4885 = vadd.f32 %v1809, %v4884
        %4886 = vmatprep.mubr.bf16.mxu0 0
        %4887 = vmatmul.mubr.bf16.gmra.mrb[0].mxu0 %v2527
        %v4888 = vpop.f32.mrb[0].mxu0
        %v4889 = vadd.f32 %v1814, %v4888
        %v4890 = vpop.f32.mrb[0].mxu0
        %v4891 = vadd.f32 %v1814, %v4890
        %v4892 = vpop.f32.mrb[0].mxu0
        %v4893 = vadd.f32 %v1819, %v4892
        %v4894 = vpop.f32.mrb[0].mxu0
        %v4895 = vadd.f32 %v1819, %v4894
        %4896 = vmatprep.mubr.bf16.mxu0 0
        %4897 = vmatmul.mubr.bf16.gmra.mrb[0].mxu0 %v2528
        %v4898 = vpop.f32.mrb[0].mxu0
        %v4899 = vadd.f32 %v1824, %v4898
        %v4900 = vpop.f32.mrb[0].mxu0
        %v4901 = vadd.f32 %v1824, %v4900
        %v4902 = vpop.f32.mrb[0].mxu0
        %v4903 = vadd.f32 %v1829, %v4902
        %v4904 = vpop.f32.mrb[0].mxu0
        %v4905 = vadd.f32 %v1829, %v4904
        %4906 = vmatprep.mubr.bf16.mxu0 0
        %4907 = vmatmul.mubr.bf16.gmra.mrb[0].mxu0 %v2529
        %v4908 = vpop.f32.mrb[0].mxu0
        %v4909 = vadd.f32 %v1834, %v4908
        %v4910 = vpop.f32.mrb[0].mxu0
        %v4911 = vadd.f32 %v1834, %v4910
        %v4912 = vpop.f32.mrb[0].mxu0
        %v4913 = vadd.f32 %v1839, %v4912
        %v4914 = vpop.f32.mrb[0].mxu0
        %v4915 = vadd.f32 %v1839, %v4914
        %4916 = vmatprep.mubr.bf16.mxu0 0
        %4917 = vmatmul.mubr.bf16.gmra.mrb[0].mxu0 %v2530
        %v4918 = vpop.f32.mrb[0].mxu0
        %v4919 = vadd.f32 %v1844, %v4918
        %v4920 = vpop.f32.mrb[0].mxu0
        %v4921 = vadd.f32 %v1844, %v4920
        %v4922 = vpop.f32.mrb[0].mxu0
        %v4923 = vadd.f32 %v1849, %v4922
        %v4924 = vpop.f32.mrb[0].mxu0
        %v4925 = vadd.f32 %v1849, %v4924
        %4926 = vmatprep.mubr.bf16.mxu0 0
        %4927 = vmatmul.mubr.bf16.gmra.mrb[0].mxu0 %v2531
        %v4928 = vpop.f32.mrb[0].mxu0
        %v4929 = vadd.f32 %v1854, %v4928
        %v4930 = vpop.f32.mrb[0].mxu0
        %v4931 = vadd.f32 %v1854, %v4930
        %v4932 = vpop.f32.mrb[0].mxu0
        %v4933 = vadd.f32 %v1859, %v4932
        %v4934 = vpop.f32.mrb[0].mxu0
        %v4935 = vadd.f32 %v1859, %v4934
        %4936 = vmatprep.mubr.bf16.mxu0 0
        %4937 = vmatmul.mubr.bf16.gmra.mrb[0].mxu0 %v2532
        %v4938 = vpop.f32.mrb[0].mxu0
        %v4939 = vadd.f32 %v1864, %v4938
        %v4940 = vpop.f32.mrb[0].mxu0
        %v4941 = vadd.f32 %v1864, %v4940
        %v4942 = vpop.f32.mrb[0].mxu0
        %v4943 = vadd.f32 %v1869, %v4942
        %v4944 = vpop.f32.mrb[0].mxu0
        %v4945 = vadd.f32 %v1869, %v4944
        %4946 = vmatprep.mubr.bf16.mxu0 0
        %4947 = vmatmul.mubr.bf16.gmra.mrb[0].mxu0 %v2533
        %v4948 = vpop.f32.mrb[0].mxu0
        %v4949 = vadd.f32 %v1874, %v4948
        %v4950 = vpop.f32.mrb[0].mxu0
        %v4951 = vadd.f32 %v1874, %v4950
        %v4952 = vpop.f32.mrb[0].mxu0
        %v4953 = vadd.f32 %v1879, %v4952
        %v4954 = vpop.f32.mrb[0].mxu0
        %v4955 = vadd.f32 %v1879, %v4954
        %4956 = vmatprep.mubr.bf16.mxu0 0
        %4957 = vmatmul.mubr.bf16.gmra.mrb[0].mxu0 %v2534
        %v4958 = vpop.f32.mrb[0].mxu0
        %v4959 = vadd.f32 %v1884, %v4958
        %v4960 = vpop.f32.mrb[0].mxu0
        %v4961 = vadd.f32 %v1884, %v4960
        %v4962 = vpop.f32.mrb[0].mxu0
        %v4963 = vadd.f32 %v1889, %v4962
        %v4964 = vpop.f32.mrb[0].mxu0
        %v4965 = vadd.f32 %v1889, %v4964
        %4966 = vmatprep.mubr.bf16.mxu0 0
        %4967 = vmatmul.mubr.bf16.gmra.mrb[0].mxu0 %v2535
        %v4968 = vpop.f32.mrb[0].mxu0
        %v4969 = vadd.f32 %v1894, %v4968
        %v4970 = vpop.f32.mrb[0].mxu0
        %v4971 = vadd.f32 %v1894, %v4970
        %v4972 = vpop.f32.mrb[0].mxu0
        %v4973 = vadd.f32 %v1899, %v4972
        %v4974 = vpop.f32.mrb[0].mxu0
        %v4975 = vadd.f32 %v1899, %v4974
        %4976 = vmatprep.mubr.bf16.mxu0 0
        %4977 = vmatmul.mubr.bf16.gmra.mrb[0].mxu0 %v2536
        %v4978 = vpop.f32.mrb[0].mxu0
        %v4979 = vadd.f32 %v1904, %v4978
        %v4980 = vpop.f32.mrb[0].mxu0
        %v4981 = vadd.f32 %v1904, %v4980
        %v4982 = vpop.f32.mrb[0].mxu0
        %v4983 = vadd.f32 %v1909, %v4982
        %v4984 = vpop.f32.mrb[0].mxu0
        %v4985 = vadd.f32 %v1909, %v4984
        %4986 = vmatprep.mubr.bf16.mxu0 0
        %4987 = vmatmul.mubr.bf16.gmra.mrb[0].mxu0 %v2537
        %v4988 = vpop.f32.mrb[0].mxu0
        %v4989 = vadd.f32 %v1914, %v4988
        %v4990 = vpop.f32.mrb[0].mxu0
        %v4991 = vadd.f32 %v1914, %v4990
        %v4992 = vpop.f32.mrb[0].mxu0
        %v4993 = vadd.f32 %v1919, %v4992
        %v4994 = vpop.f32.mrb[0].mxu0
        %v4995 = vadd.f32 %v1919, %v4994
        %4996 = vmatprep.mubr.bf16.mxu0 0
        %4997 = vmatmul.mubr.bf16.gmra.mrb[0].mxu0 %v2538
        %v4998 = vpop.f32.mrb[0].mxu0
        %v4999 = vadd.f32 %v1924, %v4998
        %v5000 = vpop.f32.mrb[0].mxu0
        %v5001 = vadd.f32 %v1924, %v5000
        %v5002 = vpop.f32.mrb[0].mxu0
        %v5003 = vadd.f32 %v1929, %v5002
        %v5004 = vpop.f32.mrb[0].mxu0
        %v5005 = vadd.f32 %v1929, %v5004
        %5006 = vmatprep.mubr.bf16.mxu0 0
        %5007 = vmatmul.mubr.bf16.gmra.mrb[0].mxu0 %v2539
        %v5008 = vpop.f32.mrb[0].mxu0
        %v5009 = vadd.f32 %v1934, %v5008
        %v5010 = vpop.f32.mrb[0].mxu0
        %v5011 = vadd.f32 %v1934, %v5010
        %v5012 = vpop.f32.mrb[0].mxu0
        %v5013 = vadd.f32 %v1939, %v5012
        %v5014 = vpop.f32.mrb[0].mxu0
        %v5015 = vadd.f32 %v1939, %v5014
        %5016 = vmatprep.mubr.bf16.mxu0 0
        %5017 = vmatmul.mubr.bf16.gmra.mrb[0].mxu0 %v2540
        %v5018 = vpop.f32.mrb[0].mxu0
        %v5019 = vadd.f32 %v1944, %v5018
        %v5020 = vpop.f32.mrb[0].mxu0
        %v5021 = vadd.f32 %v1944, %v5020
        %v5022 = vpop.f32.mrb[0].mxu0
        %v5023 = vadd.f32 %v1949, %v5022
        %v5024 = vpop.f32.mrb[0].mxu0
        %v5025 = vadd.f32 %v1949, %v5024
        %5026 = vmatprep.mubr.bf16.mxu0 0
        %5027 = vmatmul.mubr.bf16.gmra.mrb[0].mxu0 %v2541
        %v5028 = vpop.f32.mrb[0].mxu0
        %v5029 = vadd.f32 %v1954, %v5028
        %v5030 = vpop.f32.mrb[0].mxu0
        %v5031 = vadd.f32 %v1954, %v5030
        %v5032 = vpop.f32.mrb[0].mxu0
        %v5033 = vadd.f32 %v1959, %v5032
        %v5034 = vpop.f32.mrb[0].mxu0
        %v5035 = vadd.f32 %v1959, %v5034
        %5036 = vmatprep.mubr.bf16.mxu0 0
        %5037 = vmatmul.mubr.bf16.gmra.mrb[0].mxu0 %v2542
        %v5038 = vpop.f32.mrb[0].mxu0
        %v5039 = vadd.f32 %v1964, %v5038
        %v5040 = vpop.f32.mrb[0].mxu0
        %v5041 = vadd.f32 %v1964, %v5040
        %v5042 = vpop.f32.mrb[0].mxu0
        %v5043 = vadd.f32 %v1969, %v5042
        %v5044 = vpop.f32.mrb[0].mxu0
        %v5045 = vadd.f32 %v1969, %v5044
        %5046 = vmatprep.mubr.bf16.mxu0 0
        %5047 = vmatmul.mubr.bf16.gmra.mrb[0].mxu0 %v2543
        %v5048 = vpop.f32.mrb[0].mxu0
        %v5049 = vadd.f32 %v1974, %v5048
        %v5050 = vpop.f32.mrb[0].mxu0
        %v5051 = vadd.f32 %v1974, %v5050
        %v5052 = vpop.f32.mrb[0].mxu0
        %v5053 = vadd.f32 %v1979, %v5052
        %v5054 = vpop.f32.mrb[0].mxu0
        %v5055 = vadd.f32 %v1979, %v5054
        %5056 = vmatprep.mubr.bf16.mxu0 0
        %5057 = vmatmul.mubr.bf16.gmra.mrb[0].mxu0 %v2544
        %v5058 = vpop.f32.mrb[0].mxu0
        %v5059 = vadd.f32 %v1984, %v5058
        %v5060 = vpop.f32.mrb[0].mxu0
        %v5061 = vadd.f32 %v1984, %v5060
        %v5062 = vpop.f32.mrb[0].mxu0
        %v5063 = vadd.f32 %v1989, %v5062
        %v5064 = vpop.f32.mrb[0].mxu0
        %v5065 = vadd.f32 %v1989, %v5064
        %5066 = vmatprep.mubr.bf16.mxu0 0
        %5067 = vmatmul.mubr.bf16.gmra.mrb[0].mxu0 %v2545
        %v5068 = vpop.f32.mrb[0].mxu0
        %v5069 = vadd.f32 %v1994, %v5068
        %v5070 = vpop.f32.mrb[0].mxu0
        %v5071 = vadd.f32 %v1994, %v5070
        %v5072 = vpop.f32.mrb[0].mxu0
        %v5073 = vadd.f32 %v1999, %v5072
        %v5074 = vpop.f32.mrb[0].mxu0
        %v5075 = vadd.f32 %v1999, %v5074
        %5076 = vmatprep.mubr.bf16.mxu0 0
        %5077 = vmatmul.mubr.bf16.gmra.mrb[0].mxu0 %v2546
        %v5078 = vpop.f32.mrb[0].mxu0
        %v5079 = vadd.f32 %v2004, %v5078
        %v5080 = vpop.f32.mrb[0].mxu0
        %v5081 = vadd.f32 %v2004, %v5080
        %v5082 = vpop.f32.mrb[0].mxu0
        %v5083 = vadd.f32 %v2009, %v5082
        %v5084 = vpop.f32.mrb[0].mxu0
        %v5085 = vadd.f32 %v2009, %v5084
        %5086 = vmatprep.mubr.bf16.mxu0 0
        %5087 = vmatmul.mubr.bf16.gmra.mrb[0].mxu0 %v2547
        %v5088 = vpop.f32.mrb[0].mxu0
        %v5089 = vadd.f32 %v2014, %v5088
        %v5090 = vpop.f32.mrb[0].mxu0
        %v5091 = vadd.f32 %v2014, %v5090
        %v5092 = vpop.f32.mrb[0].mxu0
        %v5093 = vadd.f32 %v2019, %v5092
        %v5094 = vpop.f32.mrb[0].mxu0
        %v5095 = vadd.f32 %v2019, %v5094
        %5096 = vmatprep.mubr.bf16.mxu0 0
        %5097 = vmatmul.mubr.bf16.gmra.mrb[0].mxu0 %v2548
        %v5098 = vpop.f32.mrb[0].mxu0
        %v5099 = vadd.f32 %v2024, %v5098
        %v5100 = vpop.f32.mrb[0].mxu0
        %v5101 = vadd.f32 %v2024, %v5100
        %v5102 = vpop.f32.mrb[0].mxu0
        %v5103 = vadd.f32 %v2029, %v5102
        %v5104 = vpop.f32.mrb[0].mxu0
        %v5105 = vadd.f32 %v2029, %v5104
        %5106 = vmatprep.mubr.bf16.mxu0 0
        %5107 = vmatmul.mubr.bf16.gmra.mrb[0].mxu0 %v2549
        %v5108 = vpop.f32.mrb[0].mxu0
        %v5109 = vadd.f32 %v2034, %v5108
        %v5110 = vpop.f32.mrb[0].mxu0
        %v5111 = vadd.f32 %v2034, %v5110
        %v5112 = vpop.f32.mrb[0].mxu0
        %v5113 = vadd.f32 %v2039, %v5112
        %v5114 = vpop.f32.mrb[0].mxu0
        %v5115 = vadd.f32 %v2039, %v5114
        %5116 = vmatprep.mubr.bf16.mxu0 0
        %5117 = vmatmul.mubr.bf16.gmra.mrb[0].mxu0 %v2550
        %v5118 = vpop.f32.mrb[0].mxu0
        %v5119 = vadd.f32 %v2044, %v5118
        %v5120 = vpop.f32.mrb[0].mxu0
        %v5121 = vadd.f32 %v2044, %v5120
        %v5122 = vpop.f32.mrb[0].mxu0
        %v5123 = vadd.f32 %v2049, %v5122
        %v5124 = vpop.f32.mrb[0].mxu0
        %v5125 = vadd.f32 %v2049, %v5124
        %5126 = vmatprep.mubr.bf16.mxu0 0
        %5127 = vmatmul.mubr.bf16.gmra.mrb[0].mxu0 %v2551
        %v5128 = vpop.f32.mrb[0].mxu0
        %v5129 = vadd.f32 %v2054, %v5128
        %v5130 = vpop.f32.mrb[0].mxu0
        %v5131 = vadd.f32 %v2054, %v5130
        %v5132 = vpop.f32.mrb[0].mxu0
        %v5133 = vadd.f32 %v2059, %v5132
        %v5134 = vpop.f32.mrb[0].mxu0
        %v5135 = vadd.f32 %v2059, %v5134
        %5136 = vmatprep.mubr.bf16.mxu0 0
        %5137 = vmatmul.mubr.bf16.gmra.mrb[0].mxu0 %v2552
        %v5138 = vpop.f32.mrb[0].mxu0
        %v5139 = vadd.f32 %v2064, %v5138
        %v5140 = vpop.f32.mrb[0].mxu0
        %v5141 = vadd.f32 %v2064, %v5140
        %v5142 = vpop.f32.mrb[0].mxu0
        %v5143 = vadd.f32 %v2069, %v5142
        %v5144 = vpop.f32.mrb[0].mxu0
        %v5145 = vadd.f32 %v2069, %v5144
        %5146 = vmatprep.mubr.bf16.mxu0 0
        %5147 = vmatmul.mubr.bf16.gmra.mrb[0].mxu0 %v2553
        %v5148 = vpop.f32.mrb[0].mxu0
        %v5149 = vadd.f32 %v2074, %v5148
        %v5150 = vpop.f32.mrb[0].mxu0
        %v5151 = vadd.f32 %v2074, %v5150
        %v5152 = vpop.f32.mrb[0].mxu0
        %v5153 = vadd.f32 %v2079, %v5152
        %v5154 = vpop.f32.mrb[0].mxu0
        %v5155 = vadd.f32 %v2079, %v5154
        %5156 = vmatprep.mubr.bf16.mxu0 0
        %5157 = vmatmul.mubr.bf16.gmra.mrb[0].mxu0 %v2554
        %v5158 = vpop.f32.mrb[0].mxu0
        %v5159 = vadd.f32 %v2084, %v5158
        %v5160 = vpop.f32.mrb[0].mxu0
        %v5161 = vadd.f32 %v2084, %v5160
        %v5162 = vpop.f32.mrb[0].mxu0
        %v5163 = vadd.f32 %v2089, %v5162
        %v5164 = vpop.f32.mrb[0].mxu0
        %v5165 = vadd.f32 %v2089, %v5164
        %5166 = vmatprep.mubr.bf16.mxu0 0
        %5167 = vmatmul.mubr.bf16.gmra.mrb[0].mxu0 %v2555
        %v5168 = vpop.f32.mrb[0].mxu0
        %v5169 = vadd.f32 %v2094, %v5168
        %v5170 = vpop.f32.mrb[0].mxu0
        %v5171 = vadd.f32 %v2094, %v5170
        %v5172 = vpop.f32.mrb[0].mxu0
        %v5173 = vadd.f32 %v2099, %v5172
        %v5174 = vpop.f32.mrb[0].mxu0
        %v5175 = vadd.f32 %v2099, %v5174
        %5176 = vmatprep.mubr.bf16.mxu0 0
        %5177 = vmatmul.mubr.bf16.gmra.mrb[0].mxu0 %v2556
        %v5178 = vpop.f32.mrb[0].mxu0
        %v5179 = vadd.f32 %v2104, %v5178
        %v5180 = vpop.f32.mrb[0].mxu0
        %v5181 = vadd.f32 %v2104, %v5180
        %v5182 = vpop.f32.mrb[0].mxu0
        %v5183 = vadd.f32 %v2109, %v5182
        %v5184 = vpop.f32.mrb[0].mxu0
        %v5185 = vadd.f32 %v2109, %v5184
        %5186 = vmatprep.mubr.bf16.mxu0 0
        %5187 = vmatmul.mubr.bf16.gmra.mrb[0].mxu0 %v2557
        %v5188 = vpop.f32.mrb[0].mxu0
        %v5189 = vadd.f32 %v2114, %v5188
        %v5190 = vpop.f32.mrb[0].mxu0
        %v5191 = vadd.f32 %v2114, %v5190
        %v5192 = vpop.f32.mrb[0].mxu0
        %v5193 = vadd.f32 %v2119, %v5192
        %v5194 = vpop.f32.mrb[0].mxu0
        %v5195 = vadd.f32 %v2119, %v5194
        %5196 = vmatprep.mubr.bf16.mxu0 0
        %5197 = vmatmul.mubr.bf16.gmra.mrb[0].mxu0 %v2558
        %v5198 = vpop.f32.mrb[0].mxu0
        %v5199 = vadd.f32 %v2124, %v5198
        %v5200 = vpop.f32.mrb[0].mxu0
        %v5201 = vadd.f32 %v2124, %v5200
        %v5202 = vpop.f32.mrb[0].mxu0
        %v5203 = vadd.f32 %v2129, %v5202
        %v5204 = vpop.f32.mrb[0].mxu0
        %v5205 = vadd.f32 %v2129, %v5204
        %5206 = vmatprep.mubr.bf16.mxu0 0
        %5207 = vmatmul.mubr.bf16.gmra.mrb[0].mxu0 %v2559
        %v5208 = vpop.f32.mrb[0].mxu0
        %v5209 = vadd.f32 %v2134, %v5208
        %v5210 = vpop.f32.mrb[0].mxu0
        %v5211 = vadd.f32 %v2134, %v5210
        %v5212 = vpop.f32.mrb[0].mxu0
        %v5213 = vadd.f32 %v2139, %v5212
        %v5214 = vpop.f32.mrb[0].mxu0
        %v5215 = vadd.f32 %v2139, %v5214
        %5216 = vmatprep.mubr.bf16.mxu0 0
        %5217 = vmatmul.mubr.bf16.gmra.mrb[0].mxu0 %v2560
        %v5218 = vpop.f32.mrb[0].mxu0
        %v5219 = vadd.f32 %v2144, %v5218
        %v5220 = vpop.f32.mrb[0].mxu0
        %v5221 = vadd.f32 %v2144, %v5220
        %v5222 = vpop.f32.mrb[0].mxu0
        %v5223 = vadd.f32 %v2149, %v5222
        %v5224 = vpop.f32.mrb[0].mxu0
        %v5225 = vadd.f32 %v2149, %v5224
        %5226 = vmatprep.mubr.bf16.mxu0 0
        %5227 = vmatmul.mubr.bf16.gmra.mrb[0].mxu0 %v2561
        %v5228 = vpop.f32.mrb[0].mxu0
        %v5229 = vadd.f32 %v2154, %v5228
        %v5230 = vpop.f32.mrb[0].mxu0
        %v5231 = vadd.f32 %v2154, %v5230
        %v5232 = vpop.f32.mrb[0].mxu0
        %v5233 = vadd.f32 %v2159, %v5232
        %v5234 = vpop.f32.mrb[0].mxu0
        %v5235 = vadd.f32 %v2159, %v5234
        %5236 = vmatprep.mubr.bf16.mxu0 0
        %5237 = vmatmul.mubr.bf16.gmra.mrb[0].mxu0 %v2562
        %v5238 = vpop.f32.mrb[0].mxu0
        %v5239 = vadd.f32 %v2164, %v5238
        %v5240 = vpop.f32.mrb[0].mxu0
        %v5241 = vadd.f32 %v2164, %v5240
        %v5242 = vpop.f32.mrb[0].mxu0
        %v5243 = vadd.f32 %v2169, %v5242
        %v5244 = vpop.f32.mrb[0].mxu0
        %v5245 = vadd.f32 %v2169, %v5244
        %5246 = vmatprep.mubr.bf16.mxu0 0
        %5247 = vmatmul.mubr.bf16.gmra.mrb[0].mxu0 %v2563
        %v5248 = vpop.f32.mrb[0].mxu0
        %v5249 = vadd.f32 %v2174, %v5248
        %v5250 = vpop.f32.mrb[0].mxu0
        %v5251 = vadd.f32 %v2174, %v5250
        %v5252 = vpop.f32.mrb[0].mxu0
        %v5253 = vadd.f32 %v2179, %v5252
        %v5254 = vpop.f32.mrb[0].mxu0
        %v5255 = vadd.f32 %v2179, %v5254
        %5256 = vmatprep.mubr.bf16.mxu0 0
        %5257 = vmatmul.mubr.bf16.gmra.mrb[0].mxu0 %v2564
        %v5258 = vpop.f32.mrb[0].mxu0
        %v5259 = vadd.f32 %v2184, %v5258
        %v5260 = vpop.f32.mrb[0].mxu0
        %v5261 = vadd.f32 %v2184, %v5260
        %v5262 = vpop.f32.mrb[0].mxu0
        %v5263 = vadd.f32 %v2189, %v5262
        %v5264 = vpop.f32.mrb[0].mxu0
        %v5265 = vadd.f32 %v2189, %v5264
        %5266 = vmatprep.mubr.bf16.mxu0 0
        %5267 = vmatmul.mubr.bf16.gmra.mrb[0].mxu0 %v2565
        %v5268 = vpop.f32.mrb[0].mxu0
        %v5269 = vadd.f32 %v2194, %v5268
        %v5270 = vpop.f32.mrb[0].mxu0
        %v5271 = vadd.f32 %v2194, %v5270
        %v5272 = vpop.f32.mrb[0].mxu0
        %v5273 = vadd.f32 %v2199, %v5272
        %v5274 = vpop.f32.mrb[0].mxu0
        %v5275 = vadd.f32 %v2199, %v5274
        %5276 = vmatprep.mubr.bf16.mxu0 0
        %5277 = vmatmul.mubr.bf16.gmra.mrb[0].mxu0 %v2566
        %v5278 = vpop.f32.mrb[0].mxu0
        %v5279 = vadd.f32 %v2204, %v5278
        %v5280 = vpop.f32.mrb[0].mxu0
        %v5281 = vadd.f32 %v2204, %v5280
        %v5282 = vpop.f32.mrb[0].mxu0
        %v5283 = vadd.f32 %v2209, %v5282
        %v5284 = vpop.f32.mrb[0].mxu0
        %v5285 = vadd.f32 %v2209, %v5284
        %5286 = vmatprep.mubr.bf16.mxu0 0
        %5287 = vmatmul.mubr.bf16.gmra.mrb[0].mxu0 %v2567
        %v5288 = vpop.f32.mrb[0].mxu0
        %v5289 = vadd.f32 %v2214, %v5288
        %v5290 = vpop.f32.mrb[0].mxu0
        %v5291 = vadd.f32 %v2214, %v5290
        %v5292 = vpop.f32.mrb[0].mxu0
        %v5293 = vadd.f32 %v2219, %v5292
        %v5294 = vpop.f32.mrb[0].mxu0
        %v5295 = vadd.f32 %v2219, %v5294
        %5296 = vmatprep.mubr.bf16.mxu0 0
        %5297 = vmatmul.mubr.bf16.gmra.mrb[0].mxu0 %v2568
        %v5298 = vpop.f32.mrb[0].mxu0
        %v5299 = vadd.f32 %v2224, %v5298
        %v5300 = vpop.f32.mrb[0].mxu0
        %v5301 = vadd.f32 %v2224, %v5300
        %v5302 = vpop.f32.mrb[0].mxu0
        %v5303 = vadd.f32 %v2229, %v5302
        %v5304 = vpop.f32.mrb[0].mxu0
        %v5305 = vadd.f32 %v2229, %v5304
        %5306 = vmatprep.mubr.bf16.mxu0 0
        %5307 = vmatmul.mubr.bf16.gmra.mrb[0].mxu0 %v2569
        %v5308 = vpop.f32.mrb[0].mxu0
        %v5309 = vadd.f32 %v2234, %v5308
        %v5310 = vpop.f32.mrb[0].mxu0
        %v5311 = vadd.f32 %v2234, %v5310
        %v5312 = vpop.f32.mrb[0].mxu0
        %v5313 = vadd.f32 %v2239, %v5312
        %v5314 = vpop.f32.mrb[0].mxu0
        %v5315 = vadd.f32 %v2239, %v5314
        %5316 = vmatprep.mubr.bf16.mxu0 0
        %5317 = vmatmul.mubr.bf16.gmra.mrb[0].mxu0 %v2570
        %v5318 = vpop.f32.mrb[0].mxu0
        %v5319 = vadd.f32 %v2244, %v5318
        %v5320 = vpop.f32.mrb[0].mxu0
        %v5321 = vadd.f32 %v2244, %v5320
        %v5322 = vpop.f32.mrb[0].mxu0
        %v5323 = vadd.f32 %v2249, %v5322
        %v5324 = vpop.f32.mrb[0].mxu0
        %v5325 = vadd.f32 %v2249, %v5324
        %5326 = vdwg.mxu0
        %v5327 = vmax.f32 %v2670, 0.0
        %v5328 = vmax.f32 %v2672, 0.0
        %v5329 = vmax.f32 %v3343, 0.0
        %v5330 = vmax.f32 %v3345, 0.0
        %v5331 = vmax.f32 %v4016, 0.0
        %v5332 = vmax.f32 %v4018, 0.0
        %v5333 = vmax.f32 %v4689, 0.0
        %v5334 = vmax.f32 %v4691, 0.0
        %v5335 = vmax.f32 %v2674, 0.0
        %v5336 = vmax.f32 %v2676, 0.0
        %v5337 = vmax.f32 %v3347, 0.0
        %v5338 = vmax.f32 %v3349, 0.0
        %v5339 = vmax.f32 %v4020, 0.0
        %v5340 = vmax.f32 %v4022, 0.0
        %v5341 = vmax.f32 %v4693, 0.0
        %v5342 = vmax.f32 %v4695, 0.0
        %v5343 = vmax.f32 %v2680, 0.0
        %v5344 = vmax.f32 %v2682, 0.0
        %v5345 = vmax.f32 %v3353, 0.0
        %v5346 = vmax.f32 %v3355, 0.0
        %v5347 = vmax.f32 %v4026, 0.0
        %v5348 = vmax.f32 %v4028, 0.0
        %v5349 = vmax.f32 %v4699, 0.0
        %v5350 = vmax.f32 %v4701, 0.0
        %v5351 = vmax.f32 %v2684, 0.0
        %v5352 = vmax.f32 %v2686, 0.0
        %v5353 = vmax.f32 %v3357, 0.0
        %v5354 = vmax.f32 %v3359, 0.0
        %v5355 = vmax.f32 %v4030, 0.0
        %v5356 = vmax.f32 %v4032, 0.0
        %v5357 = vmax.f32 %v4703, 0.0
        %v5358 = vmax.f32 %v4705, 0.0
        %v5359 = vmax.f32 %v2690, 0.0
        %v5360 = vmax.f32 %v2692, 0.0
        %v5361 = vmax.f32 %v3363, 0.0
        %v5362 = vmax.f32 %v3365, 0.0
        %v5363 = vmax.f32 %v4036, 0.0
        %v5364 = vmax.f32 %v4038, 0.0
        %v5365 = vmax.f32 %v4709, 0.0
        %v5366 = vmax.f32 %v4711, 0.0
        %v5367 = vmax.f32 %v2694, 0.0
        %v5368 = vmax.f32 %v2696, 0.0
        %v5369 = vmax.f32 %v3367, 0.0
        %v5370 = vmax.f32 %v3369, 0.0
        %v5371 = vmax.f32 %v4040, 0.0
        %v5372 = vmax.f32 %v4042, 0.0
        %v5373 = vmax.f32 %v4713, 0.0
        %v5374 = vmax.f32 %v4715, 0.0
        %v5375 = vmax.f32 %v2700, 0.0
        %v5376 = vmax.f32 %v2702, 0.0
        %v5377 = vmax.f32 %v3373, 0.0
        %v5378 = vmax.f32 %v3375, 0.0
        %v5379 = vmax.f32 %v4046, 0.0
        %v5380 = vmax.f32 %v4048, 0.0
        %v5381 = vmax.f32 %v4719, 0.0
        %v5382 = vmax.f32 %v4721, 0.0
        %v5383 = vmax.f32 %v2704, 0.0
        %v5384 = vmax.f32 %v2706, 0.0
        %v5385 = vmax.f32 %v3377, 0.0
        %v5386 = vmax.f32 %v3379, 0.0
        %v5387 = vmax.f32 %v4050, 0.0
        %v5388 = vmax.f32 %v4052, 0.0
        %v5389 = vmax.f32 %v4723, 0.0
        %v5390 = vmax.f32 %v4725, 0.0
        %v5391 = vmax.f32 %v2710, 0.0
        %v5392 = vmax.f32 %v2712, 0.0
        %v5393 = vmax.f32 %v3383, 0.0
        %v5394 = vmax.f32 %v3385, 0.0
        %v5395 = vmax.f32 %v4056, 0.0
        %v5396 = vmax.f32 %v4058, 0.0
        %v5397 = vmax.f32 %v4729, 0.0
        %v5398 = vmax.f32 %v4731, 0.0
        %v5399 = vmax.f32 %v2714, 0.0
        %v5400 = vmax.f32 %v2716, 0.0
        %v5401 = vmax.f32 %v3387, 0.0
        %v5402 = vmax.f32 %v3389, 0.0
        %v5403 = vmax.f32 %v4060, 0.0
        %v5404 = vmax.f32 %v4062, 0.0
        %v5405 = vmax.f32 %v4733, 0.0
        %v5406 = vmax.f32 %v4735, 0.0
        %v5407 = vmax.f32 %v2720, 0.0
        %v5408 = vmax.f32 %v2722, 0.0
        %v5409 = vmax.f32 %v3393, 0.0
        %v5410 = vmax.f32 %v3395, 0.0
        %v5411 = vmax.f32 %v4066, 0.0
        %v5412 = vmax.f32 %v4068, 0.0
        %v5413 = vmax.f32 %v4739, 0.0
        %v5414 = vmax.f32 %v4741, 0.0
        %v5415 = vmax.f32 %v2724, 0.0
        %v5416 = vmax.f32 %v2726, 0.0
        %v5417 = vmax.f32 %v3397, 0.0
        %v5418 = vmax.f32 %v3399, 0.0
        %v5419 = vmax.f32 %v4070, 0.0
        %v5420 = vmax.f32 %v4072, 0.0
        %v5421 = vmax.f32 %v4743, 0.0
        %v5422 = vmax.f32 %v4745, 0.0
        %v5423 = vmax.f32 %v2730, 0.0
        %v5424 = vmax.f32 %v2732, 0.0
        %v5425 = vmax.f32 %v3403, 0.0
        %v5426 = vmax.f32 %v3405, 0.0
        %v5427 = vmax.f32 %v4076, 0.0
        %v5428 = vmax.f32 %v4078, 0.0
        %v5429 = vmax.f32 %v4749, 0.0
        %v5430 = vmax.f32 %v4751, 0.0
        %v5431 = vmax.f32 %v2734, 0.0
        %v5432 = vmax.f32 %v2736, 0.0
        %v5433 = vmax.f32 %v3407, 0.0
        %v5434 = vmax.f32 %v3409, 0.0
        %v5435 = vmax.f32 %v4080, 0.0
        %v5436 = vmax.f32 %v4082, 0.0
        %v5437 = vmax.f32 %v4753, 0.0
        %v5438 = vmax.f32 %v4755, 0.0
        %v5439 = vmax.f32 %v2740, 0.0
        %v5440 = vmax.f32 %v2742, 0.0
        %v5441 = vmax.f32 %v3413, 0.0
        %v5442 = vmax.f32 %v3415, 0.0
        %v5443 = vmax.f32 %v4086, 0.0
        %v5444 = vmax.f32 %v4088, 0.0
        %v5445 = vmax.f32 %v4759, 0.0
        %v5446 = vmax.f32 %v4761, 0.0
        %v5447 = vmax.f32 %v2744, 0.0
        %v5448 = vmax.f32 %v2746, 0.0
        %v5449 = vmax.f32 %v3417, 0.0
        %v5450 = vmax.f32 %v3419, 0.0
        %v5451 = vmax.f32 %v4090, 0.0
        %v5452 = vmax.f32 %v4092, 0.0
        %v5453 = vmax.f32 %v4763, 0.0
        %v5454 = vmax.f32 %v4765, 0.0
        %v5455 = vmax.f32 %v2750, 0.0
        %v5456 = vmax.f32 %v2752, 0.0
        %v5457 = vmax.f32 %v3423, 0.0
        %v5458 = vmax.f32 %v3425, 0.0
        %v5459 = vmax.f32 %v4096, 0.0
        %v5460 = vmax.f32 %v4098, 0.0
        %v5461 = vmax.f32 %v4769, 0.0
        %v5462 = vmax.f32 %v4771, 0.0
        %v5463 = vmax.f32 %v2754, 0.0
        %v5464 = vmax.f32 %v2756, 0.0
        %v5465 = vmax.f32 %v3427, 0.0
        %v5466 = vmax.f32 %v3429, 0.0
        %v5467 = vmax.f32 %v4100, 0.0
        %v5468 = vmax.f32 %v4102, 0.0
        %v5469 = vmax.f32 %v4773, 0.0
        %v5470 = vmax.f32 %v4775, 0.0
        %v5471 = vmax.f32 %v2760, 0.0
        %v5472 = vmax.f32 %v2762, 0.0
        %v5473 = vmax.f32 %v3433, 0.0
        %v5474 = vmax.f32 %v3435, 0.0
        %v5475 = vmax.f32 %v4106, 0.0
        %v5476 = vmax.f32 %v4108, 0.0
        %v5477 = vmax.f32 %v4779, 0.0
        %v5478 = vmax.f32 %v4781, 0.0
        %v5479 = vmax.f32 %v2764, 0.0
        %v5480 = vmax.f32 %v2766, 0.0
        %v5481 = vmax.f32 %v3437, 0.0
        %v5482 = vmax.f32 %v3439, 0.0
        %v5483 = vmax.f32 %v4110, 0.0
        %v5484 = vmax.f32 %v4112, 0.0
        %v5485 = vmax.f32 %v4783, 0.0
        %v5486 = vmax.f32 %v4785, 0.0
        %v5487 = vmax.f32 %v2770, 0.0
        %v5488 = vmax.f32 %v2772, 0.0
        %v5489 = vmax.f32 %v3443, 0.0
        %v5490 = vmax.f32 %v3445, 0.0
        %v5491 = vmax.f32 %v4116, 0.0
        %v5492 = vmax.f32 %v4118, 0.0
        %v5493 = vmax.f32 %v4789, 0.0
        %v5494 = vmax.f32 %v4791, 0.0
        %v5495 = vmax.f32 %v2774, 0.0
        %v5496 = vmax.f32 %v2776, 0.0
        %v5497 = vmax.f32 %v3447, 0.0
        %v5498 = vmax.f32 %v3449, 0.0
        %v5499 = vmax.f32 %v4120, 0.0
        %v5500 = vmax.f32 %v4122, 0.0
        %v5501 = vmax.f32 %v4793, 0.0
        %v5502 = vmax.f32 %v4795, 0.0
        %v5503 = vmax.f32 %v2780, 0.0
        %v5504 = vmax.f32 %v2782, 0.0
        %v5505 = vmax.f32 %v3453, 0.0
        %v5506 = vmax.f32 %v3455, 0.0
        %v5507 = vmax.f32 %v4126, 0.0
        %v5508 = vmax.f32 %v4128, 0.0
        %v5509 = vmax.f32 %v4799, 0.0
        %v5510 = vmax.f32 %v4801, 0.0
        %v5511 = vmax.f32 %v2784, 0.0
        %v5512 = vmax.f32 %v2786, 0.0
        %v5513 = vmax.f32 %v3457, 0.0
        %v5514 = vmax.f32 %v3459, 0.0
        %v5515 = vmax.f32 %v4130, 0.0
        %v5516 = vmax.f32 %v4132, 0.0
        %v5517 = vmax.f32 %v4803, 0.0
        %v5518 = vmax.f32 %v4805, 0.0
        %v5519 = vmax.f32 %v2790, 0.0
        %v5520 = vmax.f32 %v2792, 0.0
        %v5521 = vmax.f32 %v3463, 0.0
        %v5522 = vmax.f32 %v3465, 0.0
        %v5523 = vmax.f32 %v4136, 0.0
        %v5524 = vmax.f32 %v4138, 0.0
        %v5525 = vmax.f32 %v4809, 0.0
        %v5526 = vmax.f32 %v4811, 0.0
        %v5527 = vmax.f32 %v2794, 0.0
        %v5528 = vmax.f32 %v2796, 0.0
        %v5529 = vmax.f32 %v3467, 0.0
        %v5530 = vmax.f32 %v3469, 0.0
        %v5531 = vmax.f32 %v4140, 0.0
        %v5532 = vmax.f32 %v4142, 0.0
        %v5533 = vmax.f32 %v4813, 0.0
        %v5534 = vmax.f32 %v4815, 0.0
        %v5535 = vmax.f32 %v2800, 0.0
        %v5536 = vmax.f32 %v2802, 0.0
        %v5537 = vmax.f32 %v3473, 0.0
        %v5538 = vmax.f32 %v3475, 0.0
        %v5539 = vmax.f32 %v4146, 0.0
        %v5540 = vmax.f32 %v4148, 0.0
        %v5541 = vmax.f32 %v4819, 0.0
        %v5542 = vmax.f32 %v4821, 0.0
        %v5543 = vmax.f32 %v2804, 0.0
        %v5544 = vmax.f32 %v2806, 0.0
        %v5545 = vmax.f32 %v3477, 0.0
        %v5546 = vmax.f32 %v3479, 0.0
        %v5547 = vmax.f32 %v4150, 0.0
        %v5548 = vmax.f32 %v4152, 0.0
        %v5549 = vmax.f32 %v4823, 0.0
        %v5550 = vmax.f32 %v4825, 0.0
        %v5551 = vmax.f32 %v2810, 0.0
        %v5552 = vmax.f32 %v2812, 0.0
        %v5553 = vmax.f32 %v3483, 0.0
        %v5554 = vmax.f32 %v3485, 0.0
        %v5555 = vmax.f32 %v4156, 0.0
        %v5556 = vmax.f32 %v4158, 0.0
        %v5557 = vmax.f32 %v4829, 0.0
        %v5558 = vmax.f32 %v4831, 0.0
        %v5559 = vmax.f32 %v2814, 0.0
        %v5560 = vmax.f32 %v2816, 0.0
        %v5561 = vmax.f32 %v3487, 0.0
        %v5562 = vmax.f32 %v3489, 0.0
        %v5563 = vmax.f32 %v4160, 0.0
        %v5564 = vmax.f32 %v4162, 0.0
        %v5565 = vmax.f32 %v4833, 0.0
        %v5566 = vmax.f32 %v4835, 0.0
        %v5567 = vmax.f32 %v2820, 0.0
        %v5568 = vmax.f32 %v2822, 0.0
        %v5569 = vmax.f32 %v3493, 0.0
        %v5570 = vmax.f32 %v3495, 0.0
        %v5571 = vmax.f32 %v4166, 0.0
        %v5572 = vmax.f32 %v4168, 0.0
        %v5573 = vmax.f32 %v4839, 0.0
        %v5574 = vmax.f32 %v4841, 0.0
        %v5575 = vmax.f32 %v2824, 0.0
        %v5576 = vmax.f32 %v2826, 0.0
        %v5577 = vmax.f32 %v3497, 0.0
        %v5578 = vmax.f32 %v3499, 0.0
        %v5579 = vmax.f32 %v4170, 0.0
        %v5580 = vmax.f32 %v4172, 0.0
        %v5581 = vmax.f32 %v4843, 0.0
        %v5582 = vmax.f32 %v4845, 0.0
        %v5583 = vmax.f32 %v2830, 0.0
        %v5584 = vmax.f32 %v2832, 0.0
        %v5585 = vmax.f32 %v3503, 0.0
        %v5586 = vmax.f32 %v3505, 0.0
        %v5587 = vmax.f32 %v4176, 0.0
        %v5588 = vmax.f32 %v4178, 0.0
        %v5589 = vmax.f32 %v4849, 0.0
        %v5590 = vmax.f32 %v4851, 0.0
        %v5591 = vmax.f32 %v2834, 0.0
        %v5592 = vmax.f32 %v2836, 0.0
        %v5593 = vmax.f32 %v3507, 0.0
        %v5594 = vmax.f32 %v3509, 0.0
        %v5595 = vmax.f32 %v4180, 0.0
        %v5596 = vmax.f32 %v4182, 0.0
        %v5597 = vmax.f32 %v4853, 0.0
        %v5598 = vmax.f32 %v4855, 0.0
        %v5599 = vmax.f32 %v2840, 0.0
        %v5600 = vmax.f32 %v2842, 0.0
        %v5601 = vmax.f32 %v3513, 0.0
        %v5602 = vmax.f32 %v3515, 0.0
        %v5603 = vmax.f32 %v4186, 0.0
        %v5604 = vmax.f32 %v4188, 0.0
        %v5605 = vmax.f32 %v4859, 0.0
        %v5606 = vmax.f32 %v4861, 0.0
        %v5607 = vmax.f32 %v2844, 0.0
        %v5608 = vmax.f32 %v2846, 0.0
        %v5609 = vmax.f32 %v3517, 0.0
        %v5610 = vmax.f32 %v3519, 0.0
        %v5611 = vmax.f32 %v4190, 0.0
        %v5612 = vmax.f32 %v4192, 0.0
        %v5613 = vmax.f32 %v4863, 0.0
        %v5614 = vmax.f32 %v4865, 0.0
        %v5615 = vmax.f32 %v2850, 0.0
        %v5616 = vmax.f32 %v2852, 0.0
        %v5617 = vmax.f32 %v3523, 0.0
        %v5618 = vmax.f32 %v3525, 0.0
        %v5619 = vmax.f32 %v4196, 0.0
        %v5620 = vmax.f32 %v4198, 0.0
        %v5621 = vmax.f32 %v4869, 0.0
        %v5622 = vmax.f32 %v4871, 0.0
        %v5623 = vmax.f32 %v2854, 0.0
        %v5624 = vmax.f32 %v2856, 0.0
        %v5625 = vmax.f32 %v3527, 0.0
        %v5626 = vmax.f32 %v3529, 0.0
        %v5627 = vmax.f32 %v4200, 0.0
        %v5628 = vmax.f32 %v4202, 0.0
        %v5629 = vmax.f32 %v4873, 0.0
        %v5630 = vmax.f32 %v4875, 0.0
        %v5631 = vmax.f32 %v2860, 0.0
        %v5632 = vmax.f32 %v2862, 0.0
        %v5633 = vmax.f32 %v3533, 0.0
        %v5634 = vmax.f32 %v3535, 0.0
        %v5635 = vmax.f32 %v4206, 0.0
        %v5636 = vmax.f32 %v4208, 0.0
        %v5637 = vmax.f32 %v4879, 0.0
        %v5638 = vmax.f32 %v4881, 0.0
        %v5639 = vmax.f32 %v2864, 0.0
        %v5640 = vmax.f32 %v2866, 0.0
        %v5641 = vmax.f32 %v3537, 0.0
        %v5642 = vmax.f32 %v3539, 0.0
        %v5643 = vmax.f32 %v4210, 0.0
        %v5644 = vmax.f32 %v4212, 0.0
        %v5645 = vmax.f32 %v4883, 0.0
        %v5646 = vmax.f32 %v4885, 0.0
        %v5647 = vmax.f32 %v2870, 0.0
        %v5648 = vmax.f32 %v2872, 0.0
        %v5649 = vmax.f32 %v3543, 0.0
        %v5650 = vmax.f32 %v3545, 0.0
        %v5651 = vmax.f32 %v4216, 0.0
        %v5652 = vmax.f32 %v4218, 0.0
        %v5653 = vmax.f32 %v4889, 0.0
        %v5654 = vmax.f32 %v4891, 0.0
        %v5655 = vmax.f32 %v2874, 0.0
        %v5656 = vmax.f32 %v2876, 0.0
        %v5657 = vmax.f32 %v3547, 0.0
        %v5658 = vmax.f32 %v3549, 0.0
        %v5659 = vmax.f32 %v4220, 0.0
        %v5660 = vmax.f32 %v4222, 0.0
        %v5661 = vmax.f32 %v4893, 0.0
        %v5662 = vmax.f32 %v4895, 0.0
        %v5663 = vmax.f32 %v2880, 0.0
        %v5664 = vmax.f32 %v2882, 0.0
        %v5665 = vmax.f32 %v3553, 0.0
        %v5666 = vmax.f32 %v3555, 0.0
        %v5667 = vmax.f32 %v4226, 0.0
        %v5668 = vmax.f32 %v4228, 0.0
        %v5669 = vmax.f32 %v4899, 0.0
        %v5670 = vmax.f32 %v4901, 0.0
        %v5671 = vmax.f32 %v2884, 0.0
        %v5672 = vmax.f32 %v2886, 0.0
        %v5673 = vmax.f32 %v3557, 0.0
        %v5674 = vmax.f32 %v3559, 0.0
        %v5675 = vmax.f32 %v4230, 0.0
        %v5676 = vmax.f32 %v4232, 0.0
        %v5677 = vmax.f32 %v4903, 0.0
        %v5678 = vmax.f32 %v4905, 0.0
        %v5679 = vmax.f32 %v2890, 0.0
        %v5680 = vmax.f32 %v2892, 0.0
        %v5681 = vmax.f32 %v3563, 0.0
        %v5682 = vmax.f32 %v3565, 0.0
        %v5683 = vmax.f32 %v4236, 0.0
        %v5684 = vmax.f32 %v4238, 0.0
        %v5685 = vmax.f32 %v4909, 0.0
        %v5686 = vmax.f32 %v4911, 0.0
        %v5687 = vmax.f32 %v2894, 0.0
        %v5688 = vmax.f32 %v2896, 0.0
        %v5689 = vmax.f32 %v3567, 0.0
        %v5690 = vmax.f32 %v3569, 0.0
        %v5691 = vmax.f32 %v4240, 0.0
        %v5692 = vmax.f32 %v4242, 0.0
        %v5693 = vmax.f32 %v4913, 0.0
        %v5694 = vmax.f32 %v4915, 0.0
        %v5695 = vmax.f32 %v2900, 0.0
        %v5696 = vmax.f32 %v2902, 0.0
        %v5697 = vmax.f32 %v3573, 0.0
        %v5698 = vmax.f32 %v3575, 0.0
        %v5699 = vmax.f32 %v4246, 0.0
        %v5700 = vmax.f32 %v4248, 0.0
        %v5701 = vmax.f32 %v4919, 0.0
        %v5702 = vmax.f32 %v4921, 0.0
        %v5703 = vmax.f32 %v2904, 0.0
        %v5704 = vmax.f32 %v2906, 0.0
        %v5705 = vmax.f32 %v3577, 0.0
        %v5706 = vmax.f32 %v3579, 0.0
        %v5707 = vmax.f32 %v4250, 0.0
        %v5708 = vmax.f32 %v4252, 0.0
        %v5709 = vmax.f32 %v4923, 0.0
        %v5710 = vmax.f32 %v4925, 0.0
        %v5711 = vmax.f32 %v2910, 0.0
        %v5712 = vmax.f32 %v2912, 0.0
        %v5713 = vmax.f32 %v3583, 0.0
        %v5714 = vmax.f32 %v3585, 0.0
        %v5715 = vmax.f32 %v4256, 0.0
        %v5716 = vmax.f32 %v4258, 0.0
        %v5717 = vmax.f32 %v4929, 0.0
        %v5718 = vmax.f32 %v4931, 0.0
        %v5719 = vmax.f32 %v2914, 0.0
        %v5720 = vmax.f32 %v2916, 0.0
        %v5721 = vmax.f32 %v3587, 0.0
        %v5722 = vmax.f32 %v3589, 0.0
        %v5723 = vmax.f32 %v4260, 0.0
        %v5724 = vmax.f32 %v4262, 0.0
        %v5725 = vmax.f32 %v4933, 0.0
        %v5726 = vmax.f32 %v4935, 0.0
        %v5727 = vmax.f32 %v2920, 0.0
        %v5728 = vmax.f32 %v2922, 0.0
        %v5729 = vmax.f32 %v3593, 0.0
        %v5730 = vmax.f32 %v3595, 0.0
        %v5731 = vmax.f32 %v4266, 0.0
        %v5732 = vmax.f32 %v4268, 0.0
        %v5733 = vmax.f32 %v4939, 0.0
        %v5734 = vmax.f32 %v4941, 0.0
        %v5735 = vmax.f32 %v2924, 0.0
        %v5736 = vmax.f32 %v2926, 0.0
        %v5737 = vmax.f32 %v3597, 0.0
        %v5738 = vmax.f32 %v3599, 0.0
        %v5739 = vmax.f32 %v4270, 0.0
        %v5740 = vmax.f32 %v4272, 0.0
        %v5741 = vmax.f32 %v4943, 0.0
        %v5742 = vmax.f32 %v4945, 0.0
        %v5743 = vmax.f32 %v2930, 0.0
        %v5744 = vmax.f32 %v2932, 0.0
        %v5745 = vmax.f32 %v3603, 0.0
        %v5746 = vmax.f32 %v3605, 0.0
        %v5747 = vmax.f32 %v4276, 0.0
        %v5748 = vmax.f32 %v4278, 0.0
        %v5749 = vmax.f32 %v4949, 0.0
        %v5750 = vmax.f32 %v4951, 0.0
        %v5751 = vmax.f32 %v2934, 0.0
        %v5752 = vmax.f32 %v2936, 0.0
        %v5753 = vmax.f32 %v3607, 0.0
        %v5754 = vmax.f32 %v3609, 0.0
        %v5755 = vmax.f32 %v4280, 0.0
        %v5756 = vmax.f32 %v4282, 0.0
        %v5757 = vmax.f32 %v4953, 0.0
        %v5758 = vmax.f32 %v4955, 0.0
        %v5759 = vmax.f32 %v2940, 0.0
        %v5760 = vmax.f32 %v2942, 0.0
        %v5761 = vmax.f32 %v3613, 0.0
        %v5762 = vmax.f32 %v3615, 0.0
        %v5763 = vmax.f32 %v4286, 0.0
        %v5764 = vmax.f32 %v4288, 0.0
        %v5765 = vmax.f32 %v4959, 0.0
        %v5766 = vmax.f32 %v4961, 0.0
        %v5767 = vmax.f32 %v2944, 0.0
        %v5768 = vmax.f32 %v2946, 0.0
        %v5769 = vmax.f32 %v3617, 0.0
        %v5770 = vmax.f32 %v3619, 0.0
        %v5771 = vmax.f32 %v4290, 0.0
        %v5772 = vmax.f32 %v4292, 0.0
        %v5773 = vmax.f32 %v4963, 0.0
        %v5774 = vmax.f32 %v4965, 0.0
        %v5775 = vmax.f32 %v2950, 0.0
        %v5776 = vmax.f32 %v2952, 0.0
        %v5777 = vmax.f32 %v3623, 0.0
        %v5778 = vmax.f32 %v3625, 0.0
        %v5779 = vmax.f32 %v4296, 0.0
        %v5780 = vmax.f32 %v4298, 0.0
        %v5781 = vmax.f32 %v4969, 0.0
        %v5782 = vmax.f32 %v4971, 0.0
        %v5783 = vmax.f32 %v2954, 0.0
        %v5784 = vmax.f32 %v2956, 0.0
        %v5785 = vmax.f32 %v3627, 0.0
        %v5786 = vmax.f32 %v3629, 0.0
        %v5787 = vmax.f32 %v4300, 0.0
        %v5788 = vmax.f32 %v4302, 0.0
        %v5789 = vmax.f32 %v4973, 0.0
        %v5790 = vmax.f32 %v4975, 0.0
        %v5791 = vmax.f32 %v2960, 0.0
        %v5792 = vmax.f32 %v2962, 0.0
        %v5793 = vmax.f32 %v3633, 0.0
        %v5794 = vmax.f32 %v3635, 0.0
        %v5795 = vmax.f32 %v4306, 0.0
        %v5796 = vmax.f32 %v4308, 0.0
        %v5797 = vmax.f32 %v4979, 0.0
        %v5798 = vmax.f32 %v4981, 0.0
        %v5799 = vmax.f32 %v2964, 0.0
        %v5800 = vmax.f32 %v2966, 0.0
        %v5801 = vmax.f32 %v3637, 0.0
        %v5802 = vmax.f32 %v3639, 0.0
        %v5803 = vmax.f32 %v4310, 0.0
        %v5804 = vmax.f32 %v4312, 0.0
        %v5805 = vmax.f32 %v4983, 0.0
        %v5806 = vmax.f32 %v4985, 0.0
        %v5807 = vmax.f32 %v2970, 0.0
        %v5808 = vmax.f32 %v2972, 0.0
        %v5809 = vmax.f32 %v3643, 0.0
        %v5810 = vmax.f32 %v3645, 0.0
        %v5811 = vmax.f32 %v4316, 0.0
        %v5812 = vmax.f32 %v4318, 0.0
        %v5813 = vmax.f32 %v4989, 0.0
        %v5814 = vmax.f32 %v4991, 0.0
        %v5815 = vmax.f32 %v2974, 0.0
        %v5816 = vmax.f32 %v2976, 0.0
        %v5817 = vmax.f32 %v3647, 0.0
        %v5818 = vmax.f32 %v3649, 0.0
        %v5819 = vmax.f32 %v4320, 0.0
        %v5820 = vmax.f32 %v4322, 0.0
        %v5821 = vmax.f32 %v4993, 0.0
        %v5822 = vmax.f32 %v4995, 0.0
        %v5823 = vmax.f32 %v2980, 0.0
        %v5824 = vmax.f32 %v2982, 0.0
        %v5825 = vmax.f32 %v3653, 0.0
        %v5826 = vmax.f32 %v3655, 0.0
        %v5827 = vmax.f32 %v4326, 0.0
        %v5828 = vmax.f32 %v4328, 0.0
        %v5829 = vmax.f32 %v4999, 0.0
        %v5830 = vmax.f32 %v5001, 0.0
        %v5831 = vmax.f32 %v2984, 0.0
        %v5832 = vmax.f32 %v2986, 0.0
        %v5833 = vmax.f32 %v3657, 0.0
        %v5834 = vmax.f32 %v3659, 0.0
        %v5835 = vmax.f32 %v4330, 0.0
        %v5836 = vmax.f32 %v4332, 0.0
        %v5837 = vmax.f32 %v5003, 0.0
        %v5838 = vmax.f32 %v5005, 0.0
        %v5839 = vmax.f32 %v2990, 0.0
        %v5840 = vmax.f32 %v2992, 0.0
        %v5841 = vmax.f32 %v3663, 0.0
        %v5842 = vmax.f32 %v3665, 0.0
        %v5843 = vmax.f32 %v4336, 0.0
        %v5844 = vmax.f32 %v4338, 0.0
        %v5845 = vmax.f32 %v5009, 0.0
        %v5846 = vmax.f32 %v5011, 0.0
        %v5847 = vmax.f32 %v2994, 0.0
        %v5848 = vmax.f32 %v2996, 0.0
        %v5849 = vmax.f32 %v3667, 0.0
        %v5850 = vmax.f32 %v3669, 0.0
        %v5851 = vmax.f32 %v4340, 0.0
        %v5852 = vmax.f32 %v4342, 0.0
        %v5853 = vmax.f32 %v5013, 0.0
        %v5854 = vmax.f32 %v5015, 0.0
        %v5855 = vmax.f32 %v3000, 0.0
        %v5856 = vmax.f32 %v3002, 0.0
        %v5857 = vmax.f32 %v3673, 0.0
        %v5858 = vmax.f32 %v3675, 0.0
        %v5859 = vmax.f32 %v4346, 0.0
        %v5860 = vmax.f32 %v4348, 0.0
        %v5861 = vmax.f32 %v5019, 0.0
        %v5862 = vmax.f32 %v5021, 0.0
        %v5863 = vmax.f32 %v3004, 0.0
        %v5864 = vmax.f32 %v3006, 0.0
        %v5865 = vmax.f32 %v3677, 0.0
        %v5866 = vmax.f32 %v3679, 0.0
        %v5867 = vmax.f32 %v4350, 0.0
        %v5868 = vmax.f32 %v4352, 0.0
        %v5869 = vmax.f32 %v5023, 0.0
        %v5870 = vmax.f32 %v5025, 0.0
        %v5871 = vmax.f32 %v3010, 0.0
        %v5872 = vmax.f32 %v3012, 0.0
        %v5873 = vmax.f32 %v3683, 0.0
        %v5874 = vmax.f32 %v3685, 0.0
        %v5875 = vmax.f32 %v4356, 0.0
        %v5876 = vmax.f32 %v4358, 0.0
        %v5877 = vmax.f32 %v5029, 0.0
        %v5878 = vmax.f32 %v5031, 0.0
        %v5879 = vmax.f32 %v3014, 0.0
        %v5880 = vmax.f32 %v3016, 0.0
        %v5881 = vmax.f32 %v3687, 0.0
        %v5882 = vmax.f32 %v3689, 0.0
        %v5883 = vmax.f32 %v4360, 0.0
        %v5884 = vmax.f32 %v4362, 0.0
        %v5885 = vmax.f32 %v5033, 0.0
        %v5886 = vmax.f32 %v5035, 0.0
        %v5887 = vmax.f32 %v3020, 0.0
        %v5888 = vmax.f32 %v3022, 0.0
        %v5889 = vmax.f32 %v3693, 0.0
        %v5890 = vmax.f32 %v3695, 0.0
        %v5891 = vmax.f32 %v4366, 0.0
        %v5892 = vmax.f32 %v4368, 0.0
        %v5893 = vmax.f32 %v5039, 0.0
        %v5894 = vmax.f32 %v5041, 0.0
        %v5895 = vmax.f32 %v3024, 0.0
        %v5896 = vmax.f32 %v3026, 0.0
        %v5897 = vmax.f32 %v3697, 0.0
        %v5898 = vmax.f32 %v3699, 0.0
        %v5899 = vmax.f32 %v4370, 0.0
        %v5900 = vmax.f32 %v4372, 0.0
        %v5901 = vmax.f32 %v5043, 0.0
        %v5902 = vmax.f32 %v5045, 0.0
        %v5903 = vmax.f32 %v3030, 0.0
        %v5904 = vmax.f32 %v3032, 0.0
        %v5905 = vmax.f32 %v3703, 0.0
        %v5906 = vmax.f32 %v3705, 0.0
        %v5907 = vmax.f32 %v4376, 0.0
        %v5908 = vmax.f32 %v4378, 0.0
        %v5909 = vmax.f32 %v5049, 0.0
        %v5910 = vmax.f32 %v5051, 0.0
        %v5911 = vmax.f32 %v3034, 0.0
        %v5912 = vmax.f32 %v3036, 0.0
        %v5913 = vmax.f32 %v3707, 0.0
        %v5914 = vmax.f32 %v3709, 0.0
        %v5915 = vmax.f32 %v4380, 0.0
        %v5916 = vmax.f32 %v4382, 0.0
        %v5917 = vmax.f32 %v5053, 0.0
        %v5918 = vmax.f32 %v5055, 0.0
        %v5919 = vmax.f32 %v3040, 0.0
        %v5920 = vmax.f32 %v3042, 0.0
        %v5921 = vmax.f32 %v3713, 0.0
        %v5922 = vmax.f32 %v3715, 0.0
        %v5923 = vmax.f32 %v4386, 0.0
        %v5924 = vmax.f32 %v4388, 0.0
        %v5925 = vmax.f32 %v5059, 0.0
        %v5926 = vmax.f32 %v5061, 0.0
        %v5927 = vmax.f32 %v3044, 0.0
        %v5928 = vmax.f32 %v3046, 0.0
        %v5929 = vmax.f32 %v3717, 0.0
        %v5930 = vmax.f32 %v3719, 0.0
        %v5931 = vmax.f32 %v4390, 0.0
        %v5932 = vmax.f32 %v4392, 0.0
        %v5933 = vmax.f32 %v5063, 0.0
        %v5934 = vmax.f32 %v5065, 0.0
        %v5935 = vmax.f32 %v3050, 0.0
        %v5936 = vmax.f32 %v3052, 0.0
        %v5937 = vmax.f32 %v3723, 0.0
        %v5938 = vmax.f32 %v3725, 0.0
        %v5939 = vmax.f32 %v4396, 0.0
        %v5940 = vmax.f32 %v4398, 0.0
        %v5941 = vmax.f32 %v5069, 0.0
        %v5942 = vmax.f32 %v5071, 0.0
        %v5943 = vmax.f32 %v3054, 0.0
        %v5944 = vmax.f32 %v3056, 0.0
        %v5945 = vmax.f32 %v3727, 0.0
        %v5946 = vmax.f32 %v3729, 0.0
        %v5947 = vmax.f32 %v4400, 0.0
        %v5948 = vmax.f32 %v4402, 0.0
        %v5949 = vmax.f32 %v5073, 0.0
        %v5950 = vmax.f32 %v5075, 0.0
        %v5951 = vmax.f32 %v3060, 0.0
        %v5952 = vmax.f32 %v3062, 0.0
        %v5953 = vmax.f32 %v3733, 0.0
        %v5954 = vmax.f32 %v3735, 0.0
        %v5955 = vmax.f32 %v4406, 0.0
        %v5956 = vmax.f32 %v4408, 0.0
        %v5957 = vmax.f32 %v5079, 0.0
        %v5958 = vmax.f32 %v5081, 0.0
        %v5959 = vmax.f32 %v3064, 0.0
        %v5960 = vmax.f32 %v3066, 0.0
        %v5961 = vmax.f32 %v3737, 0.0
        %v5962 = vmax.f32 %v3739, 0.0
        %v5963 = vmax.f32 %v4410, 0.0
        %v5964 = vmax.f32 %v4412, 0.0
        %v5965 = vmax.f32 %v5083, 0.0
        %v5966 = vmax.f32 %v5085, 0.0
        %v5967 = vmax.f32 %v3070, 0.0
        %v5968 = vmax.f32 %v3072, 0.0
        %v5969 = vmax.f32 %v3743, 0.0
        %v5970 = vmax.f32 %v3745, 0.0
        %v5971 = vmax.f32 %v4416, 0.0
        %v5972 = vmax.f32 %v4418, 0.0
        %v5973 = vmax.f32 %v5089, 0.0
        %v5974 = vmax.f32 %v5091, 0.0
        %v5975 = vmax.f32 %v3074, 0.0
        %v5976 = vmax.f32 %v3076, 0.0
        %v5977 = vmax.f32 %v3747, 0.0
        %v5978 = vmax.f32 %v3749, 0.0
        %v5979 = vmax.f32 %v4420, 0.0
        %v5980 = vmax.f32 %v4422, 0.0
        %v5981 = vmax.f32 %v5093, 0.0
        %v5982 = vmax.f32 %v5095, 0.0
        %v5983 = vmax.f32 %v3080, 0.0
        %v5984 = vmax.f32 %v3082, 0.0
        %v5985 = vmax.f32 %v3753, 0.0
        %v5986 = vmax.f32 %v3755, 0.0
        %v5987 = vmax.f32 %v4426, 0.0
        %v5988 = vmax.f32 %v4428, 0.0
        %v5989 = vmax.f32 %v5099, 0.0
        %v5990 = vmax.f32 %v5101, 0.0
        %v5991 = vmax.f32 %v3084, 0.0
        %v5992 = vmax.f32 %v3086, 0.0
        %v5993 = vmax.f32 %v3757, 0.0
        %v5994 = vmax.f32 %v3759, 0.0
        %v5995 = vmax.f32 %v4430, 0.0
        %v5996 = vmax.f32 %v4432, 0.0
        %v5997 = vmax.f32 %v5103, 0.0
        %v5998 = vmax.f32 %v5105, 0.0
        %v5999 = vmax.f32 %v3090, 0.0
        %v6000 = vmax.f32 %v3092, 0.0
        %v6001 = vmax.f32 %v3763, 0.0
        %v6002 = vmax.f32 %v3765, 0.0
        %v6003 = vmax.f32 %v4436, 0.0
        %v6004 = vmax.f32 %v4438, 0.0
        %v6005 = vmax.f32 %v5109, 0.0
        %v6006 = vmax.f32 %v5111, 0.0
        %v6007 = vmax.f32 %v3094, 0.0
        %v6008 = vmax.f32 %v3096, 0.0
        %v6009 = vmax.f32 %v3767, 0.0
        %v6010 = vmax.f32 %v3769, 0.0
        %v6011 = vmax.f32 %v4440, 0.0
        %v6012 = vmax.f32 %v4442, 0.0
        %v6013 = vmax.f32 %v5113, 0.0
        %v6014 = vmax.f32 %v5115, 0.0
        %v6015 = vmax.f32 %v3100, 0.0
        %v6016 = vmax.f32 %v3102, 0.0
        %v6017 = vmax.f32 %v3773, 0.0
        %v6018 = vmax.f32 %v3775, 0.0
        %v6019 = vmax.f32 %v4446, 0.0
        %v6020 = vmax.f32 %v4448, 0.0
        %v6021 = vmax.f32 %v5119, 0.0
        %v6022 = vmax.f32 %v5121, 0.0
        %v6023 = vmax.f32 %v3104, 0.0
        %v6024 = vmax.f32 %v3106, 0.0
        %v6025 = vmax.f32 %v3777, 0.0
        %v6026 = vmax.f32 %v3779, 0.0
        %v6027 = vmax.f32 %v4450, 0.0
        %v6028 = vmax.f32 %v4452, 0.0
        %v6029 = vmax.f32 %v5123, 0.0
        %v6030 = vmax.f32 %v5125, 0.0
        %v6031 = vmax.f32 %v3110, 0.0
        %v6032 = vmax.f32 %v3112, 0.0
        %v6033 = vmax.f32 %v3783, 0.0
        %v6034 = vmax.f32 %v3785, 0.0
        %v6035 = vmax.f32 %v4456, 0.0
        %v6036 = vmax.f32 %v4458, 0.0
        %v6037 = vmax.f32 %v5129, 0.0
        %v6038 = vmax.f32 %v5131, 0.0
        %v6039 = vmax.f32 %v3114, 0.0
        %v6040 = vmax.f32 %v3116, 0.0
        %v6041 = vmax.f32 %v3787, 0.0
        %v6042 = vmax.f32 %v3789, 0.0
        %v6043 = vmax.f32 %v4460, 0.0
        %v6044 = vmax.f32 %v4462, 0.0
        %v6045 = vmax.f32 %v5133, 0.0
        %v6046 = vmax.f32 %v5135, 0.0
        %v6047 = vmax.f32 %v3120, 0.0
        %v6048 = vmax.f32 %v3122, 0.0
        %v6049 = vmax.f32 %v3793, 0.0
        %v6050 = vmax.f32 %v3795, 0.0
        %v6051 = vmax.f32 %v4466, 0.0
        %v6052 = vmax.f32 %v4468, 0.0
        %v6053 = vmax.f32 %v5139, 0.0
        %v6054 = vmax.f32 %v5141, 0.0
        %v6055 = vmax.f32 %v3124, 0.0
        %v6056 = vmax.f32 %v3126, 0.0
        %v6057 = vmax.f32 %v3797, 0.0
        %v6058 = vmax.f32 %v3799, 0.0
        %v6059 = vmax.f32 %v4470, 0.0
        %v6060 = vmax.f32 %v4472, 0.0
        %v6061 = vmax.f32 %v5143, 0.0
        %v6062 = vmax.f32 %v5145, 0.0
        %v6063 = vmax.f32 %v3130, 0.0
        %v6064 = vmax.f32 %v3132, 0.0
        %v6065 = vmax.f32 %v3803, 0.0
        %v6066 = vmax.f32 %v3805, 0.0
        %v6067 = vmax.f32 %v4476, 0.0
        %v6068 = vmax.f32 %v4478, 0.0
        %v6069 = vmax.f32 %v5149, 0.0
        %v6070 = vmax.f32 %v5151, 0.0
        %v6071 = vmax.f32 %v3134, 0.0
        %v6072 = vmax.f32 %v3136, 0.0
        %v6073 = vmax.f32 %v3807, 0.0
        %v6074 = vmax.f32 %v3809, 0.0
        %v6075 = vmax.f32 %v4480, 0.0
        %v6076 = vmax.f32 %v4482, 0.0
        %v6077 = vmax.f32 %v5153, 0.0
        %v6078 = vmax.f32 %v5155, 0.0
        %v6079 = vmax.f32 %v3140, 0.0
        %v6080 = vmax.f32 %v3142, 0.0
        %v6081 = vmax.f32 %v3813, 0.0
        %v6082 = vmax.f32 %v3815, 0.0
        %v6083 = vmax.f32 %v4486, 0.0
        %v6084 = vmax.f32 %v4488, 0.0
        %v6085 = vmax.f32 %v5159, 0.0
        %v6086 = vmax.f32 %v5161, 0.0
        %v6087 = vmax.f32 %v3144, 0.0
        %v6088 = vmax.f32 %v3146, 0.0
        %v6089 = vmax.f32 %v3817, 0.0
        %v6090 = vmax.f32 %v3819, 0.0
        %v6091 = vmax.f32 %v4490, 0.0
        %v6092 = vmax.f32 %v4492, 0.0
        %v6093 = vmax.f32 %v5163, 0.0
        %v6094 = vmax.f32 %v5165, 0.0
        %v6095 = vmax.f32 %v3150, 0.0
        %v6096 = vmax.f32 %v3152, 0.0
        %v6097 = vmax.f32 %v3823, 0.0
        %v6098 = vmax.f32 %v3825, 0.0
        %v6099 = vmax.f32 %v4496, 0.0
        %v6100 = vmax.f32 %v4498, 0.0
        %v6101 = vmax.f32 %v5169, 0.0
        %v6102 = vmax.f32 %v5171, 0.0
        %v6103 = vmax.f32 %v3154, 0.0
        %v6104 = vmax.f32 %v3156, 0.0
        %v6105 = vmax.f32 %v3827, 0.0
        %v6106 = vmax.f32 %v3829, 0.0
        %v6107 = vmax.f32 %v4500, 0.0
        %v6108 = vmax.f32 %v4502, 0.0
        %v6109 = vmax.f32 %v5173, 0.0
        %v6110 = vmax.f32 %v5175, 0.0
        %v6111 = vmax.f32 %v3160, 0.0
        %v6112 = vmax.f32 %v3162, 0.0
        %v6113 = vmax.f32 %v3833, 0.0
        %v6114 = vmax.f32 %v3835, 0.0
        %v6115 = vmax.f32 %v4506, 0.0
        %v6116 = vmax.f32 %v4508, 0.0
        %v6117 = vmax.f32 %v5179, 0.0
        %v6118 = vmax.f32 %v5181, 0.0
        %v6119 = vmax.f32 %v3164, 0.0
        %v6120 = vmax.f32 %v3166, 0.0
        %v6121 = vmax.f32 %v3837, 0.0
        %v6122 = vmax.f32 %v3839, 0.0
        %v6123 = vmax.f32 %v4510, 0.0
        %v6124 = vmax.f32 %v4512, 0.0
        %v6125 = vmax.f32 %v5183, 0.0
        %v6126 = vmax.f32 %v5185, 0.0
        %v6127 = vmax.f32 %v3170, 0.0
        %v6128 = vmax.f32 %v3172, 0.0
        %v6129 = vmax.f32 %v3843, 0.0
        %v6130 = vmax.f32 %v3845, 0.0
        %v6131 = vmax.f32 %v4516, 0.0
        %v6132 = vmax.f32 %v4518, 0.0
        %v6133 = vmax.f32 %v5189, 0.0
        %v6134 = vmax.f32 %v5191, 0.0
        %v6135 = vmax.f32 %v3174, 0.0
        %v6136 = vmax.f32 %v3176, 0.0
        %v6137 = vmax.f32 %v3847, 0.0
        %v6138 = vmax.f32 %v3849, 0.0
        %v6139 = vmax.f32 %v4520, 0.0
        %v6140 = vmax.f32 %v4522, 0.0
        %v6141 = vmax.f32 %v5193, 0.0
        %v6142 = vmax.f32 %v5195, 0.0
        %v6143 = vmax.f32 %v3180, 0.0
        %v6144 = vmax.f32 %v3182, 0.0
        %v6145 = vmax.f32 %v3853, 0.0
        %v6146 = vmax.f32 %v3855, 0.0
        %v6147 = vmax.f32 %v4526, 0.0
        %v6148 = vmax.f32 %v4528, 0.0
        %v6149 = vmax.f32 %v5199, 0.0
        %v6150 = vmax.f32 %v5201, 0.0
        %v6151 = vmax.f32 %v3184, 0.0
        %v6152 = vmax.f32 %v3186, 0.0
        %v6153 = vmax.f32 %v3857, 0.0
        %v6154 = vmax.f32 %v3859, 0.0
        %v6155 = vmax.f32 %v4530, 0.0
        %v6156 = vmax.f32 %v4532, 0.0
        %v6157 = vmax.f32 %v5203, 0.0
        %v6158 = vmax.f32 %v5205, 0.0
        %v6159 = vmax.f32 %v3190, 0.0
        %v6160 = vmax.f32 %v3192, 0.0
        %v6161 = vmax.f32 %v3863, 0.0
        %v6162 = vmax.f32 %v3865, 0.0
        %v6163 = vmax.f32 %v4536, 0.0
        %v6164 = vmax.f32 %v4538, 0.0
        %v6165 = vmax.f32 %v5209, 0.0
        %v6166 = vmax.f32 %v5211, 0.0
        %v6167 = vmax.f32 %v3194, 0.0
        %v6168 = vmax.f32 %v3196, 0.0
        %v6169 = vmax.f32 %v3867, 0.0
        %v6170 = vmax.f32 %v3869, 0.0
        %v6171 = vmax.f32 %v4540, 0.0
        %v6172 = vmax.f32 %v4542, 0.0
        %v6173 = vmax.f32 %v5213, 0.0
        %v6174 = vmax.f32 %v5215, 0.0
        %v6175 = vmax.f32 %v3200, 0.0
        %v6176 = vmax.f32 %v3202, 0.0
        %v6177 = vmax.f32 %v3873, 0.0
        %v6178 = vmax.f32 %v3875, 0.0
        %v6179 = vmax.f32 %v4546, 0.0
        %v6180 = vmax.f32 %v4548, 0.0
        %v6181 = vmax.f32 %v5219, 0.0
        %v6182 = vmax.f32 %v5221, 0.0
        %v6183 = vmax.f32 %v3204, 0.0
        %v6184 = vmax.f32 %v3206, 0.0
        %v6185 = vmax.f32 %v3877, 0.0
        %v6186 = vmax.f32 %v3879, 0.0
        %v6187 = vmax.f32 %v4550, 0.0
        %v6188 = vmax.f32 %v4552, 0.0
        %v6189 = vmax.f32 %v5223, 0.0
        %v6190 = vmax.f32 %v5225, 0.0
        %v6191 = vmax.f32 %v3210, 0.0
        %v6192 = vmax.f32 %v3212, 0.0
        %v6193 = vmax.f32 %v3883, 0.0
        %v6194 = vmax.f32 %v3885, 0.0
        %v6195 = vmax.f32 %v4556, 0.0
        %v6196 = vmax.f32 %v4558, 0.0
        %v6197 = vmax.f32 %v5229, 0.0
        %v6198 = vmax.f32 %v5231, 0.0
        %v6199 = vmax.f32 %v3214, 0.0
        %v6200 = vmax.f32 %v3216, 0.0
        %v6201 = vmax.f32 %v3887, 0.0
        %v6202 = vmax.f32 %v3889, 0.0
        %v6203 = vmax.f32 %v4560, 0.0
        %v6204 = vmax.f32 %v4562, 0.0
        %v6205 = vmax.f32 %v5233, 0.0
        %v6206 = vmax.f32 %v5235, 0.0
        %v6207 = vmax.f32 %v3220, 0.0
        %v6208 = vmax.f32 %v3222, 0.0
        %v6209 = vmax.f32 %v3893, 0.0
        %v6210 = vmax.f32 %v3895, 0.0
        %v6211 = vmax.f32 %v4566, 0.0
        %v6212 = vmax.f32 %v4568, 0.0
        %v6213 = vmax.f32 %v5239, 0.0
        %v6214 = vmax.f32 %v5241, 0.0
        %v6215 = vmax.f32 %v3224, 0.0
        %v6216 = vmax.f32 %v3226, 0.0
        %v6217 = vmax.f32 %v3897, 0.0
        %v6218 = vmax.f32 %v3899, 0.0
        %v6219 = vmax.f32 %v4570, 0.0
        %v6220 = vmax.f32 %v4572, 0.0
        %v6221 = vmax.f32 %v5243, 0.0
        %v6222 = vmax.f32 %v5245, 0.0
        %v6223 = vmax.f32 %v3230, 0.0
        %v6224 = vmax.f32 %v3232, 0.0
        %v6225 = vmax.f32 %v3903, 0.0
        %v6226 = vmax.f32 %v3905, 0.0
        %v6227 = vmax.f32 %v4576, 0.0
        %v6228 = vmax.f32 %v4578, 0.0
        %v6229 = vmax.f32 %v5249, 0.0
        %v6230 = vmax.f32 %v5251, 0.0
        %v6231 = vmax.f32 %v3234, 0.0
        %v6232 = vmax.f32 %v3236, 0.0
        %v6233 = vmax.f32 %v3907, 0.0
        %v6234 = vmax.f32 %v3909, 0.0
        %v6235 = vmax.f32 %v4580, 0.0
        %v6236 = vmax.f32 %v4582, 0.0
        %v6237 = vmax.f32 %v5253, 0.0
        %v6238 = vmax.f32 %v5255, 0.0
        %v6239 = vmax.f32 %v3240, 0.0
        %v6240 = vmax.f32 %v3242, 0.0
        %v6241 = vmax.f32 %v3913, 0.0
        %v6242 = vmax.f32 %v3915, 0.0
        %v6243 = vmax.f32 %v4586, 0.0
        %v6244 = vmax.f32 %v4588, 0.0
        %v6245 = vmax.f32 %v5259, 0.0
        %v6246 = vmax.f32 %v5261, 0.0
        %v6247 = vmax.f32 %v3244, 0.0
        %v6248 = vmax.f32 %v3246, 0.0
        %v6249 = vmax.f32 %v3917, 0.0
        %v6250 = vmax.f32 %v3919, 0.0
        %v6251 = vmax.f32 %v4590, 0.0
        %v6252 = vmax.f32 %v4592, 0.0
        %v6253 = vmax.f32 %v5263, 0.0
        %v6254 = vmax.f32 %v5265, 0.0
        %v6255 = vmax.f32 %v3250, 0.0
        %v6256 = vmax.f32 %v3252, 0.0
        %v6257 = vmax.f32 %v3923, 0.0
        %v6258 = vmax.f32 %v3925, 0.0
        %v6259 = vmax.f32 %v4596, 0.0
        %v6260 = vmax.f32 %v4598, 0.0
        %v6261 = vmax.f32 %v5269, 0.0
        %v6262 = vmax.f32 %v5271, 0.0
        %v6263 = vmax.f32 %v3254, 0.0
        %v6264 = vmax.f32 %v3256, 0.0
        %v6265 = vmax.f32 %v3927, 0.0
        %v6266 = vmax.f32 %v3929, 0.0
        %v6267 = vmax.f32 %v4600, 0.0
        %v6268 = vmax.f32 %v4602, 0.0
        %v6269 = vmax.f32 %v5273, 0.0
        %v6270 = vmax.f32 %v5275, 0.0
        %v6271 = vmax.f32 %v3260, 0.0
        %v6272 = vmax.f32 %v3262, 0.0
        %v6273 = vmax.f32 %v3933, 0.0
        %v6274 = vmax.f32 %v3935, 0.0
        %v6275 = vmax.f32 %v4606, 0.0
        %v6276 = vmax.f32 %v4608, 0.0
        %v6277 = vmax.f32 %v5279, 0.0
        %v6278 = vmax.f32 %v5281, 0.0
        %v6279 = vmax.f32 %v3264, 0.0
        %v6280 = vmax.f32 %v3266, 0.0
        %v6281 = vmax.f32 %v3937, 0.0
        %v6282 = vmax.f32 %v3939, 0.0
        %v6283 = vmax.f32 %v4610, 0.0
        %v6284 = vmax.f32 %v4612, 0.0
        %v6285 = vmax.f32 %v5283, 0.0
        %v6286 = vmax.f32 %v5285, 0.0
        %v6287 = vmax.f32 %v3270, 0.0
        %v6288 = vmax.f32 %v3272, 0.0
        %v6289 = vmax.f32 %v3943, 0.0
        %v6290 = vmax.f32 %v3945, 0.0
        %v6291 = vmax.f32 %v4616, 0.0
        %v6292 = vmax.f32 %v4618, 0.0
        %v6293 = vmax.f32 %v5289, 0.0
        %v6294 = vmax.f32 %v5291, 0.0
        %v6295 = vmax.f32 %v3274, 0.0
        %v6296 = vmax.f32 %v3276, 0.0
        %v6297 = vmax.f32 %v3947, 0.0
        %v6298 = vmax.f32 %v3949, 0.0
        %v6299 = vmax.f32 %v4620, 0.0
        %v6300 = vmax.f32 %v4622, 0.0
        %v6301 = vmax.f32 %v5293, 0.0
        %v6302 = vmax.f32 %v5295, 0.0
        %v6303 = vmax.f32 %v3280, 0.0
        %v6304 = vmax.f32 %v3282, 0.0
        %v6305 = vmax.f32 %v3953, 0.0
        %v6306 = vmax.f32 %v3955, 0.0
        %v6307 = vmax.f32 %v4626, 0.0
        %v6308 = vmax.f32 %v4628, 0.0
        %v6309 = vmax.f32 %v5299, 0.0
        %v6310 = vmax.f32 %v5301, 0.0
        %v6311 = vmax.f32 %v3284, 0.0
        %v6312 = vmax.f32 %v3286, 0.0
        %v6313 = vmax.f32 %v3957, 0.0
        %v6314 = vmax.f32 %v3959, 0.0
        %v6315 = vmax.f32 %v4630, 0.0
        %v6316 = vmax.f32 %v4632, 0.0
        %v6317 = vmax.f32 %v5303, 0.0
        %v6318 = vmax.f32 %v5305, 0.0
        %v6319 = vmax.f32 %v3290, 0.0
        %v6320 = vmax.f32 %v3292, 0.0
        %v6321 = vmax.f32 %v3963, 0.0
        %v6322 = vmax.f32 %v3965, 0.0
        %v6323 = vmax.f32 %v4636, 0.0
        %v6324 = vmax.f32 %v4638, 0.0
        %v6325 = vmax.f32 %v5309, 0.0
        %v6326 = vmax.f32 %v5311, 0.0
        %v6327 = vmax.f32 %v3294, 0.0
        %v6328 = vmax.f32 %v3296, 0.0
        %v6329 = vmax.f32 %v3967, 0.0
        %v6330 = vmax.f32 %v3969, 0.0
        %v6331 = vmax.f32 %v4640, 0.0
        %v6332 = vmax.f32 %v4642, 0.0
        %v6333 = vmax.f32 %v5313, 0.0
        %v6334 = vmax.f32 %v5315, 0.0
        %v6335 = vmax.f32 %v3300, 0.0
        %v6336 = vmax.f32 %v3302, 0.0
        %v6337 = vmax.f32 %v3973, 0.0
        %v6338 = vmax.f32 %v3975, 0.0
        %v6339 = vmax.f32 %v4646, 0.0
        %v6340 = vmax.f32 %v4648, 0.0
        %v6341 = vmax.f32 %v5319, 0.0
        %v6342 = vmax.f32 %v5321, 0.0
        %v6343 = vmax.f32 %v3304, 0.0
        %v6344 = vmax.f32 %v3306, 0.0
        %v6345 = vmax.f32 %v3977, 0.0
        %v6346 = vmax.f32 %v3979, 0.0
        %v6347 = vmax.f32 %v4650, 0.0
        %v6348 = vmax.f32 %v4652, 0.0
        %v6349 = vmax.f32 %v5323, 0.0
        %v6350 = vmax.f32 %v5325, 0.0
        %v6351 = vmax.f32 %v5327, %v5328
        %v6352 = vmax.f32 %v6351, %v5329
        %v6353 = vmax.f32 %v6352, %v5330
        %v6354 = vmax.f32 %v6353, %v5331
        %v6355 = vmax.f32 %v6354, %v5332
        %v6356 = vmax.f32 %v6355, %v5333
        %v6357 = vmax.f32 %v6356, %v5334
        %6358 = vmax.xlane.f32.xlu0 %v6357
        %v6359 = vpop.xlane.xlu0 %6358
        %v6360 = vmax.f32 %v5335, %v5336
        %v6361 = vmax.f32 %v6360, %v5337
        %v6362 = vmax.f32 %v6361, %v5338
        %v6363 = vmax.f32 %v6362, %v5339
        %v6364 = vmax.f32 %v6363, %v5340
        %v6365 = vmax.f32 %v6364, %v5341
        %v6366 = vmax.f32 %v6365, %v5342
        %6367 = vmax.xlane.f32.xlu0 %v6366
        %v6368 = vpop.xlane.xlu0 %6367
        %v6369 = vmax.f32 %v5343, %v5344
        %v6370 = vmax.f32 %v6369, %v5345
        %v6371 = vmax.f32 %v6370, %v5346
        %v6372 = vmax.f32 %v6371, %v5347
        %v6373 = vmax.f32 %v6372, %v5348
        %v6374 = vmax.f32 %v6373, %v5349
        %v6375 = vmax.f32 %v6374, %v5350
        %6376 = vmax.xlane.f32.xlu0 %v6375
        %v6377 = vpop.xlane.xlu0 %6376
        %v6378 = vmax.f32 %v5351, %v5352
        %v6379 = vmax.f32 %v6378, %v5353
        %v6380 = vmax.f32 %v6379, %v5354
        %v6381 = vmax.f32 %v6380, %v5355
        %v6382 = vmax.f32 %v6381, %v5356
        %v6383 = vmax.f32 %v6382, %v5357
        %v6384 = vmax.f32 %v6383, %v5358
        %6385 = vmax.xlane.f32.xlu0 %v6384
        %v6386 = vpop.xlane.xlu0 %6385
        %v6387 = vmax.f32 %v5359, %v5360
        %v6388 = vmax.f32 %v6387, %v5361
        %v6389 = vmax.f32 %v6388, %v5362
        %v6390 = vmax.f32 %v6389, %v5363
        %v6391 = vmax.f32 %v6390, %v5364
        %v6392 = vmax.f32 %v6391, %v5365
        %v6393 = vmax.f32 %v6392, %v5366
        %6394 = vmax.xlane.f32.xlu0 %v6393
        %v6395 = vpop.xlane.xlu0 %6394
        %v6396 = vmax.f32 %v5367, %v5368
        %v6397 = vmax.f32 %v6396, %v5369
        %v6398 = vmax.f32 %v6397, %v5370
        %v6399 = vmax.f32 %v6398, %v5371
        %v6400 = vmax.f32 %v6399, %v5372
        %v6401 = vmax.f32 %v6400, %v5373
        %v6402 = vmax.f32 %v6401, %v5374
        %6403 = vmax.xlane.f32.xlu0 %v6402
        %v6404 = vpop.xlane.xlu0 %6403
        %v6405 = vmax.f32 %v5375, %v5376
        %v6406 = vmax.f32 %v6405, %v5377
        %v6407 = vmax.f32 %v6406, %v5378
        %v6408 = vmax.f32 %v6407, %v5379
        %v6409 = vmax.f32 %v6408, %v5380
        %v6410 = vmax.f32 %v6409, %v5381
        %v6411 = vmax.f32 %v6410, %v5382
        %6412 = vmax.xlane.f32.xlu0 %v6411
        %v6413 = vpop.xlane.xlu0 %6412
        %v6414 = vmax.f32 %v5383, %v5384
        %v6415 = vmax.f32 %v6414, %v5385
        %v6416 = vmax.f32 %v6415, %v5386
        %v6417 = vmax.f32 %v6416, %v5387
        %v6418 = vmax.f32 %v6417, %v5388
        %v6419 = vmax.f32 %v6418, %v5389
        %v6420 = vmax.f32 %v6419, %v5390
        %6421 = vmax.xlane.f32.xlu0 %v6420
        %v6422 = vpop.xlane.xlu0 %6421
        %v6423 = vmax.f32 %v5391, %v5392
        %v6424 = vmax.f32 %v6423, %v5393
        %v6425 = vmax.f32 %v6424, %v5394
        %v6426 = vmax.f32 %v6425, %v5395
        %v6427 = vmax.f32 %v6426, %v5396
        %v6428 = vmax.f32 %v6427, %v5397
        %v6429 = vmax.f32 %v6428, %v5398
        %6430 = vmax.xlane.f32.xlu0 %v6429
        %v6431 = vpop.xlane.xlu0 %6430
        %v6432 = vmax.f32 %v5399, %v5400
        %v6433 = vmax.f32 %v6432, %v5401
        %v6434 = vmax.f32 %v6433, %v5402
        %v6435 = vmax.f32 %v6434, %v5403
        %v6436 = vmax.f32 %v6435, %v5404
        %v6437 = vmax.f32 %v6436, %v5405
        %v6438 = vmax.f32 %v6437, %v5406
        %6439 = vmax.xlane.f32.xlu0 %v6438
        %v6440 = vpop.xlane.xlu0 %6439
        %v6441 = vmax.f32 %v5407, %v5408
        %v6442 = vmax.f32 %v6441, %v5409
        %v6443 = vmax.f32 %v6442, %v5410
        %v6444 = vmax.f32 %v6443, %v5411
        %v6445 = vmax.f32 %v6444, %v5412
        %v6446 = vmax.f32 %v6445, %v5413
        %v6447 = vmax.f32 %v6446, %v5414
        %6448 = vmax.xlane.f32.xlu0 %v6447
        %v6449 = vpop.xlane.xlu0 %6448
        %v6450 = vmax.f32 %v5415, %v5416
        %v6451 = vmax.f32 %v6450, %v5417
        %v6452 = vmax.f32 %v6451, %v5418
        %v6453 = vmax.f32 %v6452, %v5419
        %v6454 = vmax.f32 %v6453, %v5420
        %v6455 = vmax.f32 %v6454, %v5421
        %v6456 = vmax.f32 %v6455, %v5422
        %6457 = vmax.xlane.f32.xlu0 %v6456
        %v6458 = vpop.xlane.xlu0 %6457
        %v6459 = vmax.f32 %v5423, %v5424
        %v6460 = vmax.f32 %v6459, %v5425
        %v6461 = vmax.f32 %v6460, %v5426
        %v6462 = vmax.f32 %v6461, %v5427
        %v6463 = vmax.f32 %v6462, %v5428
        %v6464 = vmax.f32 %v6463, %v5429
        %v6465 = vmax.f32 %v6464, %v5430
        %6466 = vmax.xlane.f32.xlu0 %v6465
        %v6467 = vpop.xlane.xlu0 %6466
        %v6468 = vmax.f32 %v5431, %v5432
        %v6469 = vmax.f32 %v6468, %v5433
        %v6470 = vmax.f32 %v6469, %v5434
        %v6471 = vmax.f32 %v6470, %v5435
        %v6472 = vmax.f32 %v6471, %v5436
        %v6473 = vmax.f32 %v6472, %v5437
        %v6474 = vmax.f32 %v6473, %v5438
        %6475 = vmax.xlane.f32.xlu0 %v6474
        %v6476 = vpop.xlane.xlu0 %6475
        %v6477 = vmax.f32 %v5439, %v5440
        %v6478 = vmax.f32 %v6477, %v5441
        %v6479 = vmax.f32 %v6478, %v5442
        %v6480 = vmax.f32 %v6479, %v5443
        %v6481 = vmax.f32 %v6480, %v5444
        %v6482 = vmax.f32 %v6481, %v5445
        %v6483 = vmax.f32 %v6482, %v5446
        %6484 = vmax.xlane.f32.xlu0 %v6483
        %v6485 = vpop.xlane.xlu0 %6484
        %v6486 = vmax.f32 %v5447, %v5448
        %v6487 = vmax.f32 %v6486, %v5449
        %v6488 = vmax.f32 %v6487, %v5450
        %v6489 = vmax.f32 %v6488, %v5451
        %v6490 = vmax.f32 %v6489, %v5452
        %v6491 = vmax.f32 %v6490, %v5453
        %v6492 = vmax.f32 %v6491, %v5454
        %6493 = vmax.xlane.f32.xlu0 %v6492
        %v6494 = vpop.xlane.xlu0 %6493
        %v6495 = vmax.f32 %v5455, %v5456
        %v6496 = vmax.f32 %v6495, %v5457
        %v6497 = vmax.f32 %v6496, %v5458
        %v6498 = vmax.f32 %v6497, %v5459
        %v6499 = vmax.f32 %v6498, %v5460
        %v6500 = vmax.f32 %v6499, %v5461
        %v6501 = vmax.f32 %v6500, %v5462
        %6502 = vmax.xlane.f32.xlu0 %v6501
        %v6503 = vpop.xlane.xlu0 %6502
        %v6504 = vmax.f32 %v5463, %v5464
        %v6505 = vmax.f32 %v6504, %v5465
        %v6506 = vmax.f32 %v6505, %v5466
        %v6507 = vmax.f32 %v6506, %v5467
        %v6508 = vmax.f32 %v6507, %v5468
        %v6509 = vmax.f32 %v6508, %v5469
        %v6510 = vmax.f32 %v6509, %v5470
        %6511 = vmax.xlane.f32.xlu0 %v6510
        %v6512 = vpop.xlane.xlu0 %6511
        %v6513 = vmax.f32 %v5471, %v5472
        %v6514 = vmax.f32 %v6513, %v5473
        %v6515 = vmax.f32 %v6514, %v5474
        %v6516 = vmax.f32 %v6515, %v5475
        %v6517 = vmax.f32 %v6516, %v5476
        %v6518 = vmax.f32 %v6517, %v5477
        %v6519 = vmax.f32 %v6518, %v5478
        %6520 = vmax.xlane.f32.xlu0 %v6519
        %v6521 = vpop.xlane.xlu0 %6520
        %v6522 = vmax.f32 %v5479, %v5480
        %v6523 = vmax.f32 %v6522, %v5481
        %v6524 = vmax.f32 %v6523, %v5482
        %v6525 = vmax.f32 %v6524, %v5483
        %v6526 = vmax.f32 %v6525, %v5484
        %v6527 = vmax.f32 %v6526, %v5485
        %v6528 = vmax.f32 %v6527, %v5486
        %6529 = vmax.xlane.f32.xlu0 %v6528
        %v6530 = vpop.xlane.xlu0 %6529
        %v6531 = vmax.f32 %v5487, %v5488
        %v6532 = vmax.f32 %v6531, %v5489
        %v6533 = vmax.f32 %v6532, %v5490
        %v6534 = vmax.f32 %v6533, %v5491
        %v6535 = vmax.f32 %v6534, %v5492
        %v6536 = vmax.f32 %v6535, %v5493
        %v6537 = vmax.f32 %v6536, %v5494
        %6538 = vmax.xlane.f32.xlu0 %v6537
        %v6539 = vpop.xlane.xlu0 %6538
        %v6540 = vmax.f32 %v5495, %v5496
        %v6541 = vmax.f32 %v6540, %v5497
        %v6542 = vmax.f32 %v6541, %v5498
        %v6543 = vmax.f32 %v6542, %v5499
        %v6544 = vmax.f32 %v6543, %v5500
        %v6545 = vmax.f32 %v6544, %v5501
        %v6546 = vmax.f32 %v6545, %v5502
        %6547 = vmax.xlane.f32.xlu0 %v6546
        %v6548 = vpop.xlane.xlu0 %6547
        %v6549 = vmax.f32 %v5503, %v5504
        %v6550 = vmax.f32 %v6549, %v5505
        %v6551 = vmax.f32 %v6550, %v5506
        %v6552 = vmax.f32 %v6551, %v5507
        %v6553 = vmax.f32 %v6552, %v5508
        %v6554 = vmax.f32 %v6553, %v5509
        %v6555 = vmax.f32 %v6554, %v5510
        %6556 = vmax.xlane.f32.xlu0 %v6555
        %v6557 = vpop.xlane.xlu0 %6556
        %v6558 = vmax.f32 %v5511, %v5512
        %v6559 = vmax.f32 %v6558, %v5513
        %v6560 = vmax.f32 %v6559, %v5514
        %v6561 = vmax.f32 %v6560, %v5515
        %v6562 = vmax.f32 %v6561, %v5516
        %v6563 = vmax.f32 %v6562, %v5517
        %v6564 = vmax.f32 %v6563, %v5518
        %6565 = vmax.xlane.f32.xlu0 %v6564
        %v6566 = vpop.xlane.xlu0 %6565
        %v6567 = vmax.f32 %v5519, %v5520
        %v6568 = vmax.f32 %v6567, %v5521
        %v6569 = vmax.f32 %v6568, %v5522
        %v6570 = vmax.f32 %v6569, %v5523
        %v6571 = vmax.f32 %v6570, %v5524
        %v6572 = vmax.f32 %v6571, %v5525
        %v6573 = vmax.f32 %v6572, %v5526
        %6574 = vmax.xlane.f32.xlu0 %v6573
        %v6575 = vpop.xlane.xlu0 %6574
        %v6576 = vmax.f32 %v5527, %v5528
        %v6577 = vmax.f32 %v6576, %v5529
        %v6578 = vmax.f32 %v6577, %v5530
        %v6579 = vmax.f32 %v6578, %v5531
        %v6580 = vmax.f32 %v6579, %v5532
        %v6581 = vmax.f32 %v6580, %v5533
        %v6582 = vmax.f32 %v6581, %v5534
        %6583 = vmax.xlane.f32.xlu0 %v6582
        %v6584 = vpop.xlane.xlu0 %6583
        %v6585 = vmax.f32 %v5535, %v5536
        %v6586 = vmax.f32 %v6585, %v5537
        %v6587 = vmax.f32 %v6586, %v5538
        %v6588 = vmax.f32 %v6587, %v5539
        %v6589 = vmax.f32 %v6588, %v5540
        %v6590 = vmax.f32 %v6589, %v5541
        %v6591 = vmax.f32 %v6590, %v5542
        %6592 = vmax.xlane.f32.xlu0 %v6591
        %v6593 = vpop.xlane.xlu0 %6592
        %v6594 = vmax.f32 %v5543, %v5544
        %v6595 = vmax.f32 %v6594, %v5545
        %v6596 = vmax.f32 %v6595, %v5546
        %v6597 = vmax.f32 %v6596, %v5547
        %v6598 = vmax.f32 %v6597, %v5548
        %v6599 = vmax.f32 %v6598, %v5549
        %v6600 = vmax.f32 %v6599, %v5550
        %6601 = vmax.xlane.f32.xlu0 %v6600
        %v6602 = vpop.xlane.xlu0 %6601
        %v6603 = vmax.f32 %v5551, %v5552
        %v6604 = vmax.f32 %v6603, %v5553
        %v6605 = vmax.f32 %v6604, %v5554
        %v6606 = vmax.f32 %v6605, %v5555
        %v6607 = vmax.f32 %v6606, %v5556
        %v6608 = vmax.f32 %v6607, %v5557
        %v6609 = vmax.f32 %v6608, %v5558
        %6610 = vmax.xlane.f32.xlu0 %v6609
        %v6611 = vpop.xlane.xlu0 %6610
        %v6612 = vmax.f32 %v5559, %v5560
        %v6613 = vmax.f32 %v6612, %v5561
        %v6614 = vmax.f32 %v6613, %v5562
        %v6615 = vmax.f32 %v6614, %v5563
        %v6616 = vmax.f32 %v6615, %v5564
        %v6617 = vmax.f32 %v6616, %v5565
        %v6618 = vmax.f32 %v6617, %v5566
        %6619 = vmax.xlane.f32.xlu0 %v6618
        %v6620 = vpop.xlane.xlu0 %6619
        %v6621 = vmax.f32 %v5567, %v5568
        %v6622 = vmax.f32 %v6621, %v5569
        %v6623 = vmax.f32 %v6622, %v5570
        %v6624 = vmax.f32 %v6623, %v5571
        %v6625 = vmax.f32 %v6624, %v5572
        %v6626 = vmax.f32 %v6625, %v5573
        %v6627 = vmax.f32 %v6626, %v5574
        %6628 = vmax.xlane.f32.xlu0 %v6627
        %v6629 = vpop.xlane.xlu0 %6628
        %v6630 = vmax.f32 %v5575, %v5576
        %v6631 = vmax.f32 %v6630, %v5577
        %v6632 = vmax.f32 %v6631, %v5578
        %v6633 = vmax.f32 %v6632, %v5579
        %v6634 = vmax.f32 %v6633, %v5580
        %v6635 = vmax.f32 %v6634, %v5581
        %v6636 = vmax.f32 %v6635, %v5582
        %6637 = vmax.xlane.f32.xlu0 %v6636
        %v6638 = vpop.xlane.xlu0 %6637
        %v6639 = vmax.f32 %v5583, %v5584
        %v6640 = vmax.f32 %v6639, %v5585
        %v6641 = vmax.f32 %v6640, %v5586
        %v6642 = vmax.f32 %v6641, %v5587
        %v6643 = vmax.f32 %v6642, %v5588
        %v6644 = vmax.f32 %v6643, %v5589
        %v6645 = vmax.f32 %v6644, %v5590
        %6646 = vmax.xlane.f32.xlu0 %v6645
        %v6647 = vpop.xlane.xlu0 %6646
        %v6648 = vmax.f32 %v5591, %v5592
        %v6649 = vmax.f32 %v6648, %v5593
        %v6650 = vmax.f32 %v6649, %v5594
        %v6651 = vmax.f32 %v6650, %v5595
        %v6652 = vmax.f32 %v6651, %v5596
        %v6653 = vmax.f32 %v6652, %v5597
        %v6654 = vmax.f32 %v6653, %v5598
        %6655 = vmax.xlane.f32.xlu0 %v6654
        %v6656 = vpop.xlane.xlu0 %6655
        %v6657 = vmax.f32 %v5599, %v5600
        %v6658 = vmax.f32 %v6657, %v5601
        %v6659 = vmax.f32 %v6658, %v5602
        %v6660 = vmax.f32 %v6659, %v5603
        %v6661 = vmax.f32 %v6660, %v5604
        %v6662 = vmax.f32 %v6661, %v5605
        %v6663 = vmax.f32 %v6662, %v5606
        %6664 = vmax.xlane.f32.xlu0 %v6663
        %v6665 = vpop.xlane.xlu0 %6664
        %v6666 = vmax.f32 %v5607, %v5608
        %v6667 = vmax.f32 %v6666, %v5609
        %v6668 = vmax.f32 %v6667, %v5610
        %v6669 = vmax.f32 %v6668, %v5611
        %v6670 = vmax.f32 %v6669, %v5612
        %v6671 = vmax.f32 %v6670, %v5613
        %v6672 = vmax.f32 %v6671, %v5614
        %6673 = vmax.xlane.f32.xlu0 %v6672
        %v6674 = vpop.xlane.xlu0 %6673
        %v6675 = vmax.f32 %v5615, %v5616
        %v6676 = vmax.f32 %v6675, %v5617
        %v6677 = vmax.f32 %v6676, %v5618
        %v6678 = vmax.f32 %v6677, %v5619
        %v6679 = vmax.f32 %v6678, %v5620
        %v6680 = vmax.f32 %v6679, %v5621
        %v6681 = vmax.f32 %v6680, %v5622
        %6682 = vmax.xlane.f32.xlu0 %v6681
        %v6683 = vpop.xlane.xlu0 %6682
        %v6684 = vmax.f32 %v5623, %v5624
        %v6685 = vmax.f32 %v6684, %v5625
        %v6686 = vmax.f32 %v6685, %v5626
        %v6687 = vmax.f32 %v6686, %v5627
        %v6688 = vmax.f32 %v6687, %v5628
        %v6689 = vmax.f32 %v6688, %v5629
        %v6690 = vmax.f32 %v6689, %v5630
        %6691 = vmax.xlane.f32.xlu0 %v6690
        %v6692 = vpop.xlane.xlu0 %6691
        %v6693 = vmax.f32 %v5631, %v5632
        %v6694 = vmax.f32 %v6693, %v5633
        %v6695 = vmax.f32 %v6694, %v5634
        %v6696 = vmax.f32 %v6695, %v5635
        %v6697 = vmax.f32 %v6696, %v5636
        %v6698 = vmax.f32 %v6697, %v5637
        %v6699 = vmax.f32 %v6698, %v5638
        %6700 = vmax.xlane.f32.xlu0 %v6699
        %v6701 = vpop.xlane.xlu0 %6700
        %v6702 = vmax.f32 %v5639, %v5640
        %v6703 = vmax.f32 %v6702, %v5641
        %v6704 = vmax.f32 %v6703, %v5642
        %v6705 = vmax.f32 %v6704, %v5643
        %v6706 = vmax.f32 %v6705, %v5644
        %v6707 = vmax.f32 %v6706, %v5645
        %v6708 = vmax.f32 %v6707, %v5646
        %6709 = vmax.xlane.f32.xlu0 %v6708
        %v6710 = vpop.xlane.xlu0 %6709
        %v6711 = vmax.f32 %v5647, %v5648
        %v6712 = vmax.f32 %v6711, %v5649
        %v6713 = vmax.f32 %v6712, %v5650
        %v6714 = vmax.f32 %v6713, %v5651
        %v6715 = vmax.f32 %v6714, %v5652
        %v6716 = vmax.f32 %v6715, %v5653
        %v6717 = vmax.f32 %v6716, %v5654
        %6718 = vmax.xlane.f32.xlu0 %v6717
        %v6719 = vpop.xlane.xlu0 %6718
        %v6720 = vmax.f32 %v5655, %v5656
        %v6721 = vmax.f32 %v6720, %v5657
        %v6722 = vmax.f32 %v6721, %v5658
        %v6723 = vmax.f32 %v6722, %v5659
        %v6724 = vmax.f32 %v6723, %v5660
        %v6725 = vmax.f32 %v6724, %v5661
        %v6726 = vmax.f32 %v6725, %v5662
        %6727 = vmax.xlane.f32.xlu0 %v6726
        %v6728 = vpop.xlane.xlu0 %6727
        %v6729 = vmax.f32 %v5663, %v5664
        %v6730 = vmax.f32 %v6729, %v5665
        %v6731 = vmax.f32 %v6730, %v5666
        %v6732 = vmax.f32 %v6731, %v5667
        %v6733 = vmax.f32 %v6732, %v5668
        %v6734 = vmax.f32 %v6733, %v5669
        %v6735 = vmax.f32 %v6734, %v5670
        %6736 = vmax.xlane.f32.xlu0 %v6735
        %v6737 = vpop.xlane.xlu0 %6736
        %v6738 = vmax.f32 %v5671, %v5672
        %v6739 = vmax.f32 %v6738, %v5673
        %v6740 = vmax.f32 %v6739, %v5674
        %v6741 = vmax.f32 %v6740, %v5675
        %v6742 = vmax.f32 %v6741, %v5676
        %v6743 = vmax.f32 %v6742, %v5677
        %v6744 = vmax.f32 %v6743, %v5678
        %6745 = vmax.xlane.f32.xlu0 %v6744
        %v6746 = vpop.xlane.xlu0 %6745
        %v6747 = vmax.f32 %v5679, %v5680
        %v6748 = vmax.f32 %v6747, %v5681
        %v6749 = vmax.f32 %v6748, %v5682
        %v6750 = vmax.f32 %v6749, %v5683
        %v6751 = vmax.f32 %v6750, %v5684
        %v6752 = vmax.f32 %v6751, %v5685
        %v6753 = vmax.f32 %v6752, %v5686
        %6754 = vmax.xlane.f32.xlu0 %v6753
        %v6755 = vpop.xlane.xlu0 %6754
        %v6756 = vmax.f32 %v5687, %v5688
        %v6757 = vmax.f32 %v6756, %v5689
        %v6758 = vmax.f32 %v6757, %v5690
        %v6759 = vmax.f32 %v6758, %v5691
        %v6760 = vmax.f32 %v6759, %v5692
        %v6761 = vmax.f32 %v6760, %v5693
        %v6762 = vmax.f32 %v6761, %v5694
        %6763 = vmax.xlane.f32.xlu0 %v6762
        %v6764 = vpop.xlane.xlu0 %6763
        %v6765 = vmax.f32 %v5695, %v5696
        %v6766 = vmax.f32 %v6765, %v5697
        %v6767 = vmax.f32 %v6766, %v5698
        %v6768 = vmax.f32 %v6767, %v5699
        %v6769 = vmax.f32 %v6768, %v5700
        %v6770 = vmax.f32 %v6769, %v5701
        %v6771 = vmax.f32 %v6770, %v5702
        %6772 = vmax.xlane.f32.xlu0 %v6771
        %v6773 = vpop.xlane.xlu0 %6772
        %v6774 = vmax.f32 %v5703, %v5704
        %v6775 = vmax.f32 %v6774, %v5705
        %v6776 = vmax.f32 %v6775, %v5706
        %v6777 = vmax.f32 %v6776, %v5707
        %v6778 = vmax.f32 %v6777, %v5708
        %v6779 = vmax.f32 %v6778, %v5709
        %v6780 = vmax.f32 %v6779, %v5710
        %6781 = vmax.xlane.f32.xlu0 %v6780
        %v6782 = vpop.xlane.xlu0 %6781
        %v6783 = vmax.f32 %v5711, %v5712
        %v6784 = vmax.f32 %v6783, %v5713
        %v6785 = vmax.f32 %v6784, %v5714
        %v6786 = vmax.f32 %v6785, %v5715
        %v6787 = vmax.f32 %v6786, %v5716
        %v6788 = vmax.f32 %v6787, %v5717
        %v6789 = vmax.f32 %v6788, %v5718
        %6790 = vmax.xlane.f32.xlu0 %v6789
        %v6791 = vpop.xlane.xlu0 %6790
        %v6792 = vmax.f32 %v5719, %v5720
        %v6793 = vmax.f32 %v6792, %v5721
        %v6794 = vmax.f32 %v6793, %v5722
        %v6795 = vmax.f32 %v6794, %v5723
        %v6796 = vmax.f32 %v6795, %v5724
        %v6797 = vmax.f32 %v6796, %v5725
        %v6798 = vmax.f32 %v6797, %v5726
        %6799 = vmax.xlane.f32.xlu0 %v6798
        %v6800 = vpop.xlane.xlu0 %6799
        %v6801 = vmax.f32 %v5727, %v5728
        %v6802 = vmax.f32 %v6801, %v5729
        %v6803 = vmax.f32 %v6802, %v5730
        %v6804 = vmax.f32 %v6803, %v5731
        %v6805 = vmax.f32 %v6804, %v5732
        %v6806 = vmax.f32 %v6805, %v5733
        %v6807 = vmax.f32 %v6806, %v5734
        %6808 = vmax.xlane.f32.xlu0 %v6807
        %v6809 = vpop.xlane.xlu0 %6808
        %v6810 = vmax.f32 %v5735, %v5736
        %v6811 = vmax.f32 %v6810, %v5737
        %v6812 = vmax.f32 %v6811, %v5738
        %v6813 = vmax.f32 %v6812, %v5739
        %v6814 = vmax.f32 %v6813, %v5740
        %v6815 = vmax.f32 %v6814, %v5741
        %v6816 = vmax.f32 %v6815, %v5742
        %6817 = vmax.xlane.f32.xlu0 %v6816
        %v6818 = vpop.xlane.xlu0 %6817
        %v6819 = vmax.f32 %v5743, %v5744
        %v6820 = vmax.f32 %v6819, %v5745
        %v6821 = vmax.f32 %v6820, %v5746
        %v6822 = vmax.f32 %v6821, %v5747
        %v6823 = vmax.f32 %v6822, %v5748
        %v6824 = vmax.f32 %v6823, %v5749
        %v6825 = vmax.f32 %v6824, %v5750
        %6826 = vmax.xlane.f32.xlu0 %v6825
        %v6827 = vpop.xlane.xlu0 %6826
        %v6828 = vmax.f32 %v5751, %v5752
        %v6829 = vmax.f32 %v6828, %v5753
        %v6830 = vmax.f32 %v6829, %v5754
        %v6831 = vmax.f32 %v6830, %v5755
        %v6832 = vmax.f32 %v6831, %v5756
        %v6833 = vmax.f32 %v6832, %v5757
        %v6834 = vmax.f32 %v6833, %v5758
        %6835 = vmax.xlane.f32.xlu0 %v6834
        %v6836 = vpop.xlane.xlu0 %6835
        %v6837 = vmax.f32 %v5759, %v5760
        %v6838 = vmax.f32 %v6837, %v5761
        %v6839 = vmax.f32 %v6838, %v5762
        %v6840 = vmax.f32 %v6839, %v5763
        %v6841 = vmax.f32 %v6840, %v5764
        %v6842 = vmax.f32 %v6841, %v5765
        %v6843 = vmax.f32 %v6842, %v5766
        %6844 = vmax.xlane.f32.xlu0 %v6843
        %v6845 = vpop.xlane.xlu0 %6844
        %v6846 = vmax.f32 %v5767, %v5768
        %v6847 = vmax.f32 %v6846, %v5769
        %v6848 = vmax.f32 %v6847, %v5770
        %v6849 = vmax.f32 %v6848, %v5771
        %v6850 = vmax.f32 %v6849, %v5772
        %v6851 = vmax.f32 %v6850, %v5773
        %v6852 = vmax.f32 %v6851, %v5774
        %6853 = vmax.xlane.f32.xlu0 %v6852
        %v6854 = vpop.xlane.xlu0 %6853
        %v6855 = vmax.f32 %v5775, %v5776
        %v6856 = vmax.f32 %v6855, %v5777
        %v6857 = vmax.f32 %v6856, %v5778
        %v6858 = vmax.f32 %v6857, %v5779
        %v6859 = vmax.f32 %v6858, %v5780
        %v6860 = vmax.f32 %v6859, %v5781
        %v6861 = vmax.f32 %v6860, %v5782
        %6862 = vmax.xlane.f32.xlu0 %v6861
        %v6863 = vpop.xlane.xlu0 %6862
        %v6864 = vmax.f32 %v5783, %v5784
        %v6865 = vmax.f32 %v6864, %v5785
        %v6866 = vmax.f32 %v6865, %v5786
        %v6867 = vmax.f32 %v6866, %v5787
        %v6868 = vmax.f32 %v6867, %v5788
        %v6869 = vmax.f32 %v6868, %v5789
        %v6870 = vmax.f32 %v6869, %v5790
        %6871 = vmax.xlane.f32.xlu0 %v6870
        %v6872 = vpop.xlane.xlu0 %6871
        %v6873 = vmax.f32 %v5791, %v5792
        %v6874 = vmax.f32 %v6873, %v5793
        %v6875 = vmax.f32 %v6874, %v5794
        %v6876 = vmax.f32 %v6875, %v5795
        %v6877 = vmax.f32 %v6876, %v5796
        %v6878 = vmax.f32 %v6877, %v5797
        %v6879 = vmax.f32 %v6878, %v5798
        %6880 = vmax.xlane.f32.xlu0 %v6879
        %v6881 = vpop.xlane.xlu0 %6880
        %v6882 = vmax.f32 %v5799, %v5800
        %v6883 = vmax.f32 %v6882, %v5801
        %v6884 = vmax.f32 %v6883, %v5802
        %v6885 = vmax.f32 %v6884, %v5803
        %v6886 = vmax.f32 %v6885, %v5804
        %v6887 = vmax.f32 %v6886, %v5805
        %v6888 = vmax.f32 %v6887, %v5806
        %6889 = vmax.xlane.f32.xlu0 %v6888
        %v6890 = vpop.xlane.xlu0 %6889
        %v6891 = vmax.f32 %v5807, %v5808
        %v6892 = vmax.f32 %v6891, %v5809
        %v6893 = vmax.f32 %v6892, %v5810
        %v6894 = vmax.f32 %v6893, %v5811
        %v6895 = vmax.f32 %v6894, %v5812
        %v6896 = vmax.f32 %v6895, %v5813
        %v6897 = vmax.f32 %v6896, %v5814
        %6898 = vmax.xlane.f32.xlu0 %v6897
        %v6899 = vpop.xlane.xlu0 %6898
        %v6900 = vmax.f32 %v5815, %v5816
        %v6901 = vmax.f32 %v6900, %v5817
        %v6902 = vmax.f32 %v6901, %v5818
        %v6903 = vmax.f32 %v6902, %v5819
        %v6904 = vmax.f32 %v6903, %v5820
        %v6905 = vmax.f32 %v6904, %v5821
        %v6906 = vmax.f32 %v6905, %v5822
        %6907 = vmax.xlane.f32.xlu0 %v6906
        %v6908 = vpop.xlane.xlu0 %6907
        %v6909 = vmax.f32 %v5823, %v5824
        %v6910 = vmax.f32 %v6909, %v5825
        %v6911 = vmax.f32 %v6910, %v5826
        %v6912 = vmax.f32 %v6911, %v5827
        %v6913 = vmax.f32 %v6912, %v5828
        %v6914 = vmax.f32 %v6913, %v5829
        %v6915 = vmax.f32 %v6914, %v5830
        %6916 = vmax.xlane.f32.xlu0 %v6915
        %v6917 = vpop.xlane.xlu0 %6916
        %v6918 = vmax.f32 %v5831, %v5832
        %v6919 = vmax.f32 %v6918, %v5833
        %v6920 = vmax.f32 %v6919, %v5834
        %v6921 = vmax.f32 %v6920, %v5835
        %v6922 = vmax.f32 %v6921, %v5836
        %v6923 = vmax.f32 %v6922, %v5837
        %v6924 = vmax.f32 %v6923, %v5838
        %6925 = vmax.xlane.f32.xlu0 %v6924
        %v6926 = vpop.xlane.xlu0 %6925
        %v6927 = vmax.f32 %v5839, %v5840
        %v6928 = vmax.f32 %v6927, %v5841
        %v6929 = vmax.f32 %v6928, %v5842
        %v6930 = vmax.f32 %v6929, %v5843
        %v6931 = vmax.f32 %v6930, %v5844
        %v6932 = vmax.f32 %v6931, %v5845
        %v6933 = vmax.f32 %v6932, %v5846
        %6934 = vmax.xlane.f32.xlu0 %v6933
        %v6935 = vpop.xlane.xlu0 %6934
        %v6936 = vmax.f32 %v5847, %v5848
        %v6937 = vmax.f32 %v6936, %v5849
        %v6938 = vmax.f32 %v6937, %v5850
        %v6939 = vmax.f32 %v6938, %v5851
        %v6940 = vmax.f32 %v6939, %v5852
        %v6941 = vmax.f32 %v6940, %v5853
        %v6942 = vmax.f32 %v6941, %v5854
        %6943 = vmax.xlane.f32.xlu0 %v6942
        %v6944 = vpop.xlane.xlu0 %6943
        %v6945 = vmax.f32 %v5855, %v5856
        %v6946 = vmax.f32 %v6945, %v5857
        %v6947 = vmax.f32 %v6946, %v5858
        %v6948 = vmax.f32 %v6947, %v5859
        %v6949 = vmax.f32 %v6948, %v5860
        %v6950 = vmax.f32 %v6949, %v5861
        %v6951 = vmax.f32 %v6950, %v5862
        %6952 = vmax.xlane.f32.xlu0 %v6951
        %v6953 = vpop.xlane.xlu0 %6952
        %v6954 = vmax.f32 %v5863, %v5864
        %v6955 = vmax.f32 %v6954, %v5865
        %v6956 = vmax.f32 %v6955, %v5866
        %v6957 = vmax.f32 %v6956, %v5867
        %v6958 = vmax.f32 %v6957, %v5868
        %v6959 = vmax.f32 %v6958, %v5869
        %v6960 = vmax.f32 %v6959, %v5870
        %6961 = vmax.xlane.f32.xlu0 %v6960
        %v6962 = vpop.xlane.xlu0 %6961
        %v6963 = vmax.f32 %v5871, %v5872
        %v6964 = vmax.f32 %v6963, %v5873
        %v6965 = vmax.f32 %v6964, %v5874
        %v6966 = vmax.f32 %v6965, %v5875
        %v6967 = vmax.f32 %v6966, %v5876
        %v6968 = vmax.f32 %v6967, %v5877
        %v6969 = vmax.f32 %v6968, %v5878
        %6970 = vmax.xlane.f32.xlu0 %v6969
        %v6971 = vpop.xlane.xlu0 %6970
        %v6972 = vmax.f32 %v5879, %v5880
        %v6973 = vmax.f32 %v6972, %v5881
        %v6974 = vmax.f32 %v6973, %v5882
        %v6975 = vmax.f32 %v6974, %v5883
        %v6976 = vmax.f32 %v6975, %v5884
        %v6977 = vmax.f32 %v6976, %v5885
        %v6978 = vmax.f32 %v6977, %v5886
        %6979 = vmax.xlane.f32.xlu0 %v6978
        %v6980 = vpop.xlane.xlu0 %6979
        %v6981 = vmax.f32 %v5887, %v5888
        %v6982 = vmax.f32 %v6981, %v5889
        %v6983 = vmax.f32 %v6982, %v5890
        %v6984 = vmax.f32 %v6983, %v5891
        %v6985 = vmax.f32 %v6984, %v5892
        %v6986 = vmax.f32 %v6985, %v5893
        %v6987 = vmax.f32 %v6986, %v5894
        %6988 = vmax.xlane.f32.xlu0 %v6987
        %v6989 = vpop.xlane.xlu0 %6988
        %v6990 = vmax.f32 %v5895, %v5896
        %v6991 = vmax.f32 %v6990, %v5897
        %v6992 = vmax.f32 %v6991, %v5898
        %v6993 = vmax.f32 %v6992, %v5899
        %v6994 = vmax.f32 %v6993, %v5900
        %v6995 = vmax.f32 %v6994, %v5901
        %v6996 = vmax.f32 %v6995, %v5902
        %6997 = vmax.xlane.f32.xlu0 %v6996
        %v6998 = vpop.xlane.xlu0 %6997
        %v6999 = vmax.f32 %v5903, %v5904
        %v7000 = vmax.f32 %v6999, %v5905
        %v7001 = vmax.f32 %v7000, %v5906
        %v7002 = vmax.f32 %v7001, %v5907
        %v7003 = vmax.f32 %v7002, %v5908
        %v7004 = vmax.f32 %v7003, %v5909
        %v7005 = vmax.f32 %v7004, %v5910
        %7006 = vmax.xlane.f32.xlu0 %v7005
        %v7007 = vpop.xlane.xlu0 %7006
        %v7008 = vmax.f32 %v5911, %v5912
        %v7009 = vmax.f32 %v7008, %v5913
        %v7010 = vmax.f32 %v7009, %v5914
        %v7011 = vmax.f32 %v7010, %v5915
        %v7012 = vmax.f32 %v7011, %v5916
        %v7013 = vmax.f32 %v7012, %v5917
        %v7014 = vmax.f32 %v7013, %v5918
        %7015 = vmax.xlane.f32.xlu0 %v7014
        %v7016 = vpop.xlane.xlu0 %7015
        %v7017 = vmax.f32 %v5919, %v5920
        %v7018 = vmax.f32 %v7017, %v5921
        %v7019 = vmax.f32 %v7018, %v5922
        %v7020 = vmax.f32 %v7019, %v5923
        %v7021 = vmax.f32 %v7020, %v5924
        %v7022 = vmax.f32 %v7021, %v5925
        %v7023 = vmax.f32 %v7022, %v5926
        %7024 = vmax.xlane.f32.xlu0 %v7023
        %v7025 = vpop.xlane.xlu0 %7024
        %v7026 = vmax.f32 %v5927, %v5928
        %v7027 = vmax.f32 %v7026, %v5929
        %v7028 = vmax.f32 %v7027, %v5930
        %v7029 = vmax.f32 %v7028, %v5931
        %v7030 = vmax.f32 %v7029, %v5932
        %v7031 = vmax.f32 %v7030, %v5933
        %v7032 = vmax.f32 %v7031, %v5934
        %7033 = vmax.xlane.f32.xlu0 %v7032
        %v7034 = vpop.xlane.xlu0 %7033
        %v7035 = vmax.f32 %v5935, %v5936
        %v7036 = vmax.f32 %v7035, %v5937
        %v7037 = vmax.f32 %v7036, %v5938
        %v7038 = vmax.f32 %v7037, %v5939
        %v7039 = vmax.f32 %v7038, %v5940
        %v7040 = vmax.f32 %v7039, %v5941
        %v7041 = vmax.f32 %v7040, %v5942
        %7042 = vmax.xlane.f32.xlu0 %v7041
        %v7043 = vpop.xlane.xlu0 %7042
        %v7044 = vmax.f32 %v5943, %v5944
        %v7045 = vmax.f32 %v7044, %v5945
        %v7046 = vmax.f32 %v7045, %v5946
        %v7047 = vmax.f32 %v7046, %v5947
        %v7048 = vmax.f32 %v7047, %v5948
        %v7049 = vmax.f32 %v7048, %v5949
        %v7050 = vmax.f32 %v7049, %v5950
        %7051 = vmax.xlane.f32.xlu0 %v7050
        %v7052 = vpop.xlane.xlu0 %7051
        %v7053 = vmax.f32 %v5951, %v5952
        %v7054 = vmax.f32 %v7053, %v5953
        %v7055 = vmax.f32 %v7054, %v5954
        %v7056 = vmax.f32 %v7055, %v5955
        %v7057 = vmax.f32 %v7056, %v5956
        %v7058 = vmax.f32 %v7057, %v5957
        %v7059 = vmax.f32 %v7058, %v5958
        %7060 = vmax.xlane.f32.xlu0 %v7059
        %v7061 = vpop.xlane.xlu0 %7060
        %v7062 = vmax.f32 %v5959, %v5960
        %v7063 = vmax.f32 %v7062, %v5961
        %v7064 = vmax.f32 %v7063, %v5962
        %v7065 = vmax.f32 %v7064, %v5963
        %v7066 = vmax.f32 %v7065, %v5964
        %v7067 = vmax.f32 %v7066, %v5965
        %v7068 = vmax.f32 %v7067, %v5966
        %7069 = vmax.xlane.f32.xlu0 %v7068
        %v7070 = vpop.xlane.xlu0 %7069
        %v7071 = vmax.f32 %v5967, %v5968
        %v7072 = vmax.f32 %v7071, %v5969
        %v7073 = vmax.f32 %v7072, %v5970
        %v7074 = vmax.f32 %v7073, %v5971
        %v7075 = vmax.f32 %v7074, %v5972
        %v7076 = vmax.f32 %v7075, %v5973
        %v7077 = vmax.f32 %v7076, %v5974
        %7078 = vmax.xlane.f32.xlu0 %v7077
        %v7079 = vpop.xlane.xlu0 %7078
        %v7080 = vmax.f32 %v5975, %v5976
        %v7081 = vmax.f32 %v7080, %v5977
        %v7082 = vmax.f32 %v7081, %v5978
        %v7083 = vmax.f32 %v7082, %v5979
        %v7084 = vmax.f32 %v7083, %v5980
        %v7085 = vmax.f32 %v7084, %v5981
        %v7086 = vmax.f32 %v7085, %v5982
        %7087 = vmax.xlane.f32.xlu0 %v7086
        %v7088 = vpop.xlane.xlu0 %7087
        %v7089 = vmax.f32 %v5983, %v5984
        %v7090 = vmax.f32 %v7089, %v5985
        %v7091 = vmax.f32 %v7090, %v5986
        %v7092 = vmax.f32 %v7091, %v5987
        %v7093 = vmax.f32 %v7092, %v5988
        %v7094 = vmax.f32 %v7093, %v5989
        %v7095 = vmax.f32 %v7094, %v5990
        %7096 = vmax.xlane.f32.xlu0 %v7095
        %v7097 = vpop.xlane.xlu0 %7096
        %v7098 = vmax.f32 %v5991, %v5992
        %v7099 = vmax.f32 %v7098, %v5993
        %v7100 = vmax.f32 %v7099, %v5994
        %v7101 = vmax.f32 %v7100, %v5995
        %v7102 = vmax.f32 %v7101, %v5996
        %v7103 = vmax.f32 %v7102, %v5997
        %v7104 = vmax.f32 %v7103, %v5998
        %7105 = vmax.xlane.f32.xlu0 %v7104
        %v7106 = vpop.xlane.xlu0 %7105
        %v7107 = vmax.f32 %v5999, %v6000
        %v7108 = vmax.f32 %v7107, %v6001
        %v7109 = vmax.f32 %v7108, %v6002
        %v7110 = vmax.f32 %v7109, %v6003
        %v7111 = vmax.f32 %v7110, %v6004
        %v7112 = vmax.f32 %v7111, %v6005
        %v7113 = vmax.f32 %v7112, %v6006
        %7114 = vmax.xlane.f32.xlu0 %v7113
        %v7115 = vpop.xlane.xlu0 %7114
        %v7116 = vmax.f32 %v6007, %v6008
        %v7117 = vmax.f32 %v7116, %v6009
        %v7118 = vmax.f32 %v7117, %v6010
        %v7119 = vmax.f32 %v7118, %v6011
        %v7120 = vmax.f32 %v7119, %v6012
        %v7121 = vmax.f32 %v7120, %v6013
        %v7122 = vmax.f32 %v7121, %v6014
        %7123 = vmax.xlane.f32.xlu0 %v7122
        %v7124 = vpop.xlane.xlu0 %7123
        %v7125 = vmax.f32 %v6015, %v6016
        %v7126 = vmax.f32 %v7125, %v6017
        %v7127 = vmax.f32 %v7126, %v6018
        %v7128 = vmax.f32 %v7127, %v6019
        %v7129 = vmax.f32 %v7128, %v6020
        %v7130 = vmax.f32 %v7129, %v6021
        %v7131 = vmax.f32 %v7130, %v6022
        %7132 = vmax.xlane.f32.xlu0 %v7131
        %v7133 = vpop.xlane.xlu0 %7132
        %v7134 = vmax.f32 %v6023, %v6024
        %v7135 = vmax.f32 %v7134, %v6025
        %v7136 = vmax.f32 %v7135, %v6026
        %v7137 = vmax.f32 %v7136, %v6027
        %v7138 = vmax.f32 %v7137, %v6028
        %v7139 = vmax.f32 %v7138, %v6029
        %v7140 = vmax.f32 %v7139, %v6030
        %7141 = vmax.xlane.f32.xlu0 %v7140
        %v7142 = vpop.xlane.xlu0 %7141
        %v7143 = vmax.f32 %v6031, %v6032
        %v7144 = vmax.f32 %v7143, %v6033
        %v7145 = vmax.f32 %v7144, %v6034
        %v7146 = vmax.f32 %v7145, %v6035
        %v7147 = vmax.f32 %v7146, %v6036
        %v7148 = vmax.f32 %v7147, %v6037
        %v7149 = vmax.f32 %v7148, %v6038
        %7150 = vmax.xlane.f32.xlu0 %v7149
        %v7151 = vpop.xlane.xlu0 %7150
        %v7152 = vmax.f32 %v6039, %v6040
        %v7153 = vmax.f32 %v7152, %v6041
        %v7154 = vmax.f32 %v7153, %v6042
        %v7155 = vmax.f32 %v7154, %v6043
        %v7156 = vmax.f32 %v7155, %v6044
        %v7157 = vmax.f32 %v7156, %v6045
        %v7158 = vmax.f32 %v7157, %v6046
        %7159 = vmax.xlane.f32.xlu0 %v7158
        %v7160 = vpop.xlane.xlu0 %7159
        %v7161 = vmax.f32 %v6047, %v6048
        %v7162 = vmax.f32 %v7161, %v6049
        %v7163 = vmax.f32 %v7162, %v6050
        %v7164 = vmax.f32 %v7163, %v6051
        %v7165 = vmax.f32 %v7164, %v6052
        %v7166 = vmax.f32 %v7165, %v6053
        %v7167 = vmax.f32 %v7166, %v6054
        %7168 = vmax.xlane.f32.xlu0 %v7167
        %v7169 = vpop.xlane.xlu0 %7168
        %v7170 = vmax.f32 %v6055, %v6056
        %v7171 = vmax.f32 %v7170, %v6057
        %v7172 = vmax.f32 %v7171, %v6058
        %v7173 = vmax.f32 %v7172, %v6059
        %v7174 = vmax.f32 %v7173, %v6060
        %v7175 = vmax.f32 %v7174, %v6061
        %v7176 = vmax.f32 %v7175, %v6062
        %7177 = vmax.xlane.f32.xlu0 %v7176
        %v7178 = vpop.xlane.xlu0 %7177
        %v7179 = vmax.f32 %v6063, %v6064
        %v7180 = vmax.f32 %v7179, %v6065
        %v7181 = vmax.f32 %v7180, %v6066
        %v7182 = vmax.f32 %v7181, %v6067
        %v7183 = vmax.f32 %v7182, %v6068
        %v7184 = vmax.f32 %v7183, %v6069
        %v7185 = vmax.f32 %v7184, %v6070
        %7186 = vmax.xlane.f32.xlu0 %v7185
        %v7187 = vpop.xlane.xlu0 %7186
        %v7188 = vmax.f32 %v6071, %v6072
        %v7189 = vmax.f32 %v7188, %v6073
        %v7190 = vmax.f32 %v7189, %v6074
        %v7191 = vmax.f32 %v7190, %v6075
        %v7192 = vmax.f32 %v7191, %v6076
        %v7193 = vmax.f32 %v7192, %v6077
        %v7194 = vmax.f32 %v7193, %v6078
        %7195 = vmax.xlane.f32.xlu0 %v7194
        %v7196 = vpop.xlane.xlu0 %7195
        %v7197 = vmax.f32 %v6079, %v6080
        %v7198 = vmax.f32 %v7197, %v6081
        %v7199 = vmax.f32 %v7198, %v6082
        %v7200 = vmax.f32 %v7199, %v6083
        %v7201 = vmax.f32 %v7200, %v6084
        %v7202 = vmax.f32 %v7201, %v6085
        %v7203 = vmax.f32 %v7202, %v6086
        %7204 = vmax.xlane.f32.xlu0 %v7203
        %v7205 = vpop.xlane.xlu0 %7204
        %v7206 = vmax.f32 %v6087, %v6088
        %v7207 = vmax.f32 %v7206, %v6089
        %v7208 = vmax.f32 %v7207, %v6090
        %v7209 = vmax.f32 %v7208, %v6091
        %v7210 = vmax.f32 %v7209, %v6092
        %v7211 = vmax.f32 %v7210, %v6093
        %v7212 = vmax.f32 %v7211, %v6094
        %7213 = vmax.xlane.f32.xlu0 %v7212
        %v7214 = vpop.xlane.xlu0 %7213
        %v7215 = vmax.f32 %v6095, %v6096
        %v7216 = vmax.f32 %v7215, %v6097
        %v7217 = vmax.f32 %v7216, %v6098
        %v7218 = vmax.f32 %v7217, %v6099
        %v7219 = vmax.f32 %v7218, %v6100
        %v7220 = vmax.f32 %v7219, %v6101
        %v7221 = vmax.f32 %v7220, %v6102
        %7222 = vmax.xlane.f32.xlu0 %v7221
        %v7223 = vpop.xlane.xlu0 %7222
        %v7224 = vmax.f32 %v6103, %v6104
        %v7225 = vmax.f32 %v7224, %v6105
        %v7226 = vmax.f32 %v7225, %v6106
        %v7227 = vmax.f32 %v7226, %v6107
        %v7228 = vmax.f32 %v7227, %v6108
        %v7229 = vmax.f32 %v7228, %v6109
        %v7230 = vmax.f32 %v7229, %v6110
        %7231 = vmax.xlane.f32.xlu0 %v7230
        %v7232 = vpop.xlane.xlu0 %7231
        %v7233 = vmax.f32 %v6111, %v6112
        %v7234 = vmax.f32 %v7233, %v6113
        %v7235 = vmax.f32 %v7234, %v6114
        %v7236 = vmax.f32 %v7235, %v6115
        %v7237 = vmax.f32 %v7236, %v6116
        %v7238 = vmax.f32 %v7237, %v6117
        %v7239 = vmax.f32 %v7238, %v6118
        %7240 = vmax.xlane.f32.xlu0 %v7239
        %v7241 = vpop.xlane.xlu0 %7240
        %v7242 = vmax.f32 %v6119, %v6120
        %v7243 = vmax.f32 %v7242, %v6121
        %v7244 = vmax.f32 %v7243, %v6122
        %v7245 = vmax.f32 %v7244, %v6123
        %v7246 = vmax.f32 %v7245, %v6124
        %v7247 = vmax.f32 %v7246, %v6125
        %v7248 = vmax.f32 %v7247, %v6126
        %7249 = vmax.xlane.f32.xlu0 %v7248
        %v7250 = vpop.xlane.xlu0 %7249
        %v7251 = vmax.f32 %v6127, %v6128
        %v7252 = vmax.f32 %v7251, %v6129
        %v7253 = vmax.f32 %v7252, %v6130
        %v7254 = vmax.f32 %v7253, %v6131
        %v7255 = vmax.f32 %v7254, %v6132
        %v7256 = vmax.f32 %v7255, %v6133
        %v7257 = vmax.f32 %v7256, %v6134
        %7258 = vmax.xlane.f32.xlu0 %v7257
        %v7259 = vpop.xlane.xlu0 %7258
        %v7260 = vmax.f32 %v6135, %v6136
        %v7261 = vmax.f32 %v7260, %v6137
        %v7262 = vmax.f32 %v7261, %v6138
        %v7263 = vmax.f32 %v7262, %v6139
        %v7264 = vmax.f32 %v7263, %v6140
        %v7265 = vmax.f32 %v7264, %v6141
        %v7266 = vmax.f32 %v7265, %v6142
        %7267 = vmax.xlane.f32.xlu0 %v7266
        %v7268 = vpop.xlane.xlu0 %7267
        %v7269 = vmax.f32 %v6143, %v6144
        %v7270 = vmax.f32 %v7269, %v6145
        %v7271 = vmax.f32 %v7270, %v6146
        %v7272 = vmax.f32 %v7271, %v6147
        %v7273 = vmax.f32 %v7272, %v6148
        %v7274 = vmax.f32 %v7273, %v6149
        %v7275 = vmax.f32 %v7274, %v6150
        %7276 = vmax.xlane.f32.xlu0 %v7275
        %v7277 = vpop.xlane.xlu0 %7276
        %v7278 = vmax.f32 %v6151, %v6152
        %v7279 = vmax.f32 %v7278, %v6153
        %v7280 = vmax.f32 %v7279, %v6154
        %v7281 = vmax.f32 %v7280, %v6155
        %v7282 = vmax.f32 %v7281, %v6156
        %v7283 = vmax.f32 %v7282, %v6157
        %v7284 = vmax.f32 %v7283, %v6158
        %7285 = vmax.xlane.f32.xlu0 %v7284
        %v7286 = vpop.xlane.xlu0 %7285
        %v7287 = vmax.f32 %v6159, %v6160
        %v7288 = vmax.f32 %v7287, %v6161
        %v7289 = vmax.f32 %v7288, %v6162
        %v7290 = vmax.f32 %v7289, %v6163
        %v7291 = vmax.f32 %v7290, %v6164
        %v7292 = vmax.f32 %v7291, %v6165
        %v7293 = vmax.f32 %v7292, %v6166
        %7294 = vmax.xlane.f32.xlu0 %v7293
        %v7295 = vpop.xlane.xlu0 %7294
        %v7296 = vmax.f32 %v6167, %v6168
        %v7297 = vmax.f32 %v7296, %v6169
        %v7298 = vmax.f32 %v7297, %v6170
        %v7299 = vmax.f32 %v7298, %v6171
        %v7300 = vmax.f32 %v7299, %v6172
        %v7301 = vmax.f32 %v7300, %v6173
        %v7302 = vmax.f32 %v7301, %v6174
        %7303 = vmax.xlane.f32.xlu0 %v7302
        %v7304 = vpop.xlane.xlu0 %7303
        %v7305 = vmax.f32 %v6175, %v6176
        %v7306 = vmax.f32 %v7305, %v6177
        %v7307 = vmax.f32 %v7306, %v6178
        %v7308 = vmax.f32 %v7307, %v6179
        %v7309 = vmax.f32 %v7308, %v6180
        %v7310 = vmax.f32 %v7309, %v6181
        %v7311 = vmax.f32 %v7310, %v6182
        %7312 = vmax.xlane.f32.xlu0 %v7311
        %v7313 = vpop.xlane.xlu0 %7312
        %v7314 = vmax.f32 %v6183, %v6184
        %v7315 = vmax.f32 %v7314, %v6185
        %v7316 = vmax.f32 %v7315, %v6186
        %v7317 = vmax.f32 %v7316, %v6187
        %v7318 = vmax.f32 %v7317, %v6188
        %v7319 = vmax.f32 %v7318, %v6189
        %v7320 = vmax.f32 %v7319, %v6190
        %7321 = vmax.xlane.f32.xlu0 %v7320
        %v7322 = vpop.xlane.xlu0 %7321
        %v7323 = vmax.f32 %v6191, %v6192
        %v7324 = vmax.f32 %v7323, %v6193
        %v7325 = vmax.f32 %v7324, %v6194
        %v7326 = vmax.f32 %v7325, %v6195
        %v7327 = vmax.f32 %v7326, %v6196
        %v7328 = vmax.f32 %v7327, %v6197
        %v7329 = vmax.f32 %v7328, %v6198
        %7330 = vmax.xlane.f32.xlu0 %v7329
        %v7331 = vpop.xlane.xlu0 %7330
        %v7332 = vmax.f32 %v6199, %v6200
        %v7333 = vmax.f32 %v7332, %v6201
        %v7334 = vmax.f32 %v7333, %v6202
        %v7335 = vmax.f32 %v7334, %v6203
        %v7336 = vmax.f32 %v7335, %v6204
        %v7337 = vmax.f32 %v7336, %v6205
        %v7338 = vmax.f32 %v7337, %v6206
        %7339 = vmax.xlane.f32.xlu0 %v7338
        %v7340 = vpop.xlane.xlu0 %7339
        %v7341 = vmax.f32 %v6207, %v6208
        %v7342 = vmax.f32 %v7341, %v6209
        %v7343 = vmax.f32 %v7342, %v6210
        %v7344 = vmax.f32 %v7343, %v6211
        %v7345 = vmax.f32 %v7344, %v6212
        %v7346 = vmax.f32 %v7345, %v6213
        %v7347 = vmax.f32 %v7346, %v6214
        %7348 = vmax.xlane.f32.xlu0 %v7347
        %v7349 = vpop.xlane.xlu0 %7348
        %v7350 = vmax.f32 %v6215, %v6216
        %v7351 = vmax.f32 %v7350, %v6217
        %v7352 = vmax.f32 %v7351, %v6218
        %v7353 = vmax.f32 %v7352, %v6219
        %v7354 = vmax.f32 %v7353, %v6220
        %v7355 = vmax.f32 %v7354, %v6221
        %v7356 = vmax.f32 %v7355, %v6222
        %7357 = vmax.xlane.f32.xlu0 %v7356
        %v7358 = vpop.xlane.xlu0 %7357
        %v7359 = vmax.f32 %v6223, %v6224
        %v7360 = vmax.f32 %v7359, %v6225
        %v7361 = vmax.f32 %v7360, %v6226
        %v7362 = vmax.f32 %v7361, %v6227
        %v7363 = vmax.f32 %v7362, %v6228
        %v7364 = vmax.f32 %v7363, %v6229
        %v7365 = vmax.f32 %v7364, %v6230
        %7366 = vmax.xlane.f32.xlu0 %v7365
        %v7367 = vpop.xlane.xlu0 %7366
        %v7368 = vmax.f32 %v6231, %v6232
        %v7369 = vmax.f32 %v7368, %v6233
        %v7370 = vmax.f32 %v7369, %v6234
        %v7371 = vmax.f32 %v7370, %v6235
        %v7372 = vmax.f32 %v7371, %v6236
        %v7373 = vmax.f32 %v7372, %v6237
        %v7374 = vmax.f32 %v7373, %v6238
        %7375 = vmax.xlane.f32.xlu0 %v7374
        %v7376 = vpop.xlane.xlu0 %7375
        %v7377 = vmax.f32 %v6239, %v6240
        %v7378 = vmax.f32 %v7377, %v6241
        %v7379 = vmax.f32 %v7378, %v6242
        %v7380 = vmax.f32 %v7379, %v6243
        %v7381 = vmax.f32 %v7380, %v6244
        %v7382 = vmax.f32 %v7381, %v6245
        %v7383 = vmax.f32 %v7382, %v6246
        %7384 = vmax.xlane.f32.xlu0 %v7383
        %v7385 = vpop.xlane.xlu0 %7384
        %v7386 = vmax.f32 %v6247, %v6248
        %v7387 = vmax.f32 %v7386, %v6249
        %v7388 = vmax.f32 %v7387, %v6250
        %v7389 = vmax.f32 %v7388, %v6251
        %v7390 = vmax.f32 %v7389, %v6252
        %v7391 = vmax.f32 %v7390, %v6253
        %v7392 = vmax.f32 %v7391, %v6254
        %7393 = vmax.xlane.f32.xlu0 %v7392
        %v7394 = vpop.xlane.xlu0 %7393
        %v7395 = vmax.f32 %v6255, %v6256
        %v7396 = vmax.f32 %v7395, %v6257
        %v7397 = vmax.f32 %v7396, %v6258
        %v7398 = vmax.f32 %v7397, %v6259
        %v7399 = vmax.f32 %v7398, %v6260
        %v7400 = vmax.f32 %v7399, %v6261
        %v7401 = vmax.f32 %v7400, %v6262
        %7402 = vmax.xlane.f32.xlu0 %v7401
        %v7403 = vpop.xlane.xlu0 %7402
        %v7404 = vmax.f32 %v6263, %v6264
        %v7405 = vmax.f32 %v7404, %v6265
        %v7406 = vmax.f32 %v7405, %v6266
        %v7407 = vmax.f32 %v7406, %v6267
        %v7408 = vmax.f32 %v7407, %v6268
        %v7409 = vmax.f32 %v7408, %v6269
        %v7410 = vmax.f32 %v7409, %v6270
        %7411 = vmax.xlane.f32.xlu0 %v7410
        %v7412 = vpop.xlane.xlu0 %7411
        %v7413 = vmax.f32 %v6271, %v6272
        %v7414 = vmax.f32 %v7413, %v6273
        %v7415 = vmax.f32 %v7414, %v6274
        %v7416 = vmax.f32 %v7415, %v6275
        %v7417 = vmax.f32 %v7416, %v6276
        %v7418 = vmax.f32 %v7417, %v6277
        %v7419 = vmax.f32 %v7418, %v6278
        %7420 = vmax.xlane.f32.xlu0 %v7419
        %v7421 = vpop.xlane.xlu0 %7420
        %v7422 = vmax.f32 %v6279, %v6280
        %v7423 = vmax.f32 %v7422, %v6281
        %v7424 = vmax.f32 %v7423, %v6282
        %v7425 = vmax.f32 %v7424, %v6283
        %v7426 = vmax.f32 %v7425, %v6284
        %v7427 = vmax.f32 %v7426, %v6285
        %v7428 = vmax.f32 %v7427, %v6286
        %7429 = vmax.xlane.f32.xlu0 %v7428
        %v7430 = vpop.xlane.xlu0 %7429
        %v7431 = vmax.f32 %v6287, %v6288
        %v7432 = vmax.f32 %v7431, %v6289
        %v7433 = vmax.f32 %v7432, %v6290
        %v7434 = vmax.f32 %v7433, %v6291
        %v7435 = vmax.f32 %v7434, %v6292
        %v7436 = vmax.f32 %v7435, %v6293
        %v7437 = vmax.f32 %v7436, %v6294
        %7438 = vmax.xlane.f32.xlu0 %v7437
        %v7439 = vpop.xlane.xlu0 %7438
        %v7440 = vmax.f32 %v6295, %v6296
        %v7441 = vmax.f32 %v7440, %v6297
        %v7442 = vmax.f32 %v7441, %v6298
        %v7443 = vmax.f32 %v7442, %v6299
        %v7444 = vmax.f32 %v7443, %v6300
        %v7445 = vmax.f32 %v7444, %v6301
        %v7446 = vmax.f32 %v7445, %v6302
        %7447 = vmax.xlane.f32.xlu0 %v7446
        %v7448 = vpop.xlane.xlu0 %7447
        %v7449 = vmax.f32 %v6303, %v6304
        %v7450 = vmax.f32 %v7449, %v6305
        %v7451 = vmax.f32 %v7450, %v6306
        %v7452 = vmax.f32 %v7451, %v6307
        %v7453 = vmax.f32 %v7452, %v6308
        %v7454 = vmax.f32 %v7453, %v6309
        %v7455 = vmax.f32 %v7454, %v6310
        %7456 = vmax.xlane.f32.xlu0 %v7455
        %v7457 = vpop.xlane.xlu0 %7456
        %v7458 = vmax.f32 %v6311, %v6312
        %v7459 = vmax.f32 %v7458, %v6313
        %v7460 = vmax.f32 %v7459, %v6314
        %v7461 = vmax.f32 %v7460, %v6315
        %v7462 = vmax.f32 %v7461, %v6316
        %v7463 = vmax.f32 %v7462, %v6317
        %v7464 = vmax.f32 %v7463, %v6318
        %7465 = vmax.xlane.f32.xlu0 %v7464
        %v7466 = vpop.xlane.xlu0 %7465
        %v7467 = vmax.f32 %v6319, %v6320
        %v7468 = vmax.f32 %v7467, %v6321
        %v7469 = vmax.f32 %v7468, %v6322
        %v7470 = vmax.f32 %v7469, %v6323
        %v7471 = vmax.f32 %v7470, %v6324
        %v7472 = vmax.f32 %v7471, %v6325
        %v7473 = vmax.f32 %v7472, %v6326
        %7474 = vmax.xlane.f32.xlu0 %v7473
        %v7475 = vpop.xlane.xlu0 %7474
        %v7476 = vmax.f32 %v6327, %v6328
        %v7477 = vmax.f32 %v7476, %v6329
        %v7478 = vmax.f32 %v7477, %v6330
        %v7479 = vmax.f32 %v7478, %v6331
        %v7480 = vmax.f32 %v7479, %v6332
        %v7481 = vmax.f32 %v7480, %v6333
        %v7482 = vmax.f32 %v7481, %v6334
        %7483 = vmax.xlane.f32.xlu0 %v7482
        %v7484 = vpop.xlane.xlu0 %7483
        %v7485 = vmax.f32 %v6335, %v6336
        %v7486 = vmax.f32 %v7485, %v6337
        %v7487 = vmax.f32 %v7486, %v6338
        %v7488 = vmax.f32 %v7487, %v6339
        %v7489 = vmax.f32 %v7488, %v6340
        %v7490 = vmax.f32 %v7489, %v6341
        %v7491 = vmax.f32 %v7490, %v6342
        %7492 = vmax.xlane.f32.xlu0 %v7491
        %v7493 = vpop.xlane.xlu0 %7492
        %v7494 = vmax.f32 %v6343, %v6344
        %v7495 = vmax.f32 %v7494, %v6345
        %v7496 = vmax.f32 %v7495, %v6346
        %v7497 = vmax.f32 %v7496, %v6347
        %v7498 = vmax.f32 %v7497, %v6348
        %v7499 = vmax.f32 %v7498, %v6349
        %v7500 = vmax.f32 %v7499, %v6350
        %7501 = vmax.xlane.f32.xlu0 %v7500
        %v7502 = vpop.xlane.xlu0 %7501
        %p7503 = scmp.eq.s32.totalorder %s27, 0
        // Predicated region
        $region45: #{tpu_custom_call.1} parent=39 // pred_check
          %p7504 = pneg %p7503
        $region46: #{tpu_custom_call.1} parent=39 // pred_check_branch
          %7506 = sbr.rel (%p7504) target = $region48
        $region47: #{tpu_custom_call.1} parent=39 // pred_region
          %vm7507 = vcmask 7168
          %7508 = vst.msk [vmem:[%s308] sm:$0xff] %vm7507, %v6359
          %7509 = vst.msk [vmem:[%s308 + $0x8] sm:$0xff] %vm7507, %v6368
          %7510 = vst.msk [vmem:[%s308 + $0x10] sm:$0xff] %vm7507, %v6377
          %7511 = vst.msk [vmem:[%s308 + $0x18] sm:$0xff] %vm7507, %v6386
          %7512 = vst.msk [vmem:[%s308 + $0x20] sm:$0xff] %vm7507, %v6395
          %7513 = vst.msk [vmem:[%s308 + $0x28] sm:$0xff] %vm7507, %v6404
          %7514 = vst.msk [vmem:[%s308 + $0x30] sm:$0xff] %vm7507, %v6413
          %7515 = vst.msk [vmem:[%s308 + $0x38] sm:$0xff] %vm7507, %v6422
          %7516 = vst.msk [vmem:[%s308 + $0x40] sm:$0xff] %vm7507, %v6431
          %7517 = vst.msk [vmem:[%s308 + $0x48] sm:$0xff] %vm7507, %v6440
          %7518 = vst.msk [vmem:[%s308 + $0x50] sm:$0xff] %vm7507, %v6449
          %7519 = vst.msk [vmem:[%s308 + $0x58] sm:$0xff] %vm7507, %v6458
          %7520 = vst.msk [vmem:[%s308 + $0x60] sm:$0xff] %vm7507, %v6467
          %7521 = vst.msk [vmem:[%s308 + $0x68] sm:$0xff] %vm7507, %v6476
          %7522 = vst.msk [vmem:[%s308 + $0x70] sm:$0xff] %vm7507, %v6485
          %7523 = vst.msk [vmem:[%s308 + $0x78] sm:$0xff] %vm7507, %v6494
          %7524 = vst.msk [vmem:[%s308 + $0x80] sm:$0xff] %vm7507, %v6503
          %7525 = vst.msk [vmem:[%s308 + $0x88] sm:$0xff] %vm7507, %v6512
          %7526 = vst.msk [vmem:[%s308 + $0x90] sm:$0xff] %vm7507, %v6521
          %7527 = vst.msk [vmem:[%s308 + $0x98] sm:$0xff] %vm7507, %v6530
          %7528 = vst.msk [vmem:[%s308 + $0xa0] sm:$0xff] %vm7507, %v6539
          %7529 = vst.msk [vmem:[%s308 + $0xa8] sm:$0xff] %vm7507, %v6548
          %7530 = vst.msk [vmem:[%s308 + $0xb0] sm:$0xff] %vm7507, %v6557
          %7531 = vst.msk [vmem:[%s308 + $0xb8] sm:$0xff] %vm7507, %v6566
          %7532 = vst.msk [vmem:[%s308 + $0xc0] sm:$0xff] %vm7507, %v6575
          %7533 = vst.msk [vmem:[%s308 + $0xc8] sm:$0xff] %vm7507, %v6584
          %7534 = vst.msk [vmem:[%s308 + $0xd0] sm:$0xff] %vm7507, %v6593
          %7535 = vst.msk [vmem:[%s308 + $0xd8] sm:$0xff] %vm7507, %v6602
          %7536 = vst.msk [vmem:[%s308 + $0xe0] sm:$0xff] %vm7507, %v6611
          %7537 = vst.msk [vmem:[%s308 + $0xe8] sm:$0xff] %vm7507, %v6620
          %7538 = vst.msk [vmem:[%s308 + $0xf0] sm:$0xff] %vm7507, %v6629
          %7539 = vst.msk [vmem:[%s308 + $0xf8] sm:$0xff] %vm7507, %v6638
          %7540 = vst.msk [vmem:[%s308 + $0x100] sm:$0xff] %vm7507, %v6647
          %7541 = vst.msk [vmem:[%s308 + $0x108] sm:$0xff] %vm7507, %v6656
          %7542 = vst.msk [vmem:[%s308 + $0x110] sm:$0xff] %vm7507, %v6665
          %7543 = vst.msk [vmem:[%s308 + $0x118] sm:$0xff] %vm7507, %v6674
          %7544 = vst.msk [vmem:[%s308 + $0x120] sm:$0xff] %vm7507, %v6683
          %7545 = vst.msk [vmem:[%s308 + $0x128] sm:$0xff] %vm7507, %v6692
          %7546 = vst.msk [vmem:[%s308 + $0x130] sm:$0xff] %vm7507, %v6701
          %7547 = vst.msk [vmem:[%s308 + $0x138] sm:$0xff] %vm7507, %v6710
          %7548 = vst.msk [vmem:[%s308 + $0x140] sm:$0xff] %vm7507, %v6719
          %7549 = vst.msk [vmem:[%s308 + $0x148] sm:$0xff] %vm7507, %v6728
          %7550 = vst.msk [vmem:[%s308 + $0x150] sm:$0xff] %vm7507, %v6737
          %7551 = vst.msk [vmem:[%s308 + $0x158] sm:$0xff] %vm7507, %v6746
          %7552 = vst.msk [vmem:[%s308 + $0x160] sm:$0xff] %vm7507, %v6755
          %7553 = vst.msk [vmem:[%s308 + $0x168] sm:$0xff] %vm7507, %v6764
          %7554 = vst.msk [vmem:[%s308 + $0x170] sm:$0xff] %vm7507, %v6773
          %7555 = vst.msk [vmem:[%s308 + $0x178] sm:$0xff] %vm7507, %v6782
          %7556 = vst.msk [vmem:[%s308 + $0x180] sm:$0xff] %vm7507, %v6791
          %7557 = vst.msk [vmem:[%s308 + $0x188] sm:$0xff] %vm7507, %v6800
          %7558 = vst.msk [vmem:[%s308 + $0x190] sm:$0xff] %vm7507, %v6809
          %7559 = vst.msk [vmem:[%s308 + $0x198] sm:$0xff] %vm7507, %v6818
          %7560 = vst.msk [vmem:[%s308 + $0x1a0] sm:$0xff] %vm7507, %v6827
          %7561 = vst.msk [vmem:[%s308 + $0x1a8] sm:$0xff] %vm7507, %v6836
          %7562 = vst.msk [vmem:[%s308 + $0x1b0] sm:$0xff] %vm7507, %v6845
          %7563 = vst.msk [vmem:[%s308 + $0x1b8] sm:$0xff] %vm7507, %v6854
          %7564 = vst.msk [vmem:[%s308 + $0x1c0] sm:$0xff] %vm7507, %v6863
          %7565 = vst.msk [vmem:[%s308 + $0x1c8] sm:$0xff] %vm7507, %v6872
          %7566 = vst.msk [vmem:[%s308 + $0x1d0] sm:$0xff] %vm7507, %v6881
          %7567 = vst.msk [vmem:[%s308 + $0x1d8] sm:$0xff] %vm7507, %v6890
          %7568 = vst.msk [vmem:[%s308 + $0x1e0] sm:$0xff] %vm7507, %v6899
          %7569 = vst.msk [vmem:[%s308 + $0x1e8] sm:$0xff] %vm7507, %v6908
          %7570 = vst.msk [vmem:[%s308 + $0x1f0] sm:$0xff] %vm7507, %v6917
          %7571 = vst.msk [vmem:[%s308 + $0x1f8] sm:$0xff] %vm7507, %v6926
          %7572 = vst.msk [vmem:[%s308 + $0x200] sm:$0xff] %vm7507, %v6935
          %7573 = vst.msk [vmem:[%s308 + $0x208] sm:$0xff] %vm7507, %v6944
          %7574 = vst.msk [vmem:[%s308 + $0x210] sm:$0xff] %vm7507, %v6953
          %7575 = vst.msk [vmem:[%s308 + $0x218] sm:$0xff] %vm7507, %v6962
          %7576 = vst.msk [vmem:[%s308 + $0x220] sm:$0xff] %vm7507, %v6971
          %7577 = vst.msk [vmem:[%s308 + $0x228] sm:$0xff] %vm7507, %v6980
          %7578 = vst.msk [vmem:[%s308 + $0x230] sm:$0xff] %vm7507, %v6989
          %7579 = vst.msk [vmem:[%s308 + $0x238] sm:$0xff] %vm7507, %v6998
          %7580 = vst.msk [vmem:[%s308 + $0x240] sm:$0xff] %vm7507, %v7007
          %7581 = vst.msk [vmem:[%s308 + $0x248] sm:$0xff] %vm7507, %v7016
          %7582 = vst.msk [vmem:[%s308 + $0x250] sm:$0xff] %vm7507, %v7025
          %7583 = vst.msk [vmem:[%s308 + $0x258] sm:$0xff] %vm7507, %v7034
          %7584 = vst.msk [vmem:[%s308 + $0x260] sm:$0xff] %vm7507, %v7043
          %7585 = vst.msk [vmem:[%s308 + $0x268] sm:$0xff] %vm7507, %v7052
          %7586 = vst.msk [vmem:[%s308 + $0x270] sm:$0xff] %vm7507, %v7061
          %7587 = vst.msk [vmem:[%s308 + $0x278] sm:$0xff] %vm7507, %v7070
          %7588 = vst.msk [vmem:[%s308 + $0x280] sm:$0xff] %vm7507, %v7079
          %7589 = vst.msk [vmem:[%s308 + $0x288] sm:$0xff] %vm7507, %v7088
          %7590 = vst.msk [vmem:[%s308 + $0x290] sm:$0xff] %vm7507, %v7097
          %7591 = vst.msk [vmem:[%s308 + $0x298] sm:$0xff] %vm7507, %v7106
          %7592 = vst.msk [vmem:[%s308 + $0x2a0] sm:$0xff] %vm7507, %v7115
          %7593 = vst.msk [vmem:[%s308 + $0x2a8] sm:$0xff] %vm7507, %v7124
          %7594 = vst.msk [vmem:[%s308 + $0x2b0] sm:$0xff] %vm7507, %v7133
          %7595 = vst.msk [vmem:[%s308 + $0x2b8] sm:$0xff] %vm7507, %v7142
          %7596 = vst.msk [vmem:[%s308 + $0x2c0] sm:$0xff] %vm7507, %v7151
          %7597 = vst.msk [vmem:[%s308 + $0x2c8] sm:$0xff] %vm7507, %v7160
          %7598 = vst.msk [vmem:[%s308 + $0x2d0] sm:$0xff] %vm7507, %v7169
          %7599 = vst.msk [vmem:[%s308 + $0x2d8] sm:$0xff] %vm7507, %v7178
          %7600 = vst.msk [vmem:[%s308 + $0x2e0] sm:$0xff] %vm7507, %v7187
          %7601 = vst.msk [vmem:[%s308 + $0x2e8] sm:$0xff] %vm7507, %v7196
          %7602 = vst.msk [vmem:[%s308 + $0x2f0] sm:$0xff] %vm7507, %v7205
          %7603 = vst.msk [vmem:[%s308 + $0x2f8] sm:$0xff] %vm7507, %v7214
          %7604 = vst.msk [vmem:[%s308 + $0x300] sm:$0xff] %vm7507, %v7223
          %7605 = vst.msk [vmem:[%s308 + $0x308] sm:$0xff] %vm7507, %v7232
          %7606 = vst.msk [vmem:[%s308 + $0x310] sm:$0xff] %vm7507, %v7241
          %7607 = vst.msk [vmem:[%s308 + $0x318] sm:$0xff] %vm7507, %v7250
          %7608 = vst.msk [vmem:[%s308 + $0x320] sm:$0xff] %vm7507, %v7259
          %7609 = vst.msk [vmem:[%s308 + $0x328] sm:$0xff] %vm7507, %v7268
          %7610 = vst.msk [vmem:[%s308 + $0x330] sm:$0xff] %vm7507, %v7277
          %7611 = vst.msk [vmem:[%s308 + $0x338] sm:$0xff] %vm7507, %v7286
          %7612 = vst.msk [vmem:[%s308 + $0x340] sm:$0xff] %vm7507, %v7295
          %7613 = vst.msk [vmem:[%s308 + $0x348] sm:$0xff] %vm7507, %v7304
          %7614 = vst.msk [vmem:[%s308 + $0x350] sm:$0xff] %vm7507, %v7313
          %7615 = vst.msk [vmem:[%s308 + $0x358] sm:$0xff] %vm7507, %v7322
          %7616 = vst.msk [vmem:[%s308 + $0x360] sm:$0xff] %vm7507, %v7331
          %7617 = vst.msk [vmem:[%s308 + $0x368] sm:$0xff] %vm7507, %v7340
          %7618 = vst.msk [vmem:[%s308 + $0x370] sm:$0xff] %vm7507, %v7349
          %7619 = vst.msk [vmem:[%s308 + $0x378] sm:$0xff] %vm7507, %v7358
          %7620 = vst.msk [vmem:[%s308 + $0x380] sm:$0xff] %vm7507, %v7367
          %7621 = vst.msk [vmem:[%s308 + $0x388] sm:$0xff] %vm7507, %v7376
          %7622 = vst.msk [vmem:[%s308 + $0x390] sm:$0xff] %vm7507, %v7385
          %7623 = vst.msk [vmem:[%s308 + $0x398] sm:$0xff] %vm7507, %v7394
          %7624 = vst.msk [vmem:[%s308 + $0x3a0] sm:$0xff] %vm7507, %v7403
          %7625 = vst.msk [vmem:[%s308 + $0x3a8] sm:$0xff] %vm7507, %v7412
          %7626 = vst.msk [vmem:[%s308 + $0x3b0] sm:$0xff] %vm7507, %v7421
          %7627 = vst.msk [vmem:[%s308 + $0x3b8] sm:$0xff] %vm7507, %v7430
          %7628 = vst.msk [vmem:[%s308 + $0x3c0] sm:$0xff] %vm7507, %v7439
          %7629 = vst.msk [vmem:[%s308 + $0x3c8] sm:$0xff] %vm7507, %v7448
          %7630 = vst.msk [vmem:[%s308 + $0x3d0] sm:$0xff] %vm7507, %v7457
          %7631 = vst.msk [vmem:[%s308 + $0x3d8] sm:$0xff] %vm7507, %v7466
          %7632 = vst.msk [vmem:[%s308 + $0x3e0] sm:$0xff] %vm7507, %v7475
          %7633 = vst.msk [vmem:[%s308 + $0x3e8] sm:$0xff] %vm7507, %v7484
          %7634 = vst.msk [vmem:[%s308 + $0x3f0] sm:$0xff] %vm7507, %v7493
          %7635 = vst.msk [vmem:[%s308 + $0x3f8] sm:$0xff] %vm7507, %v7502
        $region48: #{tpu_custom_call.1} parent=39 // pred_fallthru
          _
        %p7636 = scmp.gt.s32.totalorder %s27, 0
        // Predicated region
        $region49: #{tpu_custom_call.1} parent=39 // pred_check
          %p7637 = pneg %p7636
        $region50: #{tpu_custom_call.1} parent=39 // pred_check_branch
          %7639 = sbr.rel (%p7637) target = $region52
        $region51: #{tpu_custom_call.1} parent=39 // pred_region
          %v7640 = vld [vmem:[%s308] sm:$0xff]
          %v7641 = vld [vmem:[%s308 + $0x8] sm:$0xff]
          %v7642 = vld [vmem:[%s308 + $0x10] sm:$0xff]
          %v7643 = vld [vmem:[%s308 + $0x18] sm:$0xff]
          %v7644 = vld [vmem:[%s308 + $0x20] sm:$0xff]
          %v7645 = vld [vmem:[%s308 + $0x28] sm:$0xff]
          %v7646 = vld [vmem:[%s308 + $0x30] sm:$0xff]
          %v7647 = vld [vmem:[%s308 + $0x38] sm:$0xff]
          %v7648 = vld [vmem:[%s308 + $0x40] sm:$0xff]
          %v7649 = vld [vmem:[%s308 + $0x48] sm:$0xff]
          %v7650 = vld [vmem:[%s308 + $0x50] sm:$0xff]
          %v7651 = vld [vmem:[%s308 + $0x58] sm:$0xff]
          %v7652 = vld [vmem:[%s308 + $0x60] sm:$0xff]
          %v7653 = vld [vmem:[%s308 + $0x68] sm:$0xff]
          %v7654 = vld [vmem:[%s308 + $0x70] sm:$0xff]
          %v7655 = vld [vmem:[%s308 + $0x78] sm:$0xff]
          %v7656 = vld [vmem:[%s308 + $0x80] sm:$0xff]
          %v7657 = vld [vmem:[%s308 + $0x88] sm:$0xff]
          %v7658 = vld [vmem:[%s308 + $0x90] sm:$0xff]
          %v7659 = vld [vmem:[%s308 + $0x98] sm:$0xff]
          %v7660 = vld [vmem:[%s308 + $0xa0] sm:$0xff]
          %v7661 = vld [vmem:[%s308 + $0xa8] sm:$0xff]
          %v7662 = vld [vmem:[%s308 + $0xb0] sm:$0xff]
          %v7663 = vld [vmem:[%s308 + $0xb8] sm:$0xff]
          %v7664 = vld [vmem:[%s308 + $0xc0] sm:$0xff]
          %v7665 = vld [vmem:[%s308 + $0xc8] sm:$0xff]
          %v7666 = vld [vmem:[%s308 + $0xd0] sm:$0xff]
          %v7667 = vld [vmem:[%s308 + $0xd8] sm:$0xff]
          %v7668 = vld [vmem:[%s308 + $0xe0] sm:$0xff]
          %v7669 = vld [vmem:[%s308 + $0xe8] sm:$0xff]
          %v7670 = vld [vmem:[%s308 + $0xf0] sm:$0xff]
          %v7671 = vld [vmem:[%s308 + $0xf8] sm:$0xff]
          %v7672 = vld [vmem:[%s308 + $0x100] sm:$0xff]
          %v7673 = vld [vmem:[%s308 + $0x108] sm:$0xff]
          %v7674 = vld [vmem:[%s308 + $0x110] sm:$0xff]
          %v7675 = vld [vmem:[%s308 + $0x118] sm:$0xff]
          %v7676 = vld [vmem:[%s308 + $0x120] sm:$0xff]
          %v7677 = vld [vmem:[%s308 + $0x128] sm:$0xff]
          %v7678 = vld [vmem:[%s308 + $0x130] sm:$0xff]
          %v7679 = vld [vmem:[%s308 + $0x138] sm:$0xff]
          %v7680 = vld [vmem:[%s308 + $0x140] sm:$0xff]
          %v7681 = vld [vmem:[%s308 + $0x148] sm:$0xff]
          %v7682 = vld [vmem:[%s308 + $0x150] sm:$0xff]
          %v7683 = vld [vmem:[%s308 + $0x158] sm:$0xff]
          %v7684 = vld [vmem:[%s308 + $0x160] sm:$0xff]
          %v7685 = vld [vmem:[%s308 + $0x168] sm:$0xff]
          %v7686 = vld [vmem:[%s308 + $0x170] sm:$0xff]
          %v7687 = vld [vmem:[%s308 + $0x178] sm:$0xff]
          %v7688 = vld [vmem:[%s308 + $0x180] sm:$0xff]
          %v7689 = vld [vmem:[%s308 + $0x188] sm:$0xff]
          %v7690 = vld [vmem:[%s308 + $0x190] sm:$0xff]
          %v7691 = vld [vmem:[%s308 + $0x198] sm:$0xff]
          %v7692 = vld [vmem:[%s308 + $0x1a0] sm:$0xff]
          %v7693 = vld [vmem:[%s308 + $0x1a8] sm:$0xff]
          %v7694 = vld [vmem:[%s308 + $0x1b0] sm:$0xff]
          %v7695 = vld [vmem:[%s308 + $0x1b8] sm:$0xff]
          %v7696 = vld [vmem:[%s308 + $0x1c0] sm:$0xff]
          %v7697 = vld [vmem:[%s308 + $0x1c8] sm:$0xff]
          %v7698 = vld [vmem:[%s308 + $0x1d0] sm:$0xff]
          %v7699 = vld [vmem:[%s308 + $0x1d8] sm:$0xff]
          %v7700 = vld [vmem:[%s308 + $0x1e0] sm:$0xff]
          %v7701 = vld [vmem:[%s308 + $0x1e8] sm:$0xff]
          %v7702 = vld [vmem:[%s308 + $0x1f0] sm:$0xff]
          %v7703 = vld [vmem:[%s308 + $0x1f8] sm:$0xff]
          %v7704 = vld [vmem:[%s308 + $0x200] sm:$0xff]
          %v7705 = vld [vmem:[%s308 + $0x208] sm:$0xff]
          %v7706 = vld [vmem:[%s308 + $0x210] sm:$0xff]
          %v7707 = vld [vmem:[%s308 + $0x218] sm:$0xff]
          %v7708 = vld [vmem:[%s308 + $0x220] sm:$0xff]
          %v7709 = vld [vmem:[%s308 + $0x228] sm:$0xff]
          %v7710 = vld [vmem:[%s308 + $0x230] sm:$0xff]
          %v7711 = vld [vmem:[%s308 + $0x238] sm:$0xff]
          %v7712 = vld [vmem:[%s308 + $0x240] sm:$0xff]
          %v7713 = vld [vmem:[%s308 + $0x248] sm:$0xff]
          %v7714 = vld [vmem:[%s308 + $0x250] sm:$0xff]
          %v7715 = vld [vmem:[%s308 + $0x258] sm:$0xff]
          %v7716 = vld [vmem:[%s308 + $0x260] sm:$0xff]
          %v7717 = vld [vmem:[%s308 + $0x268] sm:$0xff]
          %v7718 = vld [vmem:[%s308 + $0x270] sm:$0xff]
          %v7719 = vld [vmem:[%s308 + $0x278] sm:$0xff]
          %v7720 = vld [vmem:[%s308 + $0x280] sm:$0xff]
          %v7721 = vld [vmem:[%s308 + $0x288] sm:$0xff]
          %v7722 = vld [vmem:[%s308 + $0x290] sm:$0xff]
          %v7723 = vld [vmem:[%s308 + $0x298] sm:$0xff]
          %v7724 = vld [vmem:[%s308 + $0x2a0] sm:$0xff]
          %v7725 = vld [vmem:[%s308 + $0x2a8] sm:$0xff]
          %v7726 = vld [vmem:[%s308 + $0x2b0] sm:$0xff]
          %v7727 = vld [vmem:[%s308 + $0x2b8] sm:$0xff]
          %v7728 = vld [vmem:[%s308 + $0x2c0] sm:$0xff]
          %v7729 = vld [vmem:[%s308 + $0x2c8] sm:$0xff]
          %v7730 = vld [vmem:[%s308 + $0x2d0] sm:$0xff]
          %v7731 = vld [vmem:[%s308 + $0x2d8] sm:$0xff]
          %v7732 = vld [vmem:[%s308 + $0x2e0] sm:$0xff]
          %v7733 = vld [vmem:[%s308 + $0x2e8] sm:$0xff]
          %v7734 = vld [vmem:[%s308 + $0x2f0] sm:$0xff]
          %v7735 = vld [vmem:[%s308 + $0x2f8] sm:$0xff]
          %v7736 = vld [vmem:[%s308 + $0x300] sm:$0xff]
          %v7737 = vld [vmem:[%s308 + $0x308] sm:$0xff]
          %v7738 = vld [vmem:[%s308 + $0x310] sm:$0xff]
          %v7739 = vld [vmem:[%s308 + $0x318] sm:$0xff]
          %v7740 = vld [vmem:[%s308 + $0x320] sm:$0xff]
          %v7741 = vld [vmem:[%s308 + $0x328] sm:$0xff]
          %v7742 = vld [vmem:[%s308 + $0x330] sm:$0xff]
          %v7743 = vld [vmem:[%s308 + $0x338] sm:$0xff]
          %v7744 = vld [vmem:[%s308 + $0x340] sm:$0xff]
          %v7745 = vld [vmem:[%s308 + $0x348] sm:$0xff]
          %v7746 = vld [vmem:[%s308 + $0x350] sm:$0xff]
          %v7747 = vld [vmem:[%s308 + $0x358] sm:$0xff]
          %v7748 = vld [vmem:[%s308 + $0x360] sm:$0xff]
          %v7749 = vld [vmem:[%s308 + $0x368] sm:$0xff]
          %v7750 = vld [vmem:[%s308 + $0x370] sm:$0xff]
          %v7751 = vld [vmem:[%s308 + $0x378] sm:$0xff]
          %v7752 = vld [vmem:[%s308 + $0x380] sm:$0xff]
          %v7753 = vld [vmem:[%s308 + $0x388] sm:$0xff]
          %v7754 = vld [vmem:[%s308 + $0x390] sm:$0xff]
          %v7755 = vld [vmem:[%s308 + $0x398] sm:$0xff]
          %v7756 = vld [vmem:[%s308 + $0x3a0] sm:$0xff]
          %v7757 = vld [vmem:[%s308 + $0x3a8] sm:$0xff]
          %v7758 = vld [vmem:[%s308 + $0x3b0] sm:$0xff]
          %v7759 = vld [vmem:[%s308 + $0x3b8] sm:$0xff]
          %v7760 = vld [vmem:[%s308 + $0x3c0] sm:$0xff]
          %v7761 = vld [vmem:[%s308 + $0x3c8] sm:$0xff]
          %v7762 = vld [vmem:[%s308 + $0x3d0] sm:$0xff]
          %v7763 = vld [vmem:[%s308 + $0x3d8] sm:$0xff]
          %v7764 = vld [vmem:[%s308 + $0x3e0] sm:$0xff]
          %v7765 = vld [vmem:[%s308 + $0x3e8] sm:$0xff]
          %v7766 = vld [vmem:[%s308 + $0x3f0] sm:$0xff]
          %v7767 = vld [vmem:[%s308 + $0x3f8] sm:$0xff]
          %v7768 = vmax.f32 %v7640, %v6359
          %v7769 = vmax.f32 %v7641, %v6368
          %v7770 = vmax.f32 %v7642, %v6377
          %v7771 = vmax.f32 %v7643, %v6386
          %v7772 = vmax.f32 %v7644, %v6395
          %v7773 = vmax.f32 %v7645, %v6404
          %v7774 = vmax.f32 %v7646, %v6413
          %v7775 = vmax.f32 %v7647, %v6422
          %v7776 = vmax.f32 %v7648, %v6431
          %v7777 = vmax.f32 %v7649, %v6440
          %v7778 = vmax.f32 %v7650, %v6449
          %v7779 = vmax.f32 %v7651, %v6458
          %v7780 = vmax.f32 %v7652, %v6467
          %v7781 = vmax.f32 %v7653, %v6476
          %v7782 = vmax.f32 %v7654, %v6485
          %v7783 = vmax.f32 %v7655, %v6494
          %v7784 = vmax.f32 %v7656, %v6503
          %v7785 = vmax.f32 %v7657, %v6512
          %v7786 = vmax.f32 %v7658, %v6521
          %v7787 = vmax.f32 %v7659, %v6530
          %v7788 = vmax.f32 %v7660, %v6539
          %v7789 = vmax.f32 %v7661, %v6548
          %v7790 = vmax.f32 %v7662, %v6557
          %v7791 = vmax.f32 %v7663, %v6566
          %v7792 = vmax.f32 %v7664, %v6575
          %v7793 = vmax.f32 %v7665, %v6584
          %v7794 = vmax.f32 %v7666, %v6593
          %v7795 = vmax.f32 %v7667, %v6602
          %v7796 = vmax.f32 %v7668, %v6611
          %v7797 = vmax.f32 %v7669, %v6620
          %v7798 = vmax.f32 %v7670, %v6629
          %v7799 = vmax.f32 %v7671, %v6638
          %v7800 = vmax.f32 %v7672, %v6647
          %v7801 = vmax.f32 %v7673, %v6656
          %v7802 = vmax.f32 %v7674, %v6665
          %v7803 = vmax.f32 %v7675, %v6674
          %v7804 = vmax.f32 %v7676, %v6683
          %v7805 = vmax.f32 %v7677, %v6692
          %v7806 = vmax.f32 %v7678, %v6701
          %v7807 = vmax.f32 %v7679, %v6710
          %v7808 = vmax.f32 %v7680, %v6719
          %v7809 = vmax.f32 %v7681, %v6728
          %v7810 = vmax.f32 %v7682, %v6737
          %v7811 = vmax.f32 %v7683, %v6746
          %v7812 = vmax.f32 %v7684, %v6755
          %v7813 = vmax.f32 %v7685, %v6764
          %v7814 = vmax.f32 %v7686, %v6773
          %v7815 = vmax.f32 %v7687, %v6782
          %v7816 = vmax.f32 %v7688, %v6791
          %v7817 = vmax.f32 %v7689, %v6800
          %v7818 = vmax.f32 %v7690, %v6809
          %v7819 = vmax.f32 %v7691, %v6818
          %v7820 = vmax.f32 %v7692, %v6827
          %v7821 = vmax.f32 %v7693, %v6836
          %v7822 = vmax.f32 %v7694, %v6845
          %v7823 = vmax.f32 %v7695, %v6854
          %v7824 = vmax.f32 %v7696, %v6863
          %v7825 = vmax.f32 %v7697, %v6872
          %v7826 = vmax.f32 %v7698, %v6881
          %v7827 = vmax.f32 %v7699, %v6890
          %v7828 = vmax.f32 %v7700, %v6899
          %v7829 = vmax.f32 %v7701, %v6908
          %v7830 = vmax.f32 %v7702, %v6917
          %v7831 = vmax.f32 %v7703, %v6926
          %v7832 = vmax.f32 %v7704, %v6935
          %v7833 = vmax.f32 %v7705, %v6944
          %v7834 = vmax.f32 %v7706, %v6953
          %v7835 = vmax.f32 %v7707, %v6962
          %v7836 = vmax.f32 %v7708, %v6971
          %v7837 = vmax.f32 %v7709, %v6980
          %v7838 = vmax.f32 %v7710, %v6989
          %v7839 = vmax.f32 %v7711, %v6998
          %v7840 = vmax.f32 %v7712, %v7007
          %v7841 = vmax.f32 %v7713, %v7016
          %v7842 = vmax.f32 %v7714, %v7025
          %v7843 = vmax.f32 %v7715, %v7034
          %v7844 = vmax.f32 %v7716, %v7043
          %v7845 = vmax.f32 %v7717, %v7052
          %v7846 = vmax.f32 %v7718, %v7061
          %v7847 = vmax.f32 %v7719, %v7070
          %v7848 = vmax.f32 %v7720, %v7079
          %v7849 = vmax.f32 %v7721, %v7088
          %v7850 = vmax.f32 %v7722, %v7097
          %v7851 = vmax.f32 %v7723, %v7106
          %v7852 = vmax.f32 %v7724, %v7115
          %v7853 = vmax.f32 %v7725, %v7124
          %v7854 = vmax.f32 %v7726, %v7133
          %v7855 = vmax.f32 %v7727, %v7142
          %v7856 = vmax.f32 %v7728, %v7151
          %v7857 = vmax.f32 %v7729, %v7160
          %v7858 = vmax.f32 %v7730, %v7169
          %v7859 = vmax.f32 %v7731, %v7178
          %v7860 = vmax.f32 %v7732, %v7187
          %v7861 = vmax.f32 %v7733, %v7196
          %v7862 = vmax.f32 %v7734, %v7205
          %v7863 = vmax.f32 %v7735, %v7214
          %v7864 = vmax.f32 %v7736, %v7223
          %v7865 = vmax.f32 %v7737, %v7232
          %v7866 = vmax.f32 %v7738, %v7241
          %v7867 = vmax.f32 %v7739, %v7250
          %v7868 = vmax.f32 %v7740, %v7259
          %v7869 = vmax.f32 %v7741, %v7268
          %v7870 = vmax.f32 %v7742, %v7277
          %v7871 = vmax.f32 %v7743, %v7286
          %v7872 = vmax.f32 %v7744, %v7295
          %v7873 = vmax.f32 %v7745, %v7304
          %v7874 = vmax.f32 %v7746, %v7313
          %v7875 = vmax.f32 %v7747, %v7322
          %v7876 = vmax.f32 %v7748, %v7331
          %v7877 = vmax.f32 %v7749, %v7340
          %v7878 = vmax.f32 %v7750, %v7349
          %v7879 = vmax.f32 %v7751, %v7358
          %v7880 = vmax.f32 %v7752, %v7367
          %v7881 = vmax.f32 %v7753, %v7376
          %v7882 = vmax.f32 %v7754, %v7385
          %v7883 = vmax.f32 %v7755, %v7394
          %v7884 = vmax.f32 %v7756, %v7403
          %v7885 = vmax.f32 %v7757, %v7412
          %v7886 = vmax.f32 %v7758, %v7421
          %v7887 = vmax.f32 %v7759, %v7430
          %v7888 = vmax.f32 %v7760, %v7439
          %v7889 = vmax.f32 %v7761, %v7448
          %v7890 = vmax.f32 %v7762, %v7457
          %v7891 = vmax.f32 %v7763, %v7466
          %v7892 = vmax.f32 %v7764, %v7475
          %v7893 = vmax.f32 %v7765, %v7484
          %v7894 = vmax.f32 %v7766, %v7493
          %v7895 = vmax.f32 %v7767, %v7502
          %vm7896 = vcmask 7168
          %7897 = vst.msk [vmem:[%s308] sm:$0xff] %vm7896, %v7768
          %7898 = vst.msk [vmem:[%s308 + $0x8] sm:$0xff] %vm7896, %v7769
          %7899 = vst.msk [vmem:[%s308 + $0x10] sm:$0xff] %vm7896, %v7770
          %7900 = vst.msk [vmem:[%s308 + $0x18] sm:$0xff] %vm7896, %v7771
          %7901 = vst.msk [vmem:[%s308 + $0x20] sm:$0xff] %vm7896, %v7772
          %7902 = vst.msk [vmem:[%s308 + $0x28] sm:$0xff] %vm7896, %v7773
          %7903 = vst.msk [vmem:[%s308 + $0x30] sm:$0xff] %vm7896, %v7774
          %7904 = vst.msk [vmem:[%s308 + $0x38] sm:$0xff] %vm7896, %v7775
          %7905 = vst.msk [vmem:[%s308 + $0x40] sm:$0xff] %vm7896, %v7776
          %7906 = vst.msk [vmem:[%s308 + $0x48] sm:$0xff] %vm7896, %v7777
          %7907 = vst.msk [vmem:[%s308 + $0x50] sm:$0xff] %vm7896, %v7778
          %7908 = vst.msk [vmem:[%s308 + $0x58] sm:$0xff] %vm7896, %v7779
          %7909 = vst.msk [vmem:[%s308 + $0x60] sm:$0xff] %vm7896, %v7780
          %7910 = vst.msk [vmem:[%s308 + $0x68] sm:$0xff] %vm7896, %v7781
          %7911 = vst.msk [vmem:[%s308 + $0x70] sm:$0xff] %vm7896, %v7782
          %7912 = vst.msk [vmem:[%s308 + $0x78] sm:$0xff] %vm7896, %v7783
          %7913 = vst.msk [vmem:[%s308 + $0x80] sm:$0xff] %vm7896, %v7784
          %7914 = vst.msk [vmem:[%s308 + $0x88] sm:$0xff] %vm7896, %v7785
          %7915 = vst.msk [vmem:[%s308 + $0x90] sm:$0xff] %vm7896, %v7786
          %7916 = vst.msk [vmem:[%s308 + $0x98] sm:$0xff] %vm7896, %v7787
          %7917 = vst.msk [vmem:[%s308 + $0xa0] sm:$0xff] %vm7896, %v7788
          %7918 = vst.msk [vmem:[%s308 + $0xa8] sm:$0xff] %vm7896, %v7789
          %7919 = vst.msk [vmem:[%s308 + $0xb0] sm:$0xff] %vm7896, %v7790
          %7920 = vst.msk [vmem:[%s308 + $0xb8] sm:$0xff] %vm7896, %v7791
          %7921 = vst.msk [vmem:[%s308 + $0xc0] sm:$0xff] %vm7896, %v7792
          %7922 = vst.msk [vmem:[%s308 + $0xc8] sm:$0xff] %vm7896, %v7793
          %7923 = vst.msk [vmem:[%s308 + $0xd0] sm:$0xff] %vm7896, %v7794
          %7924 = vst.msk [vmem:[%s308 + $0xd8] sm:$0xff] %vm7896, %v7795
          %7925 = vst.msk [vmem:[%s308 + $0xe0] sm:$0xff] %vm7896, %v7796
          %7926 = vst.msk [vmem:[%s308 + $0xe8] sm:$0xff] %vm7896, %v7797
          %7927 = vst.msk [vmem:[%s308 + $0xf0] sm:$0xff] %vm7896, %v7798
          %7928 = vst.msk [vmem:[%s308 + $0xf8] sm:$0xff] %vm7896, %v7799
          %7929 = vst.msk [vmem:[%s308 + $0x100] sm:$0xff] %vm7896, %v7800
          %7930 = vst.msk [vmem:[%s308 + $0x108] sm:$0xff] %vm7896, %v7801
          %7931 = vst.msk [vmem:[%s308 + $0x110] sm:$0xff] %vm7896, %v7802
          %7932 = vst.msk [vmem:[%s308 + $0x118] sm:$0xff] %vm7896, %v7803
          %7933 = vst.msk [vmem:[%s308 + $0x120] sm:$0xff] %vm7896, %v7804
          %7934 = vst.msk [vmem:[%s308 + $0x128] sm:$0xff] %vm7896, %v7805
          %7935 = vst.msk [vmem:[%s308 + $0x130] sm:$0xff] %vm7896, %v7806
          %7936 = vst.msk [vmem:[%s308 + $0x138] sm:$0xff] %vm7896, %v7807
          %7937 = vst.msk [vmem:[%s308 + $0x140] sm:$0xff] %vm7896, %v7808
          %7938 = vst.msk [vmem:[%s308 + $0x148] sm:$0xff] %vm7896, %v7809
          %7939 = vst.msk [vmem:[%s308 + $0x150] sm:$0xff] %vm7896, %v7810
          %7940 = vst.msk [vmem:[%s308 + $0x158] sm:$0xff] %vm7896, %v7811
          %7941 = vst.msk [vmem:[%s308 + $0x160] sm:$0xff] %vm7896, %v7812
          %7942 = vst.msk [vmem:[%s308 + $0x168] sm:$0xff] %vm7896, %v7813
          %7943 = vst.msk [vmem:[%s308 + $0x170] sm:$0xff] %vm7896, %v7814
          %7944 = vst.msk [vmem:[%s308 + $0x178] sm:$0xff] %vm7896, %v7815
          %7945 = vst.msk [vmem:[%s308 + $0x180] sm:$0xff] %vm7896, %v7816
          %7946 = vst.msk [vmem:[%s308 + $0x188] sm:$0xff] %vm7896, %v7817
          %7947 = vst.msk [vmem:[%s308 + $0x190] sm:$0xff] %vm7896, %v7818
          %7948 = vst.msk [vmem:[%s308 + $0x198] sm:$0xff] %vm7896, %v7819
          %7949 = vst.msk [vmem:[%s308 + $0x1a0] sm:$0xff] %vm7896, %v7820
          %7950 = vst.msk [vmem:[%s308 + $0x1a8] sm:$0xff] %vm7896, %v7821
          %7951 = vst.msk [vmem:[%s308 + $0x1b0] sm:$0xff] %vm7896, %v7822
          %7952 = vst.msk [vmem:[%s308 + $0x1b8] sm:$0xff] %vm7896, %v7823
          %7953 = vst.msk [vmem:[%s308 + $0x1c0] sm:$0xff] %vm7896, %v7824
          %7954 = vst.msk [vmem:[%s308 + $0x1c8] sm:$0xff] %vm7896, %v7825
          %7955 = vst.msk [vmem:[%s308 + $0x1d0] sm:$0xff] %vm7896, %v7826
          %7956 = vst.msk [vmem:[%s308 + $0x1d8] sm:$0xff] %vm7896, %v7827
          %7957 = vst.msk [vmem:[%s308 + $0x1e0] sm:$0xff] %vm7896, %v7828
          %7958 = vst.msk [vmem:[%s308 + $0x1e8] sm:$0xff] %vm7896, %v7829
          %7959 = vst.msk [vmem:[%s308 + $0x1f0] sm:$0xff] %vm7896, %v7830
          %7960 = vst.msk [vmem:[%s308 + $0x1f8] sm:$0xff] %vm7896, %v7831
          %7961 = vst.msk [vmem:[%s308 + $0x200] sm:$0xff] %vm7896, %v7832
          %7962 = vst.msk [vmem:[%s308 + $0x208] sm:$0xff] %vm7896, %v7833
          %7963 = vst.msk [vmem:[%s308 + $0x210] sm:$0xff] %vm7896, %v7834
          %7964 = vst.msk [vmem:[%s308 + $0x218] sm:$0xff] %vm7896, %v7835
          %7965 = vst.msk [vmem:[%s308 + $0x220] sm:$0xff] %vm7896, %v7836
          %7966 = vst.msk [vmem:[%s308 + $0x228] sm:$0xff] %vm7896, %v7837
          %7967 = vst.msk [vmem:[%s308 + $0x230] sm:$0xff] %vm7896, %v7838
          %7968 = vst.msk [vmem:[%s308 + $0x238] sm:$0xff] %vm7896, %v7839
          %7969 = vst.msk [vmem:[%s308 + $0x240] sm:$0xff] %vm7896, %v7840
          %7970 = vst.msk [vmem:[%s308 + $0x248] sm:$0xff] %vm7896, %v7841
          %7971 = vst.msk [vmem:[%s308 + $0x250] sm:$0xff] %vm7896, %v7842
          %7972 = vst.msk [vmem:[%s308 + $0x258] sm:$0xff] %vm7896, %v7843
          %7973 = vst.msk [vmem:[%s308 + $0x260] sm:$0xff] %vm7896, %v7844
          %7974 = vst.msk [vmem:[%s308 + $0x268] sm:$0xff] %vm7896, %v7845
          %7975 = vst.msk [vmem:[%s308 + $0x270] sm:$0xff] %vm7896, %v7846
          %7976 = vst.msk [vmem:[%s308 + $0x278] sm:$0xff] %vm7896, %v7847
          %7977 = vst.msk [vmem:[%s308 + $0x280] sm:$0xff] %vm7896, %v7848
          %7978 = vst.msk [vmem:[%s308 + $0x288] sm:$0xff] %vm7896, %v7849
          %7979 = vst.msk [vmem:[%s308 + $0x290] sm:$0xff] %vm7896, %v7850
          %7980 = vst.msk [vmem:[%s308 + $0x298] sm:$0xff] %vm7896, %v7851
          %7981 = vst.msk [vmem:[%s308 + $0x2a0] sm:$0xff] %vm7896, %v7852
          %7982 = vst.msk [vmem:[%s308 + $0x2a8] sm:$0xff] %vm7896, %v7853
          %7983 = vst.msk [vmem:[%s308 + $0x2b0] sm:$0xff] %vm7896, %v7854
          %7984 = vst.msk [vmem:[%s308 + $0x2b8] sm:$0xff] %vm7896, %v7855
          %7985 = vst.msk [vmem:[%s308 + $0x2c0] sm:$0xff] %vm7896, %v7856
          %7986 = vst.msk [vmem:[%s308 + $0x2c8] sm:$0xff] %vm7896, %v7857
          %7987 = vst.msk [vmem:[%s308 + $0x2d0] sm:$0xff] %vm7896, %v7858
          %7988 = vst.msk [vmem:[%s308 + $0x2d8] sm:$0xff] %vm7896, %v7859
          %7989 = vst.msk [vmem:[%s308 + $0x2e0] sm:$0xff] %vm7896, %v7860
          %7990 = vst.msk [vmem:[%s308 + $0x2e8] sm:$0xff] %vm7896, %v7861
          %7991 = vst.msk [vmem:[%s308 + $0x2f0] sm:$0xff] %vm7896, %v7862
          %7992 = vst.msk [vmem:[%s308 + $0x2f8] sm:$0xff] %vm7896, %v7863
          %7993 = vst.msk [vmem:[%s308 + $0x300] sm:$0xff] %vm7896, %v7864
          %7994 = vst.msk [vmem:[%s308 + $0x308] sm:$0xff] %vm7896, %v7865
          %7995 = vst.msk [vmem:[%s308 + $0x310] sm:$0xff] %vm7896, %v7866
          %7996 = vst.msk [vmem:[%s308 + $0x318] sm:$0xff] %vm7896, %v7867
          %7997 = vst.msk [vmem:[%s308 + $0x320] sm:$0xff] %vm7896, %v7868
          %7998 = vst.msk [vmem:[%s308 + $0x328] sm:$0xff] %vm7896, %v7869
          %7999 = vst.msk [vmem:[%s308 + $0x330] sm:$0xff] %vm7896, %v7870
          %8000 = vst.msk [vmem:[%s308 + $0x338] sm:$0xff] %vm7896, %v7871
          %8001 = vst.msk [vmem:[%s308 + $0x340] sm:$0xff] %vm7896, %v7872
          %8002 = vst.msk [vmem:[%s308 + $0x348] sm:$0xff] %vm7896, %v7873
          %8003 = vst.msk [vmem:[%s308 + $0x350] sm:$0xff] %vm7896, %v7874
          %8004 = vst.msk [vmem:[%s308 + $0x358] sm:$0xff] %vm7896, %v7875
          %8005 = vst.msk [vmem:[%s308 + $0x360] sm:$0xff] %vm7896, %v7876
          %8006 = vst.msk [vmem:[%s308 + $0x368] sm:$0xff] %vm7896, %v7877
          %8007 = vst.msk [vmem:[%s308 + $0x370] sm:$0xff] %vm7896, %v7878
          %8008 = vst.msk [vmem:[%s308 + $0x378] sm:$0xff] %vm7896, %v7879
          %8009 = vst.msk [vmem:[%s308 + $0x380] sm:$0xff] %vm7896, %v7880
          %8010 = vst.msk [vmem:[%s308 + $0x388] sm:$0xff] %vm7896, %v7881
          %8011 = vst.msk [vmem:[%s308 + $0x390] sm:$0xff] %vm7896, %v7882
          %8012 = vst.msk [vmem:[%s308 + $0x398] sm:$0xff] %vm7896, %v7883
          %8013 = vst.msk [vmem:[%s308 + $0x3a0] sm:$0xff] %vm7896, %v7884
          %8014 = vst.msk [vmem:[%s308 + $0x3a8] sm:$0xff] %vm7896, %v7885
          %8015 = vst.msk [vmem:[%s308 + $0x3b0] sm:$0xff] %vm7896, %v7886
          %8016 = vst.msk [vmem:[%s308 + $0x3b8] sm:$0xff] %vm7896, %v7887
          %8017 = vst.msk [vmem:[%s308 + $0x3c0] sm:$0xff] %vm7896, %v7888
          %8018 = vst.msk [vmem:[%s308 + $0x3c8] sm:$0xff] %vm7896, %v7889
          %8019 = vst.msk [vmem:[%s308 + $0x3d0] sm:$0xff] %vm7896, %v7890
          %8020 = vst.msk [vmem:[%s308 + $0x3d8] sm:$0xff] %vm7896, %v7891
          %8021 = vst.msk [vmem:[%s308 + $0x3e0] sm:$0xff] %vm7896, %v7892
          %8022 = vst.msk [vmem:[%s308 + $0x3e8] sm:$0xff] %vm7896, %v7893
          %8023 = vst.msk [vmem:[%s308 + $0x3f0] sm:$0xff] %vm7896, %v7894
          %8024 = vst.msk [vmem:[%s308 + $0x3f8] sm:$0xff] %vm7896, %v7895
        $region52: #{tpu_custom_call.1} parent=39 // pred_fallthru
          _
        %s8025 = sand.u32 %s156, 1
        %s8026 = scalar_lea.sflag [#allocation4], %s8025
        %s8027 = sand.u32 %s156, 1
        %s8028 = smul.addr %s8027, 1024
        %s8029 = scalar_lea.vmem [#allocation5], %s8028
        %p8030 = scmp.lt.s32.totalorder %s26, 1
        %s8031 = scalar_select %p8030, %s26, 1
        %s8032 = smul.addr %s8031, 128
        %s8033 = smul.addr %s8032, 8
        %s8034 = scalar_lea.vmem %s6, %s8033
        // Predicated region
        $region53: #{tpu_custom_call.1} parent=39 // pred_check
          %p8035 = pneg %p166
        $region54: #{tpu_custom_call.1} parent=39 // pred_check_branch
          %8037 = sbr.rel (%p8035) target = $region56
        $region55: #{tpu_custom_call.1} parent=39 // pred_region
          %s8038 = smul.u32 8, %s27
          %s8040 = ssub.s32 16384, 16384
          %8041 = vsyncadd %s8026, %s8040
          %s8042 = smul.addr %s26, 128
          %s8043 = sadd.s32 %s8038, %s8042
          %s8044 = smul.addr %s8043, 128
          %s8045 = scalar_lea.hbm %s5, %s8044
          %s8046 = sshll.u32 %s8029, 4
          %s8047 = int_to_ptr.vmem [resolvable:$true] %s8046
          %8052 = dma.vmem_to_hbm [thread:$0]  %s8047, 16384, %s8045, %s8026, 1024, 1024, 64
        $region56: #{tpu_custom_call.1} parent=39 // pred_fallthru
          _
        // Predicated region
        $region57: #{tpu_custom_call.1} parent=39 // pred_check
          %p8053 = pneg %p192
        $region58: #{tpu_custom_call.1} parent=39 // pred_check_branch
          %8055 = sbr.rel (%p8053) target = $region60
        $region59: #{tpu_custom_call.1} parent=39 // pred_region
          _
        $region60: #{tpu_custom_call.1} parent=39 // pred_fallthru
          _
      $region40: #{tpu_custom_call.1} parent=5 // pred_fallthru
        _
      %p8056 = scmp.le.s32.totalorder 2, %s17
      // Predicated region
      $region61: #{tpu_custom_call.1} parent=5 // pred_check
        %p8057 = pneg %p8056
      $region62: #{tpu_custom_call.1} parent=5 // pred_check_branch
        %8059 = sbr.rel (%p8057) target = $region64
      $region63: #{tpu_custom_call.1} parent=5 // pred_region
        %s8060 = ssub.s32 %s17, 2
        // Predicated region
        $region65: #{tpu_custom_call.1} parent=63 // pred_check
          %p8061 = pneg %p172
        $region66: #{tpu_custom_call.1} parent=63 // pred_check_branch
          %8063 = sbr.rel (%p8061) target = $region68
        $region67: #{tpu_custom_call.1} parent=63 // pred_region
          %s8064 = sand.u32 %s157, 1
          %s8065 = scalar_lea.sflag [#allocation4], %s8064
          %s8066 = sand.u32 %s157, 1
          %s8067 = smul.addr %s8066, 1024
          %s8068 = scalar_lea.vmem [#allocation5], %s8067
          %8069 = dma.done %s8065, 16384
        $region68: #{tpu_custom_call.1} parent=63 // pred_fallthru
          _
        // Predicated region
        $region69: #{tpu_custom_call.1} parent=63 // pred_check
          %p8070 = pneg %p198
        $region70: #{tpu_custom_call.1} parent=63 // pred_check_branch
          %8072 = sbr.rel (%p8070) target = $region72
        $region71: #{tpu_custom_call.1} parent=63 // pred_region
          %p8073 = scmp.lt.s32.totalorder %s28, 1
          %s8074 = scalar_select %p8073, %s28, 1
          %s8075 = smul.addr %s8074, 128
          %s8076 = smul.addr %s8075, 8
          %s8077 = scalar_lea.vmem %s6, %s8076
        $region72: #{tpu_custom_call.1} parent=63 // pred_fallthru
          _
      $region64: #{tpu_custom_call.1} parent=5 // pred_fallthru
        _
    $region6: #{tpu_custom_call.1} parent=1 // loop_footer
      %s21 = sadd.s32 1, %s17
    $region7: #{tpu_custom_call.1} parent=1 // loop_footer_branch
      %16 = sbr.rel target = $region3
    $region8: #{tpu_custom_call.1} parent=1 // loop_exit
      _
    %8078 = vsyncpa [#allocation3], 1
    %s8079 = scalar_lea.sflag [#allocation3], 1
    %8080 = vsyncpa %s8079, 1
    %8081 = vsyncpa [#allocation4], 1
    %s8082 = scalar_lea.sflag [#allocation4], 1
    %8083 = vsyncpa %s8082, 1

</llo_original>
